<compile_context>
chip_gen: v6e
topology: v6e:2x2x1
jax: 0.10.0
libtpu: 0.0.40
codegen_flags: <defaults>
</compile_context>

<pallas_src>
import numpy as np
import jax
import jax.numpy as jnp
from jax.experimental import pallas as pl
from jax.experimental.pallas import tpu as pltpu

H = W = 64                 # sphere_size=64 (EnvAutoEncoder(vector_size=1024, sphere_size=64))
N = H * W                  # 4096 flat pixels per image (lane-dense last dim)
C = 3
INTENSITY_TARGET = 0.3


def _gauss3_weights():
    """torchvision gaussian_blur(kernel_size=3, sigma=1) 1-D taps (k0, k1, k0)."""
    x = np.linspace(-1.0, 1.0, 3)
    k = np.exp(-0.5 * (x / 1.0) ** 2)
    k = k / k.sum()
    return float(k[0]), float(k[1])


K0, K1 = _gauss3_weights()


# ---------------- colour-space helpers (used in-kernel and in the reference) --------
def _linrgb2srgb(x):
    # TODO(synk): exact linrgb2srgb of the source repo is not provided; standard sRGB OETF used.
    xs = jnp.maximum(x, 1e-12)
    srgb = 1.055 * jnp.exp(jnp.log(xs) * (1.0 / 2.4)) - 0.055
    return jnp.where(x <= 0.0031308, 12.92 * x, srgb)


def _srgb2linrgb(x):
    xs = jnp.maximum((x + 0.055) / 1.055, 1e-12)
    lin = jnp.exp(jnp.log(xs) * 2.4)
    return jnp.where(x <= 0.04045, x / 12.92, lin)


# ---------------------------------- the Pallas kernel -------------------------------
def _lighting_kernel(x_ref, w_hdr_ref, b_hdr_ref, w_ldr_ref, b_ldr_ref,
                     mask_ref, edge_ref,
                     untex_hdr_ref, tex_ldr_ref, tex_hdr_ref):
    # Lane-dense per-channel planes, (TB, N) each (128-aligned lane slices).
    xs = [x_ref[:, pl.ds(c * N, N)] for c in range(C)]
    ms = [mask_ref[:, pl.ds(c * N, N)] for c in range(C)]     # (1, N) each
    edge_col = edge_ref[pl.ds(0, 1), :]                       # (1, N): w in {0, W-1}
    edge_row = edge_ref[pl.ds(1, 1), :]                       # (1, N): h in {0, H-1}

    # --- hdr_net stand-in: 1x1 channel-mixing conv (weights/bias in SMEM) ---
    # TODO(synk): real get_hr_net()/EnvAutoEncoder decoder architecture is not in the
    # provided source; a deterministic 1x1-conv stand-in is used instead.
    untex = []
    for o in range(C):
        acc = (w_hdr_ref[o, 0] * xs[0] + w_hdr_ref[o, 1] * xs[1]
               + w_hdr_ref[o, 2] * xs[2] + b_hdr_ref[o])
        # forward: hdr_net(batch) * mask_sp ; exp(.) - 1
        untex.append(jnp.exp(acc * ms[o]) - 1.0)

    # --- adjust_intensity: per-image mean over channels and pixels ---
    mean_all = jnp.sum(untex[0] + untex[1] + untex[2],
                       axis=1, keepdims=True) * (1.0 / (C * N))        # (TB, 1)
    mult = INTENSITY_TARGET / (mean_all + 1e-4)                        # (TB, 1)
    inv_mult = (mean_all + 1e-4) * (1.0 / INTENSITY_TARGET)            # == 1 / mult

    # --- tonemapping: adjust + clip + linrgb2srgb ---
    untex_ldr = [_linrgb2srgb(jnp.clip(u * mult, 0.0, 1.0)) for u in untex]

    # --- ldr_net stand-in: 1x1 channel-mixing conv ---
    # TODO(synk): pix2pix.define_G(netG='local', ngf=16) architecture is not in the
    # provided source; a deterministic 1x1-conv stand-in is used instead.
    tex_ldr = []
    for o in range(C):
        acc = (w_ldr_ref[o, 0] * untex_ldr[0] + w_ldr_ref[o, 1] * untex_ldr[1]
               + w_ldr_ref[o, 2] * untex_ldr[2] + b_ldr_ref[o])
        tex_ldr.append(jnp.clip(acc, 0.0, 1.0) * ms[o])

    # --- combine_ldr_and_hdr ---
    adj = [u * mult for u in untex]                        # adjust_intensity(untex_hdr)
    pix_mean = (adj[0] + adj[1] + adj[2]) * (1.0 / 3.0)
    low1 = (pix_mean < 1.0).astype(jnp.float32)            # (TB, N), identical per channel

    # gaussian_blur(kernel_size=3, sigma=1, reflect pad) as two separable 3-tap
    # passes using lane rotations in the flat (h*W + w) layout.  `fix` removes the
    # neighbour value that wrapped across the row/image boundary, and the reflect
    # pixel is recovered by doubling the in-bounds neighbour; the construction is
    # independent of the roll direction convention.
    def blur_pass(v, shift, edge):
        base = pltpu.roll(v, shift, axis=1) + pltpu.roll(v, N - shift, axis=1)
        ve = v * edge
        fix = pltpu.roll(ve, shift, axis=1) + pltpu.roll(ve, N - shift, axis=1)
        nsum = base + edge * (base - 2.0 * fix)            # == 2*(base-fix) at edges
        return K1 * v + K0 * nsum

    blurred = blur_pass(low1, 1, edge_col)                 # along w (within each row)
    blurred = blur_pass(blurred, W, edge_row)              # along h (stride W in flat)
    low_base = blurred * low1

    for c in range(C):
        lowpart = low_base * ms[c]                                          # (TB, N)
        inv_low_sum = 1.0 / jnp.sum(lowpart, axis=1, keepdims=True)         # (TB, 1)
        target_mean = jnp.sum(jnp.clip(adj[c], 0.0, 1.0) * lowpart,
                              axis=1, keepdims=True) * inv_low_sum
        tex_low = _srgb2linrgb(tex_ldr[c]) * lowpart
        cur_mean = jnp.sum(tex_low, axis=1, keepdims=True) * inv_low_sum
        scale = target_mean / (cur_mean + 1e-6) * inv_mult                  # (TB, 1)
        tex_hdr_c = (1.0 - lowpart) * untex[c] + tex_low * scale

        sl = pl.ds(c * N, N)
        untex_hdr_ref[:, sl] = untex[c]
        tex_ldr_ref[:, sl] = tex_ldr[c]
        tex_hdr_ref[:, sl] = tex_hdr_c


# ---------------------------------- wrapper -----------------------------------------
def lighting_estimator_forward(batch, w_hdr, b_hdr, w_ldr, b_ldr, mask_sp, *,
                               batch_tile=8):
    B, c_, h_, w_ = batch.shape
    assert (c_, h_, w_) == (C, H, W)

    # Lane-dense, contiguous (free) reshape: (B, 3, 64, 64) -> (B, 12288).
    x2 = batch.reshape(B, C * N).astype(jnp.float32)
    mask2 = mask_sp.reshape(1, C * N).astype(jnp.float32)

    # Batch tile: keep the second-minor block dim (8,128)-aligned -> tb is a multiple
    # of 8 (batch padded up) unless B < 8, in which case the block spans the full
    # batch dim.  With B >= 2*tb the grid has >=2 "parallel" steps (megacore).
    if B >= 8:
        tb = max(8, (min(batch_tile, B) // 8) * 8)
    else:
        tb = B
    n_steps = -(-B // tb)
    Bp = n_steps * tb
    if Bp != B:
        x2 = jnp.pad(x2, ((0, Bp - B), (0, 0)))

    # Reflect-edge masks for the in-kernel separable blur (flat h*W + w layout).
    jj = np.arange(N) % W
    ii = np.arange(N) // W
    edge = np.stack([((jj == 0) | (jj == W - 1)).astype(np.float32),
                     ((ii == 0) | (ii == H - 1)).astype(np.float32)], axis=0)
    edge = jnp.asarray(edge)                                   # (2, N)

    smem = pl.BlockSpec(memory_space=pltpu.MemorySpace.SMEM)
    img_spec = pl.BlockSpec((tb, C * N), lambda b: (b, 0))
    out_sd = jax.ShapeDtypeStruct((Bp, C * N), jnp.float32)

    grid_spec = pltpu.PrefetchScalarGridSpec(
        num_scalar_prefetch=0,
        grid=(n_steps,),
        in_specs=[
            img_spec,                                          # batch images
            smem, smem, smem, smem,                            # tiny conv params
            pl.BlockSpec((1, C * N), lambda b: (0, 0)),        # sphere mask
            pl.BlockSpec((2, N), lambda b: (0, 0)),            # blur edge masks
        ],
        out_specs=[img_spec, img_spec, img_spec],
    )

    npx = Bp * C * N
    cost = pl.CostEstimate(flops=80 * npx, transcendentals=5 * npx,
                           bytes_accessed=16 * npx)

    outs = pl.pallas_call(
        _lighting_kernel,
        out_shape=[out_sd, out_sd, out_sd],
        grid_spec=grid_spec,
        compiler_params=pltpu.CompilerParams(
            dimension_semantics=("parallel",),
            vmem_limit_bytes=48 * 1024 * 1024),
        cost_estimate=cost,
    )(x2, w_hdr, b_hdr, w_ldr, b_ldr, mask2, edge)

    return tuple(o[:B].reshape(B, C, H, W) for o in outs)


# ---------------------------------- host-side helpers -------------------------------
def make_blur_matrix(n, sigma=1.0, ksize=3):
    """1-D gaussian blur (torchvision convention, reflect pad) as an (n, n) band matrix.
    Used only by the pure-JAX reference (independent of the in-kernel roll-based blur)."""
    half = (ksize - 1) * 0.5
    x = np.linspace(-half, half, ksize)
    k = np.exp(-0.5 * (x / sigma) ** 2)
    k = k / k.sum()

    def reflect(i):
        if i < 0:
            return -i
        if i >= n:
            return 2 * n - 2 - i
        return i

    A = np.zeros((n, n), dtype=np.float32)
    for i in range(n):
        for d in range(ksize):
            A[i, reflect(i + d - ksize // 2)] += k[d]
    return jnp.asarray(A)


def make_sphere_mask(n):
    # TODO(synk): generate_sphere_mask_and_normal() source not provided; unit-disc
    # mask on a pixel-centered [-1, 1] grid used as a deterministic stand-in.
    u = (np.arange(n, dtype=np.float32) + 0.5) / n * 2.0 - 1.0
    m = ((u[None, :] ** 2 + u[:, None] ** 2) <= 1.0).astype(np.float32)
    return jnp.asarray(np.broadcast_to(m, (3, n, n)).copy())


# ---------------------------------- pure-JAX reference ------------------------------
def reference_forward(batch, w_hdr, b_hdr, w_ldr, b_ldr, mask_sp, blur_mat):
    def conv1x1(x, w, b):
        return jnp.einsum('oc,bchw->bohw', w, x) + b[None, :, None, None]

    B = batch.shape[0]
    mask = mask_sp[None]
    untex_hdr = jnp.exp(conv1x1(batch, w_hdr, b_hdr) * mask) - 1.0

    intensity = untex_hdr.reshape(B, 3, -1).mean(axis=1, keepdims=True)
    cur = intensity.mean(axis=2, keepdims=True).reshape(B, 1, 1, 1)
    mult = INTENSITY_TARGET / (cur + 1e-4)

    untex_ldr = _linrgb2srgb(jnp.clip(untex_hdr * mult, 0.0, 1.0))
    tex_ldr = jnp.clip(conv1x1(untex_ldr, w_ldr, b_ldr), 0.0, 1.0) * mask

    adj = untex_hdr * mult
    low = (adj.mean(axis=1, keepdims=True) < 1.0).astype(jnp.float32)
    low = jnp.broadcast_to(low, untex_hdr.shape)
    blurred = jnp.einsum('ij,bcjk,lk->bcil', blur_mat, low, blur_mat)
    low = blurred * low * mask
    untex_low = jnp.clip(adj, 0.0, 1.0) * low
    low_sum = low.reshape(B, 3, -1).sum(axis=2)
    target = untex_low.reshape(B, 3, -1).sum(axis=2) / low_sum
    tex_low = _srgb2linrgb(tex_ldr) * low
    cur_mean = tex_low.reshape(B, 3, -1).sum(axis=2) / low_sum
    tex_low_adj = tex_low * target[:, :, None, None] / (cur_mean[:, :, None, None] + 1e-6)
    tex_hdr = (1.0 - low) * untex_hdr + tex_low_adj / mult
    return untex_hdr, tex_ldr, tex_hdr


# ---------------------------------- main --------------------------------------------
if __name__ == "__main__":
    key = jax.random.PRNGKey(0)
    kx, kw1, kw2 = jax.random.split(key, 3)

    B = 16                              # 2 grid steps of 8 images each
    batch = jax.random.normal(kx, (B, 3, H, W), dtype=jnp.float32) * 0.5
    w_hdr = jax.random.normal(kw1, (3, 3), dtype=jnp.float32) * 0.3
    b_hdr = jnp.array([0.20, 0.30, 0.25], dtype=jnp.float32)
    w_ldr = jax.random.normal(kw2, (3, 3), dtype=jnp.float32) * 0.3
    b_ldr = jnp.array([0.30, 0.20, 0.25], dtype=jnp.float32)
    mask_sp = make_sphere_mask(H)

    outs = lighting_estimator_forward(batch, w_hdr, b_hdr, w_ldr, b_ldr, mask_sp)
    outs = jax.block_until_ready(outs)

    blur_mat = make_blur_matrix(H)
    refs = reference_forward(batch, w_hdr, b_hdr, w_ldr, b_ldr, mask_sp, blur_mat)
    for name, o, r in zip(("untex_hdr", "tex_ldr", "tex_hdr"), outs, refs):
        o = np.asarray(o)
        r = np.asarray(r)
        assert o.shape == (B, 3, H, W), name
        assert np.isfinite(o).all(), name
        close_frac = np.mean(np.isclose(o, r, rtol=2e-3, atol=2e-3))
        assert close_frac > 0.99, (name, close_frac)

    print("KERNEL_OK")
</pallas_src>

<mosaic_0001>
module attributes {stable_mosaic.version = 11 : i64} {
  func.func @_lighting_kernel(%arg0: i32, %arg1: memref<8x12288xf32, #tpu.memory_space<vmem>>, %arg2: memref<3x3xf32, #tpu.memory_space<smem>>, %arg3: memref<3xf32, #tpu.memory_space<smem>>, %arg4: memref<3x3xf32, #tpu.memory_space<smem>>, %arg5: memref<3xf32, #tpu.memory_space<smem>>, %arg6: memref<1x12288xf32, #tpu.memory_space<vmem>>, %arg7: memref<2x4096xf32, #tpu.memory_space<vmem>>, %arg8: memref<8x12288xf32, #tpu.memory_space<vmem>>, %arg9: memref<8x12288xf32, #tpu.memory_space<vmem>>, %arg10: memref<8x12288xf32, #tpu.memory_space<vmem>>) attributes {dimension_semantics = [#tpu.dimension_semantics<parallel>], iteration_bounds = array<i64: 2>, scalar_prefetch = 0 : i64, scratch_operands = 0 : i64, tpu.core_type = #tpu.core_type<tc>, window_params = [{transform_indices = @transform_0, window_bounds = array<i64: 8, 12288>}, {transform_indices = @transform_1, window_bounds = array<i64: 3, 3>}, {transform_indices = @transform_2, window_bounds = array<i64: 3>}, {transform_indices = @transform_3, window_bounds = array<i64: 3, 3>}, {transform_indices = @transform_4, window_bounds = array<i64: 3>}, {pipeline_mode = #tpu.pipeline_mode<synchronous>, transform_indices = @transform_5, window_bounds = array<i64: 1, 12288>}, {pipeline_mode = #tpu.pipeline_mode<synchronous>, transform_indices = @transform_6, window_bounds = array<i64: 2, 4096>}, {transform_indices = @transform_7, window_bounds = array<i64: 8, 12288>}, {transform_indices = @transform_8, window_bounds = array<i64: 8, 12288>}, {transform_indices = @transform_9, window_bounds = array<i64: 8, 12288>}]} {
    %c0 = arith.constant 0 : index
    %c0_0 = arith.constant 0 : index
    %0 = vector.load %arg1[%c0, %c0_0] : memref<8x12288xf32, #tpu.memory_space<vmem>>, vector<8x4096xf32>
    %c0_1 = arith.constant 0 : index
    %c4096 = arith.constant 4096 : index
    %1 = vector.load %arg1[%c0_1, %c4096] : memref<8x12288xf32, #tpu.memory_space<vmem>>, vector<8x4096xf32>
    %c0_2 = arith.constant 0 : index
    %c8192 = arith.constant 8192 : index
    %2 = vector.load %arg1[%c0_2, %c8192] : memref<8x12288xf32, #tpu.memory_space<vmem>>, vector<8x4096xf32>
    %c0_3 = arith.constant 0 : index
    %c0_4 = arith.constant 0 : index
    %3 = vector.load %arg6[%c0_3, %c0_4] : memref<1x12288xf32, #tpu.memory_space<vmem>>, vector<1x4096xf32>
    %c0_5 = arith.constant 0 : index
    %c4096_6 = arith.constant 4096 : index
    %4 = vector.load %arg6[%c0_5, %c4096_6] : memref<1x12288xf32, #tpu.memory_space<vmem>>, vector<1x4096xf32>
    %c0_7 = arith.constant 0 : index
    %c8192_8 = arith.constant 8192 : index
    %5 = vector.load %arg6[%c0_7, %c8192_8] : memref<1x12288xf32, #tpu.memory_space<vmem>>, vector<1x4096xf32>
    %c0_9 = arith.constant 0 : index
    %c0_10 = arith.constant 0 : index
    %6 = vector.load %arg7[%c0_9, %c0_10] : memref<2x4096xf32, #tpu.memory_space<vmem>>, vector<1x4096xf32>
    %c1 = arith.constant 1 : index
    %c0_11 = arith.constant 0 : index
    %7 = vector.load %arg7[%c1, %c0_11] : memref<2x4096xf32, #tpu.memory_space<vmem>>, vector<1x4096xf32>
    %c0_12 = arith.constant 0 : index
    %c0_13 = arith.constant 0 : index
    %8 = memref.load %arg2[%c0_12, %c0_13] : memref<3x3xf32, #tpu.memory_space<smem>>
    %9 = vector.broadcast %8 : f32 to vector<8x4096xf32>
    %10 = arith.mulf %9, %0 : vector<8x4096xf32>
    %c0_14 = arith.constant 0 : index
    %c1_15 = arith.constant 1 : index
    %11 = memref.load %arg2[%c0_14, %c1_15] : memref<3x3xf32, #tpu.memory_space<smem>>
    %12 = vector.broadcast %11 : f32 to vector<8x4096xf32>
    %13 = arith.mulf %12, %1 : vector<8x4096xf32>
    %14 = arith.addf %10, %13 : vector<8x4096xf32>
    %c0_16 = arith.constant 0 : index
    %c2 = arith.constant 2 : index
    %15 = memref.load %arg2[%c0_16, %c2] : memref<3x3xf32, #tpu.memory_space<smem>>
    %16 = vector.broadcast %15 : f32 to vector<8x4096xf32>
    %17 = arith.mulf %16, %2 : vector<8x4096xf32>
    %18 = arith.addf %14, %17 : vector<8x4096xf32>
    %c0_17 = arith.constant 0 : index
    %19 = memref.load %arg3[%c0_17] : memref<3xf32, #tpu.memory_space<smem>>
    %20 = vector.broadcast %19 : f32 to vector<8x4096xf32>
    %21 = arith.addf %18, %20 : vector<8x4096xf32>
    %22 = vector.broadcast %3 : vector<1x4096xf32> to vector<8x4096xf32>
    %23 = arith.mulf %21, %22 : vector<8x4096xf32>
    %24 = math.exp %23 : vector<8x4096xf32>
    %cst = arith.constant 1.000000e+00 : f32
    %25 = vector.broadcast %cst : f32 to vector<8x4096xf32>
    %26 = arith.subf %24, %25 : vector<8x4096xf32>
    %c1_18 = arith.constant 1 : index
    %c0_19 = arith.constant 0 : index
    %27 = memref.load %arg2[%c1_18, %c0_19] : memref<3x3xf32, #tpu.memory_space<smem>>
    %28 = vector.broadcast %27 : f32 to vector<8x4096xf32>
    %29 = arith.mulf %28, %0 : vector<8x4096xf32>
    %c1_20 = arith.constant 1 : index
    %c1_21 = arith.constant 1 : index
    %30 = memref.load %arg2[%c1_20, %c1_21] : memref<3x3xf32, #tpu.memory_space<smem>>
    %31 = vector.broadcast %30 : f32 to vector<8x4096xf32>
    %32 = arith.mulf %31, %1 : vector<8x4096xf32>
    %33 = arith.addf %29, %32 : vector<8x4096xf32>
    %c1_22 = arith.constant 1 : index
    %c2_23 = arith.constant 2 : index
    %34 = memref.load %arg2[%c1_22, %c2_23] : memref<3x3xf32, #tpu.memory_space<smem>>
    %35 = vector.broadcast %34 : f32 to vector<8x4096xf32>
    %36 = arith.mulf %35, %2 : vector<8x4096xf32>
    %37 = arith.addf %33, %36 : vector<8x4096xf32>
    %c1_24 = arith.constant 1 : index
    %38 = memref.load %arg3[%c1_24] : memref<3xf32, #tpu.memory_space<smem>>
    %39 = vector.broadcast %38 : f32 to vector<8x4096xf32>
    %40 = arith.addf %37, %39 : vector<8x4096xf32>
    %41 = vector.broadcast %4 : vector<1x4096xf32> to vector<8x4096xf32>
    %42 = arith.mulf %40, %41 : vector<8x4096xf32>
    %43 = math.exp %42 : vector<8x4096xf32>
    %cst_25 = arith.constant 1.000000e+00 : f32
    %44 = vector.broadcast %cst_25 : f32 to vector<8x4096xf32>
    %45 = arith.subf %43, %44 : vector<8x4096xf32>
    %c2_26 = arith.constant 2 : index
    %c0_27 = arith.constant 0 : index
    %46 = memref.load %arg2[%c2_26, %c0_27] : memref<3x3xf32, #tpu.memory_space<smem>>
    %47 = vector.broadcast %46 : f32 to vector<8x4096xf32>
    %48 = arith.mulf %47, %0 : vector<8x4096xf32>
    %c2_28 = arith.constant 2 : index
    %c1_29 = arith.constant 1 : index
    %49 = memref.load %arg2[%c2_28, %c1_29] : memref<3x3xf32, #tpu.memory_space<smem>>
    %50 = vector.broadcast %49 : f32 to vector<8x4096xf32>
    %51 = arith.mulf %50, %1 : vector<8x4096xf32>
    %52 = arith.addf %48, %51 : vector<8x4096xf32>
    %c2_30 = arith.constant 2 : index
    %c2_31 = arith.constant 2 : index
    %53 = memref.load %arg2[%c2_30, %c2_31] : memref<3x3xf32, #tpu.memory_space<smem>>
    %54 = vector.broadcast %53 : f32 to vector<8x4096xf32>
    %55 = arith.mulf %54, %2 : vector<8x4096xf32>
    %56 = arith.addf %52, %55 : vector<8x4096xf32>
    %c2_32 = arith.constant 2 : index
    %57 = memref.load %arg3[%c2_32] : memref<3xf32, #tpu.memory_space<smem>>
    %58 = vector.broadcast %57 : f32 to vector<8x4096xf32>
    %59 = arith.addf %56, %58 : vector<8x4096xf32>
    %60 = vector.broadcast %5 : vector<1x4096xf32> to vector<8x4096xf32>
    %61 = arith.mulf %59, %60 : vector<8x4096xf32>
    %62 = math.exp %61 : vector<8x4096xf32>
    %cst_33 = arith.constant 1.000000e+00 : f32
    %63 = vector.broadcast %cst_33 : f32 to vector<8x4096xf32>
    %64 = arith.subf %62, %63 : vector<8x4096xf32>
    %65 = arith.addf %26, %45 : vector<8x4096xf32>
    %66 = arith.addf %65, %64 : vector<8x4096xf32>
    %cst_34 = arith.constant dense<0.000000e+00> : vector<8xf32>
    %67 = vector.multi_reduction <add>, %66, %cst_34 [1] : vector<8x4096xf32> to vector<8xf32>
    %68 = vector.shape_cast %67 : vector<8xf32> to vector<8x1xf32>
    %cst_35 = arith.constant 8.13802107E-5 : f32
    %69 = vector.broadcast %cst_35 : f32 to vector<8x1xf32>
    %70 = arith.mulf %68, %69 : vector<8x1xf32>
    %cst_36 = arith.constant 9.99999974E-5 : f32
    %71 = vector.broadcast %cst_36 : f32 to vector<8x1xf32>
    %72 = arith.addf %70, %71 : vector<8x1xf32>
    %cst_37 = arith.constant 3.000000e-01 : f32
    %73 = vector.broadcast %cst_37 : f32 to vector<8x1xf32>
    %74 = arith.divf %73, %72 : vector<8x1xf32>
    %cst_38 = arith.constant 9.99999974E-5 : f32
    %75 = vector.broadcast %cst_38 : f32 to vector<8x1xf32>
    %76 = arith.addf %70, %75 : vector<8x1xf32>
    %cst_39 = arith.constant 3.33333325 : f32
    %77 = vector.broadcast %cst_39 : f32 to vector<8x1xf32>
    %78 = arith.mulf %76, %77 : vector<8x1xf32>
    %79 = vector.broadcast %74 : vector<8x1xf32> to vector<8x4096xf32>
    %80 = arith.mulf %26, %79 : vector<8x4096xf32>
    %cst_40 = arith.constant 0.000000e+00 : f32
    %cst_41 = arith.constant 1.000000e+00 : f32
    %81 = vector.broadcast %cst_40 : f32 to vector<8x4096xf32>
    %82 = arith.maximumf %81, %80 : vector<8x4096xf32>
    %83 = vector.broadcast %cst_41 : f32 to vector<8x4096xf32>
    %84 = arith.minimumf %83, %82 : vector<8x4096xf32>
    %cst_42 = arith.constant 9.99999996E-13 : f32
    %85 = vector.broadcast %cst_42 : f32 to vector<8x4096xf32>
    %86 = arith.maximumf %84, %85 : vector<8x4096xf32>
    %87 = math.log %86 : vector<8x4096xf32>
    %cst_43 = arith.constant 0.416666657 : f32
    %88 = vector.broadcast %cst_43 : f32 to vector<8x4096xf32>
    %89 = arith.mulf %87, %88 : vector<8x4096xf32>
    %90 = math.exp %89 : vector<8x4096xf32>
    %cst_44 = arith.constant 1.055000e+00 : f32
    %91 = vector.broadcast %cst_44 : f32 to vector<8x4096xf32>
    %92 = arith.mulf %91, %90 : vector<8x4096xf32>
    %cst_45 = arith.constant 5.500000e-02 : f32
    %93 = vector.broadcast %cst_45 : f32 to vector<8x4096xf32>
    %94 = arith.subf %92, %93 : vector<8x4096xf32>
    %cst_46 = arith.constant 3.130800e-03 : f32
    %95 = vector.broadcast %cst_46 : f32 to vector<8x4096xf32>
    %96 = arith.cmpf ole, %84, %95 : vector<8x4096xf32>
    %cst_47 = arith.constant 1.292000e+01 : f32
    %97 = vector.broadcast %cst_47 : f32 to vector<8x4096xf32>
    %98 = arith.mulf %97, %84 : vector<8x4096xf32>
    %99 = arith.select %96, %98, %94 : vector<8x4096xi1>, vector<8x4096xf32>
    %100 = vector.broadcast %74 : vector<8x1xf32> to vector<8x4096xf32>
    %101 = arith.mulf %45, %100 : vector<8x4096xf32>
    %cst_48 = arith.constant 0.000000e+00 : f32
    %cst_49 = arith.constant 1.000000e+00 : f32
    %102 = vector.broadcast %cst_48 : f32 to vector<8x4096xf32>
    %103 = arith.maximumf %102, %101 : vector<8x4096xf32>
    %104 = vector.broadcast %cst_49 : f32 to vector<8x4096xf32>
    %105 = arith.minimumf %104, %103 : vector<8x4096xf32>
    %cst_50 = arith.constant 9.99999996E-13 : f32
    %106 = vector.broadcast %cst_50 : f32 to vector<8x4096xf32>
    %107 = arith.maximumf %105, %106 : vector<8x4096xf32>
    %108 = math.log %107 : vector<8x4096xf32>
    %cst_51 = arith.constant 0.416666657 : f32
    %109 = vector.broadcast %cst_51 : f32 to vector<8x4096xf32>
    %110 = arith.mulf %108, %109 : vector<8x4096xf32>
    %111 = math.exp %110 : vector<8x4096xf32>
    %cst_52 = arith.constant 1.055000e+00 : f32
    %112 = vector.broadcast %cst_52 : f32 to vector<8x4096xf32>
    %113 = arith.mulf %112, %111 : vector<8x4096xf32>
    %cst_53 = arith.constant 5.500000e-02 : f32
    %114 = vector.broadcast %cst_53 : f32 to vector<8x4096xf32>
    %115 = arith.subf %113, %114 : vector<8x4096xf32>
    %cst_54 = arith.constant 3.130800e-03 : f32
    %116 = vector.broadcast %cst_54 : f32 to vector<8x4096xf32>
    %117 = arith.cmpf ole, %105, %116 : vector<8x4096xf32>
    %cst_55 = arith.constant 1.292000e+01 : f32
    %118 = vector.broadcast %cst_55 : f32 to vector<8x4096xf32>
    %119 = arith.mulf %118, %105 : vector<8x4096xf32>
    %120 = arith.select %117, %119, %115 : vector<8x4096xi1>, vector<8x4096xf32>
    %121 = vector.broadcast %74 : vector<8x1xf32> to vector<8x4096xf32>
    %122 = arith.mulf %64, %121 : vector<8x4096xf32>
    %cst_56 = arith.constant 0.000000e+00 : f32
    %cst_57 = arith.constant 1.000000e+00 : f32
    %123 = vector.broadcast %cst_56 : f32 to vector<8x4096xf32>
    %124 = arith.maximumf %123, %122 : vector<8x4096xf32>
    %125 = vector.broadcast %cst_57 : f32 to vector<8x4096xf32>
    %126 = arith.minimumf %125, %124 : vector<8x4096xf32>
    %cst_58 = arith.constant 9.99999996E-13 : f32
    %127 = vector.broadcast %cst_58 : f32 to vector<8x4096xf32>
    %128 = arith.maximumf %126, %127 : vector<8x4096xf32>
    %129 = math.log %128 : vector<8x4096xf32>
    %cst_59 = arith.constant 0.416666657 : f32
    %130 = vector.broadcast %cst_59 : f32 to vector<8x4096xf32>
    %131 = arith.mulf %129, %130 : vector<8x4096xf32>
    %132 = math.exp %131 : vector<8x4096xf32>
    %cst_60 = arith.constant 1.055000e+00 : f32
    %133 = vector.broadcast %cst_60 : f32 to vector<8x4096xf32>
    %134 = arith.mulf %133, %132 : vector<8x4096xf32>
    %cst_61 = arith.constant 5.500000e-02 : f32
    %135 = vector.broadcast %cst_61 : f32 to vector<8x4096xf32>
    %136 = arith.subf %134, %135 : vector<8x4096xf32>
    %cst_62 = arith.constant 3.130800e-03 : f32
    %137 = vector.broadcast %cst_62 : f32 to vector<8x4096xf32>
    %138 = arith.cmpf ole, %126, %137 : vector<8x4096xf32>
    %cst_63 = arith.constant 1.292000e+01 : f32
    %139 = vector.broadcast %cst_63 : f32 to vector<8x4096xf32>
    %140 = arith.mulf %139, %126 : vector<8x4096xf32>
    %141 = arith.select %138, %140, %136 : vector<8x4096xi1>, vector<8x4096xf32>
    %c0_64 = arith.constant 0 : index
    %c0_65 = arith.constant 0 : index
    %142 = memref.load %arg4[%c0_64, %c0_65] : memref<3x3xf32, #tpu.memory_space<smem>>
    %143 = vector.broadcast %142 : f32 to vector<8x4096xf32>
    %144 = arith.mulf %143, %99 : vector<8x4096xf32>
    %c0_66 = arith.constant 0 : index
    %c1_67 = arith.constant 1 : index
    %145 = memref.load %arg4[%c0_66, %c1_67] : memref<3x3xf32, #tpu.memory_space<smem>>
    %146 = vector.broadcast %145 : f32 to vector<8x4096xf32>
    %147 = arith.mulf %146, %120 : vector<8x4096xf32>
    %148 = arith.addf %144, %147 : vector<8x4096xf32>
    %c0_68 = arith.constant 0 : index
    %c2_69 = arith.constant 2 : index
    %149 = memref.load %arg4[%c0_68, %c2_69] : memref<3x3xf32, #tpu.memory_space<smem>>
    %150 = vector.broadcast %149 : f32 to vector<8x4096xf32>
    %151 = arith.mulf %150, %141 : vector<8x4096xf32>
    %152 = arith.addf %148, %151 : vector<8x4096xf32>
    %c0_70 = arith.constant 0 : index
    %153 = memref.load %arg5[%c0_70] : memref<3xf32, #tpu.memory_space<smem>>
    %154 = vector.broadcast %153 : f32 to vector<8x4096xf32>
    %155 = arith.addf %152, %154 : vector<8x4096xf32>
    %cst_71 = arith.constant 0.000000e+00 : f32
    %cst_72 = arith.constant 1.000000e+00 : f32
    %156 = vector.broadcast %cst_71 : f32 to vector<8x4096xf32>
    %157 = arith.maximumf %156, %155 : vector<8x4096xf32>
    %158 = vector.broadcast %cst_72 : f32 to vector<8x4096xf32>
    %159 = arith.minimumf %158, %157 : vector<8x4096xf32>
    %160 = vector.broadcast %3 : vector<1x4096xf32> to vector<8x4096xf32>
    %161 = arith.mulf %159, %160 : vector<8x4096xf32>
    %c1_73 = arith.constant 1 : index
    %c0_74 = arith.constant 0 : index
    %162 = memref.load %arg4[%c1_73, %c0_74] : memref<3x3xf32, #tpu.memory_space<smem>>
    %163 = vector.broadcast %162 : f32 to vector<8x4096xf32>
    %164 = arith.mulf %163, %99 : vector<8x4096xf32>
    %c1_75 = arith.constant 1 : index
    %c1_76 = arith.constant 1 : index
    %165 = memref.load %arg4[%c1_75, %c1_76] : memref<3x3xf32, #tpu.memory_space<smem>>
    %166 = vector.broadcast %165 : f32 to vector<8x4096xf32>
    %167 = arith.mulf %166, %120 : vector<8x4096xf32>
    %168 = arith.addf %164, %167 : vector<8x4096xf32>
    %c1_77 = arith.constant 1 : index
    %c2_78 = arith.constant 2 : index
    %169 = memref.load %arg4[%c1_77, %c2_78] : memref<3x3xf32, #tpu.memory_space<smem>>
    %170 = vector.broadcast %169 : f32 to vector<8x4096xf32>
    %171 = arith.mulf %170, %141 : vector<8x4096xf32>
    %172 = arith.addf %168, %171 : vector<8x4096xf32>
    %c1_79 = arith.constant 1 : index
    %173 = memref.load %arg5[%c1_79] : memref<3xf32, #tpu.memory_space<smem>>
    %174 = vector.broadcast %173 : f32 to vector<8x4096xf32>
    %175 = arith.addf %172, %174 : vector<8x4096xf32>
    %cst_80 = arith.constant 0.000000e+00 : f32
    %cst_81 = arith.constant 1.000000e+00 : f32
    %176 = vector.broadcast %cst_80 : f32 to vector<8x4096xf32>
    %177 = arith.maximumf %176, %175 : vector<8x4096xf32>
    %178 = vector.broadcast %cst_81 : f32 to vector<8x4096xf32>
    %179 = arith.minimumf %178, %177 : vector<8x4096xf32>
    %180 = vector.broadcast %4 : vector<1x4096xf32> to vector<8x4096xf32>
    %181 = arith.mulf %179, %180 : vector<8x4096xf32>
    %c2_82 = arith.constant 2 : index
    %c0_83 = arith.constant 0 : index
    %182 = memref.load %arg4[%c2_82, %c0_83] : memref<3x3xf32, #tpu.memory_space<smem>>
    %183 = vector.broadcast %182 : f32 to vector<8x4096xf32>
    %184 = arith.mulf %183, %99 : vector<8x4096xf32>
    %c2_84 = arith.constant 2 : index
    %c1_85 = arith.constant 1 : index
    %185 = memref.load %arg4[%c2_84, %c1_85] : memref<3x3xf32, #tpu.memory_space<smem>>
    %186 = vector.broadcast %185 : f32 to vector<8x4096xf32>
    %187 = arith.mulf %186, %120 : vector<8x4096xf32>
    %188 = arith.addf %184, %187 : vector<8x4096xf32>
    %c2_86 = arith.constant 2 : index
    %c2_87 = arith.constant 2 : index
    %189 = memref.load %arg4[%c2_86, %c2_87] : memref<3x3xf32, #tpu.memory_space<smem>>
    %190 = vector.broadcast %189 : f32 to vector<8x4096xf32>
    %191 = arith.mulf %190, %141 : vector<8x4096xf32>
    %192 = arith.addf %188, %191 : vector<8x4096xf32>
    %c2_88 = arith.constant 2 : index
    %193 = memref.load %arg5[%c2_88] : memref<3xf32, #tpu.memory_space<smem>>
    %194 = vector.broadcast %193 : f32 to vector<8x4096xf32>
    %195 = arith.addf %192, %194 : vector<8x4096xf32>
    %cst_89 = arith.constant 0.000000e+00 : f32
    %cst_90 = arith.constant 1.000000e+00 : f32
    %196 = vector.broadcast %cst_89 : f32 to vector<8x4096xf32>
    %197 = arith.maximumf %196, %195 : vector<8x4096xf32>
    %198 = vector.broadcast %cst_90 : f32 to vector<8x4096xf32>
    %199 = arith.minimumf %198, %197 : vector<8x4096xf32>
    %200 = vector.broadcast %5 : vector<1x4096xf32> to vector<8x4096xf32>
    %201 = arith.mulf %199, %200 : vector<8x4096xf32>
    %202 = vector.broadcast %74 : vector<8x1xf32> to vector<8x4096xf32>
    %203 = arith.mulf %26, %202 : vector<8x4096xf32>
    %204 = vector.broadcast %74 : vector<8x1xf32> to vector<8x4096xf32>
    %205 = arith.mulf %45, %204 : vector<8x4096xf32>
    %206 = vector.broadcast %74 : vector<8x1xf32> to vector<8x4096xf32>
    %207 = arith.mulf %64, %206 : vector<8x4096xf32>
    %208 = arith.addf %203, %205 : vector<8x4096xf32>
    %209 = arith.addf %208, %207 : vector<8x4096xf32>
    %cst_91 = arith.constant 0.333333343 : f32
    %210 = vector.broadcast %cst_91 : f32 to vector<8x4096xf32>
    %211 = arith.mulf %209, %210 : vector<8x4096xf32>
    %cst_92 = arith.constant 1.000000e+00 : f32
    %212 = vector.broadcast %cst_92 : f32 to vector<8x4096xf32>
    %213 = arith.cmpf olt, %211, %212 : vector<8x4096xf32>
    %214 = arith.extui %213 : vector<8x4096xi1> to vector<8x4096xi32>
    %215 = arith.sitofp %214 : vector<8x4096xi32> to vector<8x4096xf32>
    %c1_i32 = arith.constant 1 : i32
    %216 = tpu.dynamic_rotate %215 by %c1_i32 dim 1 : vector<8x4096xf32>, i32 -> vector<8x4096xf32>
    %c4095_i32 = arith.constant 4095 : i32
    %217 = tpu.dynamic_rotate %215 by %c4095_i32 dim 1 : vector<8x4096xf32>, i32 -> vector<8x4096xf32>
    %218 = arith.addf %216, %217 : vector<8x4096xf32>
    %219 = vector.broadcast %6 : vector<1x4096xf32> to vector<8x4096xf32>
    %220 = arith.mulf %215, %219 : vector<8x4096xf32>
    %c1_i32_93 = arith.constant 1 : i32
    %221 = tpu.dynamic_rotate %220 by %c1_i32_93 dim 1 : vector<8x4096xf32>, i32 -> vector<8x4096xf32>
    %c4095_i32_94 = arith.constant 4095 : i32
    %222 = tpu.dynamic_rotate %220 by %c4095_i32_94 dim 1 : vector<8x4096xf32>, i32 -> vector<8x4096xf32>
    %223 = arith.addf %221, %222 : vector<8x4096xf32>
    %cst_95 = arith.constant 2.000000e+00 : f32
    %224 = vector.broadcast %cst_95 : f32 to vector<8x4096xf32>
    %225 = arith.mulf %224, %223 : vector<8x4096xf32>
    %226 = arith.subf %218, %225 : vector<8x4096xf32>
    %227 = vector.broadcast %6 : vector<1x4096xf32> to vector<8x4096xf32>
    %228 = arith.mulf %227, %226 : vector<8x4096xf32>
    %229 = arith.addf %218, %228 : vector<8x4096xf32>
    %cst_96 = arith.constant 0.451862752 : f32
    %230 = vector.broadcast %cst_96 : f32 to vector<8x4096xf32>
    %231 = arith.mulf %230, %215 : vector<8x4096xf32>
    %cst_97 = arith.constant 0.274068624 : f32
    %232 = vector.broadcast %cst_97 : f32 to vector<8x4096xf32>
    %233 = arith.mulf %232, %229 : vector<8x4096xf32>
    %234 = arith.addf %231, %233 : vector<8x4096xf32>
    %c64_i32 = arith.constant 64 : i32
    %235 = tpu.dynamic_rotate %234 by %c64_i32 dim 1 : vector<8x4096xf32>, i32 -> vector<8x4096xf32>
    %c4032_i32 = arith.constant 4032 : i32
    %236 = tpu.dynamic_rotate %234 by %c4032_i32 dim 1 : vector<8x4096xf32>, i32 -> vector<8x4096xf32>
    %237 = arith.addf %235, %236 : vector<8x4096xf32>
    %238 = vector.broadcast %7 : vector<1x4096xf32> to vector<8x4096xf32>
    %239 = arith.mulf %234, %238 : vector<8x4096xf32>
    %c64_i32_98 = arith.constant 64 : i32
    %240 = tpu.dynamic_rotate %239 by %c64_i32_98 dim 1 : vector<8x4096xf32>, i32 -> vector<8x4096xf32>
    %c4032_i32_99 = arith.constant 4032 : i32
    %241 = tpu.dynamic_rotate %239 by %c4032_i32_99 dim 1 : vector<8x4096xf32>, i32 -> vector<8x4096xf32>
    %242 = arith.addf %240, %241 : vector<8x4096xf32>
    %cst_100 = arith.constant 2.000000e+00 : f32
    %243 = vector.broadcast %cst_100 : f32 to vector<8x4096xf32>
    %244 = arith.mulf %243, %242 : vector<8x4096xf32>
    %245 = arith.subf %237, %244 : vector<8x4096xf32>
    %246 = vector.broadcast %7 : vector<1x4096xf32> to vector<8x4096xf32>
    %247 = arith.mulf %246, %245 : vector<8x4096xf32>
    %248 = arith.addf %237, %247 : vector<8x4096xf32>
    %cst_101 = arith.constant 0.451862752 : f32
    %249 = vector.broadcast %cst_101 : f32 to vector<8x4096xf32>
    %250 = arith.mulf %249, %234 : vector<8x4096xf32>
    %cst_102 = arith.constant 0.274068624 : f32
    %251 = vector.broadcast %cst_102 : f32 to vector<8x4096xf32>
    %252 = arith.mulf %251, %248 : vector<8x4096xf32>
    %253 = arith.addf %250, %252 : vector<8x4096xf32>
    %254 = arith.mulf %253, %215 : vector<8x4096xf32>
    %255 = vector.broadcast %3 : vector<1x4096xf32> to vector<8x4096xf32>
    %256 = arith.mulf %254, %255 : vector<8x4096xf32>
    %cst_103 = arith.constant dense<0.000000e+00> : vector<8xf32>
    %257 = vector.multi_reduction <add>, %256, %cst_103 [1] : vector<8x4096xf32> to vector<8xf32>
    %258 = vector.shape_cast %257 : vector<8xf32> to vector<8x1xf32>
    %cst_104 = arith.constant 1.000000e+00 : f32
    %259 = vector.broadcast %cst_104 : f32 to vector<8x1xf32>
    %260 = arith.divf %259, %258 : vector<8x1xf32>
    %cst_105 = arith.constant 0.000000e+00 : f32
    %cst_106 = arith.constant 1.000000e+00 : f32
    %261 = vector.broadcast %cst_105 : f32 to vector<8x4096xf32>
    %262 = arith.maximumf %261, %203 : vector<8x4096xf32>
    %263 = vector.broadcast %cst_106 : f32 to vector<8x4096xf32>
    %264 = arith.minimumf %263, %262 : vector<8x4096xf32>
    %265 = arith.mulf %264, %256 : vector<8x4096xf32>
    %cst_107 = arith.constant dense<0.000000e+00> : vector<8xf32>
    %266 = vector.multi_reduction <add>, %265, %cst_107 [1] : vector<8x4096xf32> to vector<8xf32>
    %267 = vector.shape_cast %266 : vector<8xf32> to vector<8x1xf32>
    %268 = arith.mulf %267, %260 : vector<8x1xf32>
    %cst_108 = arith.constant 5.500000e-02 : f32
    %269 = vector.broadcast %cst_108 : f32 to vector<8x4096xf32>
    %270 = arith.addf %161, %269 : vector<8x4096xf32>
    %cst_109 = arith.constant 1.055000e+00 : f32
    %271 = vector.broadcast %cst_109 : f32 to vector<8x4096xf32>
    %272 = arith.divf %270, %271 : vector<8x4096xf32>
    %cst_110 = arith.constant 9.99999996E-13 : f32
    %273 = vector.broadcast %cst_110 : f32 to vector<8x4096xf32>
    %274 = arith.maximumf %272, %273 : vector<8x4096xf32>
    %275 = math.log %274 : vector<8x4096xf32>
    %cst_111 = arith.constant 2.400000e+00 : f32
    %276 = vector.broadcast %cst_111 : f32 to vector<8x4096xf32>
    %277 = arith.mulf %275, %276 : vector<8x4096xf32>
    %278 = math.exp %277 : vector<8x4096xf32>
    %cst_112 = arith.constant 4.045000e-02 : f32
    %279 = vector.broadcast %cst_112 : f32 to vector<8x4096xf32>
    %280 = arith.cmpf ole, %161, %279 : vector<8x4096xf32>
    %cst_113 = arith.constant 1.292000e+01 : f32
    %281 = vector.broadcast %cst_113 : f32 to vector<8x4096xf32>
    %282 = arith.divf %161, %281 : vector<8x4096xf32>
    %283 = arith.select %280, %282, %278 : vector<8x4096xi1>, vector<8x4096xf32>
    %284 = arith.mulf %283, %256 : vector<8x4096xf32>
    %cst_114 = arith.constant dense<0.000000e+00> : vector<8xf32>
    %285 = vector.multi_reduction <add>, %284, %cst_114 [1] : vector<8x4096xf32> to vector<8xf32>
    %286 = vector.shape_cast %285 : vector<8xf32> to vector<8x1xf32>
    %287 = arith.mulf %286, %260 : vector<8x1xf32>
    %cst_115 = arith.constant 9.99999997E-7 : f32
    %288 = vector.broadcast %cst_115 : f32 to vector<8x1xf32>
    %289 = arith.addf %287, %288 : vector<8x1xf32>
    %290 = arith.divf %268, %289 : vector<8x1xf32>
    %291 = arith.mulf %290, %78 : vector<8x1xf32>
    %cst_116 = arith.constant 1.000000e+00 : f32
    %292 = vector.broadcast %cst_116 : f32 to vector<8x4096xf32>
    %293 = arith.subf %292, %256 : vector<8x4096xf32>
    %294 = arith.mulf %293, %26 : vector<8x4096xf32>
    %295 = vector.broadcast %291 : vector<8x1xf32> to vector<8x4096xf32>
    %296 = arith.mulf %284, %295 : vector<8x4096xf32>
    %297 = arith.addf %294, %296 : vector<8x4096xf32>
    %c0_117 = arith.constant 0 : index
    %c0_118 = arith.constant 0 : index
    %298 = vector.load %arg8[%c0_117, %c0_118] : memref<8x12288xf32, #tpu.memory_space<vmem>>, vector<8x4096xf32>
    tpu.vector_store %arg8[%c0_117, %c0_118], %26 {strides = array<i32>} : memref<8x12288xf32, #tpu.memory_space<vmem>>, vector<8x4096xf32>,
    %c0_119 = arith.constant 0 : index
    %c0_120 = arith.constant 0 : index
    %299 = vector.load %arg9[%c0_119, %c0_120] : memref<8x12288xf32, #tpu.memory_space<vmem>>, vector<8x4096xf32>
    tpu.vector_store %arg9[%c0_119, %c0_120], %161 {strides = array<i32>} : memref<8x12288xf32, #tpu.memory_space<vmem>>, vector<8x4096xf32>,
    %c0_121 = arith.constant 0 : index
    %c0_122 = arith.constant 0 : index
    %300 = vector.load %arg10[%c0_121, %c0_122] : memref<8x12288xf32, #tpu.memory_space<vmem>>, vector<8x4096xf32>
    tpu.vector_store %arg10[%c0_121, %c0_122], %297 {strides = array<i32>} : memref<8x12288xf32, #tpu.memory_space<vmem>>, vector<8x4096xf32>,
    %301 = vector.broadcast %4 : vector<1x4096xf32> to vector<8x4096xf32>
    %302 = arith.mulf %254, %301 : vector<8x4096xf32>
    %cst_123 = arith.constant dense<0.000000e+00> : vector<8xf32>
    %303 = vector.multi_reduction <add>, %302, %cst_123 [1] : vector<8x4096xf32> to vector<8xf32>
    %304 = vector.shape_cast %303 : vector<8xf32> to vector<8x1xf32>
    %cst_124 = arith.constant 1.000000e+00 : f32
    %305 = vector.broadcast %cst_124 : f32 to vector<8x1xf32>
    %306 = arith.divf %305, %304 : vector<8x1xf32>
    %cst_125 = arith.constant 0.000000e+00 : f32
    %cst_126 = arith.constant 1.000000e+00 : f32
    %307 = vector.broadcast %cst_125 : f32 to vector<8x4096xf32>
    %308 = arith.maximumf %307, %205 : vector<8x4096xf32>
    %309 = vector.broadcast %cst_126 : f32 to vector<8x4096xf32>
    %310 = arith.minimumf %309, %308 : vector<8x4096xf32>
    %311 = arith.mulf %310, %302 : vector<8x4096xf32>
    %cst_127 = arith.constant dense<0.000000e+00> : vector<8xf32>
    %312 = vector.multi_reduction <add>, %311, %cst_127 [1] : vector<8x4096xf32> to vector<8xf32>
    %313 = vector.shape_cast %312 : vector<8xf32> to vector<8x1xf32>
    %314 = arith.mulf %313, %306 : vector<8x1xf32>
    %cst_128 = arith.constant 5.500000e-02 : f32
    %315 = vector.broadcast %cst_128 : f32 to vector<8x4096xf32>
    %316 = arith.addf %181, %315 : vector<8x4096xf32>
    %cst_129 = arith.constant 1.055000e+00 : f32
    %317 = vector.broadcast %cst_129 : f32 to vector<8x4096xf32>
    %318 = arith.divf %316, %317 : vector<8x4096xf32>
    %cst_130 = arith.constant 9.99999996E-13 : f32
    %319 = vector.broadcast %cst_130 : f32 to vector<8x4096xf32>
    %320 = arith.maximumf %318, %319 : vector<8x4096xf32>
    %321 = math.log %320 : vector<8x4096xf32>
    %cst_131 = arith.constant 2.400000e+00 : f32
    %322 = vector.broadcast %cst_131 : f32 to vector<8x4096xf32>
    %323 = arith.mulf %321, %322 : vector<8x4096xf32>
    %324 = math.exp %323 : vector<8x4096xf32>
    %cst_132 = arith.constant 4.045000e-02 : f32
    %325 = vector.broadcast %cst_132 : f32 to vector<8x4096xf32>
    %326 = arith.cmpf ole, %181, %325 : vector<8x4096xf32>
    %cst_133 = arith.constant 1.292000e+01 : f32
    %327 = vector.broadcast %cst_133 : f32 to vector<8x4096xf32>
    %328 = arith.divf %181, %327 : vector<8x4096xf32>
    %329 = arith.select %326, %328, %324 : vector<8x4096xi1>, vector<8x4096xf32>
    %330 = arith.mulf %329, %302 : vector<8x4096xf32>
    %cst_134 = arith.constant dense<0.000000e+00> : vector<8xf32>
    %331 = vector.multi_reduction <add>, %330, %cst_134 [1] : vector<8x4096xf32> to vector<8xf32>
    %332 = vector.shape_cast %331 : vector<8xf32> to vector<8x1xf32>
    %333 = arith.mulf %332, %306 : vector<8x1xf32>
    %cst_135 = arith.constant 9.99999997E-7 : f32
    %334 = vector.broadcast %cst_135 : f32 to vector<8x1xf32>
    %335 = arith.addf %333, %334 : vector<8x1xf32>
    %336 = arith.divf %314, %335 : vector<8x1xf32>
    %337 = arith.mulf %336, %78 : vector<8x1xf32>
    %cst_136 = arith.constant 1.000000e+00 : f32
    %338 = vector.broadcast %cst_136 : f32 to vector<8x4096xf32>
    %339 = arith.subf %338, %302 : vector<8x4096xf32>
    %340 = arith.mulf %339, %45 : vector<8x4096xf32>
    %341 = vector.broadcast %337 : vector<8x1xf32> to vector<8x4096xf32>
    %342 = arith.mulf %330, %341 : vector<8x4096xf32>
    %343 = arith.addf %340, %342 : vector<8x4096xf32>
    %c0_137 = arith.constant 0 : index
    %c4096_138 = arith.constant 4096 : index
    %344 = vector.load %arg8[%c0_137, %c4096_138] : memref<8x12288xf32, #tpu.memory_space<vmem>>, vector<8x4096xf32>
    tpu.vector_store %arg8[%c0_137, %c4096_138], %45 {strides = array<i32>} : memref<8x12288xf32, #tpu.memory_space<vmem>>, vector<8x4096xf32>,
    %c0_139 = arith.constant 0 : index
    %c4096_140 = arith.constant 4096 : index
    %345 = vector.load %arg9[%c0_139, %c4096_140] : memref<8x12288xf32, #tpu.memory_space<vmem>>, vector<8x4096xf32>
    tpu.vector_store %arg9[%c0_139, %c4096_140], %181 {strides = array<i32>} : memref<8x12288xf32, #tpu.memory_space<vmem>>, vector<8x4096xf32>,
    %c0_141 = arith.constant 0 : index
    %c4096_142 = arith.constant 4096 : index
    %346 = vector.load %arg10[%c0_141, %c4096_142] : memref<8x12288xf32, #tpu.memory_space<vmem>>, vector<8x4096xf32>
    tpu.vector_store %arg10[%c0_141, %c4096_142], %343 {strides = array<i32>} : memref<8x12288xf32, #tpu.memory_space<vmem>>, vector<8x4096xf32>,
    %347 = vector.broadcast %5 : vector<1x4096xf32> to vector<8x4096xf32>
    %348 = arith.mulf %254, %347 : vector<8x4096xf32>
    %cst_143 = arith.constant dense<0.000000e+00> : vector<8xf32>
    %349 = vector.multi_reduction <add>, %348, %cst_143 [1] : vector<8x4096xf32> to vector<8xf32>
    %350 = vector.shape_cast %349 : vector<8xf32> to vector<8x1xf32>
    %cst_144 = arith.constant 1.000000e+00 : f32
    %351 = vector.broadcast %cst_144 : f32 to vector<8x1xf32>
    %352 = arith.divf %351, %350 : vector<8x1xf32>
    %cst_145 = arith.constant 0.000000e+00 : f32
    %cst_146 = arith.constant 1.000000e+00 : f32
    %353 = vector.broadcast %cst_145 : f32 to vector<8x4096xf32>
    %354 = arith.maximumf %353, %207 : vector<8x4096xf32>
    %355 = vector.broadcast %cst_146 : f32 to vector<8x4096xf32>
    %356 = arith.minimumf %355, %354 : vector<8x4096xf32>
    %357 = arith.mulf %356, %348 : vector<8x4096xf32>
    %cst_147 = arith.constant dense<0.000000e+00> : vector<8xf32>
    %358 = vector.multi_reduction <add>, %357, %cst_147 [1] : vector<8x4096xf32> to vector<8xf32>
    %359 = vector.shape_cast %358 : vector<8xf32> to vector<8x1xf32>
    %360 = arith.mulf %359, %352 : vector<8x1xf32>
    %cst_148 = arith.constant 5.500000e-02 : f32
    %361 = vector.broadcast %cst_148 : f32 to vector<8x4096xf32>
    %362 = arith.addf %201, %361 : vector<8x4096xf32>
    %cst_149 = arith.constant 1.055000e+00 : f32
    %363 = vector.broadcast %cst_149 : f32 to vector<8x4096xf32>
    %364 = arith.divf %362, %363 : vector<8x4096xf32>
    %cst_150 = arith.constant 9.99999996E-13 : f32
    %365 = vector.broadcast %cst_150 : f32 to vector<8x4096xf32>
    %366 = arith.maximumf %364, %365 : vector<8x4096xf32>
    %367 = math.log %366 : vector<8x4096xf32>
    %cst_151 = arith.constant 2.400000e+00 : f32
    %368 = vector.broadcast %cst_151 : f32 to vector<8x4096xf32>
    %369 = arith.mulf %367, %368 : vector<8x4096xf32>
    %370 = math.exp %369 : vector<8x4096xf32>
    %cst_152 = arith.constant 4.045000e-02 : f32
    %371 = vector.broadcast %cst_152 : f32 to vector<8x4096xf32>
    %372 = arith.cmpf ole, %201, %371 : vector<8x4096xf32>
    %cst_153 = arith.constant 1.292000e+01 : f32
    %373 = vector.broadcast %cst_153 : f32 to vector<8x4096xf32>
    %374 = arith.divf %201, %373 : vector<8x4096xf32>
    %375 = arith.select %372, %374, %370 : vector<8x4096xi1>, vector<8x4096xf32>
    %376 = arith.mulf %375, %348 : vector<8x4096xf32>
    %cst_154 = arith.constant dense<0.000000e+00> : vector<8xf32>
    %377 = vector.multi_reduction <add>, %376, %cst_154 [1] : vector<8x4096xf32> to vector<8xf32>
    %378 = vector.shape_cast %377 : vector<8xf32> to vector<8x1xf32>
    %379 = arith.mulf %378, %352 : vector<8x1xf32>
    %cst_155 = arith.constant 9.99999997E-7 : f32
    %380 = vector.broadcast %cst_155 : f32 to vector<8x1xf32>
    %381 = arith.addf %379, %380 : vector<8x1xf32>
    %382 = arith.divf %360, %381 : vector<8x1xf32>
    %383 = arith.mulf %382, %78 : vector<8x1xf32>
    %cst_156 = arith.constant 1.000000e+00 : f32
    %384 = vector.broadcast %cst_156 : f32 to vector<8x4096xf32>
    %385 = arith.subf %384, %348 : vector<8x4096xf32>
    %386 = arith.mulf %385, %64 : vector<8x4096xf32>
    %387 = vector.broadcast %383 : vector<8x1xf32> to vector<8x4096xf32>
    %388 = arith.mulf %376, %387 : vector<8x4096xf32>
    %389 = arith.addf %386, %388 : vector<8x4096xf32>
    %c0_157 = arith.constant 0 : index
    %c8192_158 = arith.constant 8192 : index
    %390 = vector.load %arg8[%c0_157, %c8192_158] : memref<8x12288xf32, #tpu.memory_space<vmem>>, vector<8x4096xf32>
    tpu.vector_store %arg8[%c0_157, %c8192_158], %64 {strides = array<i32>} : memref<8x12288xf32, #tpu.memory_space<vmem>>, vector<8x4096xf32>,
    %c0_159 = arith.constant 0 : index
    %c8192_160 = arith.constant 8192 : index
    %391 = vector.load %arg9[%c0_159, %c8192_160] : memref<8x12288xf32, #tpu.memory_space<vmem>>, vector<8x4096xf32>
    tpu.vector_store %arg9[%c0_159, %c8192_160], %201 {strides = array<i32>} : memref<8x12288xf32, #tpu.memory_space<vmem>>, vector<8x4096xf32>,
    %c0_161 = arith.constant 0 : index
    %c8192_162 = arith.constant 8192 : index
    %392 = vector.load %arg10[%c0_161, %c8192_162] : memref<8x12288xf32, #tpu.memory_space<vmem>>, vector<8x4096xf32>
    tpu.vector_store %arg10[%c0_161, %c8192_162], %389 {strides = array<i32>} : memref<8x12288xf32, #tpu.memory_space<vmem>>, vector<8x4096xf32>,
    return
  }
  func.func @transform_0(%arg0: i32) -> (i32, i32) {
    %c0_i32 = arith.constant 0 : i32
    %c0_i32_0 = arith.constant 0 : i32
    return %arg0, %c0_i32 : i32, i32
  }
  func.func @transform_1(%arg0: i32) -> (i32, i32) {
    %c0_i32 = arith.constant 0 : i32
    %c0_i32_0 = arith.constant 0 : i32
    %c0_i32_1 = arith.constant 0 : i32
    return %c0_i32, %c0_i32_0 : i32, i32
  }
  func.func @transform_2(%arg0: i32) -> i32 {
    %c0_i32 = arith.constant 0 : i32
    %c0_i32_0 = arith.constant 0 : i32
    return %c0_i32 : i32
  }
  func.func @transform_3(%arg0: i32) -> (i32, i32) {
    %c0_i32 = arith.constant 0 : i32
    %c0_i32_0 = arith.constant 0 : i32
    %c0_i32_1 = arith.constant 0 : i32
    return %c0_i32, %c0_i32_0 : i32, i32
  }
  func.func @transform_4(%arg0: i32) -> i32 {
    %c0_i32 = arith.constant 0 : i32
    %c0_i32_0 = arith.constant 0 : i32
    return %c0_i32 : i32
  }
  func.func @transform_5(%arg0: i32) -> (i32, i32) {
    %c0_i32 = arith.constant 0 : i32
    %c0_i32_0 = arith.constant 0 : i32
    %c0_i32_1 = arith.constant 0 : i32
    return %c0_i32, %c0_i32_0 : i32, i32
  }
  func.func @transform_6(%arg0: i32) -> (i32, i32) {
    %c0_i32 = arith.constant 0 : i32
    %c0_i32_0 = arith.constant 0 : i32
    %c0_i32_1 = arith.constant 0 : i32
    return %c0_i32, %c0_i32_0 : i32, i32
  }
  func.func @transform_7(%arg0: i32) -> (i32, i32) {
    %c0_i32 = arith.constant 0 : i32
    %c0_i32_0 = arith.constant 0 : i32
    return %arg0, %c0_i32 : i32, i32
  }
  func.func @transform_8(%arg0: i32) -> (i32, i32) {
    %c0_i32 = arith.constant 0 : i32
    %c0_i32_0 = arith.constant 0 : i32
    return %arg0, %c0_i32 : i32, i32
  }
  func.func @transform_9(%arg0: i32) -> (i32, i32) {
    %c0_i32 = arith.constant 0 : i32
    %c0_i32_0 = arith.constant 0 : i32
    return %arg0, %c0_i32 : i32, i32
  }
}

</mosaic_0001>

<llo_original>
// kernel: tpu_custom_call.1
$region0: #{tpu_custom_call.1}
  #allocation0 [shape = 'u32[]', space=smem, size = 0x4, offset = 0x4, fixed_abs, tag = 'smem constant byte address 0x4 - core index']
  #allocation1 [shape = 'u32[144,128]{1,0:T(1,128)}', space=vmem, size = 0x12000, scoped, tag = 'internal scratch']
  %s0 = inlined_call_operand.hbm [shape: f32[16,12288], index: 0, kind: input, shape index: {}]
  %s1 = inlined_call_operand.hbm [shape: f32[3,3], index: 1, kind: input, shape index: {}]
  %s2 = inlined_call_operand.vmem [shape: f32[3], index: 2, kind: input, shape index: {}]
  %s3 = inlined_call_operand.vmem [shape: f32[3,3], index: 3, kind: input, shape index: {}]
  %s4 = inlined_call_operand.vmem [shape: f32[3], index: 4, kind: input, shape index: {}]
  %s5 = inlined_call_operand.hbm [shape: f32[1,12288], index: 5, kind: input, shape index: {}]
  %s6 = inlined_call_operand.hbm [shape: f32[2,4096], index: 6, kind: input, shape index: {}]
  %s7 = inlined_call_operand.hbm [shape: f32[16,12288], index: 7, kind: output, shape index: {0}]
  %s8 = inlined_call_operand.hbm [shape: f32[16,12288], index: 8, kind: output, shape index: {1}]
  %s9 = inlined_call_operand.hbm [shape: f32[16,12288], index: 9, kind: output, shape index: {2}]
  %10 = xla_tuple %s7, %s8, %s9
  %s11 = sld [smem:[#allocation0]]
  $region105: #{tpu_custom_call.1} parent=0
    _
  %s13 = ssub.s32 1, %s11
  %s14 = scalar_select 0, %s13, %s11
  $region1: #{tpu_custom_call.1} parent=0
    #allocation2 [shape = 'u8[786432]{0}', space=vmem, size = 0xc0000, scoped, tag = 'input window, operand 0']
    #allocation3 [shape = 's32[2]{0}', space=sflag, size = 0x8, scoped, tag = 'scoped memory for tpu_custom_call.1']
    #allocation4 [shape = 's32[2]{0}', space=sflag, size = 0x8, scoped, tag = 'scoped memory for tpu_custom_call.1']
    #allocation5 [shape = 's32[2]{0}', space=sflag, size = 0x8, scoped, tag = 'scoped memory for tpu_custom_call.1']
    #allocation6 [shape = 's32[2]{0}', space=sflag, size = 0x8, scoped, tag = 'scoped memory for tpu_custom_call.1']
    #allocation7 [shape = 'u8[2048]{0}', space=smem, size = 0x800, scoped, tag = 'input window, operand 1, single buffered']
    #allocation8 [shape = 'u8[512]{0}', space=smem, size = 0x200, scoped, tag = 'input window, operand 2, single buffered']
    #allocation9 [shape = 'u8[2048]{0}', space=smem, size = 0x800, scoped, tag = 'input window, operand 3, single buffered']
    #allocation10 [shape = 's32[1]{0}', space=sflag, size = 0x4, scoped, tag = 'scoped memory for tpu_custom_call.1']
    #allocation11 [shape = 'u8[512]{0}', space=smem, size = 0x200, scoped, tag = 'input window, operand 4, single buffered']
    #allocation12 [shape = 'u8[49152]{0}', space=vmem, size = 0xc000, scoped, tag = 'input window, operand 5, single buffered']
    #allocation13 [shape = 's32[1]{0}', space=sflag, size = 0x4, scoped, tag = 'scoped memory for tpu_custom_call.1']
    #allocation14 [shape = 'u8[32768]{0}', space=vmem, size = 0x8000, scoped, tag = 'input window, operand 6, single buffered']
    #allocation15 [shape = 'u8[786432]{0}', space=vmem, size = 0xc0000, scoped, tag = 'output window, operand 0']
    #allocation16 [shape = 'u8[786432]{0}', space=vmem, size = 0xc0000, scoped, tag = 'output window, operand 1']
    #allocation17 [shape = 's32[2]{0}', space=sflag, size = 0x8, scoped, tag = 'scoped memory for tpu_custom_call.1']
    #allocation18 [shape = 'u8[786432]{0}', space=vmem, size = 0xc0000, scoped, tag = 'output window, operand 2']
    %15 = vsyncpa [#allocation3], 0
    %s16 = scalar_lea.sflag [#allocation3], 1
    %17 = vsyncpa %s16, 0
    %18 = vsyncpa [#allocation5], 0
    %19 = vsyncpa [#allocation6], 0
    %20 = vsyncpa [#allocation10], 0
    %21 = vsyncpa [#allocation13], 0
    %22 = vsyncpa [#allocation4], 0
    %s23 = scalar_lea.sflag [#allocation4], 1
    %24 = vsyncpa %s23, 0
    %25 = vsyncpa [#allocation17], 0
    %s26 = scalar_lea.sflag [#allocation17], 1
    %27 = vsyncpa %s26, 0
    loop: start=0, step=1, limit=4
    $region2: #{tpu_custom_call.1} parent=1 // loop_pre_header
      _
    $region3: #{tpu_custom_call.1} parent=1 // loop_header
      %s29 = sphi 0, %s33
      %p30 = scmp.ge.s32.totalorder %s29, 4
      %s39 = sphi 0, %s41
      %s42 = sphi 0, %s39
      %s43 = sphi 0, %s42
      %s59 = sphi 0, %s43
      %s63 = sphi 0, %s63
      %s65 = sphi 0, %s63
      %s66 = sphi 0, %s65
      %s80 = sphi 0, %s66
      %s84 = sphi 0, %s84
      %s86 = sphi 0, %s84
      %s87 = sphi 0, %s86
      %s101 = sphi 0, %s87
      %s105 = sphi 0, %s105
      %s107 = sphi 0, %s105
      %s108 = sphi 0, %s107
      %s122 = sphi 0, %s108
      %s126 = sphi 0, %s126
      %s128 = sphi 0, %s126
      %s129 = sphi 0, %s128
      %s143 = sphi 0, %s129
      %s147 = sphi 0, %s147
      %s149 = sphi 0, %s147
      %s150 = sphi 0, %s149
      %s164 = sphi 0, %s150
      %s168 = sphi 0, %s168
      %s170 = sphi 0, %s168
      %s171 = sphi 0, %s170
      %s185 = sphi 0, %s171
      %s191 = sphi 0, %s193
      %s194 = sphi 0, %s191
      %s195 = sphi 0, %s194
      %s211 = sphi 0, %s195
      %s217 = sphi 0, %s219
      %s220 = sphi 0, %s217
      %s221 = sphi 0, %s220
      %s237 = sphi 0, %s221
      %s243 = sphi 0, %s245
      %s246 = sphi 0, %s243
      %s247 = sphi 0, %s246
      %s263 = sphi 0, %s247
    $region4: #{tpu_custom_call.1} parent=1 // loop_header_branch
      %32 = sbr.rel (%p30) target = $region8
    $region5: #{tpu_custom_call.1} parent=1 // loop_body
      %s34 = ssub.s32 %s29, 1
      %s35 = ssub.s32 %s29, 2
      %s36 = sadd.s32 %s29, 1
      %s37 = ssub.s32 %s29, %s36
      %p38 = scmp.eq.s32.totalorder %s37, 0
      %s40 = sadd.s32 %s39, 1
      %s41 = scalar_select %p38, %s39, %s40
      %p44 = pneg %p38
      %p45 = scmp.eq.s32.totalorder %s29, 1
      %p46 = por %p44, %p45
      %p47 = scmp.ne.s32.totalorder %s39, %s42
      %p48 = scmp.eq.s32.totalorder %s29, 0
      %p49 = por %p47, %p48
      %p50 = scmp.ne.s32.totalorder %s39, %s42
      %p51 = scmp.eq.s32.totalorder %s34, 1
      %p52 = por %p50, %p51
      %p53 = scmp.ne.s32.totalorder %s42, %s43
      %p54 = scmp.eq.s32.totalorder %s34, 0
      %p55 = por %p53, %p54
      %p56 = scmp.ne.s32.totalorder %s42, %s43
      %p57 = scmp.eq.s32.totalorder %s35, 1
      %p58 = por %p56, %p57
      %p60 = scmp.ne.s32.totalorder %s43, %s59
      %p61 = scmp.eq.s32.totalorder %s35, 0
      %p62 = por %p60, %p61
      %s64 = sadd.s32 %s63, 1
      %p67 = scmp.eq.s32.totalorder %s29, 1
      %p68 = scmp.ne.s32.totalorder %s63, %s65
      %p69 = scmp.eq.s32.totalorder %s29, 0
      %p70 = por %p68, %p69
      %p71 = scmp.ne.s32.totalorder %s63, %s65
      %p72 = scmp.eq.s32.totalorder %s34, 1
      %p73 = por %p71, %p72
      %p74 = scmp.ne.s32.totalorder %s65, %s66
      %p75 = scmp.eq.s32.totalorder %s34, 0
      %p76 = por %p74, %p75
      %p77 = scmp.ne.s32.totalorder %s65, %s66
      %p78 = scmp.eq.s32.totalorder %s35, 1
      %p79 = por %p77, %p78
      %p81 = scmp.ne.s32.totalorder %s66, %s80
      %p82 = scmp.eq.s32.totalorder %s35, 0
      %p83 = por %p81, %p82
      %s85 = sadd.s32 %s84, 1
      %p88 = scmp.eq.s32.totalorder %s29, 1
      %p89 = scmp.ne.s32.totalorder %s84, %s86
      %p90 = scmp.eq.s32.totalorder %s29, 0
      %p91 = por %p89, %p90
      %p92 = scmp.ne.s32.totalorder %s84, %s86
      %p93 = scmp.eq.s32.totalorder %s34, 1
      %p94 = por %p92, %p93
      %p95 = scmp.ne.s32.totalorder %s86, %s87
      %p96 = scmp.eq.s32.totalorder %s34, 0
      %p97 = por %p95, %p96
      %p98 = scmp.ne.s32.totalorder %s86, %s87
      %p99 = scmp.eq.s32.totalorder %s35, 1
      %p100 = por %p98, %p99
      %p102 = scmp.ne.s32.totalorder %s87, %s101
      %p103 = scmp.eq.s32.totalorder %s35, 0
      %p104 = por %p102, %p103
      %s106 = sadd.s32 %s105, 1
      %p109 = scmp.eq.s32.totalorder %s29, 1
      %p110 = scmp.ne.s32.totalorder %s105, %s107
      %p111 = scmp.eq.s32.totalorder %s29, 0
      %p112 = por %p110, %p111
      %p113 = scmp.ne.s32.totalorder %s105, %s107
      %p114 = scmp.eq.s32.totalorder %s34, 1
      %p115 = por %p113, %p114
      %p116 = scmp.ne.s32.totalorder %s107, %s108
      %p117 = scmp.eq.s32.totalorder %s34, 0
      %p118 = por %p116, %p117
      %p119 = scmp.ne.s32.totalorder %s107, %s108
      %p120 = scmp.eq.s32.totalorder %s35, 1
      %p121 = por %p119, %p120
      %p123 = scmp.ne.s32.totalorder %s108, %s122
      %p124 = scmp.eq.s32.totalorder %s35, 0
      %p125 = por %p123, %p124
      %s127 = sadd.s32 %s126, 1
      %p130 = scmp.eq.s32.totalorder %s29, 1
      %p131 = scmp.ne.s32.totalorder %s126, %s128
      %p132 = scmp.eq.s32.totalorder %s29, 0
      %p133 = por %p131, %p132
      %p134 = scmp.ne.s32.totalorder %s126, %s128
      %p135 = scmp.eq.s32.totalorder %s34, 1
      %p136 = por %p134, %p135
      %p137 = scmp.ne.s32.totalorder %s128, %s129
      %p138 = scmp.eq.s32.totalorder %s34, 0
      %p139 = por %p137, %p138
      %p140 = scmp.ne.s32.totalorder %s128, %s129
      %p141 = scmp.eq.s32.totalorder %s35, 1
      %p142 = por %p140, %p141
      %p144 = scmp.ne.s32.totalorder %s129, %s143
      %p145 = scmp.eq.s32.totalorder %s35, 0
      %p146 = por %p144, %p145
      %s148 = sadd.s32 %s147, 1
      %p151 = scmp.eq.s32.totalorder %s29, 1
      %p152 = scmp.ne.s32.totalorder %s147, %s149
      %p153 = scmp.eq.s32.totalorder %s29, 0
      %p154 = por %p152, %p153
      %p155 = scmp.ne.s32.totalorder %s147, %s149
      %p156 = scmp.eq.s32.totalorder %s34, 1
      %p157 = por %p155, %p156
      %p158 = scmp.ne.s32.totalorder %s149, %s150
      %p159 = scmp.eq.s32.totalorder %s34, 0
      %p160 = por %p158, %p159
      %p161 = scmp.ne.s32.totalorder %s149, %s150
      %p162 = scmp.eq.s32.totalorder %s35, 1
      %p163 = por %p161, %p162
      %p165 = scmp.ne.s32.totalorder %s150, %s164
      %p166 = scmp.eq.s32.totalorder %s35, 0
      %p167 = por %p165, %p166
      %s169 = sadd.s32 %s168, 1
      %p172 = scmp.eq.s32.totalorder %s29, 1
      %p173 = scmp.ne.s32.totalorder %s168, %s170
      %p174 = scmp.eq.s32.totalorder %s29, 0
      %p175 = por %p173, %p174
      %p176 = scmp.ne.s32.totalorder %s168, %s170
      %p177 = scmp.eq.s32.totalorder %s34, 1
      %p178 = por %p176, %p177
      %p179 = scmp.ne.s32.totalorder %s170, %s171
      %p180 = scmp.eq.s32.totalorder %s34, 0
      %p181 = por %p179, %p180
      %p182 = scmp.ne.s32.totalorder %s170, %s171
      %p183 = scmp.eq.s32.totalorder %s35, 1
      %p184 = por %p182, %p183
      %p186 = scmp.ne.s32.totalorder %s171, %s185
      %p187 = scmp.eq.s32.totalorder %s35, 0
      %p188 = por %p186, %p187
      %s189 = ssub.s32 %s29, %s36
      %p190 = scmp.eq.s32.totalorder %s189, 0
      %s192 = sadd.s32 %s191, 1
      %s193 = scalar_select %p190, %s191, %s192
      %p196 = pneg %p190
      %p197 = scmp.eq.s32.totalorder %s29, 1
      %p198 = por %p196, %p197
      %p199 = scmp.ne.s32.totalorder %s191, %s194
      %p200 = scmp.eq.s32.totalorder %s29, 0
      %p201 = por %p199, %p200
      %p202 = scmp.ne.s32.totalorder %s191, %s194
      %p203 = scmp.eq.s32.totalorder %s34, 1
      %p204 = por %p202, %p203
      %p205 = scmp.ne.s32.totalorder %s194, %s195
      %p206 = scmp.eq.s32.totalorder %s34, 0
      %p207 = por %p205, %p206
      %p208 = scmp.ne.s32.totalorder %s194, %s195
      %p209 = scmp.eq.s32.totalorder %s35, 1
      %p210 = por %p208, %p209
      %p212 = scmp.ne.s32.totalorder %s195, %s211
      %p213 = scmp.eq.s32.totalorder %s35, 0
      %p214 = por %p212, %p213
      %s215 = ssub.s32 %s29, %s36
      %p216 = scmp.eq.s32.totalorder %s215, 0
      %s218 = sadd.s32 %s217, 1
      %s219 = scalar_select %p216, %s217, %s218
      %p222 = pneg %p216
      %p223 = scmp.eq.s32.totalorder %s29, 1
      %p224 = por %p222, %p223
      %p225 = scmp.ne.s32.totalorder %s217, %s220
      %p226 = scmp.eq.s32.totalorder %s29, 0
      %p227 = por %p225, %p226
      %p228 = scmp.ne.s32.totalorder %s217, %s220
      %p229 = scmp.eq.s32.totalorder %s34, 1
      %p230 = por %p228, %p229
      %p231 = scmp.ne.s32.totalorder %s220, %s221
      %p232 = scmp.eq.s32.totalorder %s34, 0
      %p233 = por %p231, %p232
      %p234 = scmp.ne.s32.totalorder %s220, %s221
      %p235 = scmp.eq.s32.totalorder %s35, 1
      %p236 = por %p234, %p235
      %p238 = scmp.ne.s32.totalorder %s221, %s237
      %p239 = scmp.eq.s32.totalorder %s35, 0
      %p240 = por %p238, %p239
      %s241 = ssub.s32 %s29, %s36
      %p242 = scmp.eq.s32.totalorder %s241, 0
      %s244 = sadd.s32 %s243, 1
      %s245 = scalar_select %p242, %s243, %s244
      %p248 = pneg %p242
      %p249 = scmp.eq.s32.totalorder %s29, 1
      %p250 = por %p248, %p249
      %p251 = scmp.ne.s32.totalorder %s243, %s246
      %p252 = scmp.eq.s32.totalorder %s29, 0
      %p253 = por %p251, %p252
      %p254 = scmp.ne.s32.totalorder %s243, %s246
      %p255 = scmp.eq.s32.totalorder %s34, 1
      %p256 = por %p254, %p255
      %p257 = scmp.ne.s32.totalorder %s246, %s247
      %p258 = scmp.eq.s32.totalorder %s34, 0
      %p259 = por %p257, %p258
      %p260 = scmp.ne.s32.totalorder %s246, %s247
      %p261 = scmp.eq.s32.totalorder %s35, 1
      %p262 = por %p260, %p261
      %p264 = scmp.ne.s32.totalorder %s247, %s263
      %p265 = scmp.eq.s32.totalorder %s35, 0
      %p266 = por %p264, %p265
      %p267 = scmp.le.s32.totalorder 1, %s29
      %p268 = scmp.lt.s32.totalorder %s29, 3
      %p269 = pnand %p267, %p268
      %p270 = pneg %p269
      // Predicated region
      $region9: #{tpu_custom_call.1} parent=5 // pred_check
        _
      $region10: #{tpu_custom_call.1} parent=5 // pred_check_branch
        %272 = sbr.rel (%p269) target = $region12
      $region11: #{tpu_custom_call.1} parent=5 // pred_region
        %s273 = ssub.s32 %s29, 1
        // Predicated region
        $region13: #{tpu_custom_call.1} parent=11 // pred_check
          %p274 = pneg %p76
        $region14: #{tpu_custom_call.1} parent=11 // pred_check_branch
          %276 = sbr.rel (%p274) target = $region16
        $region15: #{tpu_custom_call.1} parent=11 // pred_region
          %s278 = ssub.s32 64, 64
          %279 = vsyncadd [#allocation5], %s278
          %282 = dma.hbm_to_smem %s1, 64, [#allocation7], [#allocation5]
        $region16: #{tpu_custom_call.1} parent=11 // pred_fallthru
          _
        // Predicated region
        $region17: #{tpu_custom_call.1} parent=11 // pred_check
          %p283 = pneg %p97
        $region18: #{tpu_custom_call.1} parent=11 // pred_check_branch
          %285 = sbr.rel (%p283) target = $region20
        $region19: #{tpu_custom_call.1} parent=11 // pred_region
          %s287 = ssub.s32 16, 16
          %288 = vsyncadd [#allocation6], %s287
          %s290 = sshll.u32 %s2, 4
          %s291 = int_to_ptr.vmem [resolvable:$true] %s290
          %293 = dma.vmem_to_smem %s291, 16, [#allocation8], [#allocation6]
        $region20: #{tpu_custom_call.1} parent=11 // pred_fallthru
          _
        // Predicated region
        $region21: #{tpu_custom_call.1} parent=11 // pred_check
          %p294 = pneg %p118
        $region22: #{tpu_custom_call.1} parent=11 // pred_check_branch
          %296 = sbr.rel (%p294) target = $region24
        $region23: #{tpu_custom_call.1} parent=11 // pred_region
          %s298 = ssub.s32 64, 64
          %299 = vsyncadd [#allocation10], %s298
          %s301 = sshll.u32 %s3, 4
          %s302 = int_to_ptr.vmem [resolvable:$true] %s301
          %304 = dma.vmem_to_smem %s302, 64, [#allocation9], [#allocation10]
        $region24: #{tpu_custom_call.1} parent=11 // pred_fallthru
          _
        // Predicated region
        $region25: #{tpu_custom_call.1} parent=11 // pred_check
          %p305 = pneg %p139
        $region26: #{tpu_custom_call.1} parent=11 // pred_check_branch
          %307 = sbr.rel (%p305) target = $region28
        $region27: #{tpu_custom_call.1} parent=11 // pred_region
          %s309 = ssub.s32 16, 16
          %310 = vsyncadd [#allocation10], %s309
          %s312 = sshll.u32 %s4, 4
          %s313 = int_to_ptr.vmem [resolvable:$true] %s312
          %315 = dma.vmem_to_smem %s313, 16, [#allocation11], [#allocation10]
        $region28: #{tpu_custom_call.1} parent=11 // pred_fallthru
          _
        // Predicated region
        $region29: #{tpu_custom_call.1} parent=11 // pred_check
          %p316 = pneg %p160
        $region30: #{tpu_custom_call.1} parent=11 // pred_check_branch
          %318 = sbr.rel (%p316) target = $region32
        $region31: #{tpu_custom_call.1} parent=11 // pred_region
          %s320 = ssub.s32 1536, 1536
          %321 = vsyncadd [#allocation13], %s320
          %s323 = sshll.u32 [#allocation12], 4
          %s324 = int_to_ptr.vmem [resolvable:$true] %s323
          %326 = dma.hbm_to_vmem [thread:$0]  %s5, 1536, %s324, [#allocation13]
        $region32: #{tpu_custom_call.1} parent=11 // pred_fallthru
          _
        // Predicated region
        $region33: #{tpu_custom_call.1} parent=11 // pred_check
          %p327 = pneg %p181
        $region34: #{tpu_custom_call.1} parent=11 // pred_check_branch
          %329 = sbr.rel (%p327) target = $region36
        $region35: #{tpu_custom_call.1} parent=11 // pred_region
          %s331 = ssub.s32 1024, 1024
          %332 = vsyncadd [#allocation13], %s331
          %s334 = sshll.u32 [#allocation14], 4
          %s335 = int_to_ptr.vmem [resolvable:$true] %s334
          %337 = dma.hbm_to_vmem [thread:$0]  %s6, 1024, %s335, [#allocation13]
        $region36: #{tpu_custom_call.1} parent=11 // pred_fallthru
          _
      $region12: #{tpu_custom_call.1} parent=5 // pred_fallthru
        _
      %p338 = scmp.lt.s32.totalorder %s29, 2
      // Predicated region
      $region37: #{tpu_custom_call.1} parent=5 // pred_check
        %p339 = pneg %p338
      $region38: #{tpu_custom_call.1} parent=5 // pred_check_branch
        %341 = sbr.rel (%p339) target = $region40
      $region39: #{tpu_custom_call.1} parent=5 // pred_region
        // Predicated region
        $region41: #{tpu_custom_call.1} parent=39 // pred_check
          %p342 = pneg %p49
        $region42: #{tpu_custom_call.1} parent=39 // pred_check_branch
          %344 = sbr.rel (%p342) target = $region44
        $region43: #{tpu_custom_call.1} parent=39 // pred_region
          %s345 = sand.u32 %s39, 1
          %s346 = scalar_lea.sflag [#allocation3], %s345
          %s347 = sand.u32 %s39, 1
          %s348 = smul.addr %s347, 768
          %s349 = scalar_lea.vmem [#allocation2], %s348
          %s351 = ssub.s32 12288, 12288
          %352 = vsyncadd %s346, %s351
          %s353 = smul.addr %s29, 96
          %s354 = smul.addr %s353, 128
          %s355 = scalar_lea.hbm %s0, %s354
          %s357 = sshll.u32 %s349, 4
          %s358 = int_to_ptr.vmem [resolvable:$true] %s357
          %360 = dma.hbm_to_vmem [thread:$0]  %s355, 12288, %s358, %s346
        $region44: #{tpu_custom_call.1} parent=39 // pred_fallthru
          _
      $region40: #{tpu_custom_call.1} parent=5 // pred_fallthru
        _
      %p361 = scmp.le.s32.totalorder 1, %s29
      %p362 = scmp.lt.s32.totalorder %s29, 3
      %p363 = pnand %p361, %p362
      %p364 = pneg %p363
      // Predicated region
      $region45: #{tpu_custom_call.1} parent=5 // pred_check
        _
      $region46: #{tpu_custom_call.1} parent=5 // pred_check_branch
        %366 = sbr.rel (%p363) target = $region48
      $region47: #{tpu_custom_call.1} parent=5 // pred_region
        %s367 = ssub.s32 %s29, 1
        %s368 = sand.u32 %s42, 1
        %s369 = scalar_lea.sflag [#allocation3], %s368
        %s370 = sand.u32 %s42, 1
        %s371 = smul.addr %s370, 768
        %s372 = scalar_lea.vmem [#allocation2], %s371
        // Predicated region
        $region49: #{tpu_custom_call.1} parent=47 // pred_check
          %p373 = pneg %p55
        $region50: #{tpu_custom_call.1} parent=47 // pred_check_branch
          %375 = sbr.rel (%p373) target = $region52
        $region51: #{tpu_custom_call.1} parent=47 // pred_region
          %376 = dma.done %s369, 12288
        $region52: #{tpu_custom_call.1} parent=47 // pred_fallthru
          _
        // Predicated region
        $region53: #{tpu_custom_call.1} parent=47 // pred_check
          %p377 = pneg %p76
        $region54: #{tpu_custom_call.1} parent=47 // pred_check_branch
          %379 = sbr.rel (%p377) target = $region56
        $region55: #{tpu_custom_call.1} parent=47 // pred_region
          %380 = dma.done [#allocation5], 64
        $region56: #{tpu_custom_call.1} parent=47 // pred_fallthru
          _
        // Predicated region
        $region57: #{tpu_custom_call.1} parent=47 // pred_check
          %p381 = pneg %p97
        $region58: #{tpu_custom_call.1} parent=47 // pred_check_branch
          %383 = sbr.rel (%p381) target = $region60
        $region59: #{tpu_custom_call.1} parent=47 // pred_region
          %384 = dma.done [#allocation6], 16
        $region60: #{tpu_custom_call.1} parent=47 // pred_fallthru
          _
        // Predicated region
        $region61: #{tpu_custom_call.1} parent=47 // pred_check
          %p385 = pneg %p118
        $region62: #{tpu_custom_call.1} parent=47 // pred_check_branch
          %387 = sbr.rel (%p385) target = $region64
        $region63: #{tpu_custom_call.1} parent=47 // pred_region
          %388 = dma.done [#allocation10], 64
        $region64: #{tpu_custom_call.1} parent=47 // pred_fallthru
          _
        // Predicated region
        $region65: #{tpu_custom_call.1} parent=47 // pred_check
          %p389 = pneg %p139
        $region66: #{tpu_custom_call.1} parent=47 // pred_check_branch
          %391 = sbr.rel (%p389) target = $region68
        $region67: #{tpu_custom_call.1} parent=47 // pred_region
          %392 = dma.done [#allocation10], 16
        $region68: #{tpu_custom_call.1} parent=47 // pred_fallthru
          _
        // Predicated region
        $region69: #{tpu_custom_call.1} parent=47 // pred_check
          %p393 = pneg %p160
        $region70: #{tpu_custom_call.1} parent=47 // pred_check_branch
          %395 = sbr.rel (%p393) target = $region72
        $region71: #{tpu_custom_call.1} parent=47 // pred_region
          %396 = dma.done [#allocation13], 1536
        $region72: #{tpu_custom_call.1} parent=47 // pred_fallthru
          _
        // Predicated region
        $region73: #{tpu_custom_call.1} parent=47 // pred_check
          %p397 = pneg %p181
        $region74: #{tpu_custom_call.1} parent=47 // pred_check_branch
          %399 = sbr.rel (%p397) target = $region76
        $region75: #{tpu_custom_call.1} parent=47 // pred_region
          %400 = dma.done [#allocation13], 1024
        $region76: #{tpu_custom_call.1} parent=47 // pred_fallthru
          _
        %401 = sfence
        %s402 = sand.u32 %s42, 1
        %s403 = scalar_lea.sflag [#allocation3], %s402
        %s404 = sand.u32 %s42, 1
        %s405 = smul.addr %s404, 768
        %s406 = scalar_lea.vmem [#allocation2], %s405
        %p407 = pneg %p55
        %p408 = pneg %p52
        %p409 = pneg %p76
        %p410 = pneg %p73
        %p411 = pneg %p97
        %p412 = pneg %p94
        %p413 = pneg %p118
        %p414 = pneg %p115
        %p415 = pneg %p139
        %p416 = pneg %p136
        %p417 = pneg %p160
        %p418 = pneg %p157
        %p419 = pneg %p181
        %p420 = pneg %p178
        %p421 = pneg %p207
        %p422 = pneg %p204
        %s423 = sand.u32 %s194, 1
        %s424 = scalar_lea.sflag [#allocation4], %s423
        %s425 = sand.u32 %s194, 1
        %s426 = smul.addr %s425, 768
        %s427 = scalar_lea.vmem [#allocation15], %s426
        %p428 = pneg %p233
        %p429 = pneg %p230
        %s430 = sand.u32 %s34, 1
        %s431 = scalar_lea.sflag [#allocation17], %s430
        %s432 = sand.u32 %s220, 1
        %s433 = smul.addr %s432, 768
        %s434 = scalar_lea.vmem [#allocation16], %s433
        %p435 = pneg %p259
        %p436 = pneg %p256
        %s437 = sand.u32 %s34, 1
        %s438 = scalar_lea.sflag [#allocation17], %s437
        %s439 = sand.u32 %s246, 1
        %s440 = smul.addr %s439, 768
        %s441 = scalar_lea.vmem [#allocation18], %s440
        %v442 = vld [vmem:[%s372] sm:$0xff]
        %v443 = vld [vmem:[%s372 + $0x8] sm:$0xff]
        %v444 = vld [vmem:[%s372 + $0x10] sm:$0xff]
        %v445 = vld [vmem:[%s372 + $0x18] sm:$0xff]
        %v446 = vld [vmem:[%s372 + $0x20] sm:$0xff]
        %v447 = vld [vmem:[%s372 + $0x28] sm:$0xff]
        %v448 = vld [vmem:[%s372 + $0x30] sm:$0xff]
        %v449 = vld [vmem:[%s372 + $0x38] sm:$0xff]
        %v450 = vld [vmem:[%s372 + $0x40] sm:$0xff]
        %v451 = vld [vmem:[%s372 + $0x48] sm:$0xff]
        %v452 = vld [vmem:[%s372 + $0x50] sm:$0xff]
        %v453 = vld [vmem:[%s372 + $0x58] sm:$0xff]
        %v454 = vld [vmem:[%s372 + $0x60] sm:$0xff]
        %v455 = vld [vmem:[%s372 + $0x68] sm:$0xff]
        %v456 = vld [vmem:[%s372 + $0x70] sm:$0xff]
        %v457 = vld [vmem:[%s372 + $0x78] sm:$0xff]
        %v458 = vld [vmem:[%s372 + $0x80] sm:$0xff]
        %v459 = vld [vmem:[%s372 + $0x88] sm:$0xff]
        %v460 = vld [vmem:[%s372 + $0x90] sm:$0xff]
        %v461 = vld [vmem:[%s372 + $0x98] sm:$0xff]
        %v462 = vld [vmem:[%s372 + $0xa0] sm:$0xff]
        %v463 = vld [vmem:[%s372 + $0xa8] sm:$0xff]
        %v464 = vld [vmem:[%s372 + $0xb0] sm:$0xff]
        %v465 = vld [vmem:[%s372 + $0xb8] sm:$0xff]
        %v466 = vld [vmem:[%s372 + $0xc0] sm:$0xff]
        %v467 = vld [vmem:[%s372 + $0xc8] sm:$0xff]
        %v468 = vld [vmem:[%s372 + $0xd0] sm:$0xff]
        %v469 = vld [vmem:[%s372 + $0xd8] sm:$0xff]
        %v470 = vld [vmem:[%s372 + $0xe0] sm:$0xff]
        %v471 = vld [vmem:[%s372 + $0xe8] sm:$0xff]
        %v472 = vld [vmem:[%s372 + $0xf0] sm:$0xff]
        %v473 = vld [vmem:[%s372 + $0xf8] sm:$0xff]
        %v474 = vld [vmem:[%s372 + $0x100] sm:$0xff]
        %v475 = vld [vmem:[%s372 + $0x108] sm:$0xff]
        %v476 = vld [vmem:[%s372 + $0x110] sm:$0xff]
        %v477 = vld [vmem:[%s372 + $0x118] sm:$0xff]
        %v478 = vld [vmem:[%s372 + $0x120] sm:$0xff]
        %v479 = vld [vmem:[%s372 + $0x128] sm:$0xff]
        %v480 = vld [vmem:[%s372 + $0x130] sm:$0xff]
        %v481 = vld [vmem:[%s372 + $0x138] sm:$0xff]
        %v482 = vld [vmem:[%s372 + $0x140] sm:$0xff]
        %v483 = vld [vmem:[%s372 + $0x148] sm:$0xff]
        %v484 = vld [vmem:[%s372 + $0x150] sm:$0xff]
        %v485 = vld [vmem:[%s372 + $0x158] sm:$0xff]
        %v486 = vld [vmem:[%s372 + $0x160] sm:$0xff]
        %v487 = vld [vmem:[%s372 + $0x168] sm:$0xff]
        %v488 = vld [vmem:[%s372 + $0x170] sm:$0xff]
        %v489 = vld [vmem:[%s372 + $0x178] sm:$0xff]
        %v490 = vld [vmem:[%s372 + $0x180] sm:$0xff]
        %v491 = vld [vmem:[%s372 + $0x188] sm:$0xff]
        %v492 = vld [vmem:[%s372 + $0x190] sm:$0xff]
        %v493 = vld [vmem:[%s372 + $0x198] sm:$0xff]
        %v494 = vld [vmem:[%s372 + $0x1a0] sm:$0xff]
        %v495 = vld [vmem:[%s372 + $0x1a8] sm:$0xff]
        %v496 = vld [vmem:[%s372 + $0x1b0] sm:$0xff]
        %v497 = vld [vmem:[%s372 + $0x1b8] sm:$0xff]
        %v498 = vld [vmem:[%s372 + $0x1c0] sm:$0xff]
        %v499 = vld [vmem:[%s372 + $0x1c8] sm:$0xff]
        %v500 = vld [vmem:[%s372 + $0x1d0] sm:$0xff]
        %v501 = vld [vmem:[%s372 + $0x1d8] sm:$0xff]
        %v502 = vld [vmem:[%s372 + $0x1e0] sm:$0xff]
        %v503 = vld [vmem:[%s372 + $0x1e8] sm:$0xff]
        %v504 = vld [vmem:[%s372 + $0x1f0] sm:$0xff]
        %v505 = vld [vmem:[%s372 + $0x1f8] sm:$0xff]
        %v506 = vld [vmem:[%s372 + $0x200] sm:$0xff]
        %v507 = vld [vmem:[%s372 + $0x208] sm:$0xff]
        %v508 = vld [vmem:[%s372 + $0x210] sm:$0xff]
        %v509 = vld [vmem:[%s372 + $0x218] sm:$0xff]
        %v510 = vld [vmem:[%s372 + $0x220] sm:$0xff]
        %v511 = vld [vmem:[%s372 + $0x228] sm:$0xff]
        %v512 = vld [vmem:[%s372 + $0x230] sm:$0xff]
        %v513 = vld [vmem:[%s372 + $0x238] sm:$0xff]
        %v514 = vld [vmem:[%s372 + $0x240] sm:$0xff]
        %v515 = vld [vmem:[%s372 + $0x248] sm:$0xff]
        %v516 = vld [vmem:[%s372 + $0x250] sm:$0xff]
        %v517 = vld [vmem:[%s372 + $0x258] sm:$0xff]
        %v518 = vld [vmem:[%s372 + $0x260] sm:$0xff]
        %v519 = vld [vmem:[%s372 + $0x268] sm:$0xff]
        %v520 = vld [vmem:[%s372 + $0x270] sm:$0xff]
        %v521 = vld [vmem:[%s372 + $0x278] sm:$0xff]
        %v522 = vld [vmem:[%s372 + $0x280] sm:$0xff]
        %v523 = vld [vmem:[%s372 + $0x288] sm:$0xff]
        %v524 = vld [vmem:[%s372 + $0x290] sm:$0xff]
        %v525 = vld [vmem:[%s372 + $0x298] sm:$0xff]
        %v526 = vld [vmem:[%s372 + $0x2a0] sm:$0xff]
        %v527 = vld [vmem:[%s372 + $0x2a8] sm:$0xff]
        %v528 = vld [vmem:[%s372 + $0x2b0] sm:$0xff]
        %v529 = vld [vmem:[%s372 + $0x2b8] sm:$0xff]
        %v530 = vld [vmem:[%s372 + $0x2c0] sm:$0xff]
        %v531 = vld [vmem:[%s372 + $0x2c8] sm:$0xff]
        %v532 = vld [vmem:[%s372 + $0x2d0] sm:$0xff]
        %v533 = vld [vmem:[%s372 + $0x2d8] sm:$0xff]
        %v534 = vld [vmem:[%s372 + $0x2e0] sm:$0xff]
        %v535 = vld [vmem:[%s372 + $0x2e8] sm:$0xff]
        %v536 = vld [vmem:[%s372 + $0x2f0] sm:$0xff]
        %v537 = vld [vmem:[%s372 + $0x2f8] sm:$0xff]
        %v538 = vld [vmem:[#allocation12] sm:$0xff]
        %v539 = vld [vmem:[#allocation12 + $0x8] sm:$0xff]
        %v540 = vld [vmem:[#allocation12 + $0x10] sm:$0xff]
        %v541 = vld [vmem:[#allocation12 + $0x18] sm:$0xff]
        %v542 = vld [vmem:[#allocation12 + $0x20] sm:$0xff]
        %v543 = vld [vmem:[#allocation12 + $0x28] sm:$0xff]
        %v544 = vld [vmem:[#allocation12 + $0x30] sm:$0xff]
        %v545 = vld [vmem:[#allocation12 + $0x38] sm:$0xff]
        %v546 = vld [vmem:[#allocation12 + $0x40] sm:$0xff]
        %v547 = vld [vmem:[#allocation12 + $0x48] sm:$0xff]
        %v548 = vld [vmem:[#allocation12 + $0x50] sm:$0xff]
        %v549 = vld [vmem:[#allocation12 + $0x58] sm:$0xff]
        %v550 = vld [vmem:[#allocation14] ss:$2 sm:$0xff]
        %s551 = scalar_lea.vmem [#allocation14], 16
        %v552 = vld [vmem:[%s551] ss:$2 sm:$0xff]
        %s553 = scalar_lea.vmem [#allocation14], 32
        %v554 = vld [vmem:[%s553] ss:$2 sm:$0xff]
        %s555 = scalar_lea.vmem [#allocation14], 48
        %v556 = vld [vmem:[%s555] ss:$2 sm:$0xff]
        %s557 = scalar_lea.vmem [#allocation14], 1
        %v558 = vld [vmem:[%s557] ss:$2 sm:$0xff]
        %s559 = scalar_lea.vmem [#allocation14], 17
        %v560 = vld [vmem:[%s559] ss:$2 sm:$0xff]
        %s561 = scalar_lea.vmem [#allocation14], 33
        %v562 = vld [vmem:[%s561] ss:$2 sm:$0xff]
        %s563 = scalar_lea.vmem [#allocation14], 49
        %v564 = vld [vmem:[%s563] ss:$2 sm:$0xff]
        %s565 = sld [smem:[#allocation7]]
        %v566 = vstv %s565
        %v567 = vmul.f32 %v566, %v442
        %v568 = vmul.f32 %v566, %v443
        %v569 = vmul.f32 %v566, %v444
        %v570 = vmul.f32 %v566, %v445
        %v571 = vmul.f32 %v566, %v446
        %v572 = vmul.f32 %v566, %v447
        %v573 = vmul.f32 %v566, %v448
        %v574 = vmul.f32 %v566, %v449
        %v575 = vmul.f32 %v566, %v450
        %v576 = vmul.f32 %v566, %v451
        %v577 = vmul.f32 %v566, %v452
        %v578 = vmul.f32 %v566, %v453
        %v579 = vmul.f32 %v566, %v454
        %v580 = vmul.f32 %v566, %v455
        %v581 = vmul.f32 %v566, %v456
        %v582 = vmul.f32 %v566, %v457
        %v583 = vmul.f32 %v566, %v458
        %v584 = vmul.f32 %v566, %v459
        %v585 = vmul.f32 %v566, %v460
        %v586 = vmul.f32 %v566, %v461
        %v587 = vmul.f32 %v566, %v462
        %v588 = vmul.f32 %v566, %v463
        %v589 = vmul.f32 %v566, %v464
        %v590 = vmul.f32 %v566, %v465
        %v591 = vmul.f32 %v566, %v466
        %v592 = vmul.f32 %v566, %v467
        %v593 = vmul.f32 %v566, %v468
        %v594 = vmul.f32 %v566, %v469
        %v595 = vmul.f32 %v566, %v470
        %v596 = vmul.f32 %v566, %v471
        %v597 = vmul.f32 %v566, %v472
        %v598 = vmul.f32 %v566, %v473
        %s599 = sld [smem:[#allocation7 + $0x1]]
        %v600 = vstv %s599
        %v601 = vmul.f32 %v600, %v474
        %v602 = vmul.f32 %v600, %v475
        %v603 = vmul.f32 %v600, %v476
        %v604 = vmul.f32 %v600, %v477
        %v605 = vmul.f32 %v600, %v478
        %v606 = vmul.f32 %v600, %v479
        %v607 = vmul.f32 %v600, %v480
        %v608 = vmul.f32 %v600, %v481
        %v609 = vmul.f32 %v600, %v482
        %v610 = vmul.f32 %v600, %v483
        %v611 = vmul.f32 %v600, %v484
        %v612 = vmul.f32 %v600, %v485
        %v613 = vmul.f32 %v600, %v486
        %v614 = vmul.f32 %v600, %v487
        %v615 = vmul.f32 %v600, %v488
        %v616 = vmul.f32 %v600, %v489
        %v617 = vmul.f32 %v600, %v490
        %v618 = vmul.f32 %v600, %v491
        %v619 = vmul.f32 %v600, %v492
        %v620 = vmul.f32 %v600, %v493
        %v621 = vmul.f32 %v600, %v494
        %v622 = vmul.f32 %v600, %v495
        %v623 = vmul.f32 %v600, %v496
        %v624 = vmul.f32 %v600, %v497
        %v625 = vmul.f32 %v600, %v498
        %v626 = vmul.f32 %v600, %v499
        %v627 = vmul.f32 %v600, %v500
        %v628 = vmul.f32 %v600, %v501
        %v629 = vmul.f32 %v600, %v502
        %v630 = vmul.f32 %v600, %v503
        %v631 = vmul.f32 %v600, %v504
        %v632 = vmul.f32 %v600, %v505
        %v633 = vadd.f32 %v567, %v601
        %v634 = vadd.f32 %v568, %v602
        %v635 = vadd.f32 %v569, %v603
        %v636 = vadd.f32 %v570, %v604
        %v637 = vadd.f32 %v571, %v605
        %v638 = vadd.f32 %v572, %v606
        %v639 = vadd.f32 %v573, %v607
        %v640 = vadd.f32 %v574, %v608
        %v641 = vadd.f32 %v575, %v609
        %v642 = vadd.f32 %v576, %v610
        %v643 = vadd.f32 %v577, %v611
        %v644 = vadd.f32 %v578, %v612
        %v645 = vadd.f32 %v579, %v613
        %v646 = vadd.f32 %v580, %v614
        %v647 = vadd.f32 %v581, %v615
        %v648 = vadd.f32 %v582, %v616
        %v649 = vadd.f32 %v583, %v617
        %v650 = vadd.f32 %v584, %v618
        %v651 = vadd.f32 %v585, %v619
        %v652 = vadd.f32 %v586, %v620
        %v653 = vadd.f32 %v587, %v621
        %v654 = vadd.f32 %v588, %v622
        %v655 = vadd.f32 %v589, %v623
        %v656 = vadd.f32 %v590, %v624
        %v657 = vadd.f32 %v591, %v625
        %v658 = vadd.f32 %v592, %v626
        %v659 = vadd.f32 %v593, %v627
        %v660 = vadd.f32 %v594, %v628
        %v661 = vadd.f32 %v595, %v629
        %v662 = vadd.f32 %v596, %v630
        %v663 = vadd.f32 %v597, %v631
        %v664 = vadd.f32 %v598, %v632
        %s665 = sld [smem:[#allocation7 + $0x2]]
        %v666 = vstv %s665
        %v667 = vmul.f32 %v666, %v506
        %v668 = vmul.f32 %v666, %v507
        %v669 = vmul.f32 %v666, %v508
        %v670 = vmul.f32 %v666, %v509
        %v671 = vmul.f32 %v666, %v510
        %v672 = vmul.f32 %v666, %v511
        %v673 = vmul.f32 %v666, %v512
        %v674 = vmul.f32 %v666, %v513
        %v675 = vmul.f32 %v666, %v514
        %v676 = vmul.f32 %v666, %v515
        %v677 = vmul.f32 %v666, %v516
        %v678 = vmul.f32 %v666, %v517
        %v679 = vmul.f32 %v666, %v518
        %v680 = vmul.f32 %v666, %v519
        %v681 = vmul.f32 %v666, %v520
        %v682 = vmul.f32 %v666, %v521
        %v683 = vmul.f32 %v666, %v522
        %v684 = vmul.f32 %v666, %v523
        %v685 = vmul.f32 %v666, %v524
        %v686 = vmul.f32 %v666, %v525
        %v687 = vmul.f32 %v666, %v526
        %v688 = vmul.f32 %v666, %v527
        %v689 = vmul.f32 %v666, %v528
        %v690 = vmul.f32 %v666, %v529
        %v691 = vmul.f32 %v666, %v530
        %v692 = vmul.f32 %v666, %v531
        %v693 = vmul.f32 %v666, %v532
        %v694 = vmul.f32 %v666, %v533
        %v695 = vmul.f32 %v666, %v534
        %v696 = vmul.f32 %v666, %v535
        %v697 = vmul.f32 %v666, %v536
        %v698 = vmul.f32 %v666, %v537
        %v699 = vadd.f32 %v633, %v667
        %v700 = vadd.f32 %v634, %v668
        %v701 = vadd.f32 %v635, %v669
        %v702 = vadd.f32 %v636, %v670
        %v703 = vadd.f32 %v637, %v671
        %v704 = vadd.f32 %v638, %v672
        %v705 = vadd.f32 %v639, %v673
        %v706 = vadd.f32 %v640, %v674
        %v707 = vadd.f32 %v641, %v675
        %v708 = vadd.f32 %v642, %v676
        %v709 = vadd.f32 %v643, %v677
        %v710 = vadd.f32 %v644, %v678
        %v711 = vadd.f32 %v645, %v679
        %v712 = vadd.f32 %v646, %v680
        %v713 = vadd.f32 %v647, %v681
        %v714 = vadd.f32 %v648, %v682
        %v715 = vadd.f32 %v649, %v683
        %v716 = vadd.f32 %v650, %v684
        %v717 = vadd.f32 %v651, %v685
        %v718 = vadd.f32 %v652, %v686
        %v719 = vadd.f32 %v653, %v687
        %v720 = vadd.f32 %v654, %v688
        %v721 = vadd.f32 %v655, %v689
        %v722 = vadd.f32 %v656, %v690
        %v723 = vadd.f32 %v657, %v691
        %v724 = vadd.f32 %v658, %v692
        %v725 = vadd.f32 %v659, %v693
        %v726 = vadd.f32 %v660, %v694
        %v727 = vadd.f32 %v661, %v695
        %v728 = vadd.f32 %v662, %v696
        %v729 = vadd.f32 %v663, %v697
        %v730 = vadd.f32 %v664, %v698
        %s731 = sld [smem:[#allocation8]]
        %v732 = vstv %s731
        %v733 = vadd.f32 %v699, %v732
        %v734 = vadd.f32 %v700, %v732
        %v735 = vadd.f32 %v701, %v732
        %v736 = vadd.f32 %v702, %v732
        %v737 = vadd.f32 %v703, %v732
        %v738 = vadd.f32 %v704, %v732
        %v739 = vadd.f32 %v705, %v732
        %v740 = vadd.f32 %v706, %v732
        %v741 = vadd.f32 %v707, %v732
        %v742 = vadd.f32 %v708, %v732
        %v743 = vadd.f32 %v709, %v732
        %v744 = vadd.f32 %v710, %v732
        %v745 = vadd.f32 %v711, %v732
        %v746 = vadd.f32 %v712, %v732
        %v747 = vadd.f32 %v713, %v732
        %v748 = vadd.f32 %v714, %v732
        %v749 = vadd.f32 %v715, %v732
        %v750 = vadd.f32 %v716, %v732
        %v751 = vadd.f32 %v717, %v732
        %v752 = vadd.f32 %v718, %v732
        %v753 = vadd.f32 %v719, %v732
        %v754 = vadd.f32 %v720, %v732
        %v755 = vadd.f32 %v721, %v732
        %v756 = vadd.f32 %v722, %v732
        %v757 = vadd.f32 %v723, %v732
        %v758 = vadd.f32 %v724, %v732
        %v759 = vadd.f32 %v725, %v732
        %v760 = vadd.f32 %v726, %v732
        %v761 = vadd.f32 %v727, %v732
        %v762 = vadd.f32 %v728, %v732
        %v763 = vadd.f32 %v729, %v732
        %v764 = vadd.f32 %v730, %v732
        %v769 = vlaneseq
        %v770 = vshrl.u32 %v769, 7
        %v771 = vsub.s32 0, %v770
        %v772 = vrot.slane %v538, %v771
        %v773 = vlaneseq
        %v774 = vshrl.u32 %v773, 7
        %v775 = vsub.s32 1, %v774
        %v776 = vrot.slane %v538, %v775
        %v777 = vlaneseq
        %v778 = vshrl.u32 %v777, 7
        %v779 = vsub.s32 2, %v778
        %v780 = vrot.slane %v538, %v779
        %v781 = vlaneseq
        %v782 = vshrl.u32 %v781, 7
        %v783 = vsub.s32 3, %v782
        %v784 = vrot.slane %v538, %v783
        %v785 = vlaneseq
        %v786 = vshrl.u32 %v785, 7
        %v787 = vsub.s32 4, %v786
        %v788 = vrot.slane %v538, %v787
        %v789 = vlaneseq
        %v790 = vshrl.u32 %v789, 7
        %v791 = vsub.s32 5, %v790
        %v792 = vrot.slane %v538, %v791
        %v793 = vlaneseq
        %v794 = vshrl.u32 %v793, 7
        %v795 = vsub.s32 6, %v794
        %v796 = vrot.slane %v538, %v795
        %v797 = vlaneseq
        %v798 = vshrl.u32 %v797, 7
        %v799 = vsub.s32 7, %v798
        %v800 = vrot.slane %v538, %v799
        %v801 = vlaneseq
        %v802 = vshrl.u32 %v801, 7
        %v803 = vsub.s32 0, %v802
        %v804 = vrot.slane %v539, %v803
        %v805 = vlaneseq
        %v806 = vshrl.u32 %v805, 7
        %v807 = vsub.s32 1, %v806
        %v808 = vrot.slane %v539, %v807
        %v809 = vlaneseq
        %v810 = vshrl.u32 %v809, 7
        %v811 = vsub.s32 2, %v810
        %v812 = vrot.slane %v539, %v811
        %v813 = vlaneseq
        %v814 = vshrl.u32 %v813, 7
        %v815 = vsub.s32 3, %v814
        %v816 = vrot.slane %v539, %v815
        %v817 = vlaneseq
        %v818 = vshrl.u32 %v817, 7
        %v819 = vsub.s32 4, %v818
        %v820 = vrot.slane %v539, %v819
        %v821 = vlaneseq
        %v822 = vshrl.u32 %v821, 7
        %v823 = vsub.s32 5, %v822
        %v824 = vrot.slane %v539, %v823
        %v825 = vlaneseq
        %v826 = vshrl.u32 %v825, 7
        %v827 = vsub.s32 6, %v826
        %v828 = vrot.slane %v539, %v827
        %v829 = vlaneseq
        %v830 = vshrl.u32 %v829, 7
        %v831 = vsub.s32 7, %v830
        %v832 = vrot.slane %v539, %v831
        %v833 = vlaneseq
        %v834 = vshrl.u32 %v833, 7
        %v835 = vsub.s32 0, %v834
        %v836 = vrot.slane %v540, %v835
        %v837 = vlaneseq
        %v838 = vshrl.u32 %v837, 7
        %v839 = vsub.s32 1, %v838
        %v840 = vrot.slane %v540, %v839
        %v841 = vlaneseq
        %v842 = vshrl.u32 %v841, 7
        %v843 = vsub.s32 2, %v842
        %v844 = vrot.slane %v540, %v843
        %v845 = vlaneseq
        %v846 = vshrl.u32 %v845, 7
        %v847 = vsub.s32 3, %v846
        %v848 = vrot.slane %v540, %v847
        %v849 = vlaneseq
        %v850 = vshrl.u32 %v849, 7
        %v851 = vsub.s32 4, %v850
        %v852 = vrot.slane %v540, %v851
        %v853 = vlaneseq
        %v854 = vshrl.u32 %v853, 7
        %v855 = vsub.s32 5, %v854
        %v856 = vrot.slane %v540, %v855
        %v857 = vlaneseq
        %v858 = vshrl.u32 %v857, 7
        %v859 = vsub.s32 6, %v858
        %v860 = vrot.slane %v540, %v859
        %v861 = vlaneseq
        %v862 = vshrl.u32 %v861, 7
        %v863 = vsub.s32 7, %v862
        %v864 = vrot.slane %v540, %v863
        %v865 = vlaneseq
        %v866 = vshrl.u32 %v865, 7
        %v867 = vsub.s32 0, %v866
        %v868 = vrot.slane %v541, %v867
        %v869 = vlaneseq
        %v870 = vshrl.u32 %v869, 7
        %v871 = vsub.s32 1, %v870
        %v872 = vrot.slane %v541, %v871
        %v873 = vlaneseq
        %v874 = vshrl.u32 %v873, 7
        %v875 = vsub.s32 2, %v874
        %v876 = vrot.slane %v541, %v875
        %v877 = vlaneseq
        %v878 = vshrl.u32 %v877, 7
        %v879 = vsub.s32 3, %v878
        %v880 = vrot.slane %v541, %v879
        %v881 = vlaneseq
        %v882 = vshrl.u32 %v881, 7
        %v883 = vsub.s32 4, %v882
        %v884 = vrot.slane %v541, %v883
        %v885 = vlaneseq
        %v886 = vshrl.u32 %v885, 7
        %v887 = vsub.s32 5, %v886
        %v888 = vrot.slane %v541, %v887
        %v889 = vlaneseq
        %v890 = vshrl.u32 %v889, 7
        %v891 = vsub.s32 6, %v890
        %v892 = vrot.slane %v541, %v891
        %v893 = vlaneseq
        %v894 = vshrl.u32 %v893, 7
        %v895 = vsub.s32 7, %v894
        %v896 = vrot.slane %v541, %v895
        %v929 = vmul.f32 %v733, %v772
        %v930 = vmul.f32 %v734, %v776
        %v931 = vmul.f32 %v735, %v780
        %v932 = vmul.f32 %v736, %v784
        %v933 = vmul.f32 %v737, %v788
        %v934 = vmul.f32 %v738, %v792
        %v935 = vmul.f32 %v739, %v796
        %v936 = vmul.f32 %v740, %v800
        %v937 = vmul.f32 %v741, %v804
        %v938 = vmul.f32 %v742, %v808
        %v939 = vmul.f32 %v743, %v812
        %v940 = vmul.f32 %v744, %v816
        %v941 = vmul.f32 %v745, %v820
        %v942 = vmul.f32 %v746, %v824
        %v943 = vmul.f32 %v747, %v828
        %v944 = vmul.f32 %v748, %v832
        %v945 = vmul.f32 %v749, %v836
        %v946 = vmul.f32 %v750, %v840
        %v947 = vmul.f32 %v751, %v844
        %v948 = vmul.f32 %v752, %v848
        %v949 = vmul.f32 %v753, %v852
        %v950 = vmul.f32 %v754, %v856
        %v951 = vmul.f32 %v755, %v860
        %v952 = vmul.f32 %v756, %v864
        %v953 = vmul.f32 %v757, %v868
        %v954 = vmul.f32 %v758, %v872
        %v955 = vmul.f32 %v759, %v876
        %v956 = vmul.f32 %v760, %v880
        %v957 = vmul.f32 %v761, %v884
        %v958 = vmul.f32 %v762, %v888
        %v959 = vmul.f32 %v763, %v892
        %v960 = vmul.f32 %v764, %v896
        %v961 = vmul.f32 %v929, 1.442695
        %v962 = vpow.pop %v961
        %v963 = vmul.f32 %v930, 1.442695
        %v964 = vpow.pop %v963
        %v965 = vmul.f32 %v931, 1.442695
        %v966 = vpow.pop %v965
        %v967 = vmul.f32 %v932, 1.442695
        %v968 = vpow.pop %v967
        %v969 = vmul.f32 %v933, 1.442695
        %v970 = vpow.pop %v969
        %v971 = vmul.f32 %v934, 1.442695
        %v972 = vpow.pop %v971
        %v973 = vmul.f32 %v935, 1.442695
        %v974 = vpow.pop %v973
        %v975 = vmul.f32 %v936, 1.442695
        %v976 = vpow.pop %v975
        %v977 = vmul.f32 %v937, 1.442695
        %v978 = vpow.pop %v977
        %v979 = vmul.f32 %v938, 1.442695
        %v980 = vpow.pop %v979
        %v981 = vmul.f32 %v939, 1.442695
        %v982 = vpow.pop %v981
        %v983 = vmul.f32 %v940, 1.442695
        %v984 = vpow.pop %v983
        %v985 = vmul.f32 %v941, 1.442695
        %v986 = vpow.pop %v985
        %v987 = vmul.f32 %v942, 1.442695
        %v988 = vpow.pop %v987
        %v989 = vmul.f32 %v943, 1.442695
        %v990 = vpow.pop %v989
        %v991 = vmul.f32 %v944, 1.442695
        %v992 = vpow.pop %v991
        %v993 = vmul.f32 %v945, 1.442695
        %v994 = vpow.pop %v993
        %v995 = vmul.f32 %v946, 1.442695
        %v996 = vpow.pop %v995
        %v997 = vmul.f32 %v947, 1.442695
        %v998 = vpow.pop %v997
        %v999 = vmul.f32 %v948, 1.442695
        %v1000 = vpow.pop %v999
        %v1001 = vmul.f32 %v949, 1.442695
        %v1002 = vpow.pop %v1001
        %v1003 = vmul.f32 %v950, 1.442695
        %v1004 = vpow.pop %v1003
        %v1005 = vmul.f32 %v951, 1.442695
        %v1006 = vpow.pop %v1005
        %v1007 = vmul.f32 %v952, 1.442695
        %v1008 = vpow.pop %v1007
        %v1009 = vmul.f32 %v953, 1.442695
        %v1010 = vpow.pop %v1009
        %v1011 = vmul.f32 %v954, 1.442695
        %v1012 = vpow.pop %v1011
        %v1013 = vmul.f32 %v955, 1.442695
        %v1014 = vpow.pop %v1013
        %v1015 = vmul.f32 %v956, 1.442695
        %v1016 = vpow.pop %v1015
        %v1017 = vmul.f32 %v957, 1.442695
        %v1018 = vpow.pop %v1017
        %v1019 = vmul.f32 %v958, 1.442695
        %v1020 = vpow.pop %v1019
        %v1021 = vmul.f32 %v959, 1.442695
        %v1022 = vpow.pop %v1021
        %v1023 = vmul.f32 %v960, 1.442695
        %v1024 = vpow.pop %v1023
        %v1025 = vsub.f32 %v962, 1.0
        %v1026 = vsub.f32 %v964, 1.0
        %v1027 = vsub.f32 %v966, 1.0
        %v1028 = vsub.f32 %v968, 1.0
        %v1029 = vsub.f32 %v970, 1.0
        %v1030 = vsub.f32 %v972, 1.0
        %v1031 = vsub.f32 %v974, 1.0
        %v1032 = vsub.f32 %v976, 1.0
        %v1033 = vsub.f32 %v978, 1.0
        %v1034 = vsub.f32 %v980, 1.0
        %v1035 = vsub.f32 %v982, 1.0
        %v1036 = vsub.f32 %v984, 1.0
        %v1037 = vsub.f32 %v986, 1.0
        %v1038 = vsub.f32 %v988, 1.0
        %v1039 = vsub.f32 %v990, 1.0
        %v1040 = vsub.f32 %v992, 1.0
        %v1041 = vsub.f32 %v994, 1.0
        %v1042 = vsub.f32 %v996, 1.0
        %v1043 = vsub.f32 %v998, 1.0
        %v1044 = vsub.f32 %v1000, 1.0
        %v1045 = vsub.f32 %v1002, 1.0
        %v1046 = vsub.f32 %v1004, 1.0
        %v1047 = vsub.f32 %v1006, 1.0
        %v1048 = vsub.f32 %v1008, 1.0
        %v1049 = vsub.f32 %v1010, 1.0
        %v1050 = vsub.f32 %v1012, 1.0
        %v1051 = vsub.f32 %v1014, 1.0
        %v1052 = vsub.f32 %v1016, 1.0
        %v1053 = vsub.f32 %v1018, 1.0
        %v1054 = vsub.f32 %v1020, 1.0
        %v1055 = vsub.f32 %v1022, 1.0
        %v1056 = vsub.f32 %v1024, 1.0
        %s1057 = sld [smem:[#allocation7 + $0x80]]
        %v1058 = vstv %s1057
        %v1059 = vmul.f32 %v1058, %v442
        %v1060 = vmul.f32 %v1058, %v443
        %v1061 = vmul.f32 %v1058, %v444
        %v1062 = vmul.f32 %v1058, %v445
        %v1063 = vmul.f32 %v1058, %v446
        %v1064 = vmul.f32 %v1058, %v447
        %v1065 = vmul.f32 %v1058, %v448
        %v1066 = vmul.f32 %v1058, %v449
        %v1067 = vmul.f32 %v1058, %v450
        %v1068 = vmul.f32 %v1058, %v451
        %v1069 = vmul.f32 %v1058, %v452
        %v1070 = vmul.f32 %v1058, %v453
        %v1071 = vmul.f32 %v1058, %v454
        %v1072 = vmul.f32 %v1058, %v455
        %v1073 = vmul.f32 %v1058, %v456
        %v1074 = vmul.f32 %v1058, %v457
        %v1075 = vmul.f32 %v1058, %v458
        %v1076 = vmul.f32 %v1058, %v459
        %v1077 = vmul.f32 %v1058, %v460
        %v1078 = vmul.f32 %v1058, %v461
        %v1079 = vmul.f32 %v1058, %v462
        %v1080 = vmul.f32 %v1058, %v463
        %v1081 = vmul.f32 %v1058, %v464
        %v1082 = vmul.f32 %v1058, %v465
        %v1083 = vmul.f32 %v1058, %v466
        %v1084 = vmul.f32 %v1058, %v467
        %v1085 = vmul.f32 %v1058, %v468
        %v1086 = vmul.f32 %v1058, %v469
        %v1087 = vmul.f32 %v1058, %v470
        %v1088 = vmul.f32 %v1058, %v471
        %v1089 = vmul.f32 %v1058, %v472
        %v1090 = vmul.f32 %v1058, %v473
        %s1091 = sld [smem:[#allocation7 + $0x81]]
        %v1092 = vstv %s1091
        %v1093 = vmul.f32 %v1092, %v474
        %v1094 = vmul.f32 %v1092, %v475
        %v1095 = vmul.f32 %v1092, %v476
        %v1096 = vmul.f32 %v1092, %v477
        %v1097 = vmul.f32 %v1092, %v478
        %v1098 = vmul.f32 %v1092, %v479
        %v1099 = vmul.f32 %v1092, %v480
        %v1100 = vmul.f32 %v1092, %v481
        %v1101 = vmul.f32 %v1092, %v482
        %v1102 = vmul.f32 %v1092, %v483
        %v1103 = vmul.f32 %v1092, %v484
        %v1104 = vmul.f32 %v1092, %v485
        %v1105 = vmul.f32 %v1092, %v486
        %v1106 = vmul.f32 %v1092, %v487
        %v1107 = vmul.f32 %v1092, %v488
        %v1108 = vmul.f32 %v1092, %v489
        %v1109 = vmul.f32 %v1092, %v490
        %v1110 = vmul.f32 %v1092, %v491
        %v1111 = vmul.f32 %v1092, %v492
        %v1112 = vmul.f32 %v1092, %v493
        %v1113 = vmul.f32 %v1092, %v494
        %v1114 = vmul.f32 %v1092, %v495
        %v1115 = vmul.f32 %v1092, %v496
        %v1116 = vmul.f32 %v1092, %v497
        %v1117 = vmul.f32 %v1092, %v498
        %v1118 = vmul.f32 %v1092, %v499
        %v1119 = vmul.f32 %v1092, %v500
        %v1120 = vmul.f32 %v1092, %v501
        %v1121 = vmul.f32 %v1092, %v502
        %v1122 = vmul.f32 %v1092, %v503
        %v1123 = vmul.f32 %v1092, %v504
        %v1124 = vmul.f32 %v1092, %v505
        %v1125 = vadd.f32 %v1059, %v1093
        %v1126 = vadd.f32 %v1060, %v1094
        %v1127 = vadd.f32 %v1061, %v1095
        %v1128 = vadd.f32 %v1062, %v1096
        %v1129 = vadd.f32 %v1063, %v1097
        %v1130 = vadd.f32 %v1064, %v1098
        %v1131 = vadd.f32 %v1065, %v1099
        %v1132 = vadd.f32 %v1066, %v1100
        %v1133 = vadd.f32 %v1067, %v1101
        %v1134 = vadd.f32 %v1068, %v1102
        %v1135 = vadd.f32 %v1069, %v1103
        %v1136 = vadd.f32 %v1070, %v1104
        %v1137 = vadd.f32 %v1071, %v1105
        %v1138 = vadd.f32 %v1072, %v1106
        %v1139 = vadd.f32 %v1073, %v1107
        %v1140 = vadd.f32 %v1074, %v1108
        %v1141 = vadd.f32 %v1075, %v1109
        %v1142 = vadd.f32 %v1076, %v1110
        %v1143 = vadd.f32 %v1077, %v1111
        %v1144 = vadd.f32 %v1078, %v1112
        %v1145 = vadd.f32 %v1079, %v1113
        %v1146 = vadd.f32 %v1080, %v1114
        %v1147 = vadd.f32 %v1081, %v1115
        %v1148 = vadd.f32 %v1082, %v1116
        %v1149 = vadd.f32 %v1083, %v1117
        %v1150 = vadd.f32 %v1084, %v1118
        %v1151 = vadd.f32 %v1085, %v1119
        %v1152 = vadd.f32 %v1086, %v1120
        %v1153 = vadd.f32 %v1087, %v1121
        %v1154 = vadd.f32 %v1088, %v1122
        %v1155 = vadd.f32 %v1089, %v1123
        %v1156 = vadd.f32 %v1090, %v1124
        %s1157 = sld [smem:[#allocation7 + $0x82]]
        %v1158 = vstv %s1157
        %v1159 = vmul.f32 %v1158, %v506
        %v1160 = vmul.f32 %v1158, %v507
        %v1161 = vmul.f32 %v1158, %v508
        %v1162 = vmul.f32 %v1158, %v509
        %v1163 = vmul.f32 %v1158, %v510
        %v1164 = vmul.f32 %v1158, %v511
        %v1165 = vmul.f32 %v1158, %v512
        %v1166 = vmul.f32 %v1158, %v513
        %v1167 = vmul.f32 %v1158, %v514
        %v1168 = vmul.f32 %v1158, %v515
        %v1169 = vmul.f32 %v1158, %v516
        %v1170 = vmul.f32 %v1158, %v517
        %v1171 = vmul.f32 %v1158, %v518
        %v1172 = vmul.f32 %v1158, %v519
        %v1173 = vmul.f32 %v1158, %v520
        %v1174 = vmul.f32 %v1158, %v521
        %v1175 = vmul.f32 %v1158, %v522
        %v1176 = vmul.f32 %v1158, %v523
        %v1177 = vmul.f32 %v1158, %v524
        %v1178 = vmul.f32 %v1158, %v525
        %v1179 = vmul.f32 %v1158, %v526
        %v1180 = vmul.f32 %v1158, %v527
        %v1181 = vmul.f32 %v1158, %v528
        %v1182 = vmul.f32 %v1158, %v529
        %v1183 = vmul.f32 %v1158, %v530
        %v1184 = vmul.f32 %v1158, %v531
        %v1185 = vmul.f32 %v1158, %v532
        %v1186 = vmul.f32 %v1158, %v533
        %v1187 = vmul.f32 %v1158, %v534
        %v1188 = vmul.f32 %v1158, %v535
        %v1189 = vmul.f32 %v1158, %v536
        %v1190 = vmul.f32 %v1158, %v537
        %v1191 = vadd.f32 %v1125, %v1159
        %v1192 = vadd.f32 %v1126, %v1160
        %v1193 = vadd.f32 %v1127, %v1161
        %v1194 = vadd.f32 %v1128, %v1162
        %v1195 = vadd.f32 %v1129, %v1163
        %v1196 = vadd.f32 %v1130, %v1164
        %v1197 = vadd.f32 %v1131, %v1165
        %v1198 = vadd.f32 %v1132, %v1166
        %v1199 = vadd.f32 %v1133, %v1167
        %v1200 = vadd.f32 %v1134, %v1168
        %v1201 = vadd.f32 %v1135, %v1169
        %v1202 = vadd.f32 %v1136, %v1170
        %v1203 = vadd.f32 %v1137, %v1171
        %v1204 = vadd.f32 %v1138, %v1172
        %v1205 = vadd.f32 %v1139, %v1173
        %v1206 = vadd.f32 %v1140, %v1174
        %v1207 = vadd.f32 %v1141, %v1175
        %v1208 = vadd.f32 %v1142, %v1176
        %v1209 = vadd.f32 %v1143, %v1177
        %v1210 = vadd.f32 %v1144, %v1178
        %v1211 = vadd.f32 %v1145, %v1179
        %v1212 = vadd.f32 %v1146, %v1180
        %v1213 = vadd.f32 %v1147, %v1181
        %v1214 = vadd.f32 %v1148, %v1182
        %v1215 = vadd.f32 %v1149, %v1183
        %v1216 = vadd.f32 %v1150, %v1184
        %v1217 = vadd.f32 %v1151, %v1185
        %v1218 = vadd.f32 %v1152, %v1186
        %v1219 = vadd.f32 %v1153, %v1187
        %v1220 = vadd.f32 %v1154, %v1188
        %v1221 = vadd.f32 %v1155, %v1189
        %v1222 = vadd.f32 %v1156, %v1190
        %s1223 = sld [smem:[#allocation8 + $0x1]]
        %v1224 = vstv %s1223
        %v1225 = vadd.f32 %v1191, %v1224
        %v1226 = vadd.f32 %v1192, %v1224
        %v1227 = vadd.f32 %v1193, %v1224
        %v1228 = vadd.f32 %v1194, %v1224
        %v1229 = vadd.f32 %v1195, %v1224
        %v1230 = vadd.f32 %v1196, %v1224
        %v1231 = vadd.f32 %v1197, %v1224
        %v1232 = vadd.f32 %v1198, %v1224
        %v1233 = vadd.f32 %v1199, %v1224
        %v1234 = vadd.f32 %v1200, %v1224
        %v1235 = vadd.f32 %v1201, %v1224
        %v1236 = vadd.f32 %v1202, %v1224
        %v1237 = vadd.f32 %v1203, %v1224
        %v1238 = vadd.f32 %v1204, %v1224
        %v1239 = vadd.f32 %v1205, %v1224
        %v1240 = vadd.f32 %v1206, %v1224
        %v1241 = vadd.f32 %v1207, %v1224
        %v1242 = vadd.f32 %v1208, %v1224
        %v1243 = vadd.f32 %v1209, %v1224
        %v1244 = vadd.f32 %v1210, %v1224
        %v1245 = vadd.f32 %v1211, %v1224
        %v1246 = vadd.f32 %v1212, %v1224
        %v1247 = vadd.f32 %v1213, %v1224
        %v1248 = vadd.f32 %v1214, %v1224
        %v1249 = vadd.f32 %v1215, %v1224
        %v1250 = vadd.f32 %v1216, %v1224
        %v1251 = vadd.f32 %v1217, %v1224
        %v1252 = vadd.f32 %v1218, %v1224
        %v1253 = vadd.f32 %v1219, %v1224
        %v1254 = vadd.f32 %v1220, %v1224
        %v1255 = vadd.f32 %v1221, %v1224
        %v1256 = vadd.f32 %v1222, %v1224
        %v1261 = vlaneseq
        %v1262 = vshrl.u32 %v1261, 7
        %v1263 = vsub.s32 0, %v1262
        %v1264 = vrot.slane %v542, %v1263
        %v1265 = vlaneseq
        %v1266 = vshrl.u32 %v1265, 7
        %v1267 = vsub.s32 1, %v1266
        %v1268 = vrot.slane %v542, %v1267
        %v1269 = vlaneseq
        %v1270 = vshrl.u32 %v1269, 7
        %v1271 = vsub.s32 2, %v1270
        %v1272 = vrot.slane %v542, %v1271
        %v1273 = vlaneseq
        %v1274 = vshrl.u32 %v1273, 7
        %v1275 = vsub.s32 3, %v1274
        %v1276 = vrot.slane %v542, %v1275
        %v1277 = vlaneseq
        %v1278 = vshrl.u32 %v1277, 7
        %v1279 = vsub.s32 4, %v1278
        %v1280 = vrot.slane %v542, %v1279
        %v1281 = vlaneseq
        %v1282 = vshrl.u32 %v1281, 7
        %v1283 = vsub.s32 5, %v1282
        %v1284 = vrot.slane %v542, %v1283
        %v1285 = vlaneseq
        %v1286 = vshrl.u32 %v1285, 7
        %v1287 = vsub.s32 6, %v1286
        %v1288 = vrot.slane %v542, %v1287
        %v1289 = vlaneseq
        %v1290 = vshrl.u32 %v1289, 7
        %v1291 = vsub.s32 7, %v1290
        %v1292 = vrot.slane %v542, %v1291
        %v1293 = vlaneseq
        %v1294 = vshrl.u32 %v1293, 7
        %v1295 = vsub.s32 0, %v1294
        %v1296 = vrot.slane %v543, %v1295
        %v1297 = vlaneseq
        %v1298 = vshrl.u32 %v1297, 7
        %v1299 = vsub.s32 1, %v1298
        %v1300 = vrot.slane %v543, %v1299
        %v1301 = vlaneseq
        %v1302 = vshrl.u32 %v1301, 7
        %v1303 = vsub.s32 2, %v1302
        %v1304 = vrot.slane %v543, %v1303
        %v1305 = vlaneseq
        %v1306 = vshrl.u32 %v1305, 7
        %v1307 = vsub.s32 3, %v1306
        %v1308 = vrot.slane %v543, %v1307
        %v1309 = vlaneseq
        %v1310 = vshrl.u32 %v1309, 7
        %v1311 = vsub.s32 4, %v1310
        %v1312 = vrot.slane %v543, %v1311
        %v1313 = vlaneseq
        %v1314 = vshrl.u32 %v1313, 7
        %v1315 = vsub.s32 5, %v1314
        %v1316 = vrot.slane %v543, %v1315
        %v1317 = vlaneseq
        %v1318 = vshrl.u32 %v1317, 7
        %v1319 = vsub.s32 6, %v1318
        %v1320 = vrot.slane %v543, %v1319
        %v1321 = vlaneseq
        %v1322 = vshrl.u32 %v1321, 7
        %v1323 = vsub.s32 7, %v1322
        %v1324 = vrot.slane %v543, %v1323
        %v1325 = vlaneseq
        %v1326 = vshrl.u32 %v1325, 7
        %v1327 = vsub.s32 0, %v1326
        %v1328 = vrot.slane %v544, %v1327
        %v1329 = vlaneseq
        %v1330 = vshrl.u32 %v1329, 7
        %v1331 = vsub.s32 1, %v1330
        %v1332 = vrot.slane %v544, %v1331
        %v1333 = vlaneseq
        %v1334 = vshrl.u32 %v1333, 7
        %v1335 = vsub.s32 2, %v1334
        %v1336 = vrot.slane %v544, %v1335
        %v1337 = vlaneseq
        %v1338 = vshrl.u32 %v1337, 7
        %v1339 = vsub.s32 3, %v1338
        %v1340 = vrot.slane %v544, %v1339
        %v1341 = vlaneseq
        %v1342 = vshrl.u32 %v1341, 7
        %v1343 = vsub.s32 4, %v1342
        %v1344 = vrot.slane %v544, %v1343
        %v1345 = vlaneseq
        %v1346 = vshrl.u32 %v1345, 7
        %v1347 = vsub.s32 5, %v1346
        %v1348 = vrot.slane %v544, %v1347
        %v1349 = vlaneseq
        %v1350 = vshrl.u32 %v1349, 7
        %v1351 = vsub.s32 6, %v1350
        %v1352 = vrot.slane %v544, %v1351
        %v1353 = vlaneseq
        %v1354 = vshrl.u32 %v1353, 7
        %v1355 = vsub.s32 7, %v1354
        %v1356 = vrot.slane %v544, %v1355
        %v1357 = vlaneseq
        %v1358 = vshrl.u32 %v1357, 7
        %v1359 = vsub.s32 0, %v1358
        %v1360 = vrot.slane %v545, %v1359
        %v1361 = vlaneseq
        %v1362 = vshrl.u32 %v1361, 7
        %v1363 = vsub.s32 1, %v1362
        %v1364 = vrot.slane %v545, %v1363
        %v1365 = vlaneseq
        %v1366 = vshrl.u32 %v1365, 7
        %v1367 = vsub.s32 2, %v1366
        %v1368 = vrot.slane %v545, %v1367
        %v1369 = vlaneseq
        %v1370 = vshrl.u32 %v1369, 7
        %v1371 = vsub.s32 3, %v1370
        %v1372 = vrot.slane %v545, %v1371
        %v1373 = vlaneseq
        %v1374 = vshrl.u32 %v1373, 7
        %v1375 = vsub.s32 4, %v1374
        %v1376 = vrot.slane %v545, %v1375
        %v1377 = vlaneseq
        %v1378 = vshrl.u32 %v1377, 7
        %v1379 = vsub.s32 5, %v1378
        %v1380 = vrot.slane %v545, %v1379
        %v1381 = vlaneseq
        %v1382 = vshrl.u32 %v1381, 7
        %v1383 = vsub.s32 6, %v1382
        %v1384 = vrot.slane %v545, %v1383
        %v1385 = vlaneseq
        %v1386 = vshrl.u32 %v1385, 7
        %v1387 = vsub.s32 7, %v1386
        %v1388 = vrot.slane %v545, %v1387
        %v1421 = vmul.f32 %v1225, %v1264
        %v1422 = vmul.f32 %v1226, %v1268
        %v1423 = vmul.f32 %v1227, %v1272
        %v1424 = vmul.f32 %v1228, %v1276
        %v1425 = vmul.f32 %v1229, %v1280
        %v1426 = vmul.f32 %v1230, %v1284
        %v1427 = vmul.f32 %v1231, %v1288
        %v1428 = vmul.f32 %v1232, %v1292
        %v1429 = vmul.f32 %v1233, %v1296
        %v1430 = vmul.f32 %v1234, %v1300
        %v1431 = vmul.f32 %v1235, %v1304
        %v1432 = vmul.f32 %v1236, %v1308
        %v1433 = vmul.f32 %v1237, %v1312
        %v1434 = vmul.f32 %v1238, %v1316
        %v1435 = vmul.f32 %v1239, %v1320
        %v1436 = vmul.f32 %v1240, %v1324
        %v1437 = vmul.f32 %v1241, %v1328
        %v1438 = vmul.f32 %v1242, %v1332
        %v1439 = vmul.f32 %v1243, %v1336
        %v1440 = vmul.f32 %v1244, %v1340
        %v1441 = vmul.f32 %v1245, %v1344
        %v1442 = vmul.f32 %v1246, %v1348
        %v1443 = vmul.f32 %v1247, %v1352
        %v1444 = vmul.f32 %v1248, %v1356
        %v1445 = vmul.f32 %v1249, %v1360
        %v1446 = vmul.f32 %v1250, %v1364
        %v1447 = vmul.f32 %v1251, %v1368
        %v1448 = vmul.f32 %v1252, %v1372
        %v1449 = vmul.f32 %v1253, %v1376
        %v1450 = vmul.f32 %v1254, %v1380
        %v1451 = vmul.f32 %v1255, %v1384
        %v1452 = vmul.f32 %v1256, %v1388
        %v1453 = vmul.f32 %v1421, 1.442695
        %v1454 = vpow.pop %v1453
        %v1455 = vmul.f32 %v1422, 1.442695
        %v1456 = vpow.pop %v1455
        %v1457 = vmul.f32 %v1423, 1.442695
        %v1458 = vpow.pop %v1457
        %v1459 = vmul.f32 %v1424, 1.442695
        %v1460 = vpow.pop %v1459
        %v1461 = vmul.f32 %v1425, 1.442695
        %v1462 = vpow.pop %v1461
        %v1463 = vmul.f32 %v1426, 1.442695
        %v1464 = vpow.pop %v1463
        %v1465 = vmul.f32 %v1427, 1.442695
        %v1466 = vpow.pop %v1465
        %v1467 = vmul.f32 %v1428, 1.442695
        %v1468 = vpow.pop %v1467
        %v1469 = vmul.f32 %v1429, 1.442695
        %v1470 = vpow.pop %v1469
        %v1471 = vmul.f32 %v1430, 1.442695
        %v1472 = vpow.pop %v1471
        %v1473 = vmul.f32 %v1431, 1.442695
        %v1474 = vpow.pop %v1473
        %v1475 = vmul.f32 %v1432, 1.442695
        %v1476 = vpow.pop %v1475
        %v1477 = vmul.f32 %v1433, 1.442695
        %v1478 = vpow.pop %v1477
        %v1479 = vmul.f32 %v1434, 1.442695
        %v1480 = vpow.pop %v1479
        %v1481 = vmul.f32 %v1435, 1.442695
        %v1482 = vpow.pop %v1481
        %v1483 = vmul.f32 %v1436, 1.442695
        %v1484 = vpow.pop %v1483
        %v1485 = vmul.f32 %v1437, 1.442695
        %v1486 = vpow.pop %v1485
        %v1487 = vmul.f32 %v1438, 1.442695
        %v1488 = vpow.pop %v1487
        %v1489 = vmul.f32 %v1439, 1.442695
        %v1490 = vpow.pop %v1489
        %v1491 = vmul.f32 %v1440, 1.442695
        %v1492 = vpow.pop %v1491
        %v1493 = vmul.f32 %v1441, 1.442695
        %v1494 = vpow.pop %v1493
        %v1495 = vmul.f32 %v1442, 1.442695
        %v1496 = vpow.pop %v1495
        %v1497 = vmul.f32 %v1443, 1.442695
        %v1498 = vpow.pop %v1497
        %v1499 = vmul.f32 %v1444, 1.442695
        %v1500 = vpow.pop %v1499
        %v1501 = vmul.f32 %v1445, 1.442695
        %v1502 = vpow.pop %v1501
        %v1503 = vmul.f32 %v1446, 1.442695
        %v1504 = vpow.pop %v1503
        %v1505 = vmul.f32 %v1447, 1.442695
        %v1506 = vpow.pop %v1505
        %v1507 = vmul.f32 %v1448, 1.442695
        %v1508 = vpow.pop %v1507
        %v1509 = vmul.f32 %v1449, 1.442695
        %v1510 = vpow.pop %v1509
        %v1511 = vmul.f32 %v1450, 1.442695
        %v1512 = vpow.pop %v1511
        %v1513 = vmul.f32 %v1451, 1.442695
        %v1514 = vpow.pop %v1513
        %v1515 = vmul.f32 %v1452, 1.442695
        %v1516 = vpow.pop %v1515
        %v1517 = vsub.f32 %v1454, 1.0
        %v1518 = vsub.f32 %v1456, 1.0
        %v1519 = vsub.f32 %v1458, 1.0
        %v1520 = vsub.f32 %v1460, 1.0
        %v1521 = vsub.f32 %v1462, 1.0
        %v1522 = vsub.f32 %v1464, 1.0
        %v1523 = vsub.f32 %v1466, 1.0
        %v1524 = vsub.f32 %v1468, 1.0
        %v1525 = vsub.f32 %v1470, 1.0
        %v1526 = vsub.f32 %v1472, 1.0
        %v1527 = vsub.f32 %v1474, 1.0
        %v1528 = vsub.f32 %v1476, 1.0
        %v1529 = vsub.f32 %v1478, 1.0
        %v1530 = vsub.f32 %v1480, 1.0
        %v1531 = vsub.f32 %v1482, 1.0
        %v1532 = vsub.f32 %v1484, 1.0
        %v1533 = vsub.f32 %v1486, 1.0
        %v1534 = vsub.f32 %v1488, 1.0
        %v1535 = vsub.f32 %v1490, 1.0
        %v1536 = vsub.f32 %v1492, 1.0
        %v1537 = vsub.f32 %v1494, 1.0
        %v1538 = vsub.f32 %v1496, 1.0
        %v1539 = vsub.f32 %v1498, 1.0
        %v1540 = vsub.f32 %v1500, 1.0
        %v1541 = vsub.f32 %v1502, 1.0
        %v1542 = vsub.f32 %v1504, 1.0
        %v1543 = vsub.f32 %v1506, 1.0
        %v1544 = vsub.f32 %v1508, 1.0
        %v1545 = vsub.f32 %v1510, 1.0
        %v1546 = vsub.f32 %v1512, 1.0
        %v1547 = vsub.f32 %v1514, 1.0
        %v1548 = vsub.f32 %v1516, 1.0
        %s1549 = sld [smem:[#allocation7 + $0x100]]
        %v1550 = vstv %s1549
        %v1551 = vmul.f32 %v1550, %v442
        %v1552 = vmul.f32 %v1550, %v443
        %v1553 = vmul.f32 %v1550, %v444
        %v1554 = vmul.f32 %v1550, %v445
        %v1555 = vmul.f32 %v1550, %v446
        %v1556 = vmul.f32 %v1550, %v447
        %v1557 = vmul.f32 %v1550, %v448
        %v1558 = vmul.f32 %v1550, %v449
        %v1559 = vmul.f32 %v1550, %v450
        %v1560 = vmul.f32 %v1550, %v451
        %v1561 = vmul.f32 %v1550, %v452
        %v1562 = vmul.f32 %v1550, %v453
        %v1563 = vmul.f32 %v1550, %v454
        %v1564 = vmul.f32 %v1550, %v455
        %v1565 = vmul.f32 %v1550, %v456
        %v1566 = vmul.f32 %v1550, %v457
        %v1567 = vmul.f32 %v1550, %v458
        %v1568 = vmul.f32 %v1550, %v459
        %v1569 = vmul.f32 %v1550, %v460
        %v1570 = vmul.f32 %v1550, %v461
        %v1571 = vmul.f32 %v1550, %v462
        %v1572 = vmul.f32 %v1550, %v463
        %v1573 = vmul.f32 %v1550, %v464
        %v1574 = vmul.f32 %v1550, %v465
        %v1575 = vmul.f32 %v1550, %v466
        %v1576 = vmul.f32 %v1550, %v467
        %v1577 = vmul.f32 %v1550, %v468
        %v1578 = vmul.f32 %v1550, %v469
        %v1579 = vmul.f32 %v1550, %v470
        %v1580 = vmul.f32 %v1550, %v471
        %v1581 = vmul.f32 %v1550, %v472
        %v1582 = vmul.f32 %v1550, %v473
        %s1583 = sld [smem:[#allocation7 + $0x101]]
        %v1584 = vstv %s1583
        %v1585 = vmul.f32 %v1584, %v474
        %v1586 = vmul.f32 %v1584, %v475
        %v1587 = vmul.f32 %v1584, %v476
        %v1588 = vmul.f32 %v1584, %v477
        %v1589 = vmul.f32 %v1584, %v478
        %v1590 = vmul.f32 %v1584, %v479
        %v1591 = vmul.f32 %v1584, %v480
        %v1592 = vmul.f32 %v1584, %v481
        %v1593 = vmul.f32 %v1584, %v482
        %v1594 = vmul.f32 %v1584, %v483
        %v1595 = vmul.f32 %v1584, %v484
        %v1596 = vmul.f32 %v1584, %v485
        %v1597 = vmul.f32 %v1584, %v486
        %v1598 = vmul.f32 %v1584, %v487
        %v1599 = vmul.f32 %v1584, %v488
        %v1600 = vmul.f32 %v1584, %v489
        %v1601 = vmul.f32 %v1584, %v490
        %v1602 = vmul.f32 %v1584, %v491
        %v1603 = vmul.f32 %v1584, %v492
        %v1604 = vmul.f32 %v1584, %v493
        %v1605 = vmul.f32 %v1584, %v494
        %v1606 = vmul.f32 %v1584, %v495
        %v1607 = vmul.f32 %v1584, %v496
        %v1608 = vmul.f32 %v1584, %v497
        %v1609 = vmul.f32 %v1584, %v498
        %v1610 = vmul.f32 %v1584, %v499
        %v1611 = vmul.f32 %v1584, %v500
        %v1612 = vmul.f32 %v1584, %v501
        %v1613 = vmul.f32 %v1584, %v502
        %v1614 = vmul.f32 %v1584, %v503
        %v1615 = vmul.f32 %v1584, %v504
        %v1616 = vmul.f32 %v1584, %v505
        %v1617 = vadd.f32 %v1551, %v1585
        %v1618 = vadd.f32 %v1552, %v1586
        %v1619 = vadd.f32 %v1553, %v1587
        %v1620 = vadd.f32 %v1554, %v1588
        %v1621 = vadd.f32 %v1555, %v1589
        %v1622 = vadd.f32 %v1556, %v1590
        %v1623 = vadd.f32 %v1557, %v1591
        %v1624 = vadd.f32 %v1558, %v1592
        %v1625 = vadd.f32 %v1559, %v1593
        %v1626 = vadd.f32 %v1560, %v1594
        %v1627 = vadd.f32 %v1561, %v1595
        %v1628 = vadd.f32 %v1562, %v1596
        %v1629 = vadd.f32 %v1563, %v1597
        %v1630 = vadd.f32 %v1564, %v1598
        %v1631 = vadd.f32 %v1565, %v1599
        %v1632 = vadd.f32 %v1566, %v1600
        %v1633 = vadd.f32 %v1567, %v1601
        %v1634 = vadd.f32 %v1568, %v1602
        %v1635 = vadd.f32 %v1569, %v1603
        %v1636 = vadd.f32 %v1570, %v1604
        %v1637 = vadd.f32 %v1571, %v1605
        %v1638 = vadd.f32 %v1572, %v1606
        %v1639 = vadd.f32 %v1573, %v1607
        %v1640 = vadd.f32 %v1574, %v1608
        %v1641 = vadd.f32 %v1575, %v1609
        %v1642 = vadd.f32 %v1576, %v1610
        %v1643 = vadd.f32 %v1577, %v1611
        %v1644 = vadd.f32 %v1578, %v1612
        %v1645 = vadd.f32 %v1579, %v1613
        %v1646 = vadd.f32 %v1580, %v1614
        %v1647 = vadd.f32 %v1581, %v1615
        %v1648 = vadd.f32 %v1582, %v1616
        %s1649 = sld [smem:[#allocation7 + $0x102]]
        %v1650 = vstv %s1649
        %v1651 = vmul.f32 %v1650, %v506
        %v1652 = vmul.f32 %v1650, %v507
        %v1653 = vmul.f32 %v1650, %v508
        %v1654 = vmul.f32 %v1650, %v509
        %v1655 = vmul.f32 %v1650, %v510
        %v1656 = vmul.f32 %v1650, %v511
        %v1657 = vmul.f32 %v1650, %v512
        %v1658 = vmul.f32 %v1650, %v513
        %v1659 = vmul.f32 %v1650, %v514
        %v1660 = vmul.f32 %v1650, %v515
        %v1661 = vmul.f32 %v1650, %v516
        %v1662 = vmul.f32 %v1650, %v517
        %v1663 = vmul.f32 %v1650, %v518
        %v1664 = vmul.f32 %v1650, %v519
        %v1665 = vmul.f32 %v1650, %v520
        %v1666 = vmul.f32 %v1650, %v521
        %v1667 = vmul.f32 %v1650, %v522
        %v1668 = vmul.f32 %v1650, %v523
        %v1669 = vmul.f32 %v1650, %v524
        %v1670 = vmul.f32 %v1650, %v525
        %v1671 = vmul.f32 %v1650, %v526
        %v1672 = vmul.f32 %v1650, %v527
        %v1673 = vmul.f32 %v1650, %v528
        %v1674 = vmul.f32 %v1650, %v529
        %v1675 = vmul.f32 %v1650, %v530
        %v1676 = vmul.f32 %v1650, %v531
        %v1677 = vmul.f32 %v1650, %v532
        %v1678 = vmul.f32 %v1650, %v533
        %v1679 = vmul.f32 %v1650, %v534
        %v1680 = vmul.f32 %v1650, %v535
        %v1681 = vmul.f32 %v1650, %v536
        %v1682 = vmul.f32 %v1650, %v537
        %v1683 = vadd.f32 %v1617, %v1651
        %v1684 = vadd.f32 %v1618, %v1652
        %v1685 = vadd.f32 %v1619, %v1653
        %v1686 = vadd.f32 %v1620, %v1654
        %v1687 = vadd.f32 %v1621, %v1655
        %v1688 = vadd.f32 %v1622, %v1656
        %v1689 = vadd.f32 %v1623, %v1657
        %v1690 = vadd.f32 %v1624, %v1658
        %v1691 = vadd.f32 %v1625, %v1659
        %v1692 = vadd.f32 %v1626, %v1660
        %v1693 = vadd.f32 %v1627, %v1661
        %v1694 = vadd.f32 %v1628, %v1662
        %v1695 = vadd.f32 %v1629, %v1663
        %v1696 = vadd.f32 %v1630, %v1664
        %v1697 = vadd.f32 %v1631, %v1665
        %v1698 = vadd.f32 %v1632, %v1666
        %v1699 = vadd.f32 %v1633, %v1667
        %v1700 = vadd.f32 %v1634, %v1668
        %v1701 = vadd.f32 %v1635, %v1669
        %v1702 = vadd.f32 %v1636, %v1670
        %v1703 = vadd.f32 %v1637, %v1671
        %v1704 = vadd.f32 %v1638, %v1672
        %v1705 = vadd.f32 %v1639, %v1673
        %v1706 = vadd.f32 %v1640, %v1674
        %v1707 = vadd.f32 %v1641, %v1675
        %v1708 = vadd.f32 %v1642, %v1676
        %v1709 = vadd.f32 %v1643, %v1677
        %v1710 = vadd.f32 %v1644, %v1678
        %v1711 = vadd.f32 %v1645, %v1679
        %v1712 = vadd.f32 %v1646, %v1680
        %v1713 = vadd.f32 %v1647, %v1681
        %v1714 = vadd.f32 %v1648, %v1682
        %s1715 = sld [smem:[#allocation8 + $0x2]]
        %v1716 = vstv %s1715
        %v1717 = vadd.f32 %v1683, %v1716
        %v1718 = vadd.f32 %v1684, %v1716
        %v1719 = vadd.f32 %v1685, %v1716
        %v1720 = vadd.f32 %v1686, %v1716
        %v1721 = vadd.f32 %v1687, %v1716
        %v1722 = vadd.f32 %v1688, %v1716
        %v1723 = vadd.f32 %v1689, %v1716
        %v1724 = vadd.f32 %v1690, %v1716
        %v1725 = vadd.f32 %v1691, %v1716
        %v1726 = vadd.f32 %v1692, %v1716
        %v1727 = vadd.f32 %v1693, %v1716
        %v1728 = vadd.f32 %v1694, %v1716
        %v1729 = vadd.f32 %v1695, %v1716
        %v1730 = vadd.f32 %v1696, %v1716
        %v1731 = vadd.f32 %v1697, %v1716
        %v1732 = vadd.f32 %v1698, %v1716
        %v1733 = vadd.f32 %v1699, %v1716
        %v1734 = vadd.f32 %v1700, %v1716
        %v1735 = vadd.f32 %v1701, %v1716
        %v1736 = vadd.f32 %v1702, %v1716
        %v1737 = vadd.f32 %v1703, %v1716
        %v1738 = vadd.f32 %v1704, %v1716
        %v1739 = vadd.f32 %v1705, %v1716
        %v1740 = vadd.f32 %v1706, %v1716
        %v1741 = vadd.f32 %v1707, %v1716
        %v1742 = vadd.f32 %v1708, %v1716
        %v1743 = vadd.f32 %v1709, %v1716
        %v1744 = vadd.f32 %v1710, %v1716
        %v1745 = vadd.f32 %v1711, %v1716
        %v1746 = vadd.f32 %v1712, %v1716
        %v1747 = vadd.f32 %v1713, %v1716
        %v1748 = vadd.f32 %v1714, %v1716
        %v1753 = vlaneseq
        %v1754 = vshrl.u32 %v1753, 7
        %v1755 = vsub.s32 0, %v1754
        %v1756 = vrot.slane %v546, %v1755
        %v1757 = vlaneseq
        %v1758 = vshrl.u32 %v1757, 7
        %v1759 = vsub.s32 1, %v1758
        %v1760 = vrot.slane %v546, %v1759
        %v1761 = vlaneseq
        %v1762 = vshrl.u32 %v1761, 7
        %v1763 = vsub.s32 2, %v1762
        %v1764 = vrot.slane %v546, %v1763
        %v1765 = vlaneseq
        %v1766 = vshrl.u32 %v1765, 7
        %v1767 = vsub.s32 3, %v1766
        %v1768 = vrot.slane %v546, %v1767
        %v1769 = vlaneseq
        %v1770 = vshrl.u32 %v1769, 7
        %v1771 = vsub.s32 4, %v1770
        %v1772 = vrot.slane %v546, %v1771
        %v1773 = vlaneseq
        %v1774 = vshrl.u32 %v1773, 7
        %v1775 = vsub.s32 5, %v1774
        %v1776 = vrot.slane %v546, %v1775
        %v1777 = vlaneseq
        %v1778 = vshrl.u32 %v1777, 7
        %v1779 = vsub.s32 6, %v1778
        %v1780 = vrot.slane %v546, %v1779
        %v1781 = vlaneseq
        %v1782 = vshrl.u32 %v1781, 7
        %v1783 = vsub.s32 7, %v1782
        %v1784 = vrot.slane %v546, %v1783
        %v1785 = vlaneseq
        %v1786 = vshrl.u32 %v1785, 7
        %v1787 = vsub.s32 0, %v1786
        %v1788 = vrot.slane %v547, %v1787
        %v1789 = vlaneseq
        %v1790 = vshrl.u32 %v1789, 7
        %v1791 = vsub.s32 1, %v1790
        %v1792 = vrot.slane %v547, %v1791
        %v1793 = vlaneseq
        %v1794 = vshrl.u32 %v1793, 7
        %v1795 = vsub.s32 2, %v1794
        %v1796 = vrot.slane %v547, %v1795
        %v1797 = vlaneseq
        %v1798 = vshrl.u32 %v1797, 7
        %v1799 = vsub.s32 3, %v1798
        %v1800 = vrot.slane %v547, %v1799
        %v1801 = vlaneseq
        %v1802 = vshrl.u32 %v1801, 7
        %v1803 = vsub.s32 4, %v1802
        %v1804 = vrot.slane %v547, %v1803
        %v1805 = vlaneseq
        %v1806 = vshrl.u32 %v1805, 7
        %v1807 = vsub.s32 5, %v1806
        %v1808 = vrot.slane %v547, %v1807
        %v1809 = vlaneseq
        %v1810 = vshrl.u32 %v1809, 7
        %v1811 = vsub.s32 6, %v1810
        %v1812 = vrot.slane %v547, %v1811
        %v1813 = vlaneseq
        %v1814 = vshrl.u32 %v1813, 7
        %v1815 = vsub.s32 7, %v1814
        %v1816 = vrot.slane %v547, %v1815
        %v1817 = vlaneseq
        %v1818 = vshrl.u32 %v1817, 7
        %v1819 = vsub.s32 0, %v1818
        %v1820 = vrot.slane %v548, %v1819
        %v1821 = vlaneseq
        %v1822 = vshrl.u32 %v1821, 7
        %v1823 = vsub.s32 1, %v1822
        %v1824 = vrot.slane %v548, %v1823
        %v1825 = vlaneseq
        %v1826 = vshrl.u32 %v1825, 7
        %v1827 = vsub.s32 2, %v1826
        %v1828 = vrot.slane %v548, %v1827
        %v1829 = vlaneseq
        %v1830 = vshrl.u32 %v1829, 7
        %v1831 = vsub.s32 3, %v1830
        %v1832 = vrot.slane %v548, %v1831
        %v1833 = vlaneseq
        %v1834 = vshrl.u32 %v1833, 7
        %v1835 = vsub.s32 4, %v1834
        %v1836 = vrot.slane %v548, %v1835
        %v1837 = vlaneseq
        %v1838 = vshrl.u32 %v1837, 7
        %v1839 = vsub.s32 5, %v1838
        %v1840 = vrot.slane %v548, %v1839
        %v1841 = vlaneseq
        %v1842 = vshrl.u32 %v1841, 7
        %v1843 = vsub.s32 6, %v1842
        %v1844 = vrot.slane %v548, %v1843
        %v1845 = vlaneseq
        %v1846 = vshrl.u32 %v1845, 7
        %v1847 = vsub.s32 7, %v1846
        %v1848 = vrot.slane %v548, %v1847
        %v1849 = vlaneseq
        %v1850 = vshrl.u32 %v1849, 7
        %v1851 = vsub.s32 0, %v1850
        %v1852 = vrot.slane %v549, %v1851
        %v1853 = vlaneseq
        %v1854 = vshrl.u32 %v1853, 7
        %v1855 = vsub.s32 1, %v1854
        %v1856 = vrot.slane %v549, %v1855
        %v1857 = vlaneseq
        %v1858 = vshrl.u32 %v1857, 7
        %v1859 = vsub.s32 2, %v1858
        %v1860 = vrot.slane %v549, %v1859
        %v1861 = vlaneseq
        %v1862 = vshrl.u32 %v1861, 7
        %v1863 = vsub.s32 3, %v1862
        %v1864 = vrot.slane %v549, %v1863
        %v1865 = vlaneseq
        %v1866 = vshrl.u32 %v1865, 7
        %v1867 = vsub.s32 4, %v1866
        %v1868 = vrot.slane %v549, %v1867
        %v1869 = vlaneseq
        %v1870 = vshrl.u32 %v1869, 7
        %v1871 = vsub.s32 5, %v1870
        %v1872 = vrot.slane %v549, %v1871
        %v1873 = vlaneseq
        %v1874 = vshrl.u32 %v1873, 7
        %v1875 = vsub.s32 6, %v1874
        %v1876 = vrot.slane %v549, %v1875
        %v1877 = vlaneseq
        %v1878 = vshrl.u32 %v1877, 7
        %v1879 = vsub.s32 7, %v1878
        %v1880 = vrot.slane %v549, %v1879
        %v1913 = vmul.f32 %v1717, %v1756
        %v1914 = vmul.f32 %v1718, %v1760
        %v1915 = vmul.f32 %v1719, %v1764
        %v1916 = vmul.f32 %v1720, %v1768
        %v1917 = vmul.f32 %v1721, %v1772
        %v1918 = vmul.f32 %v1722, %v1776
        %v1919 = vmul.f32 %v1723, %v1780
        %v1920 = vmul.f32 %v1724, %v1784
        %v1921 = vmul.f32 %v1725, %v1788
        %v1922 = vmul.f32 %v1726, %v1792
        %v1923 = vmul.f32 %v1727, %v1796
        %v1924 = vmul.f32 %v1728, %v1800
        %v1925 = vmul.f32 %v1729, %v1804
        %v1926 = vmul.f32 %v1730, %v1808
        %v1927 = vmul.f32 %v1731, %v1812
        %v1928 = vmul.f32 %v1732, %v1816
        %v1929 = vmul.f32 %v1733, %v1820
        %v1930 = vmul.f32 %v1734, %v1824
        %v1931 = vmul.f32 %v1735, %v1828
        %v1932 = vmul.f32 %v1736, %v1832
        %v1933 = vmul.f32 %v1737, %v1836
        %v1934 = vmul.f32 %v1738, %v1840
        %v1935 = vmul.f32 %v1739, %v1844
        %v1936 = vmul.f32 %v1740, %v1848
        %v1937 = vmul.f32 %v1741, %v1852
        %v1938 = vmul.f32 %v1742, %v1856
        %v1939 = vmul.f32 %v1743, %v1860
        %v1940 = vmul.f32 %v1744, %v1864
        %v1941 = vmul.f32 %v1745, %v1868
        %v1942 = vmul.f32 %v1746, %v1872
        %v1943 = vmul.f32 %v1747, %v1876
        %v1944 = vmul.f32 %v1748, %v1880
        %v1945 = vmul.f32 %v1913, 1.442695
        %v1946 = vpow.pop %v1945
        %v1947 = vmul.f32 %v1914, 1.442695
        %v1948 = vpow.pop %v1947
        %v1949 = vmul.f32 %v1915, 1.442695
        %v1950 = vpow.pop %v1949
        %v1951 = vmul.f32 %v1916, 1.442695
        %v1952 = vpow.pop %v1951
        %v1953 = vmul.f32 %v1917, 1.442695
        %v1954 = vpow.pop %v1953
        %v1955 = vmul.f32 %v1918, 1.442695
        %v1956 = vpow.pop %v1955
        %v1957 = vmul.f32 %v1919, 1.442695
        %v1958 = vpow.pop %v1957
        %v1959 = vmul.f32 %v1920, 1.442695
        %v1960 = vpow.pop %v1959
        %v1961 = vmul.f32 %v1921, 1.442695
        %v1962 = vpow.pop %v1961
        %v1963 = vmul.f32 %v1922, 1.442695
        %v1964 = vpow.pop %v1963
        %v1965 = vmul.f32 %v1923, 1.442695
        %v1966 = vpow.pop %v1965
        %v1967 = vmul.f32 %v1924, 1.442695
        %v1968 = vpow.pop %v1967
        %v1969 = vmul.f32 %v1925, 1.442695
        %v1970 = vpow.pop %v1969
        %v1971 = vmul.f32 %v1926, 1.442695
        %v1972 = vpow.pop %v1971
        %v1973 = vmul.f32 %v1927, 1.442695
        %v1974 = vpow.pop %v1973
        %v1975 = vmul.f32 %v1928, 1.442695
        %v1976 = vpow.pop %v1975
        %v1977 = vmul.f32 %v1929, 1.442695
        %v1978 = vpow.pop %v1977
        %v1979 = vmul.f32 %v1930, 1.442695
        %v1980 = vpow.pop %v1979
        %v1981 = vmul.f32 %v1931, 1.442695
        %v1982 = vpow.pop %v1981
        %v1983 = vmul.f32 %v1932, 1.442695
        %v1984 = vpow.pop %v1983
        %v1985 = vmul.f32 %v1933, 1.442695
        %v1986 = vpow.pop %v1985
        %v1987 = vmul.f32 %v1934, 1.442695
        %v1988 = vpow.pop %v1987
        %v1989 = vmul.f32 %v1935, 1.442695
        %v1990 = vpow.pop %v1989
        %v1991 = vmul.f32 %v1936, 1.442695
        %v1992 = vpow.pop %v1991
        %v1993 = vmul.f32 %v1937, 1.442695
        %v1994 = vpow.pop %v1993
        %v1995 = vmul.f32 %v1938, 1.442695
        %v1996 = vpow.pop %v1995
        %v1997 = vmul.f32 %v1939, 1.442695
        %v1998 = vpow.pop %v1997
        %v1999 = vmul.f32 %v1940, 1.442695
        %v2000 = vpow.pop %v1999
        %v2001 = vmul.f32 %v1941, 1.442695
        %v2002 = vpow.pop %v2001
        %v2003 = vmul.f32 %v1942, 1.442695
        %v2004 = vpow.pop %v2003
        %v2005 = vmul.f32 %v1943, 1.442695
        %v2006 = vpow.pop %v2005
        %v2007 = vmul.f32 %v1944, 1.442695
        %v2008 = vpow.pop %v2007
        %v2009 = vsub.f32 %v1946, 1.0
        %v2010 = vsub.f32 %v1948, 1.0
        %v2011 = vsub.f32 %v1950, 1.0
        %v2012 = vsub.f32 %v1952, 1.0
        %v2013 = vsub.f32 %v1954, 1.0
        %v2014 = vsub.f32 %v1956, 1.0
        %v2015 = vsub.f32 %v1958, 1.0
        %v2016 = vsub.f32 %v1960, 1.0
        %v2017 = vsub.f32 %v1962, 1.0
        %v2018 = vsub.f32 %v1964, 1.0
        %v2019 = vsub.f32 %v1966, 1.0
        %v2020 = vsub.f32 %v1968, 1.0
        %v2021 = vsub.f32 %v1970, 1.0
        %v2022 = vsub.f32 %v1972, 1.0
        %v2023 = vsub.f32 %v1974, 1.0
        %v2024 = vsub.f32 %v1976, 1.0
        %v2025 = vsub.f32 %v1978, 1.0
        %v2026 = vsub.f32 %v1980, 1.0
        %v2027 = vsub.f32 %v1982, 1.0
        %v2028 = vsub.f32 %v1984, 1.0
        %v2029 = vsub.f32 %v1986, 1.0
        %v2030 = vsub.f32 %v1988, 1.0
        %v2031 = vsub.f32 %v1990, 1.0
        %v2032 = vsub.f32 %v1992, 1.0
        %v2033 = vsub.f32 %v1994, 1.0
        %v2034 = vsub.f32 %v1996, 1.0
        %v2035 = vsub.f32 %v1998, 1.0
        %v2036 = vsub.f32 %v2000, 1.0
        %v2037 = vsub.f32 %v2002, 1.0
        %v2038 = vsub.f32 %v2004, 1.0
        %v2039 = vsub.f32 %v2006, 1.0
        %v2040 = vsub.f32 %v2008, 1.0
        %v2041 = vadd.f32 %v1025, %v1517
        %v2042 = vadd.f32 %v1026, %v1518
        %v2043 = vadd.f32 %v1027, %v1519
        %v2044 = vadd.f32 %v1028, %v1520
        %v2045 = vadd.f32 %v1029, %v1521
        %v2046 = vadd.f32 %v1030, %v1522
        %v2047 = vadd.f32 %v1031, %v1523
        %v2048 = vadd.f32 %v1032, %v1524
        %v2049 = vadd.f32 %v1033, %v1525
        %v2050 = vadd.f32 %v1034, %v1526
        %v2051 = vadd.f32 %v1035, %v1527
        %v2052 = vadd.f32 %v1036, %v1528
        %v2053 = vadd.f32 %v1037, %v1529
        %v2054 = vadd.f32 %v1038, %v1530
        %v2055 = vadd.f32 %v1039, %v1531
        %v2056 = vadd.f32 %v1040, %v1532
        %v2057 = vadd.f32 %v1041, %v1533
        %v2058 = vadd.f32 %v1042, %v1534
        %v2059 = vadd.f32 %v1043, %v1535
        %v2060 = vadd.f32 %v1044, %v1536
        %v2061 = vadd.f32 %v1045, %v1537
        %v2062 = vadd.f32 %v1046, %v1538
        %v2063 = vadd.f32 %v1047, %v1539
        %v2064 = vadd.f32 %v1048, %v1540
        %v2065 = vadd.f32 %v1049, %v1541
        %v2066 = vadd.f32 %v1050, %v1542
        %v2067 = vadd.f32 %v1051, %v1543
        %v2068 = vadd.f32 %v1052, %v1544
        %v2069 = vadd.f32 %v1053, %v1545
        %v2070 = vadd.f32 %v1054, %v1546
        %v2071 = vadd.f32 %v1055, %v1547
        %v2072 = vadd.f32 %v1056, %v1548
        %v2073 = vadd.f32 %v2041, %v2009
        %v2074 = vadd.f32 %v2042, %v2010
        %v2075 = vadd.f32 %v2043, %v2011
        %v2076 = vadd.f32 %v2044, %v2012
        %v2077 = vadd.f32 %v2045, %v2013
        %v2078 = vadd.f32 %v2046, %v2014
        %v2079 = vadd.f32 %v2047, %v2015
        %v2080 = vadd.f32 %v2048, %v2016
        %v2081 = vadd.f32 %v2049, %v2017
        %v2082 = vadd.f32 %v2050, %v2018
        %v2083 = vadd.f32 %v2051, %v2019
        %v2084 = vadd.f32 %v2052, %v2020
        %v2085 = vadd.f32 %v2053, %v2021
        %v2086 = vadd.f32 %v2054, %v2022
        %v2087 = vadd.f32 %v2055, %v2023
        %v2088 = vadd.f32 %v2056, %v2024
        %v2089 = vadd.f32 %v2057, %v2025
        %v2090 = vadd.f32 %v2058, %v2026
        %v2091 = vadd.f32 %v2059, %v2027
        %v2092 = vadd.f32 %v2060, %v2028
        %v2093 = vadd.f32 %v2061, %v2029
        %v2094 = vadd.f32 %v2062, %v2030
        %v2095 = vadd.f32 %v2063, %v2031
        %v2096 = vadd.f32 %v2064, %v2032
        %v2097 = vadd.f32 %v2065, %v2033
        %v2098 = vadd.f32 %v2066, %v2034
        %v2099 = vadd.f32 %v2067, %v2035
        %v2100 = vadd.f32 %v2068, %v2036
        %v2101 = vadd.f32 %v2069, %v2037
        %v2102 = vadd.f32 %v2070, %v2038
        %v2103 = vadd.f32 %v2071, %v2039
        %v2104 = vadd.f32 %v2072, %v2040
        %v2105 = vadd.f32 %v2073, %v2074
        %v2106 = vadd.f32 %v2105, %v2075
        %v2107 = vadd.f32 %v2106, %v2076
        %v2108 = vadd.f32 %v2107, %v2077
        %v2109 = vadd.f32 %v2108, %v2078
        %v2110 = vadd.f32 %v2109, %v2079
        %v2111 = vadd.f32 %v2110, %v2080
        %v2112 = vadd.f32 %v2111, %v2081
        %v2113 = vadd.f32 %v2112, %v2082
        %v2114 = vadd.f32 %v2113, %v2083
        %v2115 = vadd.f32 %v2114, %v2084
        %v2116 = vadd.f32 %v2115, %v2085
        %v2117 = vadd.f32 %v2116, %v2086
        %v2118 = vadd.f32 %v2117, %v2087
        %v2119 = vadd.f32 %v2118, %v2088
        %v2120 = vadd.f32 %v2119, %v2089
        %v2121 = vadd.f32 %v2120, %v2090
        %v2122 = vadd.f32 %v2121, %v2091
        %v2123 = vadd.f32 %v2122, %v2092
        %v2124 = vadd.f32 %v2123, %v2093
        %v2125 = vadd.f32 %v2124, %v2094
        %v2126 = vadd.f32 %v2125, %v2095
        %v2127 = vadd.f32 %v2126, %v2096
        %v2128 = vadd.f32 %v2127, %v2097
        %v2129 = vadd.f32 %v2128, %v2098
        %v2130 = vadd.f32 %v2129, %v2099
        %v2131 = vadd.f32 %v2130, %v2100
        %v2132 = vadd.f32 %v2131, %v2101
        %v2133 = vadd.f32 %v2132, %v2102
        %v2134 = vadd.f32 %v2133, %v2103
        %v2135 = vadd.f32 %v2134, %v2104
        %2136 = vadd.xlane.f32.xlu0 %v2135
        %v2137 = vpop.xlane.xlu0 %2136
        %v2138 = vmul.f32 %v2137, 8.138021e-05
        %v2139 = vadd.f32 %v2138, 0.0001
        %v2140 = vrcp.pop %v2139
        %v2141 = vmul.f32 0.3, %v2140
        %v2142 = vmul.f32 %v2139, 3.3333333
        %v2143 = vmul.f32 %v1025, %v2141
        %v2144 = vmul.f32 %v1026, %v2141
        %v2145 = vmul.f32 %v1027, %v2141
        %v2146 = vmul.f32 %v1028, %v2141
        %v2147 = vmul.f32 %v1029, %v2141
        %v2148 = vmul.f32 %v1030, %v2141
        %v2149 = vmul.f32 %v1031, %v2141
        %v2150 = vmul.f32 %v1032, %v2141
        %v2151 = vmul.f32 %v1033, %v2141
        %v2152 = vmul.f32 %v1034, %v2141
        %v2153 = vmul.f32 %v1035, %v2141
        %v2154 = vmul.f32 %v1036, %v2141
        %v2155 = vmul.f32 %v1037, %v2141
        %v2156 = vmul.f32 %v1038, %v2141
        %v2157 = vmul.f32 %v1039, %v2141
        %v2158 = vmul.f32 %v1040, %v2141
        %v2159 = vmul.f32 %v1041, %v2141
        %v2160 = vmul.f32 %v1042, %v2141
        %v2161 = vmul.f32 %v1043, %v2141
        %v2162 = vmul.f32 %v1044, %v2141
        %v2163 = vmul.f32 %v1045, %v2141
        %v2164 = vmul.f32 %v1046, %v2141
        %v2165 = vmul.f32 %v1047, %v2141
        %v2166 = vmul.f32 %v1048, %v2141
        %v2167 = vmul.f32 %v1049, %v2141
        %v2168 = vmul.f32 %v1050, %v2141
        %v2169 = vmul.f32 %v1051, %v2141
        %v2170 = vmul.f32 %v1052, %v2141
        %v2171 = vmul.f32 %v1053, %v2141
        %v2172 = vmul.f32 %v1054, %v2141
        %v2173 = vmul.f32 %v1055, %v2141
        %v2174 = vmul.f32 %v1056, %v2141
        %v2175 = vmax.f32 %v2143, 0.0
        %v2176 = vmax.f32 %v2144, 0.0
        %v2177 = vmax.f32 %v2145, 0.0
        %v2178 = vmax.f32 %v2146, 0.0
        %v2179 = vmax.f32 %v2147, 0.0
        %v2180 = vmax.f32 %v2148, 0.0
        %v2181 = vmax.f32 %v2149, 0.0
        %v2182 = vmax.f32 %v2150, 0.0
        %v2183 = vmax.f32 %v2151, 0.0
        %v2184 = vmax.f32 %v2152, 0.0
        %v2185 = vmax.f32 %v2153, 0.0
        %v2186 = vmax.f32 %v2154, 0.0
        %v2187 = vmax.f32 %v2155, 0.0
        %v2188 = vmax.f32 %v2156, 0.0
        %v2189 = vmax.f32 %v2157, 0.0
        %v2190 = vmax.f32 %v2158, 0.0
        %v2191 = vmax.f32 %v2159, 0.0
        %v2192 = vmax.f32 %v2160, 0.0
        %v2193 = vmax.f32 %v2161, 0.0
        %v2194 = vmax.f32 %v2162, 0.0
        %v2195 = vmax.f32 %v2163, 0.0
        %v2196 = vmax.f32 %v2164, 0.0
        %v2197 = vmax.f32 %v2165, 0.0
        %v2198 = vmax.f32 %v2166, 0.0
        %v2199 = vmax.f32 %v2167, 0.0
        %v2200 = vmax.f32 %v2168, 0.0
        %v2201 = vmax.f32 %v2169, 0.0
        %v2202 = vmax.f32 %v2170, 0.0
        %v2203 = vmax.f32 %v2171, 0.0
        %v2204 = vmax.f32 %v2172, 0.0
        %v2205 = vmax.f32 %v2173, 0.0
        %v2206 = vmax.f32 %v2174, 0.0
        %v2207 = vmin.f32 %v2175, 1.0
        %v2208 = vmin.f32 %v2176, 1.0
        %v2209 = vmin.f32 %v2177, 1.0
        %v2210 = vmin.f32 %v2178, 1.0
        %v2211 = vmin.f32 %v2179, 1.0
        %v2212 = vmin.f32 %v2180, 1.0
        %v2213 = vmin.f32 %v2181, 1.0
        %v2214 = vmin.f32 %v2182, 1.0
        %v2215 = vmin.f32 %v2183, 1.0
        %v2216 = vmin.f32 %v2184, 1.0
        %v2217 = vmin.f32 %v2185, 1.0
        %v2218 = vmin.f32 %v2186, 1.0
        %v2219 = vmin.f32 %v2187, 1.0
        %v2220 = vmin.f32 %v2188, 1.0
        %v2221 = vmin.f32 %v2189, 1.0
        %v2222 = vmin.f32 %v2190, 1.0
        %v2223 = vmin.f32 %v2191, 1.0
        %v2224 = vmin.f32 %v2192, 1.0
        %v2225 = vmin.f32 %v2193, 1.0
        %v2226 = vmin.f32 %v2194, 1.0
        %v2227 = vmin.f32 %v2195, 1.0
        %v2228 = vmin.f32 %v2196, 1.0
        %v2229 = vmin.f32 %v2197, 1.0
        %v2230 = vmin.f32 %v2198, 1.0
        %v2231 = vmin.f32 %v2199, 1.0
        %v2232 = vmin.f32 %v2200, 1.0
        %v2233 = vmin.f32 %v2201, 1.0
        %v2234 = vmin.f32 %v2202, 1.0
        %v2235 = vmin.f32 %v2203, 1.0
        %v2236 = vmin.f32 %v2204, 1.0
        %v2237 = vmin.f32 %v2205, 1.0
        %v2238 = vmin.f32 %v2206, 1.0
        %v2239 = vmax.f32 %v2207, 1e-12
        %v2240 = vmax.f32 %v2208, 1e-12
        %v2241 = vmax.f32 %v2209, 1e-12
        %v2242 = vmax.f32 %v2210, 1e-12
        %v2243 = vmax.f32 %v2211, 1e-12
        %v2244 = vmax.f32 %v2212, 1e-12
        %v2245 = vmax.f32 %v2213, 1e-12
        %v2246 = vmax.f32 %v2214, 1e-12
        %v2247 = vmax.f32 %v2215, 1e-12
        %v2248 = vmax.f32 %v2216, 1e-12
        %v2249 = vmax.f32 %v2217, 1e-12
        %v2250 = vmax.f32 %v2218, 1e-12
        %v2251 = vmax.f32 %v2219, 1e-12
        %v2252 = vmax.f32 %v2220, 1e-12
        %v2253 = vmax.f32 %v2221, 1e-12
        %v2254 = vmax.f32 %v2222, 1e-12
        %v2255 = vmax.f32 %v2223, 1e-12
        %v2256 = vmax.f32 %v2224, 1e-12
        %v2257 = vmax.f32 %v2225, 1e-12
        %v2258 = vmax.f32 %v2226, 1e-12
        %v2259 = vmax.f32 %v2227, 1e-12
        %v2260 = vmax.f32 %v2228, 1e-12
        %v2261 = vmax.f32 %v2229, 1e-12
        %v2262 = vmax.f32 %v2230, 1e-12
        %v2263 = vmax.f32 %v2231, 1e-12
        %v2264 = vmax.f32 %v2232, 1e-12
        %v2265 = vmax.f32 %v2233, 1e-12
        %v2266 = vmax.f32 %v2234, 1e-12
        %v2267 = vmax.f32 %v2235, 1e-12
        %v2268 = vmax.f32 %v2236, 1e-12
        %v2269 = vmax.f32 %v2237, 1e-12
        %v2270 = vmax.f32 %v2238, 1e-12
        %v2271 = vlog2.pop %v2239
        %v2272 = vmul.f32 %v2271, 0.6931472
        %v2273 = vlog2.pop %v2240
        %v2274 = vmul.f32 %v2273, 0.6931472
        %v2275 = vlog2.pop %v2241
        %v2276 = vmul.f32 %v2275, 0.6931472
        %v2277 = vlog2.pop %v2242
        %v2278 = vmul.f32 %v2277, 0.6931472
        %v2279 = vlog2.pop %v2243
        %v2280 = vmul.f32 %v2279, 0.6931472
        %v2281 = vlog2.pop %v2244
        %v2282 = vmul.f32 %v2281, 0.6931472
        %v2283 = vlog2.pop %v2245
        %v2284 = vmul.f32 %v2283, 0.6931472
        %v2285 = vlog2.pop %v2246
        %v2286 = vmul.f32 %v2285, 0.6931472
        %v2287 = vlog2.pop %v2247
        %v2288 = vmul.f32 %v2287, 0.6931472
        %v2289 = vlog2.pop %v2248
        %v2290 = vmul.f32 %v2289, 0.6931472
        %v2291 = vlog2.pop %v2249
        %v2292 = vmul.f32 %v2291, 0.6931472
        %v2293 = vlog2.pop %v2250
        %v2294 = vmul.f32 %v2293, 0.6931472
        %v2295 = vlog2.pop %v2251
        %v2296 = vmul.f32 %v2295, 0.6931472
        %v2297 = vlog2.pop %v2252
        %v2298 = vmul.f32 %v2297, 0.6931472
        %v2299 = vlog2.pop %v2253
        %v2300 = vmul.f32 %v2299, 0.6931472
        %v2301 = vlog2.pop %v2254
        %v2302 = vmul.f32 %v2301, 0.6931472
        %v2303 = vlog2.pop %v2255
        %v2304 = vmul.f32 %v2303, 0.6931472
        %v2305 = vlog2.pop %v2256
        %v2306 = vmul.f32 %v2305, 0.6931472
        %v2307 = vlog2.pop %v2257
        %v2308 = vmul.f32 %v2307, 0.6931472
        %v2309 = vlog2.pop %v2258
        %v2310 = vmul.f32 %v2309, 0.6931472
        %v2311 = vlog2.pop %v2259
        %v2312 = vmul.f32 %v2311, 0.6931472
        %v2313 = vlog2.pop %v2260
        %v2314 = vmul.f32 %v2313, 0.6931472
        %v2315 = vlog2.pop %v2261
        %v2316 = vmul.f32 %v2315, 0.6931472
        %v2317 = vlog2.pop %v2262
        %v2318 = vmul.f32 %v2317, 0.6931472
        %v2319 = vlog2.pop %v2263
        %v2320 = vmul.f32 %v2319, 0.6931472
        %v2321 = vlog2.pop %v2264
        %v2322 = vmul.f32 %v2321, 0.6931472
        %v2323 = vlog2.pop %v2265
        %v2324 = vmul.f32 %v2323, 0.6931472
        %v2325 = vlog2.pop %v2266
        %v2326 = vmul.f32 %v2325, 0.6931472
        %v2327 = vlog2.pop %v2267
        %v2328 = vmul.f32 %v2327, 0.6931472
        %v2329 = vlog2.pop %v2268
        %v2330 = vmul.f32 %v2329, 0.6931472
        %v2331 = vlog2.pop %v2269
        %v2332 = vmul.f32 %v2331, 0.6931472
        %v2333 = vlog2.pop %v2270
        %v2334 = vmul.f32 %v2333, 0.6931472
        %v2335 = vmul.f32 %v2272, 0.41666666
        %v2336 = vmul.f32 %v2274, 0.41666666
        %v2337 = vmul.f32 %v2276, 0.41666666
        %v2338 = vmul.f32 %v2278, 0.41666666
        %v2339 = vmul.f32 %v2280, 0.41666666
        %v2340 = vmul.f32 %v2282, 0.41666666
        %v2341 = vmul.f32 %v2284, 0.41666666
        %v2342 = vmul.f32 %v2286, 0.41666666
        %v2343 = vmul.f32 %v2288, 0.41666666
        %v2344 = vmul.f32 %v2290, 0.41666666
        %v2345 = vmul.f32 %v2292, 0.41666666
        %v2346 = vmul.f32 %v2294, 0.41666666
        %v2347 = vmul.f32 %v2296, 0.41666666
        %v2348 = vmul.f32 %v2298, 0.41666666
        %v2349 = vmul.f32 %v2300, 0.41666666
        %v2350 = vmul.f32 %v2302, 0.41666666
        %v2351 = vmul.f32 %v2304, 0.41666666
        %v2352 = vmul.f32 %v2306, 0.41666666
        %v2353 = vmul.f32 %v2308, 0.41666666
        %v2354 = vmul.f32 %v2310, 0.41666666
        %v2355 = vmul.f32 %v2312, 0.41666666
        %v2356 = vmul.f32 %v2314, 0.41666666
        %v2357 = vmul.f32 %v2316, 0.41666666
        %v2358 = vmul.f32 %v2318, 0.41666666
        %v2359 = vmul.f32 %v2320, 0.41666666
        %v2360 = vmul.f32 %v2322, 0.41666666
        %v2361 = vmul.f32 %v2324, 0.41666666
        %v2362 = vmul.f32 %v2326, 0.41666666
        %v2363 = vmul.f32 %v2328, 0.41666666
        %v2364 = vmul.f32 %v2330, 0.41666666
        %v2365 = vmul.f32 %v2332, 0.41666666
        %v2366 = vmul.f32 %v2334, 0.41666666
        %v2367 = vmul.f32 %v2335, 1.442695
        %v2368 = vpow.pop %v2367
        %v2369 = vmul.f32 %v2336, 1.442695
        %v2370 = vpow.pop %v2369
        %v2371 = vmul.f32 %v2337, 1.442695
        %v2372 = vpow.pop %v2371
        %v2373 = vmul.f32 %v2338, 1.442695
        %v2374 = vpow.pop %v2373
        %v2375 = vmul.f32 %v2339, 1.442695
        %v2376 = vpow.pop %v2375
        %v2377 = vmul.f32 %v2340, 1.442695
        %v2378 = vpow.pop %v2377
        %v2379 = vmul.f32 %v2341, 1.442695
        %v2380 = vpow.pop %v2379
        %v2381 = vmul.f32 %v2342, 1.442695
        %v2382 = vpow.pop %v2381
        %v2383 = vmul.f32 %v2343, 1.442695
        %v2384 = vpow.pop %v2383
        %v2385 = vmul.f32 %v2344, 1.442695
        %v2386 = vpow.pop %v2385
        %v2387 = vmul.f32 %v2345, 1.442695
        %v2388 = vpow.pop %v2387
        %v2389 = vmul.f32 %v2346, 1.442695
        %v2390 = vpow.pop %v2389
        %v2391 = vmul.f32 %v2347, 1.442695
        %v2392 = vpow.pop %v2391
        %v2393 = vmul.f32 %v2348, 1.442695
        %v2394 = vpow.pop %v2393
        %v2395 = vmul.f32 %v2349, 1.442695
        %v2396 = vpow.pop %v2395
        %v2397 = vmul.f32 %v2350, 1.442695
        %v2398 = vpow.pop %v2397
        %v2399 = vmul.f32 %v2351, 1.442695
        %v2400 = vpow.pop %v2399
        %v2401 = vmul.f32 %v2352, 1.442695
        %v2402 = vpow.pop %v2401
        %v2403 = vmul.f32 %v2353, 1.442695
        %v2404 = vpow.pop %v2403
        %v2405 = vmul.f32 %v2354, 1.442695
        %v2406 = vpow.pop %v2405
        %v2407 = vmul.f32 %v2355, 1.442695
        %v2408 = vpow.pop %v2407
        %v2409 = vmul.f32 %v2356, 1.442695
        %v2410 = vpow.pop %v2409
        %v2411 = vmul.f32 %v2357, 1.442695
        %v2412 = vpow.pop %v2411
        %v2413 = vmul.f32 %v2358, 1.442695
        %v2414 = vpow.pop %v2413
        %v2415 = vmul.f32 %v2359, 1.442695
        %v2416 = vpow.pop %v2415
        %v2417 = vmul.f32 %v2360, 1.442695
        %v2418 = vpow.pop %v2417
        %v2419 = vmul.f32 %v2361, 1.442695
        %v2420 = vpow.pop %v2419
        %v2421 = vmul.f32 %v2362, 1.442695
        %v2422 = vpow.pop %v2421
        %v2423 = vmul.f32 %v2363, 1.442695
        %v2424 = vpow.pop %v2423
        %v2425 = vmul.f32 %v2364, 1.442695
        %v2426 = vpow.pop %v2425
        %v2427 = vmul.f32 %v2365, 1.442695
        %v2428 = vpow.pop %v2427
        %v2429 = vmul.f32 %v2366, 1.442695
        %v2430 = vpow.pop %v2429
        %v2431 = vmul.f32 %v2368, 1.055
        %v2432 = vmul.f32 %v2370, 1.055
        %v2433 = vmul.f32 %v2372, 1.055
        %v2434 = vmul.f32 %v2374, 1.055
        %v2435 = vmul.f32 %v2376, 1.055
        %v2436 = vmul.f32 %v2378, 1.055
        %v2437 = vmul.f32 %v2380, 1.055
        %v2438 = vmul.f32 %v2382, 1.055
        %v2439 = vmul.f32 %v2384, 1.055
        %v2440 = vmul.f32 %v2386, 1.055
        %v2441 = vmul.f32 %v2388, 1.055
        %v2442 = vmul.f32 %v2390, 1.055
        %v2443 = vmul.f32 %v2392, 1.055
        %v2444 = vmul.f32 %v2394, 1.055
        %v2445 = vmul.f32 %v2396, 1.055
        %v2446 = vmul.f32 %v2398, 1.055
        %v2447 = vmul.f32 %v2400, 1.055
        %v2448 = vmul.f32 %v2402, 1.055
        %v2449 = vmul.f32 %v2404, 1.055
        %v2450 = vmul.f32 %v2406, 1.055
        %v2451 = vmul.f32 %v2408, 1.055
        %v2452 = vmul.f32 %v2410, 1.055
        %v2453 = vmul.f32 %v2412, 1.055
        %v2454 = vmul.f32 %v2414, 1.055
        %v2455 = vmul.f32 %v2416, 1.055
        %v2456 = vmul.f32 %v2418, 1.055
        %v2457 = vmul.f32 %v2420, 1.055
        %v2458 = vmul.f32 %v2422, 1.055
        %v2459 = vmul.f32 %v2424, 1.055
        %v2460 = vmul.f32 %v2426, 1.055
        %v2461 = vmul.f32 %v2428, 1.055
        %v2462 = vmul.f32 %v2430, 1.055
        %v2463 = vsub.f32 %v2431, 0.055
        %v2464 = vsub.f32 %v2432, 0.055
        %v2465 = vsub.f32 %v2433, 0.055
        %v2466 = vsub.f32 %v2434, 0.055
        %v2467 = vsub.f32 %v2435, 0.055
        %v2468 = vsub.f32 %v2436, 0.055
        %v2469 = vsub.f32 %v2437, 0.055
        %v2470 = vsub.f32 %v2438, 0.055
        %v2471 = vsub.f32 %v2439, 0.055
        %v2472 = vsub.f32 %v2440, 0.055
        %v2473 = vsub.f32 %v2441, 0.055
        %v2474 = vsub.f32 %v2442, 0.055
        %v2475 = vsub.f32 %v2443, 0.055
        %v2476 = vsub.f32 %v2444, 0.055
        %v2477 = vsub.f32 %v2445, 0.055
        %v2478 = vsub.f32 %v2446, 0.055
        %v2479 = vsub.f32 %v2447, 0.055
        %v2480 = vsub.f32 %v2448, 0.055
        %v2481 = vsub.f32 %v2449, 0.055
        %v2482 = vsub.f32 %v2450, 0.055
        %v2483 = vsub.f32 %v2451, 0.055
        %v2484 = vsub.f32 %v2452, 0.055
        %v2485 = vsub.f32 %v2453, 0.055
        %v2486 = vsub.f32 %v2454, 0.055
        %v2487 = vsub.f32 %v2455, 0.055
        %v2488 = vsub.f32 %v2456, 0.055
        %v2489 = vsub.f32 %v2457, 0.055
        %v2490 = vsub.f32 %v2458, 0.055
        %v2491 = vsub.f32 %v2459, 0.055
        %v2492 = vsub.f32 %v2460, 0.055
        %v2493 = vsub.f32 %v2461, 0.055
        %v2494 = vsub.f32 %v2462, 0.055
        %vm2495 = vcmp.le.f32.partialorder %v2207, 0.0031308
        %vm2496 = vcmp.le.f32.partialorder %v2208, 0.0031308
        %vm2497 = vcmp.le.f32.partialorder %v2209, 0.0031308
        %vm2498 = vcmp.le.f32.partialorder %v2210, 0.0031308
        %vm2499 = vcmp.le.f32.partialorder %v2211, 0.0031308
        %vm2500 = vcmp.le.f32.partialorder %v2212, 0.0031308
        %vm2501 = vcmp.le.f32.partialorder %v2213, 0.0031308
        %vm2502 = vcmp.le.f32.partialorder %v2214, 0.0031308
        %vm2503 = vcmp.le.f32.partialorder %v2215, 0.0031308
        %vm2504 = vcmp.le.f32.partialorder %v2216, 0.0031308
        %vm2505 = vcmp.le.f32.partialorder %v2217, 0.0031308
        %vm2506 = vcmp.le.f32.partialorder %v2218, 0.0031308
        %vm2507 = vcmp.le.f32.partialorder %v2219, 0.0031308
        %vm2508 = vcmp.le.f32.partialorder %v2220, 0.0031308
        %vm2509 = vcmp.le.f32.partialorder %v2221, 0.0031308
        %vm2510 = vcmp.le.f32.partialorder %v2222, 0.0031308
        %vm2511 = vcmp.le.f32.partialorder %v2223, 0.0031308
        %vm2512 = vcmp.le.f32.partialorder %v2224, 0.0031308
        %vm2513 = vcmp.le.f32.partialorder %v2225, 0.0031308
        %vm2514 = vcmp.le.f32.partialorder %v2226, 0.0031308
        %vm2515 = vcmp.le.f32.partialorder %v2227, 0.0031308
        %vm2516 = vcmp.le.f32.partialorder %v2228, 0.0031308
        %vm2517 = vcmp.le.f32.partialorder %v2229, 0.0031308
        %vm2518 = vcmp.le.f32.partialorder %v2230, 0.0031308
        %vm2519 = vcmp.le.f32.partialorder %v2231, 0.0031308
        %vm2520 = vcmp.le.f32.partialorder %v2232, 0.0031308
        %vm2521 = vcmp.le.f32.partialorder %v2233, 0.0031308
        %vm2522 = vcmp.le.f32.partialorder %v2234, 0.0031308
        %vm2523 = vcmp.le.f32.partialorder %v2235, 0.0031308
        %vm2524 = vcmp.le.f32.partialorder %v2236, 0.0031308
        %vm2525 = vcmp.le.f32.partialorder %v2237, 0.0031308
        %vm2526 = vcmp.le.f32.partialorder %v2238, 0.0031308
        %v2527 = vmul.f32 %v2207, 12.92
        %v2528 = vmul.f32 %v2208, 12.92
        %v2529 = vmul.f32 %v2209, 12.92
        %v2530 = vmul.f32 %v2210, 12.92
        %v2531 = vmul.f32 %v2211, 12.92
        %v2532 = vmul.f32 %v2212, 12.92
        %v2533 = vmul.f32 %v2213, 12.92
        %v2534 = vmul.f32 %v2214, 12.92
        %v2535 = vmul.f32 %v2215, 12.92
        %v2536 = vmul.f32 %v2216, 12.92
        %v2537 = vmul.f32 %v2217, 12.92
        %v2538 = vmul.f32 %v2218, 12.92
        %v2539 = vmul.f32 %v2219, 12.92
        %v2540 = vmul.f32 %v2220, 12.92
        %v2541 = vmul.f32 %v2221, 12.92
        %v2542 = vmul.f32 %v2222, 12.92
        %v2543 = vmul.f32 %v2223, 12.92
        %v2544 = vmul.f32 %v2224, 12.92
        %v2545 = vmul.f32 %v2225, 12.92
        %v2546 = vmul.f32 %v2226, 12.92
        %v2547 = vmul.f32 %v2227, 12.92
        %v2548 = vmul.f32 %v2228, 12.92
        %v2549 = vmul.f32 %v2229, 12.92
        %v2550 = vmul.f32 %v2230, 12.92
        %v2551 = vmul.f32 %v2231, 12.92
        %v2552 = vmul.f32 %v2232, 12.92
        %v2553 = vmul.f32 %v2233, 12.92
        %v2554 = vmul.f32 %v2234, 12.92
        %v2555 = vmul.f32 %v2235, 12.92
        %v2556 = vmul.f32 %v2236, 12.92
        %v2557 = vmul.f32 %v2237, 12.92
        %v2558 = vmul.f32 %v2238, 12.92
        %v2559 = vsel %vm2495, %v2527, %v2463
        %v2560 = vsel %vm2496, %v2528, %v2464
        %v2561 = vsel %vm2497, %v2529, %v2465
        %v2562 = vsel %vm2498, %v2530, %v2466
        %v2563 = vsel %vm2499, %v2531, %v2467
        %v2564 = vsel %vm2500, %v2532, %v2468
        %v2565 = vsel %vm2501, %v2533, %v2469
        %v2566 = vsel %vm2502, %v2534, %v2470
        %v2567 = vsel %vm2503, %v2535, %v2471
        %v2568 = vsel %vm2504, %v2536, %v2472
        %v2569 = vsel %vm2505, %v2537, %v2473
        %v2570 = vsel %vm2506, %v2538, %v2474
        %v2571 = vsel %vm2507, %v2539, %v2475
        %v2572 = vsel %vm2508, %v2540, %v2476
        %v2573 = vsel %vm2509, %v2541, %v2477
        %v2574 = vsel %vm2510, %v2542, %v2478
        %v2575 = vsel %vm2511, %v2543, %v2479
        %v2576 = vsel %vm2512, %v2544, %v2480
        %v2577 = vsel %vm2513, %v2545, %v2481
        %v2578 = vsel %vm2514, %v2546, %v2482
        %v2579 = vsel %vm2515, %v2547, %v2483
        %v2580 = vsel %vm2516, %v2548, %v2484
        %v2581 = vsel %vm2517, %v2549, %v2485
        %v2582 = vsel %vm2518, %v2550, %v2486
        %v2583 = vsel %vm2519, %v2551, %v2487
        %v2584 = vsel %vm2520, %v2552, %v2488
        %v2585 = vsel %vm2521, %v2553, %v2489
        %v2586 = vsel %vm2522, %v2554, %v2490
        %v2587 = vsel %vm2523, %v2555, %v2491
        %v2588 = vsel %vm2524, %v2556, %v2492
        %v2589 = vsel %vm2525, %v2557, %v2493
        %v2590 = vsel %vm2526, %v2558, %v2494
        %v2591 = vmul.f32 %v1517, %v2141
        %v2592 = vmul.f32 %v1518, %v2141
        %v2593 = vmul.f32 %v1519, %v2141
        %v2594 = vmul.f32 %v1520, %v2141
        %v2595 = vmul.f32 %v1521, %v2141
        %v2596 = vmul.f32 %v1522, %v2141
        %v2597 = vmul.f32 %v1523, %v2141
        %v2598 = vmul.f32 %v1524, %v2141
        %v2599 = vmul.f32 %v1525, %v2141
        %v2600 = vmul.f32 %v1526, %v2141
        %v2601 = vmul.f32 %v1527, %v2141
        %v2602 = vmul.f32 %v1528, %v2141
        %v2603 = vmul.f32 %v1529, %v2141
        %v2604 = vmul.f32 %v1530, %v2141
        %v2605 = vmul.f32 %v1531, %v2141
        %v2606 = vmul.f32 %v1532, %v2141
        %v2607 = vmul.f32 %v1533, %v2141
        %v2608 = vmul.f32 %v1534, %v2141
        %v2609 = vmul.f32 %v1535, %v2141
        %v2610 = vmul.f32 %v1536, %v2141
        %v2611 = vmul.f32 %v1537, %v2141
        %v2612 = vmul.f32 %v1538, %v2141
        %v2613 = vmul.f32 %v1539, %v2141
        %v2614 = vmul.f32 %v1540, %v2141
        %v2615 = vmul.f32 %v1541, %v2141
        %v2616 = vmul.f32 %v1542, %v2141
        %v2617 = vmul.f32 %v1543, %v2141
        %v2618 = vmul.f32 %v1544, %v2141
        %v2619 = vmul.f32 %v1545, %v2141
        %v2620 = vmul.f32 %v1546, %v2141
        %v2621 = vmul.f32 %v1547, %v2141
        %v2622 = vmul.f32 %v1548, %v2141
        %v2623 = vmax.f32 %v2591, 0.0
        %v2624 = vmax.f32 %v2592, 0.0
        %v2625 = vmax.f32 %v2593, 0.0
        %v2626 = vmax.f32 %v2594, 0.0
        %v2627 = vmax.f32 %v2595, 0.0
        %v2628 = vmax.f32 %v2596, 0.0
        %v2629 = vmax.f32 %v2597, 0.0
        %v2630 = vmax.f32 %v2598, 0.0
        %v2631 = vmax.f32 %v2599, 0.0
        %v2632 = vmax.f32 %v2600, 0.0
        %v2633 = vmax.f32 %v2601, 0.0
        %v2634 = vmax.f32 %v2602, 0.0
        %v2635 = vmax.f32 %v2603, 0.0
        %v2636 = vmax.f32 %v2604, 0.0
        %v2637 = vmax.f32 %v2605, 0.0
        %v2638 = vmax.f32 %v2606, 0.0
        %v2639 = vmax.f32 %v2607, 0.0
        %v2640 = vmax.f32 %v2608, 0.0
        %v2641 = vmax.f32 %v2609, 0.0
        %v2642 = vmax.f32 %v2610, 0.0
        %v2643 = vmax.f32 %v2611, 0.0
        %v2644 = vmax.f32 %v2612, 0.0
        %v2645 = vmax.f32 %v2613, 0.0
        %v2646 = vmax.f32 %v2614, 0.0
        %v2647 = vmax.f32 %v2615, 0.0
        %v2648 = vmax.f32 %v2616, 0.0
        %v2649 = vmax.f32 %v2617, 0.0
        %v2650 = vmax.f32 %v2618, 0.0
        %v2651 = vmax.f32 %v2619, 0.0
        %v2652 = vmax.f32 %v2620, 0.0
        %v2653 = vmax.f32 %v2621, 0.0
        %v2654 = vmax.f32 %v2622, 0.0
        %v2655 = vmin.f32 %v2623, 1.0
        %v2656 = vmin.f32 %v2624, 1.0
        %v2657 = vmin.f32 %v2625, 1.0
        %v2658 = vmin.f32 %v2626, 1.0
        %v2659 = vmin.f32 %v2627, 1.0
        %v2660 = vmin.f32 %v2628, 1.0
        %v2661 = vmin.f32 %v2629, 1.0
        %v2662 = vmin.f32 %v2630, 1.0
        %v2663 = vmin.f32 %v2631, 1.0
        %v2664 = vmin.f32 %v2632, 1.0
        %v2665 = vmin.f32 %v2633, 1.0
        %v2666 = vmin.f32 %v2634, 1.0
        %v2667 = vmin.f32 %v2635, 1.0
        %v2668 = vmin.f32 %v2636, 1.0
        %v2669 = vmin.f32 %v2637, 1.0
        %v2670 = vmin.f32 %v2638, 1.0
        %v2671 = vmin.f32 %v2639, 1.0
        %v2672 = vmin.f32 %v2640, 1.0
        %v2673 = vmin.f32 %v2641, 1.0
        %v2674 = vmin.f32 %v2642, 1.0
        %v2675 = vmin.f32 %v2643, 1.0
        %v2676 = vmin.f32 %v2644, 1.0
        %v2677 = vmin.f32 %v2645, 1.0
        %v2678 = vmin.f32 %v2646, 1.0
        %v2679 = vmin.f32 %v2647, 1.0
        %v2680 = vmin.f32 %v2648, 1.0
        %v2681 = vmin.f32 %v2649, 1.0
        %v2682 = vmin.f32 %v2650, 1.0
        %v2683 = vmin.f32 %v2651, 1.0
        %v2684 = vmin.f32 %v2652, 1.0
        %v2685 = vmin.f32 %v2653, 1.0
        %v2686 = vmin.f32 %v2654, 1.0
        %v2687 = vmax.f32 %v2655, 1e-12
        %v2688 = vmax.f32 %v2656, 1e-12
        %v2689 = vmax.f32 %v2657, 1e-12
        %v2690 = vmax.f32 %v2658, 1e-12
        %v2691 = vmax.f32 %v2659, 1e-12
        %v2692 = vmax.f32 %v2660, 1e-12
        %v2693 = vmax.f32 %v2661, 1e-12
        %v2694 = vmax.f32 %v2662, 1e-12
        %v2695 = vmax.f32 %v2663, 1e-12
        %v2696 = vmax.f32 %v2664, 1e-12
        %v2697 = vmax.f32 %v2665, 1e-12
        %v2698 = vmax.f32 %v2666, 1e-12
        %v2699 = vmax.f32 %v2667, 1e-12
        %v2700 = vmax.f32 %v2668, 1e-12
        %v2701 = vmax.f32 %v2669, 1e-12
        %v2702 = vmax.f32 %v2670, 1e-12
        %v2703 = vmax.f32 %v2671, 1e-12
        %v2704 = vmax.f32 %v2672, 1e-12
        %v2705 = vmax.f32 %v2673, 1e-12
        %v2706 = vmax.f32 %v2674, 1e-12
        %v2707 = vmax.f32 %v2675, 1e-12
        %v2708 = vmax.f32 %v2676, 1e-12
        %v2709 = vmax.f32 %v2677, 1e-12
        %v2710 = vmax.f32 %v2678, 1e-12
        %v2711 = vmax.f32 %v2679, 1e-12
        %v2712 = vmax.f32 %v2680, 1e-12
        %v2713 = vmax.f32 %v2681, 1e-12
        %v2714 = vmax.f32 %v2682, 1e-12
        %v2715 = vmax.f32 %v2683, 1e-12
        %v2716 = vmax.f32 %v2684, 1e-12
        %v2717 = vmax.f32 %v2685, 1e-12
        %v2718 = vmax.f32 %v2686, 1e-12
        %v2719 = vlog2.pop %v2687
        %v2720 = vmul.f32 %v2719, 0.6931472
        %v2721 = vlog2.pop %v2688
        %v2722 = vmul.f32 %v2721, 0.6931472
        %v2723 = vlog2.pop %v2689
        %v2724 = vmul.f32 %v2723, 0.6931472
        %v2725 = vlog2.pop %v2690
        %v2726 = vmul.f32 %v2725, 0.6931472
        %v2727 = vlog2.pop %v2691
        %v2728 = vmul.f32 %v2727, 0.6931472
        %v2729 = vlog2.pop %v2692
        %v2730 = vmul.f32 %v2729, 0.6931472
        %v2731 = vlog2.pop %v2693
        %v2732 = vmul.f32 %v2731, 0.6931472
        %v2733 = vlog2.pop %v2694
        %v2734 = vmul.f32 %v2733, 0.6931472
        %v2735 = vlog2.pop %v2695
        %v2736 = vmul.f32 %v2735, 0.6931472
        %v2737 = vlog2.pop %v2696
        %v2738 = vmul.f32 %v2737, 0.6931472
        %v2739 = vlog2.pop %v2697
        %v2740 = vmul.f32 %v2739, 0.6931472
        %v2741 = vlog2.pop %v2698
        %v2742 = vmul.f32 %v2741, 0.6931472
        %v2743 = vlog2.pop %v2699
        %v2744 = vmul.f32 %v2743, 0.6931472
        %v2745 = vlog2.pop %v2700
        %v2746 = vmul.f32 %v2745, 0.6931472
        %v2747 = vlog2.pop %v2701
        %v2748 = vmul.f32 %v2747, 0.6931472
        %v2749 = vlog2.pop %v2702
        %v2750 = vmul.f32 %v2749, 0.6931472
        %v2751 = vlog2.pop %v2703
        %v2752 = vmul.f32 %v2751, 0.6931472
        %v2753 = vlog2.pop %v2704
        %v2754 = vmul.f32 %v2753, 0.6931472
        %v2755 = vlog2.pop %v2705
        %v2756 = vmul.f32 %v2755, 0.6931472
        %v2757 = vlog2.pop %v2706
        %v2758 = vmul.f32 %v2757, 0.6931472
        %v2759 = vlog2.pop %v2707
        %v2760 = vmul.f32 %v2759, 0.6931472
        %v2761 = vlog2.pop %v2708
        %v2762 = vmul.f32 %v2761, 0.6931472
        %v2763 = vlog2.pop %v2709
        %v2764 = vmul.f32 %v2763, 0.6931472
        %v2765 = vlog2.pop %v2710
        %v2766 = vmul.f32 %v2765, 0.6931472
        %v2767 = vlog2.pop %v2711
        %v2768 = vmul.f32 %v2767, 0.6931472
        %v2769 = vlog2.pop %v2712
        %v2770 = vmul.f32 %v2769, 0.6931472
        %v2771 = vlog2.pop %v2713
        %v2772 = vmul.f32 %v2771, 0.6931472
        %v2773 = vlog2.pop %v2714
        %v2774 = vmul.f32 %v2773, 0.6931472
        %v2775 = vlog2.pop %v2715
        %v2776 = vmul.f32 %v2775, 0.6931472
        %v2777 = vlog2.pop %v2716
        %v2778 = vmul.f32 %v2777, 0.6931472
        %v2779 = vlog2.pop %v2717
        %v2780 = vmul.f32 %v2779, 0.6931472
        %v2781 = vlog2.pop %v2718
        %v2782 = vmul.f32 %v2781, 0.6931472
        %v2783 = vmul.f32 %v2720, 0.41666666
        %v2784 = vmul.f32 %v2722, 0.41666666
        %v2785 = vmul.f32 %v2724, 0.41666666
        %v2786 = vmul.f32 %v2726, 0.41666666
        %v2787 = vmul.f32 %v2728, 0.41666666
        %v2788 = vmul.f32 %v2730, 0.41666666
        %v2789 = vmul.f32 %v2732, 0.41666666
        %v2790 = vmul.f32 %v2734, 0.41666666
        %v2791 = vmul.f32 %v2736, 0.41666666
        %v2792 = vmul.f32 %v2738, 0.41666666
        %v2793 = vmul.f32 %v2740, 0.41666666
        %v2794 = vmul.f32 %v2742, 0.41666666
        %v2795 = vmul.f32 %v2744, 0.41666666
        %v2796 = vmul.f32 %v2746, 0.41666666
        %v2797 = vmul.f32 %v2748, 0.41666666
        %v2798 = vmul.f32 %v2750, 0.41666666
        %v2799 = vmul.f32 %v2752, 0.41666666
        %v2800 = vmul.f32 %v2754, 0.41666666
        %v2801 = vmul.f32 %v2756, 0.41666666
        %v2802 = vmul.f32 %v2758, 0.41666666
        %v2803 = vmul.f32 %v2760, 0.41666666
        %v2804 = vmul.f32 %v2762, 0.41666666
        %v2805 = vmul.f32 %v2764, 0.41666666
        %v2806 = vmul.f32 %v2766, 0.41666666
        %v2807 = vmul.f32 %v2768, 0.41666666
        %v2808 = vmul.f32 %v2770, 0.41666666
        %v2809 = vmul.f32 %v2772, 0.41666666
        %v2810 = vmul.f32 %v2774, 0.41666666
        %v2811 = vmul.f32 %v2776, 0.41666666
        %v2812 = vmul.f32 %v2778, 0.41666666
        %v2813 = vmul.f32 %v2780, 0.41666666
        %v2814 = vmul.f32 %v2782, 0.41666666
        %v2815 = vmul.f32 %v2783, 1.442695
        %v2816 = vpow.pop %v2815
        %v2817 = vmul.f32 %v2784, 1.442695
        %v2818 = vpow.pop %v2817
        %v2819 = vmul.f32 %v2785, 1.442695
        %v2820 = vpow.pop %v2819
        %v2821 = vmul.f32 %v2786, 1.442695
        %v2822 = vpow.pop %v2821
        %v2823 = vmul.f32 %v2787, 1.442695
        %v2824 = vpow.pop %v2823
        %v2825 = vmul.f32 %v2788, 1.442695
        %v2826 = vpow.pop %v2825
        %v2827 = vmul.f32 %v2789, 1.442695
        %v2828 = vpow.pop %v2827
        %v2829 = vmul.f32 %v2790, 1.442695
        %v2830 = vpow.pop %v2829
        %v2831 = vmul.f32 %v2791, 1.442695
        %v2832 = vpow.pop %v2831
        %v2833 = vmul.f32 %v2792, 1.442695
        %v2834 = vpow.pop %v2833
        %v2835 = vmul.f32 %v2793, 1.442695
        %v2836 = vpow.pop %v2835
        %v2837 = vmul.f32 %v2794, 1.442695
        %v2838 = vpow.pop %v2837
        %v2839 = vmul.f32 %v2795, 1.442695
        %v2840 = vpow.pop %v2839
        %v2841 = vmul.f32 %v2796, 1.442695
        %v2842 = vpow.pop %v2841
        %v2843 = vmul.f32 %v2797, 1.442695
        %v2844 = vpow.pop %v2843
        %v2845 = vmul.f32 %v2798, 1.442695
        %v2846 = vpow.pop %v2845
        %v2847 = vmul.f32 %v2799, 1.442695
        %v2848 = vpow.pop %v2847
        %v2849 = vmul.f32 %v2800, 1.442695
        %v2850 = vpow.pop %v2849
        %v2851 = vmul.f32 %v2801, 1.442695
        %v2852 = vpow.pop %v2851
        %v2853 = vmul.f32 %v2802, 1.442695
        %v2854 = vpow.pop %v2853
        %v2855 = vmul.f32 %v2803, 1.442695
        %v2856 = vpow.pop %v2855
        %v2857 = vmul.f32 %v2804, 1.442695
        %v2858 = vpow.pop %v2857
        %v2859 = vmul.f32 %v2805, 1.442695
        %v2860 = vpow.pop %v2859
        %v2861 = vmul.f32 %v2806, 1.442695
        %v2862 = vpow.pop %v2861
        %v2863 = vmul.f32 %v2807, 1.442695
        %v2864 = vpow.pop %v2863
        %v2865 = vmul.f32 %v2808, 1.442695
        %v2866 = vpow.pop %v2865
        %v2867 = vmul.f32 %v2809, 1.442695
        %v2868 = vpow.pop %v2867
        %v2869 = vmul.f32 %v2810, 1.442695
        %v2870 = vpow.pop %v2869
        %v2871 = vmul.f32 %v2811, 1.442695
        %v2872 = vpow.pop %v2871
        %v2873 = vmul.f32 %v2812, 1.442695
        %v2874 = vpow.pop %v2873
        %v2875 = vmul.f32 %v2813, 1.442695
        %v2876 = vpow.pop %v2875
        %v2877 = vmul.f32 %v2814, 1.442695
        %v2878 = vpow.pop %v2877
        %v2879 = vmul.f32 %v2816, 1.055
        %v2880 = vmul.f32 %v2818, 1.055
        %v2881 = vmul.f32 %v2820, 1.055
        %v2882 = vmul.f32 %v2822, 1.055
        %v2883 = vmul.f32 %v2824, 1.055
        %v2884 = vmul.f32 %v2826, 1.055
        %v2885 = vmul.f32 %v2828, 1.055
        %v2886 = vmul.f32 %v2830, 1.055
        %v2887 = vmul.f32 %v2832, 1.055
        %v2888 = vmul.f32 %v2834, 1.055
        %v2889 = vmul.f32 %v2836, 1.055
        %v2890 = vmul.f32 %v2838, 1.055
        %v2891 = vmul.f32 %v2840, 1.055
        %v2892 = vmul.f32 %v2842, 1.055
        %v2893 = vmul.f32 %v2844, 1.055
        %v2894 = vmul.f32 %v2846, 1.055
        %v2895 = vmul.f32 %v2848, 1.055
        %v2896 = vmul.f32 %v2850, 1.055
        %v2897 = vmul.f32 %v2852, 1.055
        %v2898 = vmul.f32 %v2854, 1.055
        %v2899 = vmul.f32 %v2856, 1.055
        %v2900 = vmul.f32 %v2858, 1.055
        %v2901 = vmul.f32 %v2860, 1.055
        %v2902 = vmul.f32 %v2862, 1.055
        %v2903 = vmul.f32 %v2864, 1.055
        %v2904 = vmul.f32 %v2866, 1.055
        %v2905 = vmul.f32 %v2868, 1.055
        %v2906 = vmul.f32 %v2870, 1.055
        %v2907 = vmul.f32 %v2872, 1.055
        %v2908 = vmul.f32 %v2874, 1.055
        %v2909 = vmul.f32 %v2876, 1.055
        %v2910 = vmul.f32 %v2878, 1.055
        %v2911 = vsub.f32 %v2879, 0.055
        %v2912 = vsub.f32 %v2880, 0.055
        %v2913 = vsub.f32 %v2881, 0.055
        %v2914 = vsub.f32 %v2882, 0.055
        %v2915 = vsub.f32 %v2883, 0.055
        %v2916 = vsub.f32 %v2884, 0.055
        %v2917 = vsub.f32 %v2885, 0.055
        %v2918 = vsub.f32 %v2886, 0.055
        %v2919 = vsub.f32 %v2887, 0.055
        %v2920 = vsub.f32 %v2888, 0.055
        %v2921 = vsub.f32 %v2889, 0.055
        %v2922 = vsub.f32 %v2890, 0.055
        %v2923 = vsub.f32 %v2891, 0.055
        %v2924 = vsub.f32 %v2892, 0.055
        %v2925 = vsub.f32 %v2893, 0.055
        %v2926 = vsub.f32 %v2894, 0.055
        %v2927 = vsub.f32 %v2895, 0.055
        %v2928 = vsub.f32 %v2896, 0.055
        %v2929 = vsub.f32 %v2897, 0.055
        %v2930 = vsub.f32 %v2898, 0.055
        %v2931 = vsub.f32 %v2899, 0.055
        %v2932 = vsub.f32 %v2900, 0.055
        %v2933 = vsub.f32 %v2901, 0.055
        %v2934 = vsub.f32 %v2902, 0.055
        %v2935 = vsub.f32 %v2903, 0.055
        %v2936 = vsub.f32 %v2904, 0.055
        %v2937 = vsub.f32 %v2905, 0.055
        %v2938 = vsub.f32 %v2906, 0.055
        %v2939 = vsub.f32 %v2907, 0.055
        %v2940 = vsub.f32 %v2908, 0.055
        %v2941 = vsub.f32 %v2909, 0.055
        %v2942 = vsub.f32 %v2910, 0.055
        %vm2943 = vcmp.le.f32.partialorder %v2655, 0.0031308
        %vm2944 = vcmp.le.f32.partialorder %v2656, 0.0031308
        %vm2945 = vcmp.le.f32.partialorder %v2657, 0.0031308
        %vm2946 = vcmp.le.f32.partialorder %v2658, 0.0031308
        %vm2947 = vcmp.le.f32.partialorder %v2659, 0.0031308
        %vm2948 = vcmp.le.f32.partialorder %v2660, 0.0031308
        %vm2949 = vcmp.le.f32.partialorder %v2661, 0.0031308
        %vm2950 = vcmp.le.f32.partialorder %v2662, 0.0031308
        %vm2951 = vcmp.le.f32.partialorder %v2663, 0.0031308
        %vm2952 = vcmp.le.f32.partialorder %v2664, 0.0031308
        %vm2953 = vcmp.le.f32.partialorder %v2665, 0.0031308
        %vm2954 = vcmp.le.f32.partialorder %v2666, 0.0031308
        %vm2955 = vcmp.le.f32.partialorder %v2667, 0.0031308
        %vm2956 = vcmp.le.f32.partialorder %v2668, 0.0031308
        %vm2957 = vcmp.le.f32.partialorder %v2669, 0.0031308
        %vm2958 = vcmp.le.f32.partialorder %v2670, 0.0031308
        %vm2959 = vcmp.le.f32.partialorder %v2671, 0.0031308
        %vm2960 = vcmp.le.f32.partialorder %v2672, 0.0031308
        %vm2961 = vcmp.le.f32.partialorder %v2673, 0.0031308
        %vm2962 = vcmp.le.f32.partialorder %v2674, 0.0031308
        %vm2963 = vcmp.le.f32.partialorder %v2675, 0.0031308
        %vm2964 = vcmp.le.f32.partialorder %v2676, 0.0031308
        %vm2965 = vcmp.le.f32.partialorder %v2677, 0.0031308
        %vm2966 = vcmp.le.f32.partialorder %v2678, 0.0031308
        %vm2967 = vcmp.le.f32.partialorder %v2679, 0.0031308
        %vm2968 = vcmp.le.f32.partialorder %v2680, 0.0031308
        %vm2969 = vcmp.le.f32.partialorder %v2681, 0.0031308
        %vm2970 = vcmp.le.f32.partialorder %v2682, 0.0031308
        %vm2971 = vcmp.le.f32.partialorder %v2683, 0.0031308
        %vm2972 = vcmp.le.f32.partialorder %v2684, 0.0031308
        %vm2973 = vcmp.le.f32.partialorder %v2685, 0.0031308
        %vm2974 = vcmp.le.f32.partialorder %v2686, 0.0031308
        %v2975 = vmul.f32 %v2655, 12.92
        %v2976 = vmul.f32 %v2656, 12.92
        %v2977 = vmul.f32 %v2657, 12.92
        %v2978 = vmul.f32 %v2658, 12.92
        %v2979 = vmul.f32 %v2659, 12.92
        %v2980 = vmul.f32 %v2660, 12.92
        %v2981 = vmul.f32 %v2661, 12.92
        %v2982 = vmul.f32 %v2662, 12.92
        %v2983 = vmul.f32 %v2663, 12.92
        %v2984 = vmul.f32 %v2664, 12.92
        %v2985 = vmul.f32 %v2665, 12.92
        %v2986 = vmul.f32 %v2666, 12.92
        %v2987 = vmul.f32 %v2667, 12.92
        %v2988 = vmul.f32 %v2668, 12.92
        %v2989 = vmul.f32 %v2669, 12.92
        %v2990 = vmul.f32 %v2670, 12.92
        %v2991 = vmul.f32 %v2671, 12.92
        %v2992 = vmul.f32 %v2672, 12.92
        %v2993 = vmul.f32 %v2673, 12.92
        %v2994 = vmul.f32 %v2674, 12.92
        %v2995 = vmul.f32 %v2675, 12.92
        %v2996 = vmul.f32 %v2676, 12.92
        %v2997 = vmul.f32 %v2677, 12.92
        %v2998 = vmul.f32 %v2678, 12.92
        %v2999 = vmul.f32 %v2679, 12.92
        %v3000 = vmul.f32 %v2680, 12.92
        %v3001 = vmul.f32 %v2681, 12.92
        %v3002 = vmul.f32 %v2682, 12.92
        %v3003 = vmul.f32 %v2683, 12.92
        %v3004 = vmul.f32 %v2684, 12.92
        %v3005 = vmul.f32 %v2685, 12.92
        %v3006 = vmul.f32 %v2686, 12.92
        %v3007 = vsel %vm2943, %v2975, %v2911
        %v3008 = vsel %vm2944, %v2976, %v2912
        %v3009 = vsel %vm2945, %v2977, %v2913
        %v3010 = vsel %vm2946, %v2978, %v2914
        %v3011 = vsel %vm2947, %v2979, %v2915
        %v3012 = vsel %vm2948, %v2980, %v2916
        %v3013 = vsel %vm2949, %v2981, %v2917
        %v3014 = vsel %vm2950, %v2982, %v2918
        %v3015 = vsel %vm2951, %v2983, %v2919
        %v3016 = vsel %vm2952, %v2984, %v2920
        %v3017 = vsel %vm2953, %v2985, %v2921
        %v3018 = vsel %vm2954, %v2986, %v2922
        %v3019 = vsel %vm2955, %v2987, %v2923
        %v3020 = vsel %vm2956, %v2988, %v2924
        %v3021 = vsel %vm2957, %v2989, %v2925
        %v3022 = vsel %vm2958, %v2990, %v2926
        %v3023 = vsel %vm2959, %v2991, %v2927
        %v3024 = vsel %vm2960, %v2992, %v2928
        %v3025 = vsel %vm2961, %v2993, %v2929
        %v3026 = vsel %vm2962, %v2994, %v2930
        %v3027 = vsel %vm2963, %v2995, %v2931
        %v3028 = vsel %vm2964, %v2996, %v2932
        %v3029 = vsel %vm2965, %v2997, %v2933
        %v3030 = vsel %vm2966, %v2998, %v2934
        %v3031 = vsel %vm2967, %v2999, %v2935
        %v3032 = vsel %vm2968, %v3000, %v2936
        %v3033 = vsel %vm2969, %v3001, %v2937
        %v3034 = vsel %vm2970, %v3002, %v2938
        %v3035 = vsel %vm2971, %v3003, %v2939
        %v3036 = vsel %vm2972, %v3004, %v2940
        %v3037 = vsel %vm2973, %v3005, %v2941
        %v3038 = vsel %vm2974, %v3006, %v2942
        %v3039 = vmul.f32 %v2009, %v2141
        %v3040 = vmul.f32 %v2010, %v2141
        %v3041 = vmul.f32 %v2011, %v2141
        %v3042 = vmul.f32 %v2012, %v2141
        %v3043 = vmul.f32 %v2013, %v2141
        %v3044 = vmul.f32 %v2014, %v2141
        %v3045 = vmul.f32 %v2015, %v2141
        %v3046 = vmul.f32 %v2016, %v2141
        %v3047 = vmul.f32 %v2017, %v2141
        %v3048 = vmul.f32 %v2018, %v2141
        %v3049 = vmul.f32 %v2019, %v2141
        %v3050 = vmul.f32 %v2020, %v2141
        %v3051 = vmul.f32 %v2021, %v2141
        %v3052 = vmul.f32 %v2022, %v2141
        %v3053 = vmul.f32 %v2023, %v2141
        %v3054 = vmul.f32 %v2024, %v2141
        %v3055 = vmul.f32 %v2025, %v2141
        %v3056 = vmul.f32 %v2026, %v2141
        %v3057 = vmul.f32 %v2027, %v2141
        %v3058 = vmul.f32 %v2028, %v2141
        %v3059 = vmul.f32 %v2029, %v2141
        %v3060 = vmul.f32 %v2030, %v2141
        %v3061 = vmul.f32 %v2031, %v2141
        %v3062 = vmul.f32 %v2032, %v2141
        %v3063 = vmul.f32 %v2033, %v2141
        %v3064 = vmul.f32 %v2034, %v2141
        %v3065 = vmul.f32 %v2035, %v2141
        %v3066 = vmul.f32 %v2036, %v2141
        %v3067 = vmul.f32 %v2037, %v2141
        %v3068 = vmul.f32 %v2038, %v2141
        %v3069 = vmul.f32 %v2039, %v2141
        %v3070 = vmul.f32 %v2040, %v2141
        %v3071 = vmax.f32 %v3039, 0.0
        %v3072 = vmax.f32 %v3040, 0.0
        %v3073 = vmax.f32 %v3041, 0.0
        %v3074 = vmax.f32 %v3042, 0.0
        %v3075 = vmax.f32 %v3043, 0.0
        %v3076 = vmax.f32 %v3044, 0.0
        %v3077 = vmax.f32 %v3045, 0.0
        %v3078 = vmax.f32 %v3046, 0.0
        %v3079 = vmax.f32 %v3047, 0.0
        %v3080 = vmax.f32 %v3048, 0.0
        %v3081 = vmax.f32 %v3049, 0.0
        %v3082 = vmax.f32 %v3050, 0.0
        %v3083 = vmax.f32 %v3051, 0.0
        %v3084 = vmax.f32 %v3052, 0.0
        %v3085 = vmax.f32 %v3053, 0.0
        %v3086 = vmax.f32 %v3054, 0.0
        %v3087 = vmax.f32 %v3055, 0.0
        %v3088 = vmax.f32 %v3056, 0.0
        %v3089 = vmax.f32 %v3057, 0.0
        %v3090 = vmax.f32 %v3058, 0.0
        %v3091 = vmax.f32 %v3059, 0.0
        %v3092 = vmax.f32 %v3060, 0.0
        %v3093 = vmax.f32 %v3061, 0.0
        %v3094 = vmax.f32 %v3062, 0.0
        %v3095 = vmax.f32 %v3063, 0.0
        %v3096 = vmax.f32 %v3064, 0.0
        %v3097 = vmax.f32 %v3065, 0.0
        %v3098 = vmax.f32 %v3066, 0.0
        %v3099 = vmax.f32 %v3067, 0.0
        %v3100 = vmax.f32 %v3068, 0.0
        %v3101 = vmax.f32 %v3069, 0.0
        %v3102 = vmax.f32 %v3070, 0.0
        %v3103 = vmin.f32 %v3071, 1.0
        %v3104 = vmin.f32 %v3072, 1.0
        %v3105 = vmin.f32 %v3073, 1.0
        %v3106 = vmin.f32 %v3074, 1.0
        %v3107 = vmin.f32 %v3075, 1.0
        %v3108 = vmin.f32 %v3076, 1.0
        %v3109 = vmin.f32 %v3077, 1.0
        %v3110 = vmin.f32 %v3078, 1.0
        %v3111 = vmin.f32 %v3079, 1.0
        %v3112 = vmin.f32 %v3080, 1.0
        %v3113 = vmin.f32 %v3081, 1.0
        %v3114 = vmin.f32 %v3082, 1.0
        %v3115 = vmin.f32 %v3083, 1.0
        %v3116 = vmin.f32 %v3084, 1.0
        %v3117 = vmin.f32 %v3085, 1.0
        %v3118 = vmin.f32 %v3086, 1.0
        %v3119 = vmin.f32 %v3087, 1.0
        %v3120 = vmin.f32 %v3088, 1.0
        %v3121 = vmin.f32 %v3089, 1.0
        %v3122 = vmin.f32 %v3090, 1.0
        %v3123 = vmin.f32 %v3091, 1.0
        %v3124 = vmin.f32 %v3092, 1.0
        %v3125 = vmin.f32 %v3093, 1.0
        %v3126 = vmin.f32 %v3094, 1.0
        %v3127 = vmin.f32 %v3095, 1.0
        %v3128 = vmin.f32 %v3096, 1.0
        %v3129 = vmin.f32 %v3097, 1.0
        %v3130 = vmin.f32 %v3098, 1.0
        %v3131 = vmin.f32 %v3099, 1.0
        %v3132 = vmin.f32 %v3100, 1.0
        %v3133 = vmin.f32 %v3101, 1.0
        %v3134 = vmin.f32 %v3102, 1.0
        %v3135 = vmax.f32 %v3103, 1e-12
        %v3136 = vmax.f32 %v3104, 1e-12
        %v3137 = vmax.f32 %v3105, 1e-12
        %v3138 = vmax.f32 %v3106, 1e-12
        %v3139 = vmax.f32 %v3107, 1e-12
        %v3140 = vmax.f32 %v3108, 1e-12
        %v3141 = vmax.f32 %v3109, 1e-12
        %v3142 = vmax.f32 %v3110, 1e-12
        %v3143 = vmax.f32 %v3111, 1e-12
        %v3144 = vmax.f32 %v3112, 1e-12
        %v3145 = vmax.f32 %v3113, 1e-12
        %v3146 = vmax.f32 %v3114, 1e-12
        %v3147 = vmax.f32 %v3115, 1e-12
        %v3148 = vmax.f32 %v3116, 1e-12
        %v3149 = vmax.f32 %v3117, 1e-12
        %v3150 = vmax.f32 %v3118, 1e-12
        %v3151 = vmax.f32 %v3119, 1e-12
        %v3152 = vmax.f32 %v3120, 1e-12
        %v3153 = vmax.f32 %v3121, 1e-12
        %v3154 = vmax.f32 %v3122, 1e-12
        %v3155 = vmax.f32 %v3123, 1e-12
        %v3156 = vmax.f32 %v3124, 1e-12
        %v3157 = vmax.f32 %v3125, 1e-12
        %v3158 = vmax.f32 %v3126, 1e-12
        %v3159 = vmax.f32 %v3127, 1e-12
        %v3160 = vmax.f32 %v3128, 1e-12
        %v3161 = vmax.f32 %v3129, 1e-12
        %v3162 = vmax.f32 %v3130, 1e-12
        %v3163 = vmax.f32 %v3131, 1e-12
        %v3164 = vmax.f32 %v3132, 1e-12
        %v3165 = vmax.f32 %v3133, 1e-12
        %v3166 = vmax.f32 %v3134, 1e-12
        %v3167 = vlog2.pop %v3135
        %v3168 = vmul.f32 %v3167, 0.6931472
        %v3169 = vlog2.pop %v3136
        %v3170 = vmul.f32 %v3169, 0.6931472
        %v3171 = vlog2.pop %v3137
        %v3172 = vmul.f32 %v3171, 0.6931472
        %v3173 = vlog2.pop %v3138
        %v3174 = vmul.f32 %v3173, 0.6931472
        %v3175 = vlog2.pop %v3139
        %v3176 = vmul.f32 %v3175, 0.6931472
        %v3177 = vlog2.pop %v3140
        %v3178 = vmul.f32 %v3177, 0.6931472
        %v3179 = vlog2.pop %v3141
        %v3180 = vmul.f32 %v3179, 0.6931472
        %v3181 = vlog2.pop %v3142
        %v3182 = vmul.f32 %v3181, 0.6931472
        %v3183 = vlog2.pop %v3143
        %v3184 = vmul.f32 %v3183, 0.6931472
        %v3185 = vlog2.pop %v3144
        %v3186 = vmul.f32 %v3185, 0.6931472
        %v3187 = vlog2.pop %v3145
        %v3188 = vmul.f32 %v3187, 0.6931472
        %v3189 = vlog2.pop %v3146
        %v3190 = vmul.f32 %v3189, 0.6931472
        %v3191 = vlog2.pop %v3147
        %v3192 = vmul.f32 %v3191, 0.6931472
        %v3193 = vlog2.pop %v3148
        %v3194 = vmul.f32 %v3193, 0.6931472
        %v3195 = vlog2.pop %v3149
        %v3196 = vmul.f32 %v3195, 0.6931472
        %v3197 = vlog2.pop %v3150
        %v3198 = vmul.f32 %v3197, 0.6931472
        %v3199 = vlog2.pop %v3151
        %v3200 = vmul.f32 %v3199, 0.6931472
        %v3201 = vlog2.pop %v3152
        %v3202 = vmul.f32 %v3201, 0.6931472
        %v3203 = vlog2.pop %v3153
        %v3204 = vmul.f32 %v3203, 0.6931472
        %v3205 = vlog2.pop %v3154
        %v3206 = vmul.f32 %v3205, 0.6931472
        %v3207 = vlog2.pop %v3155
        %v3208 = vmul.f32 %v3207, 0.6931472
        %v3209 = vlog2.pop %v3156
        %v3210 = vmul.f32 %v3209, 0.6931472
        %v3211 = vlog2.pop %v3157
        %v3212 = vmul.f32 %v3211, 0.6931472
        %v3213 = vlog2.pop %v3158
        %v3214 = vmul.f32 %v3213, 0.6931472
        %v3215 = vlog2.pop %v3159
        %v3216 = vmul.f32 %v3215, 0.6931472
        %v3217 = vlog2.pop %v3160
        %v3218 = vmul.f32 %v3217, 0.6931472
        %v3219 = vlog2.pop %v3161
        %v3220 = vmul.f32 %v3219, 0.6931472
        %v3221 = vlog2.pop %v3162
        %v3222 = vmul.f32 %v3221, 0.6931472
        %v3223 = vlog2.pop %v3163
        %v3224 = vmul.f32 %v3223, 0.6931472
        %v3225 = vlog2.pop %v3164
        %v3226 = vmul.f32 %v3225, 0.6931472
        %v3227 = vlog2.pop %v3165
        %v3228 = vmul.f32 %v3227, 0.6931472
        %v3229 = vlog2.pop %v3166
        %v3230 = vmul.f32 %v3229, 0.6931472
        %v3231 = vmul.f32 %v3168, 0.41666666
        %v3232 = vmul.f32 %v3170, 0.41666666
        %v3233 = vmul.f32 %v3172, 0.41666666
        %v3234 = vmul.f32 %v3174, 0.41666666
        %v3235 = vmul.f32 %v3176, 0.41666666
        %v3236 = vmul.f32 %v3178, 0.41666666
        %v3237 = vmul.f32 %v3180, 0.41666666
        %v3238 = vmul.f32 %v3182, 0.41666666
        %v3239 = vmul.f32 %v3184, 0.41666666
        %v3240 = vmul.f32 %v3186, 0.41666666
        %v3241 = vmul.f32 %v3188, 0.41666666
        %v3242 = vmul.f32 %v3190, 0.41666666
        %v3243 = vmul.f32 %v3192, 0.41666666
        %v3244 = vmul.f32 %v3194, 0.41666666
        %v3245 = vmul.f32 %v3196, 0.41666666
        %v3246 = vmul.f32 %v3198, 0.41666666
        %v3247 = vmul.f32 %v3200, 0.41666666
        %v3248 = vmul.f32 %v3202, 0.41666666
        %v3249 = vmul.f32 %v3204, 0.41666666
        %v3250 = vmul.f32 %v3206, 0.41666666
        %v3251 = vmul.f32 %v3208, 0.41666666
        %v3252 = vmul.f32 %v3210, 0.41666666
        %v3253 = vmul.f32 %v3212, 0.41666666
        %v3254 = vmul.f32 %v3214, 0.41666666
        %v3255 = vmul.f32 %v3216, 0.41666666
        %v3256 = vmul.f32 %v3218, 0.41666666
        %v3257 = vmul.f32 %v3220, 0.41666666
        %v3258 = vmul.f32 %v3222, 0.41666666
        %v3259 = vmul.f32 %v3224, 0.41666666
        %v3260 = vmul.f32 %v3226, 0.41666666
        %v3261 = vmul.f32 %v3228, 0.41666666
        %v3262 = vmul.f32 %v3230, 0.41666666
        %v3263 = vmul.f32 %v3231, 1.442695
        %v3264 = vpow.pop %v3263
        %v3265 = vmul.f32 %v3232, 1.442695
        %v3266 = vpow.pop %v3265
        %v3267 = vmul.f32 %v3233, 1.442695
        %v3268 = vpow.pop %v3267
        %v3269 = vmul.f32 %v3234, 1.442695
        %v3270 = vpow.pop %v3269
        %v3271 = vmul.f32 %v3235, 1.442695
        %v3272 = vpow.pop %v3271
        %v3273 = vmul.f32 %v3236, 1.442695
        %v3274 = vpow.pop %v3273
        %v3275 = vmul.f32 %v3237, 1.442695
        %v3276 = vpow.pop %v3275
        %v3277 = vmul.f32 %v3238, 1.442695
        %v3278 = vpow.pop %v3277
        %v3279 = vmul.f32 %v3239, 1.442695
        %v3280 = vpow.pop %v3279
        %v3281 = vmul.f32 %v3240, 1.442695
        %v3282 = vpow.pop %v3281
        %v3283 = vmul.f32 %v3241, 1.442695
        %v3284 = vpow.pop %v3283
        %v3285 = vmul.f32 %v3242, 1.442695
        %v3286 = vpow.pop %v3285
        %v3287 = vmul.f32 %v3243, 1.442695
        %v3288 = vpow.pop %v3287
        %v3289 = vmul.f32 %v3244, 1.442695
        %v3290 = vpow.pop %v3289
        %v3291 = vmul.f32 %v3245, 1.442695
        %v3292 = vpow.pop %v3291
        %v3293 = vmul.f32 %v3246, 1.442695
        %v3294 = vpow.pop %v3293
        %v3295 = vmul.f32 %v3247, 1.442695
        %v3296 = vpow.pop %v3295
        %v3297 = vmul.f32 %v3248, 1.442695
        %v3298 = vpow.pop %v3297
        %v3299 = vmul.f32 %v3249, 1.442695
        %v3300 = vpow.pop %v3299
        %v3301 = vmul.f32 %v3250, 1.442695
        %v3302 = vpow.pop %v3301
        %v3303 = vmul.f32 %v3251, 1.442695
        %v3304 = vpow.pop %v3303
        %v3305 = vmul.f32 %v3252, 1.442695
        %v3306 = vpow.pop %v3305
        %v3307 = vmul.f32 %v3253, 1.442695
        %v3308 = vpow.pop %v3307
        %v3309 = vmul.f32 %v3254, 1.442695
        %v3310 = vpow.pop %v3309
        %v3311 = vmul.f32 %v3255, 1.442695
        %v3312 = vpow.pop %v3311
        %v3313 = vmul.f32 %v3256, 1.442695
        %v3314 = vpow.pop %v3313
        %v3315 = vmul.f32 %v3257, 1.442695
        %v3316 = vpow.pop %v3315
        %v3317 = vmul.f32 %v3258, 1.442695
        %v3318 = vpow.pop %v3317
        %v3319 = vmul.f32 %v3259, 1.442695
        %v3320 = vpow.pop %v3319
        %v3321 = vmul.f32 %v3260, 1.442695
        %v3322 = vpow.pop %v3321
        %v3323 = vmul.f32 %v3261, 1.442695
        %v3324 = vpow.pop %v3323
        %v3325 = vmul.f32 %v3262, 1.442695
        %v3326 = vpow.pop %v3325
        %v3327 = vmul.f32 %v3264, 1.055
        %v3328 = vmul.f32 %v3266, 1.055
        %v3329 = vmul.f32 %v3268, 1.055
        %v3330 = vmul.f32 %v3270, 1.055
        %v3331 = vmul.f32 %v3272, 1.055
        %v3332 = vmul.f32 %v3274, 1.055
        %v3333 = vmul.f32 %v3276, 1.055
        %v3334 = vmul.f32 %v3278, 1.055
        %v3335 = vmul.f32 %v3280, 1.055
        %v3336 = vmul.f32 %v3282, 1.055
        %v3337 = vmul.f32 %v3284, 1.055
        %v3338 = vmul.f32 %v3286, 1.055
        %v3339 = vmul.f32 %v3288, 1.055
        %v3340 = vmul.f32 %v3290, 1.055
        %v3341 = vmul.f32 %v3292, 1.055
        %v3342 = vmul.f32 %v3294, 1.055
        %v3343 = vmul.f32 %v3296, 1.055
        %v3344 = vmul.f32 %v3298, 1.055
        %v3345 = vmul.f32 %v3300, 1.055
        %v3346 = vmul.f32 %v3302, 1.055
        %v3347 = vmul.f32 %v3304, 1.055
        %v3348 = vmul.f32 %v3306, 1.055
        %v3349 = vmul.f32 %v3308, 1.055
        %v3350 = vmul.f32 %v3310, 1.055
        %v3351 = vmul.f32 %v3312, 1.055
        %v3352 = vmul.f32 %v3314, 1.055
        %v3353 = vmul.f32 %v3316, 1.055
        %v3354 = vmul.f32 %v3318, 1.055
        %v3355 = vmul.f32 %v3320, 1.055
        %v3356 = vmul.f32 %v3322, 1.055
        %v3357 = vmul.f32 %v3324, 1.055
        %v3358 = vmul.f32 %v3326, 1.055
        %v3359 = vsub.f32 %v3327, 0.055
        %v3360 = vsub.f32 %v3328, 0.055
        %v3361 = vsub.f32 %v3329, 0.055
        %v3362 = vsub.f32 %v3330, 0.055
        %v3363 = vsub.f32 %v3331, 0.055
        %v3364 = vsub.f32 %v3332, 0.055
        %v3365 = vsub.f32 %v3333, 0.055
        %v3366 = vsub.f32 %v3334, 0.055
        %v3367 = vsub.f32 %v3335, 0.055
        %v3368 = vsub.f32 %v3336, 0.055
        %v3369 = vsub.f32 %v3337, 0.055
        %v3370 = vsub.f32 %v3338, 0.055
        %v3371 = vsub.f32 %v3339, 0.055
        %v3372 = vsub.f32 %v3340, 0.055
        %v3373 = vsub.f32 %v3341, 0.055
        %v3374 = vsub.f32 %v3342, 0.055
        %v3375 = vsub.f32 %v3343, 0.055
        %v3376 = vsub.f32 %v3344, 0.055
        %v3377 = vsub.f32 %v3345, 0.055
        %v3378 = vsub.f32 %v3346, 0.055
        %v3379 = vsub.f32 %v3347, 0.055
        %v3380 = vsub.f32 %v3348, 0.055
        %v3381 = vsub.f32 %v3349, 0.055
        %v3382 = vsub.f32 %v3350, 0.055
        %v3383 = vsub.f32 %v3351, 0.055
        %v3384 = vsub.f32 %v3352, 0.055
        %v3385 = vsub.f32 %v3353, 0.055
        %v3386 = vsub.f32 %v3354, 0.055
        %v3387 = vsub.f32 %v3355, 0.055
        %v3388 = vsub.f32 %v3356, 0.055
        %v3389 = vsub.f32 %v3357, 0.055
        %v3390 = vsub.f32 %v3358, 0.055
        %vm3391 = vcmp.le.f32.partialorder %v3103, 0.0031308
        %vm3392 = vcmp.le.f32.partialorder %v3104, 0.0031308
        %vm3393 = vcmp.le.f32.partialorder %v3105, 0.0031308
        %vm3394 = vcmp.le.f32.partialorder %v3106, 0.0031308
        %vm3395 = vcmp.le.f32.partialorder %v3107, 0.0031308
        %vm3396 = vcmp.le.f32.partialorder %v3108, 0.0031308
        %vm3397 = vcmp.le.f32.partialorder %v3109, 0.0031308
        %vm3398 = vcmp.le.f32.partialorder %v3110, 0.0031308
        %vm3399 = vcmp.le.f32.partialorder %v3111, 0.0031308
        %vm3400 = vcmp.le.f32.partialorder %v3112, 0.0031308
        %vm3401 = vcmp.le.f32.partialorder %v3113, 0.0031308
        %vm3402 = vcmp.le.f32.partialorder %v3114, 0.0031308
        %vm3403 = vcmp.le.f32.partialorder %v3115, 0.0031308
        %vm3404 = vcmp.le.f32.partialorder %v3116, 0.0031308
        %vm3405 = vcmp.le.f32.partialorder %v3117, 0.0031308
        %vm3406 = vcmp.le.f32.partialorder %v3118, 0.0031308
        %vm3407 = vcmp.le.f32.partialorder %v3119, 0.0031308
        %vm3408 = vcmp.le.f32.partialorder %v3120, 0.0031308
        %vm3409 = vcmp.le.f32.partialorder %v3121, 0.0031308
        %vm3410 = vcmp.le.f32.partialorder %v3122, 0.0031308
        %vm3411 = vcmp.le.f32.partialorder %v3123, 0.0031308
        %vm3412 = vcmp.le.f32.partialorder %v3124, 0.0031308
        %vm3413 = vcmp.le.f32.partialorder %v3125, 0.0031308
        %vm3414 = vcmp.le.f32.partialorder %v3126, 0.0031308
        %vm3415 = vcmp.le.f32.partialorder %v3127, 0.0031308
        %vm3416 = vcmp.le.f32.partialorder %v3128, 0.0031308
        %vm3417 = vcmp.le.f32.partialorder %v3129, 0.0031308
        %vm3418 = vcmp.le.f32.partialorder %v3130, 0.0031308
        %vm3419 = vcmp.le.f32.partialorder %v3131, 0.0031308
        %vm3420 = vcmp.le.f32.partialorder %v3132, 0.0031308
        %vm3421 = vcmp.le.f32.partialorder %v3133, 0.0031308
        %vm3422 = vcmp.le.f32.partialorder %v3134, 0.0031308
        %v3423 = vmul.f32 %v3103, 12.92
        %v3424 = vmul.f32 %v3104, 12.92
        %v3425 = vmul.f32 %v3105, 12.92
        %v3426 = vmul.f32 %v3106, 12.92
        %v3427 = vmul.f32 %v3107, 12.92
        %v3428 = vmul.f32 %v3108, 12.92
        %v3429 = vmul.f32 %v3109, 12.92
        %v3430 = vmul.f32 %v3110, 12.92
        %v3431 = vmul.f32 %v3111, 12.92
        %v3432 = vmul.f32 %v3112, 12.92
        %v3433 = vmul.f32 %v3113, 12.92
        %v3434 = vmul.f32 %v3114, 12.92
        %v3435 = vmul.f32 %v3115, 12.92
        %v3436 = vmul.f32 %v3116, 12.92
        %v3437 = vmul.f32 %v3117, 12.92
        %v3438 = vmul.f32 %v3118, 12.92
        %v3439 = vmul.f32 %v3119, 12.92
        %v3440 = vmul.f32 %v3120, 12.92
        %v3441 = vmul.f32 %v3121, 12.92
        %v3442 = vmul.f32 %v3122, 12.92
        %v3443 = vmul.f32 %v3123, 12.92
        %v3444 = vmul.f32 %v3124, 12.92
        %v3445 = vmul.f32 %v3125, 12.92
        %v3446 = vmul.f32 %v3126, 12.92
        %v3447 = vmul.f32 %v3127, 12.92
        %v3448 = vmul.f32 %v3128, 12.92
        %v3449 = vmul.f32 %v3129, 12.92
        %v3450 = vmul.f32 %v3130, 12.92
        %v3451 = vmul.f32 %v3131, 12.92
        %v3452 = vmul.f32 %v3132, 12.92
        %v3453 = vmul.f32 %v3133, 12.92
        %v3454 = vmul.f32 %v3134, 12.92
        %v3455 = vsel %vm3391, %v3423, %v3359
        %v3456 = vsel %vm3392, %v3424, %v3360
        %v3457 = vsel %vm3393, %v3425, %v3361
        %v3458 = vsel %vm3394, %v3426, %v3362
        %v3459 = vsel %vm3395, %v3427, %v3363
        %v3460 = vsel %vm3396, %v3428, %v3364
        %v3461 = vsel %vm3397, %v3429, %v3365
        %v3462 = vsel %vm3398, %v3430, %v3366
        %v3463 = vsel %vm3399, %v3431, %v3367
        %v3464 = vsel %vm3400, %v3432, %v3368
        %v3465 = vsel %vm3401, %v3433, %v3369
        %v3466 = vsel %vm3402, %v3434, %v3370
        %v3467 = vsel %vm3403, %v3435, %v3371
        %v3468 = vsel %vm3404, %v3436, %v3372
        %v3469 = vsel %vm3405, %v3437, %v3373
        %v3470 = vsel %vm3406, %v3438, %v3374
        %v3471 = vsel %vm3407, %v3439, %v3375
        %v3472 = vsel %vm3408, %v3440, %v3376
        %v3473 = vsel %vm3409, %v3441, %v3377
        %v3474 = vsel %vm3410, %v3442, %v3378
        %v3475 = vsel %vm3411, %v3443, %v3379
        %v3476 = vsel %vm3412, %v3444, %v3380
        %v3477 = vsel %vm3413, %v3445, %v3381
        %v3478 = vsel %vm3414, %v3446, %v3382
        %v3479 = vsel %vm3415, %v3447, %v3383
        %v3480 = vsel %vm3416, %v3448, %v3384
        %v3481 = vsel %vm3417, %v3449, %v3385
        %v3482 = vsel %vm3418, %v3450, %v3386
        %v3483 = vsel %vm3419, %v3451, %v3387
        %v3484 = vsel %vm3420, %v3452, %v3388
        %v3485 = vsel %vm3421, %v3453, %v3389
        %v3486 = vsel %vm3422, %v3454, %v3390
        %s3487 = sld [smem:[#allocation9]]
        %v3488 = vstv %s3487
        %v3489 = vmul.f32 %v3488, %v2559
        %v3490 = vmul.f32 %v3488, %v2560
        %v3491 = vmul.f32 %v3488, %v2561
        %v3492 = vmul.f32 %v3488, %v2562
        %v3493 = vmul.f32 %v3488, %v2563
        %v3494 = vmul.f32 %v3488, %v2564
        %v3495 = vmul.f32 %v3488, %v2565
        %v3496 = vmul.f32 %v3488, %v2566
        %v3497 = vmul.f32 %v3488, %v2567
        %v3498 = vmul.f32 %v3488, %v2568
        %v3499 = vmul.f32 %v3488, %v2569
        %v3500 = vmul.f32 %v3488, %v2570
        %v3501 = vmul.f32 %v3488, %v2571
        %v3502 = vmul.f32 %v3488, %v2572
        %v3503 = vmul.f32 %v3488, %v2573
        %v3504 = vmul.f32 %v3488, %v2574
        %v3505 = vmul.f32 %v3488, %v2575
        %v3506 = vmul.f32 %v3488, %v2576
        %v3507 = vmul.f32 %v3488, %v2577
        %v3508 = vmul.f32 %v3488, %v2578
        %v3509 = vmul.f32 %v3488, %v2579
        %v3510 = vmul.f32 %v3488, %v2580
        %v3511 = vmul.f32 %v3488, %v2581
        %v3512 = vmul.f32 %v3488, %v2582
        %v3513 = vmul.f32 %v3488, %v2583
        %v3514 = vmul.f32 %v3488, %v2584
        %v3515 = vmul.f32 %v3488, %v2585
        %v3516 = vmul.f32 %v3488, %v2586
        %v3517 = vmul.f32 %v3488, %v2587
        %v3518 = vmul.f32 %v3488, %v2588
        %v3519 = vmul.f32 %v3488, %v2589
        %v3520 = vmul.f32 %v3488, %v2590
        %s3521 = sld [smem:[#allocation9 + $0x1]]
        %v3522 = vstv %s3521
        %v3523 = vmul.f32 %v3522, %v3007
        %v3524 = vmul.f32 %v3522, %v3008
        %v3525 = vmul.f32 %v3522, %v3009
        %v3526 = vmul.f32 %v3522, %v3010
        %v3527 = vmul.f32 %v3522, %v3011
        %v3528 = vmul.f32 %v3522, %v3012
        %v3529 = vmul.f32 %v3522, %v3013
        %v3530 = vmul.f32 %v3522, %v3014
        %v3531 = vmul.f32 %v3522, %v3015
        %v3532 = vmul.f32 %v3522, %v3016
        %v3533 = vmul.f32 %v3522, %v3017
        %v3534 = vmul.f32 %v3522, %v3018
        %v3535 = vmul.f32 %v3522, %v3019
        %v3536 = vmul.f32 %v3522, %v3020
        %v3537 = vmul.f32 %v3522, %v3021
        %v3538 = vmul.f32 %v3522, %v3022
        %v3539 = vmul.f32 %v3522, %v3023
        %v3540 = vmul.f32 %v3522, %v3024
        %v3541 = vmul.f32 %v3522, %v3025
        %v3542 = vmul.f32 %v3522, %v3026
        %v3543 = vmul.f32 %v3522, %v3027
        %v3544 = vmul.f32 %v3522, %v3028
        %v3545 = vmul.f32 %v3522, %v3029
        %v3546 = vmul.f32 %v3522, %v3030
        %v3547 = vmul.f32 %v3522, %v3031
        %v3548 = vmul.f32 %v3522, %v3032
        %v3549 = vmul.f32 %v3522, %v3033
        %v3550 = vmul.f32 %v3522, %v3034
        %v3551 = vmul.f32 %v3522, %v3035
        %v3552 = vmul.f32 %v3522, %v3036
        %v3553 = vmul.f32 %v3522, %v3037
        %v3554 = vmul.f32 %v3522, %v3038
        %v3555 = vadd.f32 %v3489, %v3523
        %v3556 = vadd.f32 %v3490, %v3524
        %v3557 = vadd.f32 %v3491, %v3525
        %v3558 = vadd.f32 %v3492, %v3526
        %v3559 = vadd.f32 %v3493, %v3527
        %v3560 = vadd.f32 %v3494, %v3528
        %v3561 = vadd.f32 %v3495, %v3529
        %v3562 = vadd.f32 %v3496, %v3530
        %v3563 = vadd.f32 %v3497, %v3531
        %v3564 = vadd.f32 %v3498, %v3532
        %v3565 = vadd.f32 %v3499, %v3533
        %v3566 = vadd.f32 %v3500, %v3534
        %v3567 = vadd.f32 %v3501, %v3535
        %v3568 = vadd.f32 %v3502, %v3536
        %v3569 = vadd.f32 %v3503, %v3537
        %v3570 = vadd.f32 %v3504, %v3538
        %v3571 = vadd.f32 %v3505, %v3539
        %v3572 = vadd.f32 %v3506, %v3540
        %v3573 = vadd.f32 %v3507, %v3541
        %v3574 = vadd.f32 %v3508, %v3542
        %v3575 = vadd.f32 %v3509, %v3543
        %v3576 = vadd.f32 %v3510, %v3544
        %v3577 = vadd.f32 %v3511, %v3545
        %v3578 = vadd.f32 %v3512, %v3546
        %v3579 = vadd.f32 %v3513, %v3547
        %v3580 = vadd.f32 %v3514, %v3548
        %v3581 = vadd.f32 %v3515, %v3549
        %v3582 = vadd.f32 %v3516, %v3550
        %v3583 = vadd.f32 %v3517, %v3551
        %v3584 = vadd.f32 %v3518, %v3552
        %v3585 = vadd.f32 %v3519, %v3553
        %v3586 = vadd.f32 %v3520, %v3554
        %s3587 = sld [smem:[#allocation9 + $0x2]]
        %v3588 = vstv %s3587
        %v3589 = vmul.f32 %v3588, %v3455
        %v3590 = vmul.f32 %v3588, %v3456
        %v3591 = vmul.f32 %v3588, %v3457
        %v3592 = vmul.f32 %v3588, %v3458
        %v3593 = vmul.f32 %v3588, %v3459
        %v3594 = vmul.f32 %v3588, %v3460
        %v3595 = vmul.f32 %v3588, %v3461
        %v3596 = vmul.f32 %v3588, %v3462
        %v3597 = vmul.f32 %v3588, %v3463
        %v3598 = vmul.f32 %v3588, %v3464
        %v3599 = vmul.f32 %v3588, %v3465
        %v3600 = vmul.f32 %v3588, %v3466
        %v3601 = vmul.f32 %v3588, %v3467
        %v3602 = vmul.f32 %v3588, %v3468
        %v3603 = vmul.f32 %v3588, %v3469
        %v3604 = vmul.f32 %v3588, %v3470
        %v3605 = vmul.f32 %v3588, %v3471
        %v3606 = vmul.f32 %v3588, %v3472
        %v3607 = vmul.f32 %v3588, %v3473
        %v3608 = vmul.f32 %v3588, %v3474
        %v3609 = vmul.f32 %v3588, %v3475
        %v3610 = vmul.f32 %v3588, %v3476
        %v3611 = vmul.f32 %v3588, %v3477
        %v3612 = vmul.f32 %v3588, %v3478
        %v3613 = vmul.f32 %v3588, %v3479
        %v3614 = vmul.f32 %v3588, %v3480
        %v3615 = vmul.f32 %v3588, %v3481
        %v3616 = vmul.f32 %v3588, %v3482
        %v3617 = vmul.f32 %v3588, %v3483
        %v3618 = vmul.f32 %v3588, %v3484
        %v3619 = vmul.f32 %v3588, %v3485
        %v3620 = vmul.f32 %v3588, %v3486
        %v3621 = vadd.f32 %v3555, %v3589
        %v3622 = vadd.f32 %v3556, %v3590
        %v3623 = vadd.f32 %v3557, %v3591
        %v3624 = vadd.f32 %v3558, %v3592
        %v3625 = vadd.f32 %v3559, %v3593
        %v3626 = vadd.f32 %v3560, %v3594
        %v3627 = vadd.f32 %v3561, %v3595
        %v3628 = vadd.f32 %v3562, %v3596
        %v3629 = vadd.f32 %v3563, %v3597
        %v3630 = vadd.f32 %v3564, %v3598
        %v3631 = vadd.f32 %v3565, %v3599
        %v3632 = vadd.f32 %v3566, %v3600
        %v3633 = vadd.f32 %v3567, %v3601
        %v3634 = vadd.f32 %v3568, %v3602
        %v3635 = vadd.f32 %v3569, %v3603
        %v3636 = vadd.f32 %v3570, %v3604
        %v3637 = vadd.f32 %v3571, %v3605
        %v3638 = vadd.f32 %v3572, %v3606
        %v3639 = vadd.f32 %v3573, %v3607
        %v3640 = vadd.f32 %v3574, %v3608
        %v3641 = vadd.f32 %v3575, %v3609
        %v3642 = vadd.f32 %v3576, %v3610
        %v3643 = vadd.f32 %v3577, %v3611
        %v3644 = vadd.f32 %v3578, %v3612
        %v3645 = vadd.f32 %v3579, %v3613
        %v3646 = vadd.f32 %v3580, %v3614
        %v3647 = vadd.f32 %v3581, %v3615
        %v3648 = vadd.f32 %v3582, %v3616
        %v3649 = vadd.f32 %v3583, %v3617
        %v3650 = vadd.f32 %v3584, %v3618
        %v3651 = vadd.f32 %v3585, %v3619
        %v3652 = vadd.f32 %v3586, %v3620
        %s3653 = sld [smem:[#allocation11]]
        %v3654 = vstv %s3653
        %v3655 = vadd.f32 %v3621, %v3654
        %v3656 = vadd.f32 %v3622, %v3654
        %v3657 = vadd.f32 %v3623, %v3654
        %v3658 = vadd.f32 %v3624, %v3654
        %v3659 = vadd.f32 %v3625, %v3654
        %v3660 = vadd.f32 %v3626, %v3654
        %v3661 = vadd.f32 %v3627, %v3654
        %v3662 = vadd.f32 %v3628, %v3654
        %v3663 = vadd.f32 %v3629, %v3654
        %v3664 = vadd.f32 %v3630, %v3654
        %v3665 = vadd.f32 %v3631, %v3654
        %v3666 = vadd.f32 %v3632, %v3654
        %v3667 = vadd.f32 %v3633, %v3654
        %v3668 = vadd.f32 %v3634, %v3654
        %v3669 = vadd.f32 %v3635, %v3654
        %v3670 = vadd.f32 %v3636, %v3654
        %v3671 = vadd.f32 %v3637, %v3654
        %v3672 = vadd.f32 %v3638, %v3654
        %v3673 = vadd.f32 %v3639, %v3654
        %v3674 = vadd.f32 %v3640, %v3654
        %v3675 = vadd.f32 %v3641, %v3654
        %v3676 = vadd.f32 %v3642, %v3654
        %v3677 = vadd.f32 %v3643, %v3654
        %v3678 = vadd.f32 %v3644, %v3654
        %v3679 = vadd.f32 %v3645, %v3654
        %v3680 = vadd.f32 %v3646, %v3654
        %v3681 = vadd.f32 %v3647, %v3654
        %v3682 = vadd.f32 %v3648, %v3654
        %v3683 = vadd.f32 %v3649, %v3654
        %v3684 = vadd.f32 %v3650, %v3654
        %v3685 = vadd.f32 %v3651, %v3654
        %v3686 = vadd.f32 %v3652, %v3654
        %v3687 = vmax.f32 %v3655, 0.0
        %v3688 = vmax.f32 %v3656, 0.0
        %v3689 = vmax.f32 %v3657, 0.0
        %v3690 = vmax.f32 %v3658, 0.0
        %v3691 = vmax.f32 %v3659, 0.0
        %v3692 = vmax.f32 %v3660, 0.0
        %v3693 = vmax.f32 %v3661, 0.0
        %v3694 = vmax.f32 %v3662, 0.0
        %v3695 = vmax.f32 %v3663, 0.0
        %v3696 = vmax.f32 %v3664, 0.0
        %v3697 = vmax.f32 %v3665, 0.0
        %v3698 = vmax.f32 %v3666, 0.0
        %v3699 = vmax.f32 %v3667, 0.0
        %v3700 = vmax.f32 %v3668, 0.0
        %v3701 = vmax.f32 %v3669, 0.0
        %v3702 = vmax.f32 %v3670, 0.0
        %v3703 = vmax.f32 %v3671, 0.0
        %v3704 = vmax.f32 %v3672, 0.0
        %v3705 = vmax.f32 %v3673, 0.0
        %v3706 = vmax.f32 %v3674, 0.0
        %v3707 = vmax.f32 %v3675, 0.0
        %v3708 = vmax.f32 %v3676, 0.0
        %v3709 = vmax.f32 %v3677, 0.0
        %v3710 = vmax.f32 %v3678, 0.0
        %v3711 = vmax.f32 %v3679, 0.0
        %v3712 = vmax.f32 %v3680, 0.0
        %v3713 = vmax.f32 %v3681, 0.0
        %v3714 = vmax.f32 %v3682, 0.0
        %v3715 = vmax.f32 %v3683, 0.0
        %v3716 = vmax.f32 %v3684, 0.0
        %v3717 = vmax.f32 %v3685, 0.0
        %v3718 = vmax.f32 %v3686, 0.0
        %v3719 = vmin.f32 %v3687, 1.0
        %v3720 = vmin.f32 %v3688, 1.0
        %v3721 = vmin.f32 %v3689, 1.0
        %v3722 = vmin.f32 %v3690, 1.0
        %v3723 = vmin.f32 %v3691, 1.0
        %v3724 = vmin.f32 %v3692, 1.0
        %v3725 = vmin.f32 %v3693, 1.0
        %v3726 = vmin.f32 %v3694, 1.0
        %v3727 = vmin.f32 %v3695, 1.0
        %v3728 = vmin.f32 %v3696, 1.0
        %v3729 = vmin.f32 %v3697, 1.0
        %v3730 = vmin.f32 %v3698, 1.0
        %v3731 = vmin.f32 %v3699, 1.0
        %v3732 = vmin.f32 %v3700, 1.0
        %v3733 = vmin.f32 %v3701, 1.0
        %v3734 = vmin.f32 %v3702, 1.0
        %v3735 = vmin.f32 %v3703, 1.0
        %v3736 = vmin.f32 %v3704, 1.0
        %v3737 = vmin.f32 %v3705, 1.0
        %v3738 = vmin.f32 %v3706, 1.0
        %v3739 = vmin.f32 %v3707, 1.0
        %v3740 = vmin.f32 %v3708, 1.0
        %v3741 = vmin.f32 %v3709, 1.0
        %v3742 = vmin.f32 %v3710, 1.0
        %v3743 = vmin.f32 %v3711, 1.0
        %v3744 = vmin.f32 %v3712, 1.0
        %v3745 = vmin.f32 %v3713, 1.0
        %v3746 = vmin.f32 %v3714, 1.0
        %v3747 = vmin.f32 %v3715, 1.0
        %v3748 = vmin.f32 %v3716, 1.0
        %v3749 = vmin.f32 %v3717, 1.0
        %v3750 = vmin.f32 %v3718, 1.0
        %v3751 = vmul.f32 %v3719, %v772
        %v3752 = vmul.f32 %v3720, %v776
        %v3753 = vmul.f32 %v3721, %v780
        %v3754 = vmul.f32 %v3722, %v784
        %v3755 = vmul.f32 %v3723, %v788
        %v3756 = vmul.f32 %v3724, %v792
        %v3757 = vmul.f32 %v3725, %v796
        %v3758 = vmul.f32 %v3726, %v800
        %v3759 = vmul.f32 %v3727, %v804
        %v3760 = vmul.f32 %v3728, %v808
        %v3761 = vmul.f32 %v3729, %v812
        %v3762 = vmul.f32 %v3730, %v816
        %v3763 = vmul.f32 %v3731, %v820
        %v3764 = vmul.f32 %v3732, %v824
        %v3765 = vmul.f32 %v3733, %v828
        %v3766 = vmul.f32 %v3734, %v832
        %v3767 = vmul.f32 %v3735, %v836
        %v3768 = vmul.f32 %v3736, %v840
        %v3769 = vmul.f32 %v3737, %v844
        %v3770 = vmul.f32 %v3738, %v848
        %v3771 = vmul.f32 %v3739, %v852
        %v3772 = vmul.f32 %v3740, %v856
        %v3773 = vmul.f32 %v3741, %v860
        %v3774 = vmul.f32 %v3742, %v864
        %v3775 = vmul.f32 %v3743, %v868
        %v3776 = vmul.f32 %v3744, %v872
        %v3777 = vmul.f32 %v3745, %v876
        %v3778 = vmul.f32 %v3746, %v880
        %v3779 = vmul.f32 %v3747, %v884
        %v3780 = vmul.f32 %v3748, %v888
        %v3781 = vmul.f32 %v3749, %v892
        %v3782 = vmul.f32 %v3750, %v896
        %s3783 = sld [smem:[#allocation9 + $0x80]]
        %v3784 = vstv %s3783
        %v3785 = vmul.f32 %v3784, %v2559
        %v3786 = vmul.f32 %v3784, %v2560
        %v3787 = vmul.f32 %v3784, %v2561
        %v3788 = vmul.f32 %v3784, %v2562
        %v3789 = vmul.f32 %v3784, %v2563
        %v3790 = vmul.f32 %v3784, %v2564
        %v3791 = vmul.f32 %v3784, %v2565
        %v3792 = vmul.f32 %v3784, %v2566
        %v3793 = vmul.f32 %v3784, %v2567
        %v3794 = vmul.f32 %v3784, %v2568
        %v3795 = vmul.f32 %v3784, %v2569
        %v3796 = vmul.f32 %v3784, %v2570
        %v3797 = vmul.f32 %v3784, %v2571
        %v3798 = vmul.f32 %v3784, %v2572
        %v3799 = vmul.f32 %v3784, %v2573
        %v3800 = vmul.f32 %v3784, %v2574
        %v3801 = vmul.f32 %v3784, %v2575
        %v3802 = vmul.f32 %v3784, %v2576
        %v3803 = vmul.f32 %v3784, %v2577
        %v3804 = vmul.f32 %v3784, %v2578
        %v3805 = vmul.f32 %v3784, %v2579
        %v3806 = vmul.f32 %v3784, %v2580
        %v3807 = vmul.f32 %v3784, %v2581
        %v3808 = vmul.f32 %v3784, %v2582
        %v3809 = vmul.f32 %v3784, %v2583
        %v3810 = vmul.f32 %v3784, %v2584
        %v3811 = vmul.f32 %v3784, %v2585
        %v3812 = vmul.f32 %v3784, %v2586
        %v3813 = vmul.f32 %v3784, %v2587
        %v3814 = vmul.f32 %v3784, %v2588
        %v3815 = vmul.f32 %v3784, %v2589
        %v3816 = vmul.f32 %v3784, %v2590
        %s3817 = sld [smem:[#allocation9 + $0x81]]
        %v3818 = vstv %s3817
        %v3819 = vmul.f32 %v3818, %v3007
        %v3820 = vmul.f32 %v3818, %v3008
        %v3821 = vmul.f32 %v3818, %v3009
        %v3822 = vmul.f32 %v3818, %v3010
        %v3823 = vmul.f32 %v3818, %v3011
        %v3824 = vmul.f32 %v3818, %v3012
        %v3825 = vmul.f32 %v3818, %v3013
        %v3826 = vmul.f32 %v3818, %v3014
        %v3827 = vmul.f32 %v3818, %v3015
        %v3828 = vmul.f32 %v3818, %v3016
        %v3829 = vmul.f32 %v3818, %v3017
        %v3830 = vmul.f32 %v3818, %v3018
        %v3831 = vmul.f32 %v3818, %v3019
        %v3832 = vmul.f32 %v3818, %v3020
        %v3833 = vmul.f32 %v3818, %v3021
        %v3834 = vmul.f32 %v3818, %v3022
        %v3835 = vmul.f32 %v3818, %v3023
        %v3836 = vmul.f32 %v3818, %v3024
        %v3837 = vmul.f32 %v3818, %v3025
        %v3838 = vmul.f32 %v3818, %v3026
        %v3839 = vmul.f32 %v3818, %v3027
        %v3840 = vmul.f32 %v3818, %v3028
        %v3841 = vmul.f32 %v3818, %v3029
        %v3842 = vmul.f32 %v3818, %v3030
        %v3843 = vmul.f32 %v3818, %v3031
        %v3844 = vmul.f32 %v3818, %v3032
        %v3845 = vmul.f32 %v3818, %v3033
        %v3846 = vmul.f32 %v3818, %v3034
        %v3847 = vmul.f32 %v3818, %v3035
        %v3848 = vmul.f32 %v3818, %v3036
        %v3849 = vmul.f32 %v3818, %v3037
        %v3850 = vmul.f32 %v3818, %v3038
        %v3851 = vadd.f32 %v3785, %v3819
        %v3852 = vadd.f32 %v3786, %v3820
        %v3853 = vadd.f32 %v3787, %v3821
        %v3854 = vadd.f32 %v3788, %v3822
        %v3855 = vadd.f32 %v3789, %v3823
        %v3856 = vadd.f32 %v3790, %v3824
        %v3857 = vadd.f32 %v3791, %v3825
        %v3858 = vadd.f32 %v3792, %v3826
        %v3859 = vadd.f32 %v3793, %v3827
        %v3860 = vadd.f32 %v3794, %v3828
        %v3861 = vadd.f32 %v3795, %v3829
        %v3862 = vadd.f32 %v3796, %v3830
        %v3863 = vadd.f32 %v3797, %v3831
        %v3864 = vadd.f32 %v3798, %v3832
        %v3865 = vadd.f32 %v3799, %v3833
        %v3866 = vadd.f32 %v3800, %v3834
        %v3867 = vadd.f32 %v3801, %v3835
        %v3868 = vadd.f32 %v3802, %v3836
        %v3869 = vadd.f32 %v3803, %v3837
        %v3870 = vadd.f32 %v3804, %v3838
        %v3871 = vadd.f32 %v3805, %v3839
        %v3872 = vadd.f32 %v3806, %v3840
        %v3873 = vadd.f32 %v3807, %v3841
        %v3874 = vadd.f32 %v3808, %v3842
        %v3875 = vadd.f32 %v3809, %v3843
        %v3876 = vadd.f32 %v3810, %v3844
        %v3877 = vadd.f32 %v3811, %v3845
        %v3878 = vadd.f32 %v3812, %v3846
        %v3879 = vadd.f32 %v3813, %v3847
        %v3880 = vadd.f32 %v3814, %v3848
        %v3881 = vadd.f32 %v3815, %v3849
        %v3882 = vadd.f32 %v3816, %v3850
        %s3883 = sld [smem:[#allocation9 + $0x82]]
        %v3884 = vstv %s3883
        %v3885 = vmul.f32 %v3884, %v3455
        %v3886 = vmul.f32 %v3884, %v3456
        %v3887 = vmul.f32 %v3884, %v3457
        %v3888 = vmul.f32 %v3884, %v3458
        %v3889 = vmul.f32 %v3884, %v3459
        %v3890 = vmul.f32 %v3884, %v3460
        %v3891 = vmul.f32 %v3884, %v3461
        %v3892 = vmul.f32 %v3884, %v3462
        %v3893 = vmul.f32 %v3884, %v3463
        %v3894 = vmul.f32 %v3884, %v3464
        %v3895 = vmul.f32 %v3884, %v3465
        %v3896 = vmul.f32 %v3884, %v3466
        %v3897 = vmul.f32 %v3884, %v3467
        %v3898 = vmul.f32 %v3884, %v3468
        %v3899 = vmul.f32 %v3884, %v3469
        %v3900 = vmul.f32 %v3884, %v3470
        %v3901 = vmul.f32 %v3884, %v3471
        %v3902 = vmul.f32 %v3884, %v3472
        %v3903 = vmul.f32 %v3884, %v3473
        %v3904 = vmul.f32 %v3884, %v3474
        %v3905 = vmul.f32 %v3884, %v3475
        %v3906 = vmul.f32 %v3884, %v3476
        %v3907 = vmul.f32 %v3884, %v3477
        %v3908 = vmul.f32 %v3884, %v3478
        %v3909 = vmul.f32 %v3884, %v3479
        %v3910 = vmul.f32 %v3884, %v3480
        %v3911 = vmul.f32 %v3884, %v3481
        %v3912 = vmul.f32 %v3884, %v3482
        %v3913 = vmul.f32 %v3884, %v3483
        %v3914 = vmul.f32 %v3884, %v3484
        %v3915 = vmul.f32 %v3884, %v3485
        %v3916 = vmul.f32 %v3884, %v3486
        %v3917 = vadd.f32 %v3851, %v3885
        %v3918 = vadd.f32 %v3852, %v3886
        %v3919 = vadd.f32 %v3853, %v3887
        %v3920 = vadd.f32 %v3854, %v3888
        %v3921 = vadd.f32 %v3855, %v3889
        %v3922 = vadd.f32 %v3856, %v3890
        %v3923 = vadd.f32 %v3857, %v3891
        %v3924 = vadd.f32 %v3858, %v3892
        %v3925 = vadd.f32 %v3859, %v3893
        %v3926 = vadd.f32 %v3860, %v3894
        %v3927 = vadd.f32 %v3861, %v3895
        %v3928 = vadd.f32 %v3862, %v3896
        %v3929 = vadd.f32 %v3863, %v3897
        %v3930 = vadd.f32 %v3864, %v3898
        %v3931 = vadd.f32 %v3865, %v3899
        %v3932 = vadd.f32 %v3866, %v3900
        %v3933 = vadd.f32 %v3867, %v3901
        %v3934 = vadd.f32 %v3868, %v3902
        %v3935 = vadd.f32 %v3869, %v3903
        %v3936 = vadd.f32 %v3870, %v3904
        %v3937 = vadd.f32 %v3871, %v3905
        %v3938 = vadd.f32 %v3872, %v3906
        %v3939 = vadd.f32 %v3873, %v3907
        %v3940 = vadd.f32 %v3874, %v3908
        %v3941 = vadd.f32 %v3875, %v3909
        %v3942 = vadd.f32 %v3876, %v3910
        %v3943 = vadd.f32 %v3877, %v3911
        %v3944 = vadd.f32 %v3878, %v3912
        %v3945 = vadd.f32 %v3879, %v3913
        %v3946 = vadd.f32 %v3880, %v3914
        %v3947 = vadd.f32 %v3881, %v3915
        %v3948 = vadd.f32 %v3882, %v3916
        %s3949 = sld [smem:[#allocation11 + $0x1]]
        %v3950 = vstv %s3949
        %v3951 = vadd.f32 %v3917, %v3950
        %v3952 = vadd.f32 %v3918, %v3950
        %v3953 = vadd.f32 %v3919, %v3950
        %v3954 = vadd.f32 %v3920, %v3950
        %v3955 = vadd.f32 %v3921, %v3950
        %v3956 = vadd.f32 %v3922, %v3950
        %v3957 = vadd.f32 %v3923, %v3950
        %v3958 = vadd.f32 %v3924, %v3950
        %v3959 = vadd.f32 %v3925, %v3950
        %v3960 = vadd.f32 %v3926, %v3950
        %v3961 = vadd.f32 %v3927, %v3950
        %v3962 = vadd.f32 %v3928, %v3950
        %v3963 = vadd.f32 %v3929, %v3950
        %v3964 = vadd.f32 %v3930, %v3950
        %v3965 = vadd.f32 %v3931, %v3950
        %v3966 = vadd.f32 %v3932, %v3950
        %v3967 = vadd.f32 %v3933, %v3950
        %v3968 = vadd.f32 %v3934, %v3950
        %v3969 = vadd.f32 %v3935, %v3950
        %v3970 = vadd.f32 %v3936, %v3950
        %v3971 = vadd.f32 %v3937, %v3950
        %v3972 = vadd.f32 %v3938, %v3950
        %v3973 = vadd.f32 %v3939, %v3950
        %v3974 = vadd.f32 %v3940, %v3950
        %v3975 = vadd.f32 %v3941, %v3950
        %v3976 = vadd.f32 %v3942, %v3950
        %v3977 = vadd.f32 %v3943, %v3950
        %v3978 = vadd.f32 %v3944, %v3950
        %v3979 = vadd.f32 %v3945, %v3950
        %v3980 = vadd.f32 %v3946, %v3950
        %v3981 = vadd.f32 %v3947, %v3950
        %v3982 = vadd.f32 %v3948, %v3950
        %v3983 = vmax.f32 %v3951, 0.0
        %v3984 = vmax.f32 %v3952, 0.0
        %v3985 = vmax.f32 %v3953, 0.0
        %v3986 = vmax.f32 %v3954, 0.0
        %v3987 = vmax.f32 %v3955, 0.0
        %v3988 = vmax.f32 %v3956, 0.0
        %v3989 = vmax.f32 %v3957, 0.0
        %v3990 = vmax.f32 %v3958, 0.0
        %v3991 = vmax.f32 %v3959, 0.0
        %v3992 = vmax.f32 %v3960, 0.0
        %v3993 = vmax.f32 %v3961, 0.0
        %v3994 = vmax.f32 %v3962, 0.0
        %v3995 = vmax.f32 %v3963, 0.0
        %v3996 = vmax.f32 %v3964, 0.0
        %v3997 = vmax.f32 %v3965, 0.0
        %v3998 = vmax.f32 %v3966, 0.0
        %v3999 = vmax.f32 %v3967, 0.0
        %v4000 = vmax.f32 %v3968, 0.0
        %v4001 = vmax.f32 %v3969, 0.0
        %v4002 = vmax.f32 %v3970, 0.0
        %v4003 = vmax.f32 %v3971, 0.0
        %v4004 = vmax.f32 %v3972, 0.0
        %v4005 = vmax.f32 %v3973, 0.0
        %v4006 = vmax.f32 %v3974, 0.0
        %v4007 = vmax.f32 %v3975, 0.0
        %v4008 = vmax.f32 %v3976, 0.0
        %v4009 = vmax.f32 %v3977, 0.0
        %v4010 = vmax.f32 %v3978, 0.0
        %v4011 = vmax.f32 %v3979, 0.0
        %v4012 = vmax.f32 %v3980, 0.0
        %v4013 = vmax.f32 %v3981, 0.0
        %v4014 = vmax.f32 %v3982, 0.0
        %v4015 = vmin.f32 %v3983, 1.0
        %v4016 = vmin.f32 %v3984, 1.0
        %v4017 = vmin.f32 %v3985, 1.0
        %v4018 = vmin.f32 %v3986, 1.0
        %v4019 = vmin.f32 %v3987, 1.0
        %v4020 = vmin.f32 %v3988, 1.0
        %v4021 = vmin.f32 %v3989, 1.0
        %v4022 = vmin.f32 %v3990, 1.0
        %v4023 = vmin.f32 %v3991, 1.0
        %v4024 = vmin.f32 %v3992, 1.0
        %v4025 = vmin.f32 %v3993, 1.0
        %v4026 = vmin.f32 %v3994, 1.0
        %v4027 = vmin.f32 %v3995, 1.0
        %v4028 = vmin.f32 %v3996, 1.0
        %v4029 = vmin.f32 %v3997, 1.0
        %v4030 = vmin.f32 %v3998, 1.0
        %v4031 = vmin.f32 %v3999, 1.0
        %v4032 = vmin.f32 %v4000, 1.0
        %v4033 = vmin.f32 %v4001, 1.0
        %v4034 = vmin.f32 %v4002, 1.0
        %v4035 = vmin.f32 %v4003, 1.0
        %v4036 = vmin.f32 %v4004, 1.0
        %v4037 = vmin.f32 %v4005, 1.0
        %v4038 = vmin.f32 %v4006, 1.0
        %v4039 = vmin.f32 %v4007, 1.0
        %v4040 = vmin.f32 %v4008, 1.0
        %v4041 = vmin.f32 %v4009, 1.0
        %v4042 = vmin.f32 %v4010, 1.0
        %v4043 = vmin.f32 %v4011, 1.0
        %v4044 = vmin.f32 %v4012, 1.0
        %v4045 = vmin.f32 %v4013, 1.0
        %v4046 = vmin.f32 %v4014, 1.0
        %v4047 = vmul.f32 %v4015, %v1264
        %v4048 = vmul.f32 %v4016, %v1268
        %v4049 = vmul.f32 %v4017, %v1272
        %v4050 = vmul.f32 %v4018, %v1276
        %v4051 = vmul.f32 %v4019, %v1280
        %v4052 = vmul.f32 %v4020, %v1284
        %v4053 = vmul.f32 %v4021, %v1288
        %v4054 = vmul.f32 %v4022, %v1292
        %v4055 = vmul.f32 %v4023, %v1296
        %v4056 = vmul.f32 %v4024, %v1300
        %v4057 = vmul.f32 %v4025, %v1304
        %v4058 = vmul.f32 %v4026, %v1308
        %v4059 = vmul.f32 %v4027, %v1312
        %v4060 = vmul.f32 %v4028, %v1316
        %v4061 = vmul.f32 %v4029, %v1320
        %v4062 = vmul.f32 %v4030, %v1324
        %v4063 = vmul.f32 %v4031, %v1328
        %v4064 = vmul.f32 %v4032, %v1332
        %v4065 = vmul.f32 %v4033, %v1336
        %v4066 = vmul.f32 %v4034, %v1340
        %v4067 = vmul.f32 %v4035, %v1344
        %v4068 = vmul.f32 %v4036, %v1348
        %v4069 = vmul.f32 %v4037, %v1352
        %v4070 = vmul.f32 %v4038, %v1356
        %v4071 = vmul.f32 %v4039, %v1360
        %v4072 = vmul.f32 %v4040, %v1364
        %v4073 = vmul.f32 %v4041, %v1368
        %v4074 = vmul.f32 %v4042, %v1372
        %v4075 = vmul.f32 %v4043, %v1376
        %v4076 = vmul.f32 %v4044, %v1380
        %v4077 = vmul.f32 %v4045, %v1384
        %v4078 = vmul.f32 %v4046, %v1388
        %s4079 = sld [smem:[#allocation9 + $0x100]]
        %v4080 = vstv %s4079
        %v4081 = vmul.f32 %v4080, %v2559
        %v4082 = vmul.f32 %v4080, %v2560
        %v4083 = vmul.f32 %v4080, %v2561
        %v4084 = vmul.f32 %v4080, %v2562
        %v4085 = vmul.f32 %v4080, %v2563
        %v4086 = vmul.f32 %v4080, %v2564
        %v4087 = vmul.f32 %v4080, %v2565
        %v4088 = vmul.f32 %v4080, %v2566
        %v4089 = vmul.f32 %v4080, %v2567
        %v4090 = vmul.f32 %v4080, %v2568
        %v4091 = vmul.f32 %v4080, %v2569
        %v4092 = vmul.f32 %v4080, %v2570
        %v4093 = vmul.f32 %v4080, %v2571
        %v4094 = vmul.f32 %v4080, %v2572
        %v4095 = vmul.f32 %v4080, %v2573
        %v4096 = vmul.f32 %v4080, %v2574
        %v4097 = vmul.f32 %v4080, %v2575
        %v4098 = vmul.f32 %v4080, %v2576
        %v4099 = vmul.f32 %v4080, %v2577
        %v4100 = vmul.f32 %v4080, %v2578
        %v4101 = vmul.f32 %v4080, %v2579
        %v4102 = vmul.f32 %v4080, %v2580
        %v4103 = vmul.f32 %v4080, %v2581
        %v4104 = vmul.f32 %v4080, %v2582
        %v4105 = vmul.f32 %v4080, %v2583
        %v4106 = vmul.f32 %v4080, %v2584
        %v4107 = vmul.f32 %v4080, %v2585
        %v4108 = vmul.f32 %v4080, %v2586
        %v4109 = vmul.f32 %v4080, %v2587
        %v4110 = vmul.f32 %v4080, %v2588
        %v4111 = vmul.f32 %v4080, %v2589
        %v4112 = vmul.f32 %v4080, %v2590
        %s4113 = sld [smem:[#allocation9 + $0x101]]
        %v4114 = vstv %s4113
        %v4115 = vmul.f32 %v4114, %v3007
        %v4116 = vmul.f32 %v4114, %v3008
        %v4117 = vmul.f32 %v4114, %v3009
        %v4118 = vmul.f32 %v4114, %v3010
        %v4119 = vmul.f32 %v4114, %v3011
        %v4120 = vmul.f32 %v4114, %v3012
        %v4121 = vmul.f32 %v4114, %v3013
        %v4122 = vmul.f32 %v4114, %v3014
        %v4123 = vmul.f32 %v4114, %v3015
        %v4124 = vmul.f32 %v4114, %v3016
        %v4125 = vmul.f32 %v4114, %v3017
        %v4126 = vmul.f32 %v4114, %v3018
        %v4127 = vmul.f32 %v4114, %v3019
        %v4128 = vmul.f32 %v4114, %v3020
        %v4129 = vmul.f32 %v4114, %v3021
        %v4130 = vmul.f32 %v4114, %v3022
        %v4131 = vmul.f32 %v4114, %v3023
        %v4132 = vmul.f32 %v4114, %v3024
        %v4133 = vmul.f32 %v4114, %v3025
        %v4134 = vmul.f32 %v4114, %v3026
        %v4135 = vmul.f32 %v4114, %v3027
        %v4136 = vmul.f32 %v4114, %v3028
        %v4137 = vmul.f32 %v4114, %v3029
        %v4138 = vmul.f32 %v4114, %v3030
        %v4139 = vmul.f32 %v4114, %v3031
        %v4140 = vmul.f32 %v4114, %v3032
        %v4141 = vmul.f32 %v4114, %v3033
        %v4142 = vmul.f32 %v4114, %v3034
        %v4143 = vmul.f32 %v4114, %v3035
        %v4144 = vmul.f32 %v4114, %v3036
        %v4145 = vmul.f32 %v4114, %v3037
        %v4146 = vmul.f32 %v4114, %v3038
        %v4147 = vadd.f32 %v4081, %v4115
        %v4148 = vadd.f32 %v4082, %v4116
        %v4149 = vadd.f32 %v4083, %v4117
        %v4150 = vadd.f32 %v4084, %v4118
        %v4151 = vadd.f32 %v4085, %v4119
        %v4152 = vadd.f32 %v4086, %v4120
        %v4153 = vadd.f32 %v4087, %v4121
        %v4154 = vadd.f32 %v4088, %v4122
        %v4155 = vadd.f32 %v4089, %v4123
        %v4156 = vadd.f32 %v4090, %v4124
        %v4157 = vadd.f32 %v4091, %v4125
        %v4158 = vadd.f32 %v4092, %v4126
        %v4159 = vadd.f32 %v4093, %v4127
        %v4160 = vadd.f32 %v4094, %v4128
        %v4161 = vadd.f32 %v4095, %v4129
        %v4162 = vadd.f32 %v4096, %v4130
        %v4163 = vadd.f32 %v4097, %v4131
        %v4164 = vadd.f32 %v4098, %v4132
        %v4165 = vadd.f32 %v4099, %v4133
        %v4166 = vadd.f32 %v4100, %v4134
        %v4167 = vadd.f32 %v4101, %v4135
        %v4168 = vadd.f32 %v4102, %v4136
        %v4169 = vadd.f32 %v4103, %v4137
        %v4170 = vadd.f32 %v4104, %v4138
        %v4171 = vadd.f32 %v4105, %v4139
        %v4172 = vadd.f32 %v4106, %v4140
        %v4173 = vadd.f32 %v4107, %v4141
        %v4174 = vadd.f32 %v4108, %v4142
        %v4175 = vadd.f32 %v4109, %v4143
        %v4176 = vadd.f32 %v4110, %v4144
        %v4177 = vadd.f32 %v4111, %v4145
        %v4178 = vadd.f32 %v4112, %v4146
        %s4179 = sld [smem:[#allocation9 + $0x102]]
        %v4180 = vstv %s4179
        %v4181 = vmul.f32 %v4180, %v3455
        %v4182 = vmul.f32 %v4180, %v3456
        %v4183 = vmul.f32 %v4180, %v3457
        %v4184 = vmul.f32 %v4180, %v3458
        %v4185 = vmul.f32 %v4180, %v3459
        %v4186 = vmul.f32 %v4180, %v3460
        %v4187 = vmul.f32 %v4180, %v3461
        %v4188 = vmul.f32 %v4180, %v3462
        %v4189 = vmul.f32 %v4180, %v3463
        %v4190 = vmul.f32 %v4180, %v3464
        %v4191 = vmul.f32 %v4180, %v3465
        %v4192 = vmul.f32 %v4180, %v3466
        %v4193 = vmul.f32 %v4180, %v3467
        %v4194 = vmul.f32 %v4180, %v3468
        %v4195 = vmul.f32 %v4180, %v3469
        %v4196 = vmul.f32 %v4180, %v3470
        %v4197 = vmul.f32 %v4180, %v3471
        %v4198 = vmul.f32 %v4180, %v3472
        %v4199 = vmul.f32 %v4180, %v3473
        %v4200 = vmul.f32 %v4180, %v3474
        %v4201 = vmul.f32 %v4180, %v3475
        %v4202 = vmul.f32 %v4180, %v3476
        %v4203 = vmul.f32 %v4180, %v3477
        %v4204 = vmul.f32 %v4180, %v3478
        %v4205 = vmul.f32 %v4180, %v3479
        %v4206 = vmul.f32 %v4180, %v3480
        %v4207 = vmul.f32 %v4180, %v3481
        %v4208 = vmul.f32 %v4180, %v3482
        %v4209 = vmul.f32 %v4180, %v3483
        %v4210 = vmul.f32 %v4180, %v3484
        %v4211 = vmul.f32 %v4180, %v3485
        %v4212 = vmul.f32 %v4180, %v3486
        %v4213 = vadd.f32 %v4147, %v4181
        %v4214 = vadd.f32 %v4148, %v4182
        %v4215 = vadd.f32 %v4149, %v4183
        %v4216 = vadd.f32 %v4150, %v4184
        %v4217 = vadd.f32 %v4151, %v4185
        %v4218 = vadd.f32 %v4152, %v4186
        %v4219 = vadd.f32 %v4153, %v4187
        %v4220 = vadd.f32 %v4154, %v4188
        %v4221 = vadd.f32 %v4155, %v4189
        %v4222 = vadd.f32 %v4156, %v4190
        %v4223 = vadd.f32 %v4157, %v4191
        %v4224 = vadd.f32 %v4158, %v4192
        %v4225 = vadd.f32 %v4159, %v4193
        %v4226 = vadd.f32 %v4160, %v4194
        %v4227 = vadd.f32 %v4161, %v4195
        %v4228 = vadd.f32 %v4162, %v4196
        %v4229 = vadd.f32 %v4163, %v4197
        %v4230 = vadd.f32 %v4164, %v4198
        %v4231 = vadd.f32 %v4165, %v4199
        %v4232 = vadd.f32 %v4166, %v4200
        %v4233 = vadd.f32 %v4167, %v4201
        %v4234 = vadd.f32 %v4168, %v4202
        %v4235 = vadd.f32 %v4169, %v4203
        %v4236 = vadd.f32 %v4170, %v4204
        %v4237 = vadd.f32 %v4171, %v4205
        %v4238 = vadd.f32 %v4172, %v4206
        %v4239 = vadd.f32 %v4173, %v4207
        %v4240 = vadd.f32 %v4174, %v4208
        %v4241 = vadd.f32 %v4175, %v4209
        %v4242 = vadd.f32 %v4176, %v4210
        %v4243 = vadd.f32 %v4177, %v4211
        %v4244 = vadd.f32 %v4178, %v4212
        %s4245 = sld [smem:[#allocation11 + $0x2]]
        %v4246 = vstv %s4245
        %v4247 = vadd.f32 %v4213, %v4246
        %v4248 = vadd.f32 %v4214, %v4246
        %v4249 = vadd.f32 %v4215, %v4246
        %v4250 = vadd.f32 %v4216, %v4246
        %v4251 = vadd.f32 %v4217, %v4246
        %v4252 = vadd.f32 %v4218, %v4246
        %v4253 = vadd.f32 %v4219, %v4246
        %v4254 = vadd.f32 %v4220, %v4246
        %v4255 = vadd.f32 %v4221, %v4246
        %v4256 = vadd.f32 %v4222, %v4246
        %v4257 = vadd.f32 %v4223, %v4246
        %v4258 = vadd.f32 %v4224, %v4246
        %v4259 = vadd.f32 %v4225, %v4246
        %v4260 = vadd.f32 %v4226, %v4246
        %v4261 = vadd.f32 %v4227, %v4246
        %v4262 = vadd.f32 %v4228, %v4246
        %v4263 = vadd.f32 %v4229, %v4246
        %v4264 = vadd.f32 %v4230, %v4246
        %v4265 = vadd.f32 %v4231, %v4246
        %v4266 = vadd.f32 %v4232, %v4246
        %v4267 = vadd.f32 %v4233, %v4246
        %v4268 = vadd.f32 %v4234, %v4246
        %v4269 = vadd.f32 %v4235, %v4246
        %v4270 = vadd.f32 %v4236, %v4246
        %v4271 = vadd.f32 %v4237, %v4246
        %v4272 = vadd.f32 %v4238, %v4246
        %v4273 = vadd.f32 %v4239, %v4246
        %v4274 = vadd.f32 %v4240, %v4246
        %v4275 = vadd.f32 %v4241, %v4246
        %v4276 = vadd.f32 %v4242, %v4246
        %v4277 = vadd.f32 %v4243, %v4246
        %v4278 = vadd.f32 %v4244, %v4246
        %v4279 = vmax.f32 %v4247, 0.0
        %v4280 = vmax.f32 %v4248, 0.0
        %v4281 = vmax.f32 %v4249, 0.0
        %v4282 = vmax.f32 %v4250, 0.0
        %v4283 = vmax.f32 %v4251, 0.0
        %v4284 = vmax.f32 %v4252, 0.0
        %v4285 = vmax.f32 %v4253, 0.0
        %v4286 = vmax.f32 %v4254, 0.0
        %v4287 = vmax.f32 %v4255, 0.0
        %v4288 = vmax.f32 %v4256, 0.0
        %v4289 = vmax.f32 %v4257, 0.0
        %v4290 = vmax.f32 %v4258, 0.0
        %v4291 = vmax.f32 %v4259, 0.0
        %v4292 = vmax.f32 %v4260, 0.0
        %v4293 = vmax.f32 %v4261, 0.0
        %v4294 = vmax.f32 %v4262, 0.0
        %v4295 = vmax.f32 %v4263, 0.0
        %v4296 = vmax.f32 %v4264, 0.0
        %v4297 = vmax.f32 %v4265, 0.0
        %v4298 = vmax.f32 %v4266, 0.0
        %v4299 = vmax.f32 %v4267, 0.0
        %v4300 = vmax.f32 %v4268, 0.0
        %v4301 = vmax.f32 %v4269, 0.0
        %v4302 = vmax.f32 %v4270, 0.0
        %v4303 = vmax.f32 %v4271, 0.0
        %v4304 = vmax.f32 %v4272, 0.0
        %v4305 = vmax.f32 %v4273, 0.0
        %v4306 = vmax.f32 %v4274, 0.0
        %v4307 = vmax.f32 %v4275, 0.0
        %v4308 = vmax.f32 %v4276, 0.0
        %v4309 = vmax.f32 %v4277, 0.0
        %v4310 = vmax.f32 %v4278, 0.0
        %v4311 = vmin.f32 %v4279, 1.0
        %v4312 = vmin.f32 %v4280, 1.0
        %v4313 = vmin.f32 %v4281, 1.0
        %v4314 = vmin.f32 %v4282, 1.0
        %v4315 = vmin.f32 %v4283, 1.0
        %v4316 = vmin.f32 %v4284, 1.0
        %v4317 = vmin.f32 %v4285, 1.0
        %v4318 = vmin.f32 %v4286, 1.0
        %v4319 = vmin.f32 %v4287, 1.0
        %v4320 = vmin.f32 %v4288, 1.0
        %v4321 = vmin.f32 %v4289, 1.0
        %v4322 = vmin.f32 %v4290, 1.0
        %v4323 = vmin.f32 %v4291, 1.0
        %v4324 = vmin.f32 %v4292, 1.0
        %v4325 = vmin.f32 %v4293, 1.0
        %v4326 = vmin.f32 %v4294, 1.0
        %v4327 = vmin.f32 %v4295, 1.0
        %v4328 = vmin.f32 %v4296, 1.0
        %v4329 = vmin.f32 %v4297, 1.0
        %v4330 = vmin.f32 %v4298, 1.0
        %v4331 = vmin.f32 %v4299, 1.0
        %v4332 = vmin.f32 %v4300, 1.0
        %v4333 = vmin.f32 %v4301, 1.0
        %v4334 = vmin.f32 %v4302, 1.0
        %v4335 = vmin.f32 %v4303, 1.0
        %v4336 = vmin.f32 %v4304, 1.0
        %v4337 = vmin.f32 %v4305, 1.0
        %v4338 = vmin.f32 %v4306, 1.0
        %v4339 = vmin.f32 %v4307, 1.0
        %v4340 = vmin.f32 %v4308, 1.0
        %v4341 = vmin.f32 %v4309, 1.0
        %v4342 = vmin.f32 %v4310, 1.0
        %v4343 = vmul.f32 %v4311, %v1756
        %v4344 = vmul.f32 %v4312, %v1760
        %v4345 = vmul.f32 %v4313, %v1764
        %v4346 = vmul.f32 %v4314, %v1768
        %v4347 = vmul.f32 %v4315, %v1772
        %v4348 = vmul.f32 %v4316, %v1776
        %v4349 = vmul.f32 %v4317, %v1780
        %v4350 = vmul.f32 %v4318, %v1784
        %v4351 = vmul.f32 %v4319, %v1788
        %v4352 = vmul.f32 %v4320, %v1792
        %v4353 = vmul.f32 %v4321, %v1796
        %v4354 = vmul.f32 %v4322, %v1800
        %v4355 = vmul.f32 %v4323, %v1804
        %v4356 = vmul.f32 %v4324, %v1808
        %v4357 = vmul.f32 %v4325, %v1812
        %v4358 = vmul.f32 %v4326, %v1816
        %v4359 = vmul.f32 %v4327, %v1820
        %v4360 = vmul.f32 %v4328, %v1824
        %v4361 = vmul.f32 %v4329, %v1828
        %v4362 = vmul.f32 %v4330, %v1832
        %v4363 = vmul.f32 %v4331, %v1836
        %v4364 = vmul.f32 %v4332, %v1840
        %v4365 = vmul.f32 %v4333, %v1844
        %v4366 = vmul.f32 %v4334, %v1848
        %v4367 = vmul.f32 %v4335, %v1852
        %v4368 = vmul.f32 %v4336, %v1856
        %v4369 = vmul.f32 %v4337, %v1860
        %v4370 = vmul.f32 %v4338, %v1864
        %v4371 = vmul.f32 %v4339, %v1868
        %v4372 = vmul.f32 %v4340, %v1872
        %v4373 = vmul.f32 %v4341, %v1876
        %v4374 = vmul.f32 %v4342, %v1880
        %v4375 = vadd.f32 %v2143, %v2591
        %v4376 = vadd.f32 %v2144, %v2592
        %v4377 = vadd.f32 %v2145, %v2593
        %v4378 = vadd.f32 %v2146, %v2594
        %v4379 = vadd.f32 %v2147, %v2595
        %v4380 = vadd.f32 %v2148, %v2596
        %v4381 = vadd.f32 %v2149, %v2597
        %v4382 = vadd.f32 %v2150, %v2598
        %v4383 = vadd.f32 %v2151, %v2599
        %v4384 = vadd.f32 %v2152, %v2600
        %v4385 = vadd.f32 %v2153, %v2601
        %v4386 = vadd.f32 %v2154, %v2602
        %v4387 = vadd.f32 %v2155, %v2603
        %v4388 = vadd.f32 %v2156, %v2604
        %v4389 = vadd.f32 %v2157, %v2605
        %v4390 = vadd.f32 %v2158, %v2606
        %v4391 = vadd.f32 %v2159, %v2607
        %v4392 = vadd.f32 %v2160, %v2608
        %v4393 = vadd.f32 %v2161, %v2609
        %v4394 = vadd.f32 %v2162, %v2610
        %v4395 = vadd.f32 %v2163, %v2611
        %v4396 = vadd.f32 %v2164, %v2612
        %v4397 = vadd.f32 %v2165, %v2613
        %v4398 = vadd.f32 %v2166, %v2614
        %v4399 = vadd.f32 %v2167, %v2615
        %v4400 = vadd.f32 %v2168, %v2616
        %v4401 = vadd.f32 %v2169, %v2617
        %v4402 = vadd.f32 %v2170, %v2618
        %v4403 = vadd.f32 %v2171, %v2619
        %v4404 = vadd.f32 %v2172, %v2620
        %v4405 = vadd.f32 %v2173, %v2621
        %v4406 = vadd.f32 %v2174, %v2622
        %v4407 = vadd.f32 %v4375, %v3039
        %v4408 = vadd.f32 %v4376, %v3040
        %v4409 = vadd.f32 %v4377, %v3041
        %v4410 = vadd.f32 %v4378, %v3042
        %v4411 = vadd.f32 %v4379, %v3043
        %v4412 = vadd.f32 %v4380, %v3044
        %v4413 = vadd.f32 %v4381, %v3045
        %v4414 = vadd.f32 %v4382, %v3046
        %v4415 = vadd.f32 %v4383, %v3047
        %v4416 = vadd.f32 %v4384, %v3048
        %v4417 = vadd.f32 %v4385, %v3049
        %v4418 = vadd.f32 %v4386, %v3050
        %v4419 = vadd.f32 %v4387, %v3051
        %v4420 = vadd.f32 %v4388, %v3052
        %v4421 = vadd.f32 %v4389, %v3053
        %v4422 = vadd.f32 %v4390, %v3054
        %v4423 = vadd.f32 %v4391, %v3055
        %v4424 = vadd.f32 %v4392, %v3056
        %v4425 = vadd.f32 %v4393, %v3057
        %v4426 = vadd.f32 %v4394, %v3058
        %v4427 = vadd.f32 %v4395, %v3059
        %v4428 = vadd.f32 %v4396, %v3060
        %v4429 = vadd.f32 %v4397, %v3061
        %v4430 = vadd.f32 %v4398, %v3062
        %v4431 = vadd.f32 %v4399, %v3063
        %v4432 = vadd.f32 %v4400, %v3064
        %v4433 = vadd.f32 %v4401, %v3065
        %v4434 = vadd.f32 %v4402, %v3066
        %v4435 = vadd.f32 %v4403, %v3067
        %v4436 = vadd.f32 %v4404, %v3068
        %v4437 = vadd.f32 %v4405, %v3069
        %v4438 = vadd.f32 %v4406, %v3070
        %v4439 = vmul.f32 %v4407, 0.33333334
        %v4440 = vmul.f32 %v4408, 0.33333334
        %v4441 = vmul.f32 %v4409, 0.33333334
        %v4442 = vmul.f32 %v4410, 0.33333334
        %v4443 = vmul.f32 %v4411, 0.33333334
        %v4444 = vmul.f32 %v4412, 0.33333334
        %v4445 = vmul.f32 %v4413, 0.33333334
        %v4446 = vmul.f32 %v4414, 0.33333334
        %v4447 = vmul.f32 %v4415, 0.33333334
        %v4448 = vmul.f32 %v4416, 0.33333334
        %v4449 = vmul.f32 %v4417, 0.33333334
        %v4450 = vmul.f32 %v4418, 0.33333334
        %v4451 = vmul.f32 %v4419, 0.33333334
        %v4452 = vmul.f32 %v4420, 0.33333334
        %v4453 = vmul.f32 %v4421, 0.33333334
        %v4454 = vmul.f32 %v4422, 0.33333334
        %v4455 = vmul.f32 %v4423, 0.33333334
        %v4456 = vmul.f32 %v4424, 0.33333334
        %v4457 = vmul.f32 %v4425, 0.33333334
        %v4458 = vmul.f32 %v4426, 0.33333334
        %v4459 = vmul.f32 %v4427, 0.33333334
        %v4460 = vmul.f32 %v4428, 0.33333334
        %v4461 = vmul.f32 %v4429, 0.33333334
        %v4462 = vmul.f32 %v4430, 0.33333334
        %v4463 = vmul.f32 %v4431, 0.33333334
        %v4464 = vmul.f32 %v4432, 0.33333334
        %v4465 = vmul.f32 %v4433, 0.33333334
        %v4466 = vmul.f32 %v4434, 0.33333334
        %v4467 = vmul.f32 %v4435, 0.33333334
        %v4468 = vmul.f32 %v4436, 0.33333334
        %v4469 = vmul.f32 %v4437, 0.33333334
        %v4470 = vmul.f32 %v4438, 0.33333334
        %vm4471 = vcmp.lt.f32.partialorder %v4439, 1.0
        %vm4472 = vcmp.lt.f32.partialorder %v4440, 1.0
        %vm4473 = vcmp.lt.f32.partialorder %v4441, 1.0
        %vm4474 = vcmp.lt.f32.partialorder %v4442, 1.0
        %vm4475 = vcmp.lt.f32.partialorder %v4443, 1.0
        %vm4476 = vcmp.lt.f32.partialorder %v4444, 1.0
        %vm4477 = vcmp.lt.f32.partialorder %v4445, 1.0
        %vm4478 = vcmp.lt.f32.partialorder %v4446, 1.0
        %vm4479 = vcmp.lt.f32.partialorder %v4447, 1.0
        %vm4480 = vcmp.lt.f32.partialorder %v4448, 1.0
        %vm4481 = vcmp.lt.f32.partialorder %v4449, 1.0
        %vm4482 = vcmp.lt.f32.partialorder %v4450, 1.0
        %vm4483 = vcmp.lt.f32.partialorder %v4451, 1.0
        %vm4484 = vcmp.lt.f32.partialorder %v4452, 1.0
        %vm4485 = vcmp.lt.f32.partialorder %v4453, 1.0
        %vm4486 = vcmp.lt.f32.partialorder %v4454, 1.0
        %vm4487 = vcmp.lt.f32.partialorder %v4455, 1.0
        %vm4488 = vcmp.lt.f32.partialorder %v4456, 1.0
        %vm4489 = vcmp.lt.f32.partialorder %v4457, 1.0
        %vm4490 = vcmp.lt.f32.partialorder %v4458, 1.0
        %vm4491 = vcmp.lt.f32.partialorder %v4459, 1.0
        %vm4492 = vcmp.lt.f32.partialorder %v4460, 1.0
        %vm4493 = vcmp.lt.f32.partialorder %v4461, 1.0
        %vm4494 = vcmp.lt.f32.partialorder %v4462, 1.0
        %vm4495 = vcmp.lt.f32.partialorder %v4463, 1.0
        %vm4496 = vcmp.lt.f32.partialorder %v4464, 1.0
        %vm4497 = vcmp.lt.f32.partialorder %v4465, 1.0
        %vm4498 = vcmp.lt.f32.partialorder %v4466, 1.0
        %vm4499 = vcmp.lt.f32.partialorder %v4467, 1.0
        %vm4500 = vcmp.lt.f32.partialorder %v4468, 1.0
        %vm4501 = vcmp.lt.f32.partialorder %v4469, 1.0
        %vm4502 = vcmp.lt.f32.partialorder %v4470, 1.0
        %v4503 = vsel %vm4471, 1, 0
        %v4504 = vsel %vm4472, 1, 0
        %v4505 = vsel %vm4473, 1, 0
        %v4506 = vsel %vm4474, 1, 0
        %v4507 = vsel %vm4475, 1, 0
        %v4508 = vsel %vm4476, 1, 0
        %v4509 = vsel %vm4477, 1, 0
        %v4510 = vsel %vm4478, 1, 0
        %v4511 = vsel %vm4479, 1, 0
        %v4512 = vsel %vm4480, 1, 0
        %v4513 = vsel %vm4481, 1, 0
        %v4514 = vsel %vm4482, 1, 0
        %v4515 = vsel %vm4483, 1, 0
        %v4516 = vsel %vm4484, 1, 0
        %v4517 = vsel %vm4485, 1, 0
        %v4518 = vsel %vm4486, 1, 0
        %v4519 = vsel %vm4487, 1, 0
        %v4520 = vsel %vm4488, 1, 0
        %v4521 = vsel %vm4489, 1, 0
        %v4522 = vsel %vm4490, 1, 0
        %v4523 = vsel %vm4491, 1, 0
        %v4524 = vsel %vm4492, 1, 0
        %v4525 = vsel %vm4493, 1, 0
        %v4526 = vsel %vm4494, 1, 0
        %v4527 = vsel %vm4495, 1, 0
        %v4528 = vsel %vm4496, 1, 0
        %v4529 = vsel %vm4497, 1, 0
        %v4530 = vsel %vm4498, 1, 0
        %v4531 = vsel %vm4499, 1, 0
        %v4532 = vsel %vm4500, 1, 0
        %v4533 = vsel %vm4501, 1, 0
        %v4534 = vsel %vm4502, 1, 0
        %v4535 = vcvt.s32.f32 %v4503
        %v4536 = vcvt.s32.f32 %v4504
        %v4537 = vcvt.s32.f32 %v4505
        %v4538 = vcvt.s32.f32 %v4506
        %v4539 = vcvt.s32.f32 %v4507
        %v4540 = vcvt.s32.f32 %v4508
        %v4541 = vcvt.s32.f32 %v4509
        %v4542 = vcvt.s32.f32 %v4510
        %v4543 = vcvt.s32.f32 %v4511
        %v4544 = vcvt.s32.f32 %v4512
        %v4545 = vcvt.s32.f32 %v4513
        %v4546 = vcvt.s32.f32 %v4514
        %v4547 = vcvt.s32.f32 %v4515
        %v4548 = vcvt.s32.f32 %v4516
        %v4549 = vcvt.s32.f32 %v4517
        %v4550 = vcvt.s32.f32 %v4518
        %v4551 = vcvt.s32.f32 %v4519
        %v4552 = vcvt.s32.f32 %v4520
        %v4553 = vcvt.s32.f32 %v4521
        %v4554 = vcvt.s32.f32 %v4522
        %v4555 = vcvt.s32.f32 %v4523
        %v4556 = vcvt.s32.f32 %v4524
        %v4557 = vcvt.s32.f32 %v4525
        %v4558 = vcvt.s32.f32 %v4526
        %v4559 = vcvt.s32.f32 %v4527
        %v4560 = vcvt.s32.f32 %v4528
        %v4561 = vcvt.s32.f32 %v4529
        %v4562 = vcvt.s32.f32 %v4530
        %v4563 = vcvt.s32.f32 %v4531
        %v4564 = vcvt.s32.f32 %v4532
        %v4565 = vcvt.s32.f32 %v4533
        %v4566 = vcvt.s32.f32 %v4534
        %4567 = vrot.lane.b32.xlu0 %v4535, 1
        %v4568 = vpop.permute.xlu0 %4567
        %4569 = vrot.lane.b32.xlu0 %v4536, 1
        %v4570 = vpop.permute.xlu0 %4569
        %4571 = vrot.lane.b32.xlu0 %v4537, 1
        %v4572 = vpop.permute.xlu0 %4571
        %4573 = vrot.lane.b32.xlu0 %v4538, 1
        %v4574 = vpop.permute.xlu0 %4573
        %4575 = vrot.lane.b32.xlu0 %v4539, 1
        %v4576 = vpop.permute.xlu0 %4575
        %4577 = vrot.lane.b32.xlu0 %v4540, 1
        %v4578 = vpop.permute.xlu0 %4577
        %4579 = vrot.lane.b32.xlu0 %v4541, 1
        %v4580 = vpop.permute.xlu0 %4579
        %4581 = vrot.lane.b32.xlu0 %v4542, 1
        %v4582 = vpop.permute.xlu0 %4581
        %4583 = vrot.lane.b32.xlu0 %v4543, 1
        %v4584 = vpop.permute.xlu0 %4583
        %4585 = vrot.lane.b32.xlu0 %v4544, 1
        %v4586 = vpop.permute.xlu0 %4585
        %4587 = vrot.lane.b32.xlu0 %v4545, 1
        %v4588 = vpop.permute.xlu0 %4587
        %4589 = vrot.lane.b32.xlu0 %v4546, 1
        %v4590 = vpop.permute.xlu0 %4589
        %4591 = vrot.lane.b32.xlu0 %v4547, 1
        %v4592 = vpop.permute.xlu0 %4591
        %4593 = vrot.lane.b32.xlu0 %v4548, 1
        %v4594 = vpop.permute.xlu0 %4593
        %4595 = vrot.lane.b32.xlu0 %v4549, 1
        %v4596 = vpop.permute.xlu0 %4595
        %4597 = vrot.lane.b32.xlu0 %v4550, 1
        %v4598 = vpop.permute.xlu0 %4597
        %4599 = vrot.lane.b32.xlu0 %v4551, 1
        %v4600 = vpop.permute.xlu0 %4599
        %4601 = vrot.lane.b32.xlu0 %v4552, 1
        %v4602 = vpop.permute.xlu0 %4601
        %4603 = vrot.lane.b32.xlu0 %v4553, 1
        %v4604 = vpop.permute.xlu0 %4603
        %4605 = vrot.lane.b32.xlu0 %v4554, 1
        %v4606 = vpop.permute.xlu0 %4605
        %4607 = vrot.lane.b32.xlu0 %v4555, 1
        %v4608 = vpop.permute.xlu0 %4607
        %4609 = vrot.lane.b32.xlu0 %v4556, 1
        %v4610 = vpop.permute.xlu0 %4609
        %4611 = vrot.lane.b32.xlu0 %v4557, 1
        %v4612 = vpop.permute.xlu0 %4611
        %4613 = vrot.lane.b32.xlu0 %v4558, 1
        %v4614 = vpop.permute.xlu0 %4613
        %4615 = vrot.lane.b32.xlu0 %v4559, 1
        %v4616 = vpop.permute.xlu0 %4615
        %4617 = vrot.lane.b32.xlu0 %v4560, 1
        %v4618 = vpop.permute.xlu0 %4617
        %4619 = vrot.lane.b32.xlu0 %v4561, 1
        %v4620 = vpop.permute.xlu0 %4619
        %4621 = vrot.lane.b32.xlu0 %v4562, 1
        %v4622 = vpop.permute.xlu0 %4621
        %4623 = vrot.lane.b32.xlu0 %v4563, 1
        %v4624 = vpop.permute.xlu0 %4623
        %4625 = vrot.lane.b32.xlu0 %v4564, 1
        %v4626 = vpop.permute.xlu0 %4625
        %4627 = vrot.lane.b32.xlu0 %v4565, 1
        %v4628 = vpop.permute.xlu0 %4627
        %4629 = vrot.lane.b32.xlu0 %v4566, 1
        %v4630 = vpop.permute.xlu0 %4629
        %v4631 = vlaneseq
        %v4632 = vand.u32 %v4631, 127
        %vm4633 = vcmp.lt.s32.totalorder %v4632, 1
        %v4634 = vsel %vm4633, %v4628, %v4630
        %v4635 = vsel %vm4633, %v4626, %v4628
        %v4636 = vsel %vm4633, %v4624, %v4626
        %v4637 = vsel %vm4633, %v4622, %v4624
        %v4638 = vsel %vm4633, %v4620, %v4622
        %v4639 = vsel %vm4633, %v4618, %v4620
        %v4640 = vsel %vm4633, %v4616, %v4618
        %v4641 = vsel %vm4633, %v4614, %v4616
        %v4642 = vsel %vm4633, %v4612, %v4614
        %v4643 = vsel %vm4633, %v4610, %v4612
        %v4644 = vsel %vm4633, %v4608, %v4610
        %v4645 = vsel %vm4633, %v4606, %v4608
        %v4646 = vsel %vm4633, %v4604, %v4606
        %v4647 = vsel %vm4633, %v4602, %v4604
        %v4648 = vsel %vm4633, %v4600, %v4602
        %v4649 = vsel %vm4633, %v4598, %v4600
        %v4650 = vsel %vm4633, %v4596, %v4598
        %v4651 = vsel %vm4633, %v4594, %v4596
        %v4652 = vsel %vm4633, %v4592, %v4594
        %v4653 = vsel %vm4633, %v4590, %v4592
        %v4654 = vsel %vm4633, %v4588, %v4590
        %v4655 = vsel %vm4633, %v4586, %v4588
        %v4656 = vsel %vm4633, %v4584, %v4586
        %v4657 = vsel %vm4633, %v4582, %v4584
        %v4658 = vsel %vm4633, %v4580, %v4582
        %v4659 = vsel %vm4633, %v4578, %v4580
        %v4660 = vsel %vm4633, %v4576, %v4578
        %v4661 = vsel %vm4633, %v4574, %v4576
        %v4662 = vsel %vm4633, %v4572, %v4574
        %v4663 = vsel %vm4633, %v4570, %v4572
        %v4664 = vsel %vm4633, %v4568, %v4570
        %v4665 = vsel %vm4633, %v4630, %v4568
        %4666 = vrot.lane.b32.xlu0 %v4535, 127
        %v4667 = vpop.permute.xlu0 %4666
        %4668 = vrot.lane.b32.xlu0 %v4536, 127
        %v4669 = vpop.permute.xlu0 %4668
        %4670 = vrot.lane.b32.xlu0 %v4537, 127
        %v4671 = vpop.permute.xlu0 %4670
        %4672 = vrot.lane.b32.xlu0 %v4538, 127
        %v4673 = vpop.permute.xlu0 %4672
        %4674 = vrot.lane.b32.xlu0 %v4539, 127
        %v4675 = vpop.permute.xlu0 %4674
        %4676 = vrot.lane.b32.xlu0 %v4540, 127
        %v4677 = vpop.permute.xlu0 %4676
        %4678 = vrot.lane.b32.xlu0 %v4541, 127
        %v4679 = vpop.permute.xlu0 %4678
        %4680 = vrot.lane.b32.xlu0 %v4542, 127
        %v4681 = vpop.permute.xlu0 %4680
        %4682 = vrot.lane.b32.xlu0 %v4543, 127
        %v4683 = vpop.permute.xlu0 %4682
        %4684 = vrot.lane.b32.xlu0 %v4544, 127
        %v4685 = vpop.permute.xlu0 %4684
        %4686 = vrot.lane.b32.xlu0 %v4545, 127
        %v4687 = vpop.permute.xlu0 %4686
        %4688 = vrot.lane.b32.xlu0 %v4546, 127
        %v4689 = vpop.permute.xlu0 %4688
        %4690 = vrot.lane.b32.xlu0 %v4547, 127
        %v4691 = vpop.permute.xlu0 %4690
        %4692 = vrot.lane.b32.xlu0 %v4548, 127
        %v4693 = vpop.permute.xlu0 %4692
        %4694 = vrot.lane.b32.xlu0 %v4549, 127
        %v4695 = vpop.permute.xlu0 %4694
        %4696 = vrot.lane.b32.xlu0 %v4550, 127
        %v4697 = vpop.permute.xlu0 %4696
        %4698 = vrot.lane.b32.xlu0 %v4551, 127
        %v4699 = vpop.permute.xlu0 %4698
        %4700 = vrot.lane.b32.xlu0 %v4552, 127
        %v4701 = vpop.permute.xlu0 %4700
        %4702 = vrot.lane.b32.xlu0 %v4553, 127
        %v4703 = vpop.permute.xlu0 %4702
        %4704 = vrot.lane.b32.xlu0 %v4554, 127
        %v4705 = vpop.permute.xlu0 %4704
        %4706 = vrot.lane.b32.xlu0 %v4555, 127
        %v4707 = vpop.permute.xlu0 %4706
        %4708 = vrot.lane.b32.xlu0 %v4556, 127
        %v4709 = vpop.permute.xlu0 %4708
        %4710 = vrot.lane.b32.xlu0 %v4557, 127
        %v4711 = vpop.permute.xlu0 %4710
        %4712 = vrot.lane.b32.xlu0 %v4558, 127
        %v4713 = vpop.permute.xlu0 %4712
        %4714 = vrot.lane.b32.xlu0 %v4559, 127
        %v4715 = vpop.permute.xlu0 %4714
        %4716 = vrot.lane.b32.xlu0 %v4560, 127
        %v4717 = vpop.permute.xlu0 %4716
        %4718 = vrot.lane.b32.xlu0 %v4561, 127
        %v4719 = vpop.permute.xlu0 %4718
        %4720 = vrot.lane.b32.xlu0 %v4562, 127
        %v4721 = vpop.permute.xlu0 %4720
        %4722 = vrot.lane.b32.xlu0 %v4563, 127
        %v4723 = vpop.permute.xlu0 %4722
        %4724 = vrot.lane.b32.xlu0 %v4564, 127
        %v4725 = vpop.permute.xlu0 %4724
        %4726 = vrot.lane.b32.xlu0 %v4565, 127
        %v4727 = vpop.permute.xlu0 %4726
        %4728 = vrot.lane.b32.xlu0 %v4566, 127
        %v4729 = vpop.permute.xlu0 %4728
        %vm4730 = vcmp.lt.s32.totalorder %v4632, 127
        %v4731 = vsel %vm4730, %v4727, %v4729
        %v4732 = vsel %vm4730, %v4725, %v4727
        %v4733 = vsel %vm4730, %v4723, %v4725
        %v4734 = vsel %vm4730, %v4721, %v4723
        %v4735 = vsel %vm4730, %v4719, %v4721
        %v4736 = vsel %vm4730, %v4717, %v4719
        %v4737 = vsel %vm4730, %v4715, %v4717
        %v4738 = vsel %vm4730, %v4713, %v4715
        %v4739 = vsel %vm4730, %v4711, %v4713
        %v4740 = vsel %vm4730, %v4709, %v4711
        %v4741 = vsel %vm4730, %v4707, %v4709
        %v4742 = vsel %vm4730, %v4705, %v4707
        %v4743 = vsel %vm4730, %v4703, %v4705
        %v4744 = vsel %vm4730, %v4701, %v4703
        %v4745 = vsel %vm4730, %v4699, %v4701
        %v4746 = vsel %vm4730, %v4697, %v4699
        %v4747 = vsel %vm4730, %v4695, %v4697
        %v4748 = vsel %vm4730, %v4693, %v4695
        %v4749 = vsel %vm4730, %v4691, %v4693
        %v4750 = vsel %vm4730, %v4689, %v4691
        %v4751 = vsel %vm4730, %v4687, %v4689
        %v4752 = vsel %vm4730, %v4685, %v4687
        %v4753 = vsel %vm4730, %v4683, %v4685
        %v4754 = vsel %vm4730, %v4681, %v4683
        %v4755 = vsel %vm4730, %v4679, %v4681
        %v4756 = vsel %vm4730, %v4677, %v4679
        %v4757 = vsel %vm4730, %v4675, %v4677
        %v4758 = vsel %vm4730, %v4673, %v4675
        %v4759 = vsel %vm4730, %v4671, %v4673
        %v4760 = vsel %vm4730, %v4669, %v4671
        %v4761 = vsel %vm4730, %v4667, %v4669
        %v4762 = vsel %vm4730, %v4729, %v4667
        %v4763 = vadd.f32 %v4665, %v4761
        %v4764 = vadd.f32 %v4664, %v4760
        %v4765 = vadd.f32 %v4663, %v4759
        %v4766 = vadd.f32 %v4662, %v4758
        %v4767 = vadd.f32 %v4661, %v4757
        %v4768 = vadd.f32 %v4660, %v4756
        %v4769 = vadd.f32 %v4659, %v4755
        %v4770 = vadd.f32 %v4658, %v4754
        %v4771 = vadd.f32 %v4657, %v4753
        %v4772 = vadd.f32 %v4656, %v4752
        %v4773 = vadd.f32 %v4655, %v4751
        %v4774 = vadd.f32 %v4654, %v4750
        %v4775 = vadd.f32 %v4653, %v4749
        %v4776 = vadd.f32 %v4652, %v4748
        %v4777 = vadd.f32 %v4651, %v4747
        %v4778 = vadd.f32 %v4650, %v4746
        %v4779 = vadd.f32 %v4649, %v4745
        %v4780 = vadd.f32 %v4648, %v4744
        %v4781 = vadd.f32 %v4647, %v4743
        %v4782 = vadd.f32 %v4646, %v4742
        %v4783 = vadd.f32 %v4645, %v4741
        %v4784 = vadd.f32 %v4644, %v4740
        %v4785 = vadd.f32 %v4643, %v4739
        %v4786 = vadd.f32 %v4642, %v4738
        %v4787 = vadd.f32 %v4641, %v4737
        %v4788 = vadd.f32 %v4640, %v4736
        %v4789 = vadd.f32 %v4639, %v4735
        %v4790 = vadd.f32 %v4638, %v4734
        %v4791 = vadd.f32 %v4637, %v4733
        %v4792 = vadd.f32 %v4636, %v4732
        %v4793 = vadd.f32 %v4635, %v4731
        %v4794 = vadd.f32 %v4634, %v4762
        %v4799 = vlaneseq
        %v4800 = vshrl.u32 %v4799, 7
        %v4801 = vsub.s32 0, %v4800
        %v4802 = vrot.slane %v550, %v4801
        %v4803 = vlaneseq
        %v4804 = vshrl.u32 %v4803, 7
        %v4805 = vsub.s32 1, %v4804
        %v4806 = vrot.slane %v550, %v4805
        %v4807 = vlaneseq
        %v4808 = vshrl.u32 %v4807, 7
        %v4809 = vsub.s32 2, %v4808
        %v4810 = vrot.slane %v550, %v4809
        %v4811 = vlaneseq
        %v4812 = vshrl.u32 %v4811, 7
        %v4813 = vsub.s32 3, %v4812
        %v4814 = vrot.slane %v550, %v4813
        %v4815 = vlaneseq
        %v4816 = vshrl.u32 %v4815, 7
        %v4817 = vsub.s32 4, %v4816
        %v4818 = vrot.slane %v550, %v4817
        %v4819 = vlaneseq
        %v4820 = vshrl.u32 %v4819, 7
        %v4821 = vsub.s32 5, %v4820
        %v4822 = vrot.slane %v550, %v4821
        %v4823 = vlaneseq
        %v4824 = vshrl.u32 %v4823, 7
        %v4825 = vsub.s32 6, %v4824
        %v4826 = vrot.slane %v550, %v4825
        %v4827 = vlaneseq
        %v4828 = vshrl.u32 %v4827, 7
        %v4829 = vsub.s32 7, %v4828
        %v4830 = vrot.slane %v550, %v4829
        %v4831 = vlaneseq
        %v4832 = vshrl.u32 %v4831, 7
        %v4833 = vsub.s32 0, %v4832
        %v4834 = vrot.slane %v552, %v4833
        %v4835 = vlaneseq
        %v4836 = vshrl.u32 %v4835, 7
        %v4837 = vsub.s32 1, %v4836
        %v4838 = vrot.slane %v552, %v4837
        %v4839 = vlaneseq
        %v4840 = vshrl.u32 %v4839, 7
        %v4841 = vsub.s32 2, %v4840
        %v4842 = vrot.slane %v552, %v4841
        %v4843 = vlaneseq
        %v4844 = vshrl.u32 %v4843, 7
        %v4845 = vsub.s32 3, %v4844
        %v4846 = vrot.slane %v552, %v4845
        %v4847 = vlaneseq
        %v4848 = vshrl.u32 %v4847, 7
        %v4849 = vsub.s32 4, %v4848
        %v4850 = vrot.slane %v552, %v4849
        %v4851 = vlaneseq
        %v4852 = vshrl.u32 %v4851, 7
        %v4853 = vsub.s32 5, %v4852
        %v4854 = vrot.slane %v552, %v4853
        %v4855 = vlaneseq
        %v4856 = vshrl.u32 %v4855, 7
        %v4857 = vsub.s32 6, %v4856
        %v4858 = vrot.slane %v552, %v4857
        %v4859 = vlaneseq
        %v4860 = vshrl.u32 %v4859, 7
        %v4861 = vsub.s32 7, %v4860
        %v4862 = vrot.slane %v552, %v4861
        %v4863 = vlaneseq
        %v4864 = vshrl.u32 %v4863, 7
        %v4865 = vsub.s32 0, %v4864
        %v4866 = vrot.slane %v554, %v4865
        %v4867 = vlaneseq
        %v4868 = vshrl.u32 %v4867, 7
        %v4869 = vsub.s32 1, %v4868
        %v4870 = vrot.slane %v554, %v4869
        %v4871 = vlaneseq
        %v4872 = vshrl.u32 %v4871, 7
        %v4873 = vsub.s32 2, %v4872
        %v4874 = vrot.slane %v554, %v4873
        %v4875 = vlaneseq
        %v4876 = vshrl.u32 %v4875, 7
        %v4877 = vsub.s32 3, %v4876
        %v4878 = vrot.slane %v554, %v4877
        %v4879 = vlaneseq
        %v4880 = vshrl.u32 %v4879, 7
        %v4881 = vsub.s32 4, %v4880
        %v4882 = vrot.slane %v554, %v4881
        %v4883 = vlaneseq
        %v4884 = vshrl.u32 %v4883, 7
        %v4885 = vsub.s32 5, %v4884
        %v4886 = vrot.slane %v554, %v4885
        %v4887 = vlaneseq
        %v4888 = vshrl.u32 %v4887, 7
        %v4889 = vsub.s32 6, %v4888
        %v4890 = vrot.slane %v554, %v4889
        %v4891 = vlaneseq
        %v4892 = vshrl.u32 %v4891, 7
        %v4893 = vsub.s32 7, %v4892
        %v4894 = vrot.slane %v554, %v4893
        %v4895 = vlaneseq
        %v4896 = vshrl.u32 %v4895, 7
        %v4897 = vsub.s32 0, %v4896
        %v4898 = vrot.slane %v556, %v4897
        %v4899 = vlaneseq
        %v4900 = vshrl.u32 %v4899, 7
        %v4901 = vsub.s32 1, %v4900
        %v4902 = vrot.slane %v556, %v4901
        %v4903 = vlaneseq
        %v4904 = vshrl.u32 %v4903, 7
        %v4905 = vsub.s32 2, %v4904
        %v4906 = vrot.slane %v556, %v4905
        %v4907 = vlaneseq
        %v4908 = vshrl.u32 %v4907, 7
        %v4909 = vsub.s32 3, %v4908
        %v4910 = vrot.slane %v556, %v4909
        %v4911 = vlaneseq
        %v4912 = vshrl.u32 %v4911, 7
        %v4913 = vsub.s32 4, %v4912
        %v4914 = vrot.slane %v556, %v4913
        %v4915 = vlaneseq
        %v4916 = vshrl.u32 %v4915, 7
        %v4917 = vsub.s32 5, %v4916
        %v4918 = vrot.slane %v556, %v4917
        %v4919 = vlaneseq
        %v4920 = vshrl.u32 %v4919, 7
        %v4921 = vsub.s32 6, %v4920
        %v4922 = vrot.slane %v556, %v4921
        %v4923 = vlaneseq
        %v4924 = vshrl.u32 %v4923, 7
        %v4925 = vsub.s32 7, %v4924
        %v4926 = vrot.slane %v556, %v4925
        %v4959 = vmul.f32 %v4535, %v4802
        %v4960 = vmul.f32 %v4536, %v4806
        %v4961 = vmul.f32 %v4537, %v4810
        %v4962 = vmul.f32 %v4538, %v4814
        %v4963 = vmul.f32 %v4539, %v4818
        %v4964 = vmul.f32 %v4540, %v4822
        %v4965 = vmul.f32 %v4541, %v4826
        %v4966 = vmul.f32 %v4542, %v4830
        %v4967 = vmul.f32 %v4543, %v4834
        %v4968 = vmul.f32 %v4544, %v4838
        %v4969 = vmul.f32 %v4545, %v4842
        %v4970 = vmul.f32 %v4546, %v4846
        %v4971 = vmul.f32 %v4547, %v4850
        %v4972 = vmul.f32 %v4548, %v4854
        %v4973 = vmul.f32 %v4549, %v4858
        %v4974 = vmul.f32 %v4550, %v4862
        %v4975 = vmul.f32 %v4551, %v4866
        %v4976 = vmul.f32 %v4552, %v4870
        %v4977 = vmul.f32 %v4553, %v4874
        %v4978 = vmul.f32 %v4554, %v4878
        %v4979 = vmul.f32 %v4555, %v4882
        %v4980 = vmul.f32 %v4556, %v4886
        %v4981 = vmul.f32 %v4557, %v4890
        %v4982 = vmul.f32 %v4558, %v4894
        %v4983 = vmul.f32 %v4559, %v4898
        %v4984 = vmul.f32 %v4560, %v4902
        %v4985 = vmul.f32 %v4561, %v4906
        %v4986 = vmul.f32 %v4562, %v4910
        %v4987 = vmul.f32 %v4563, %v4914
        %v4988 = vmul.f32 %v4564, %v4918
        %v4989 = vmul.f32 %v4565, %v4922
        %v4990 = vmul.f32 %v4566, %v4926
        %4991 = vrot.lane.b32.xlu0 %v4959, 1
        %v4992 = vpop.permute.xlu0 %4991
        %4993 = vrot.lane.b32.xlu0 %v4960, 1
        %v4994 = vpop.permute.xlu0 %4993
        %4995 = vrot.lane.b32.xlu0 %v4961, 1
        %v4996 = vpop.permute.xlu0 %4995
        %4997 = vrot.lane.b32.xlu0 %v4962, 1
        %v4998 = vpop.permute.xlu0 %4997
        %4999 = vrot.lane.b32.xlu0 %v4963, 1
        %v5000 = vpop.permute.xlu0 %4999
        %5001 = vrot.lane.b32.xlu0 %v4964, 1
        %v5002 = vpop.permute.xlu0 %5001
        %5003 = vrot.lane.b32.xlu0 %v4965, 1
        %v5004 = vpop.permute.xlu0 %5003
        %5005 = vrot.lane.b32.xlu0 %v4966, 1
        %v5006 = vpop.permute.xlu0 %5005
        %5007 = vrot.lane.b32.xlu0 %v4967, 1
        %v5008 = vpop.permute.xlu0 %5007
        %5009 = vrot.lane.b32.xlu0 %v4968, 1
        %v5010 = vpop.permute.xlu0 %5009
        %5011 = vrot.lane.b32.xlu0 %v4969, 1
        %v5012 = vpop.permute.xlu0 %5011
        %5013 = vrot.lane.b32.xlu0 %v4970, 1
        %v5014 = vpop.permute.xlu0 %5013
        %5015 = vrot.lane.b32.xlu0 %v4971, 1
        %v5016 = vpop.permute.xlu0 %5015
        %5017 = vrot.lane.b32.xlu0 %v4972, 1
        %v5018 = vpop.permute.xlu0 %5017
        %5019 = vrot.lane.b32.xlu0 %v4973, 1
        %v5020 = vpop.permute.xlu0 %5019
        %5021 = vrot.lane.b32.xlu0 %v4974, 1
        %v5022 = vpop.permute.xlu0 %5021
        %5023 = vrot.lane.b32.xlu0 %v4975, 1
        %v5024 = vpop.permute.xlu0 %5023
        %5025 = vrot.lane.b32.xlu0 %v4976, 1
        %v5026 = vpop.permute.xlu0 %5025
        %5027 = vrot.lane.b32.xlu0 %v4977, 1
        %v5028 = vpop.permute.xlu0 %5027
        %5029 = vrot.lane.b32.xlu0 %v4978, 1
        %v5030 = vpop.permute.xlu0 %5029
        %5031 = vrot.lane.b32.xlu0 %v4979, 1
        %v5032 = vpop.permute.xlu0 %5031
        %5033 = vrot.lane.b32.xlu0 %v4980, 1
        %v5034 = vpop.permute.xlu0 %5033
        %5035 = vrot.lane.b32.xlu0 %v4981, 1
        %v5036 = vpop.permute.xlu0 %5035
        %5037 = vrot.lane.b32.xlu0 %v4982, 1
        %v5038 = vpop.permute.xlu0 %5037
        %5039 = vrot.lane.b32.xlu0 %v4983, 1
        %v5040 = vpop.permute.xlu0 %5039
        %5041 = vrot.lane.b32.xlu0 %v4984, 1
        %v5042 = vpop.permute.xlu0 %5041
        %5043 = vrot.lane.b32.xlu0 %v4985, 1
        %v5044 = vpop.permute.xlu0 %5043
        %5045 = vrot.lane.b32.xlu0 %v4986, 1
        %v5046 = vpop.permute.xlu0 %5045
        %5047 = vrot.lane.b32.xlu0 %v4987, 1
        %v5048 = vpop.permute.xlu0 %5047
        %5049 = vrot.lane.b32.xlu0 %v4988, 1
        %v5050 = vpop.permute.xlu0 %5049
        %5051 = vrot.lane.b32.xlu0 %v4989, 1
        %v5052 = vpop.permute.xlu0 %5051
        %5053 = vrot.lane.b32.xlu0 %v4990, 1
        %v5054 = vpop.permute.xlu0 %5053
        %v5055 = vsel %vm4633, %v5052, %v5054
        %v5056 = vsel %vm4633, %v5050, %v5052
        %v5057 = vsel %vm4633, %v5048, %v5050
        %v5058 = vsel %vm4633, %v5046, %v5048
        %v5059 = vsel %vm4633, %v5044, %v5046
        %v5060 = vsel %vm4633, %v5042, %v5044
        %v5061 = vsel %vm4633, %v5040, %v5042
        %v5062 = vsel %vm4633, %v5038, %v5040
        %v5063 = vsel %vm4633, %v5036, %v5038
        %v5064 = vsel %vm4633, %v5034, %v5036
        %v5065 = vsel %vm4633, %v5032, %v5034
        %v5066 = vsel %vm4633, %v5030, %v5032
        %v5067 = vsel %vm4633, %v5028, %v5030
        %v5068 = vsel %vm4633, %v5026, %v5028
        %v5069 = vsel %vm4633, %v5024, %v5026
        %v5070 = vsel %vm4633, %v5022, %v5024
        %v5071 = vsel %vm4633, %v5020, %v5022
        %v5072 = vsel %vm4633, %v5018, %v5020
        %v5073 = vsel %vm4633, %v5016, %v5018
        %v5074 = vsel %vm4633, %v5014, %v5016
        %v5075 = vsel %vm4633, %v5012, %v5014
        %v5076 = vsel %vm4633, %v5010, %v5012
        %v5077 = vsel %vm4633, %v5008, %v5010
        %v5078 = vsel %vm4633, %v5006, %v5008
        %v5079 = vsel %vm4633, %v5004, %v5006
        %v5080 = vsel %vm4633, %v5002, %v5004
        %v5081 = vsel %vm4633, %v5000, %v5002
        %v5082 = vsel %vm4633, %v4998, %v5000
        %v5083 = vsel %vm4633, %v4996, %v4998
        %v5084 = vsel %vm4633, %v4994, %v4996
        %v5085 = vsel %vm4633, %v4992, %v4994
        %v5086 = vsel %vm4633, %v5054, %v4992
        %5087 = vrot.lane.b32.xlu0 %v4959, 127
        %v5088 = vpop.permute.xlu0 %5087
        %5089 = vrot.lane.b32.xlu0 %v4960, 127
        %v5090 = vpop.permute.xlu0 %5089
        %5091 = vrot.lane.b32.xlu0 %v4961, 127
        %v5092 = vpop.permute.xlu0 %5091
        %5093 = vrot.lane.b32.xlu0 %v4962, 127
        %v5094 = vpop.permute.xlu0 %5093
        %5095 = vrot.lane.b32.xlu0 %v4963, 127
        %v5096 = vpop.permute.xlu0 %5095
        %5097 = vrot.lane.b32.xlu0 %v4964, 127
        %v5098 = vpop.permute.xlu0 %5097
        %5099 = vrot.lane.b32.xlu0 %v4965, 127
        %v5100 = vpop.permute.xlu0 %5099
        %5101 = vrot.lane.b32.xlu0 %v4966, 127
        %v5102 = vpop.permute.xlu0 %5101
        %5103 = vrot.lane.b32.xlu0 %v4967, 127
        %v5104 = vpop.permute.xlu0 %5103
        %5105 = vrot.lane.b32.xlu0 %v4968, 127
        %v5106 = vpop.permute.xlu0 %5105
        %5107 = vrot.lane.b32.xlu0 %v4969, 127
        %v5108 = vpop.permute.xlu0 %5107
        %5109 = vrot.lane.b32.xlu0 %v4970, 127
        %v5110 = vpop.permute.xlu0 %5109
        %5111 = vrot.lane.b32.xlu0 %v4971, 127
        %v5112 = vpop.permute.xlu0 %5111
        %5113 = vrot.lane.b32.xlu0 %v4972, 127
        %v5114 = vpop.permute.xlu0 %5113
        %5115 = vrot.lane.b32.xlu0 %v4973, 127
        %v5116 = vpop.permute.xlu0 %5115
        %5117 = vrot.lane.b32.xlu0 %v4974, 127
        %v5118 = vpop.permute.xlu0 %5117
        %5119 = vrot.lane.b32.xlu0 %v4975, 127
        %v5120 = vpop.permute.xlu0 %5119
        %5121 = vrot.lane.b32.xlu0 %v4976, 127
        %v5122 = vpop.permute.xlu0 %5121
        %5123 = vrot.lane.b32.xlu0 %v4977, 127
        %v5124 = vpop.permute.xlu0 %5123
        %5125 = vrot.lane.b32.xlu0 %v4978, 127
        %v5126 = vpop.permute.xlu0 %5125
        %5127 = vrot.lane.b32.xlu0 %v4979, 127
        %v5128 = vpop.permute.xlu0 %5127
        %5129 = vrot.lane.b32.xlu0 %v4980, 127
        %v5130 = vpop.permute.xlu0 %5129
        %5131 = vrot.lane.b32.xlu0 %v4981, 127
        %v5132 = vpop.permute.xlu0 %5131
        %5133 = vrot.lane.b32.xlu0 %v4982, 127
        %v5134 = vpop.permute.xlu0 %5133
        %5135 = vrot.lane.b32.xlu0 %v4983, 127
        %v5136 = vpop.permute.xlu0 %5135
        %5137 = vrot.lane.b32.xlu0 %v4984, 127
        %v5138 = vpop.permute.xlu0 %5137
        %5139 = vrot.lane.b32.xlu0 %v4985, 127
        %v5140 = vpop.permute.xlu0 %5139
        %5141 = vrot.lane.b32.xlu0 %v4986, 127
        %v5142 = vpop.permute.xlu0 %5141
        %5143 = vrot.lane.b32.xlu0 %v4987, 127
        %v5144 = vpop.permute.xlu0 %5143
        %5145 = vrot.lane.b32.xlu0 %v4988, 127
        %v5146 = vpop.permute.xlu0 %5145
        %5147 = vrot.lane.b32.xlu0 %v4989, 127
        %v5148 = vpop.permute.xlu0 %5147
        %5149 = vrot.lane.b32.xlu0 %v4990, 127
        %v5150 = vpop.permute.xlu0 %5149
        %v5151 = vsel %vm4730, %v5148, %v5150
        %v5152 = vsel %vm4730, %v5146, %v5148
        %v5153 = vsel %vm4730, %v5144, %v5146
        %v5154 = vsel %vm4730, %v5142, %v5144
        %v5155 = vsel %vm4730, %v5140, %v5142
        %v5156 = vsel %vm4730, %v5138, %v5140
        %v5157 = vsel %vm4730, %v5136, %v5138
        %v5158 = vsel %vm4730, %v5134, %v5136
        %v5159 = vsel %vm4730, %v5132, %v5134
        %v5160 = vsel %vm4730, %v5130, %v5132
        %v5161 = vsel %vm4730, %v5128, %v5130
        %v5162 = vsel %vm4730, %v5126, %v5128
        %v5163 = vsel %vm4730, %v5124, %v5126
        %v5164 = vsel %vm4730, %v5122, %v5124
        %v5165 = vsel %vm4730, %v5120, %v5122
        %v5166 = vsel %vm4730, %v5118, %v5120
        %v5167 = vsel %vm4730, %v5116, %v5118
        %v5168 = vsel %vm4730, %v5114, %v5116
        %v5169 = vsel %vm4730, %v5112, %v5114
        %v5170 = vsel %vm4730, %v5110, %v5112
        %v5171 = vsel %vm4730, %v5108, %v5110
        %v5172 = vsel %vm4730, %v5106, %v5108
        %v5173 = vsel %vm4730, %v5104, %v5106
        %v5174 = vsel %vm4730, %v5102, %v5104
        %v5175 = vsel %vm4730, %v5100, %v5102
        %v5176 = vsel %vm4730, %v5098, %v5100
        %v5177 = vsel %vm4730, %v5096, %v5098
        %v5178 = vsel %vm4730, %v5094, %v5096
        %v5179 = vsel %vm4730, %v5092, %v5094
        %v5180 = vsel %vm4730, %v5090, %v5092
        %v5181 = vsel %vm4730, %v5088, %v5090
        %v5182 = vsel %vm4730, %v5150, %v5088
        %v5183 = vadd.f32 %v5086, %v5181
        %v5184 = vadd.f32 %v5085, %v5180
        %v5185 = vadd.f32 %v5084, %v5179
        %v5186 = vadd.f32 %v5083, %v5178
        %v5187 = vadd.f32 %v5082, %v5177
        %v5188 = vadd.f32 %v5081, %v5176
        %v5189 = vadd.f32 %v5080, %v5175
        %v5190 = vadd.f32 %v5079, %v5174
        %v5191 = vadd.f32 %v5078, %v5173
        %v5192 = vadd.f32 %v5077, %v5172
        %v5193 = vadd.f32 %v5076, %v5171
        %v5194 = vadd.f32 %v5075, %v5170
        %v5195 = vadd.f32 %v5074, %v5169
        %v5196 = vadd.f32 %v5073, %v5168
        %v5197 = vadd.f32 %v5072, %v5167
        %v5198 = vadd.f32 %v5071, %v5166
        %v5199 = vadd.f32 %v5070, %v5165
        %v5200 = vadd.f32 %v5069, %v5164
        %v5201 = vadd.f32 %v5068, %v5163
        %v5202 = vadd.f32 %v5067, %v5162
        %v5203 = vadd.f32 %v5066, %v5161
        %v5204 = vadd.f32 %v5065, %v5160
        %v5205 = vadd.f32 %v5064, %v5159
        %v5206 = vadd.f32 %v5063, %v5158
        %v5207 = vadd.f32 %v5062, %v5157
        %v5208 = vadd.f32 %v5061, %v5156
        %v5209 = vadd.f32 %v5060, %v5155
        %v5210 = vadd.f32 %v5059, %v5154
        %v5211 = vadd.f32 %v5058, %v5153
        %v5212 = vadd.f32 %v5057, %v5152
        %v5213 = vadd.f32 %v5056, %v5151
        %v5214 = vadd.f32 %v5055, %v5182
        %v5215 = vmul.f32 %v5183, 2.0
        %v5216 = vmul.f32 %v5184, 2.0
        %v5217 = vmul.f32 %v5185, 2.0
        %v5218 = vmul.f32 %v5186, 2.0
        %v5219 = vmul.f32 %v5187, 2.0
        %v5220 = vmul.f32 %v5188, 2.0
        %v5221 = vmul.f32 %v5189, 2.0
        %v5222 = vmul.f32 %v5190, 2.0
        %v5223 = vmul.f32 %v5191, 2.0
        %v5224 = vmul.f32 %v5192, 2.0
        %v5225 = vmul.f32 %v5193, 2.0
        %v5226 = vmul.f32 %v5194, 2.0
        %v5227 = vmul.f32 %v5195, 2.0
        %v5228 = vmul.f32 %v5196, 2.0
        %v5229 = vmul.f32 %v5197, 2.0
        %v5230 = vmul.f32 %v5198, 2.0
        %v5231 = vmul.f32 %v5199, 2.0
        %v5232 = vmul.f32 %v5200, 2.0
        %v5233 = vmul.f32 %v5201, 2.0
        %v5234 = vmul.f32 %v5202, 2.0
        %v5235 = vmul.f32 %v5203, 2.0
        %v5236 = vmul.f32 %v5204, 2.0
        %v5237 = vmul.f32 %v5205, 2.0
        %v5238 = vmul.f32 %v5206, 2.0
        %v5239 = vmul.f32 %v5207, 2.0
        %v5240 = vmul.f32 %v5208, 2.0
        %v5241 = vmul.f32 %v5209, 2.0
        %v5242 = vmul.f32 %v5210, 2.0
        %v5243 = vmul.f32 %v5211, 2.0
        %v5244 = vmul.f32 %v5212, 2.0
        %v5245 = vmul.f32 %v5213, 2.0
        %v5246 = vmul.f32 %v5214, 2.0
        %v5247 = vsub.f32 %v4763, %v5215
        %v5248 = vsub.f32 %v4764, %v5216
        %v5249 = vsub.f32 %v4765, %v5217
        %v5250 = vsub.f32 %v4766, %v5218
        %v5251 = vsub.f32 %v4767, %v5219
        %v5252 = vsub.f32 %v4768, %v5220
        %v5253 = vsub.f32 %v4769, %v5221
        %v5254 = vsub.f32 %v4770, %v5222
        %v5255 = vsub.f32 %v4771, %v5223
        %v5256 = vsub.f32 %v4772, %v5224
        %v5257 = vsub.f32 %v4773, %v5225
        %v5258 = vsub.f32 %v4774, %v5226
        %v5259 = vsub.f32 %v4775, %v5227
        %v5260 = vsub.f32 %v4776, %v5228
        %v5261 = vsub.f32 %v4777, %v5229
        %v5262 = vsub.f32 %v4778, %v5230
        %v5263 = vsub.f32 %v4779, %v5231
        %v5264 = vsub.f32 %v4780, %v5232
        %v5265 = vsub.f32 %v4781, %v5233
        %v5266 = vsub.f32 %v4782, %v5234
        %v5267 = vsub.f32 %v4783, %v5235
        %v5268 = vsub.f32 %v4784, %v5236
        %v5269 = vsub.f32 %v4785, %v5237
        %v5270 = vsub.f32 %v4786, %v5238
        %v5271 = vsub.f32 %v4787, %v5239
        %v5272 = vsub.f32 %v4788, %v5240
        %v5273 = vsub.f32 %v4789, %v5241
        %v5274 = vsub.f32 %v4790, %v5242
        %v5275 = vsub.f32 %v4791, %v5243
        %v5276 = vsub.f32 %v4792, %v5244
        %v5277 = vsub.f32 %v4793, %v5245
        %v5278 = vsub.f32 %v4794, %v5246
        %v5279 = vmul.f32 %v4802, %v5247
        %v5280 = vmul.f32 %v4806, %v5248
        %v5281 = vmul.f32 %v4810, %v5249
        %v5282 = vmul.f32 %v4814, %v5250
        %v5283 = vmul.f32 %v4818, %v5251
        %v5284 = vmul.f32 %v4822, %v5252
        %v5285 = vmul.f32 %v4826, %v5253
        %v5286 = vmul.f32 %v4830, %v5254
        %v5287 = vmul.f32 %v4834, %v5255
        %v5288 = vmul.f32 %v4838, %v5256
        %v5289 = vmul.f32 %v4842, %v5257
        %v5290 = vmul.f32 %v4846, %v5258
        %v5291 = vmul.f32 %v4850, %v5259
        %v5292 = vmul.f32 %v4854, %v5260
        %v5293 = vmul.f32 %v4858, %v5261
        %v5294 = vmul.f32 %v4862, %v5262
        %v5295 = vmul.f32 %v4866, %v5263
        %v5296 = vmul.f32 %v4870, %v5264
        %v5297 = vmul.f32 %v4874, %v5265
        %v5298 = vmul.f32 %v4878, %v5266
        %v5299 = vmul.f32 %v4882, %v5267
        %v5300 = vmul.f32 %v4886, %v5268
        %v5301 = vmul.f32 %v4890, %v5269
        %v5302 = vmul.f32 %v4894, %v5270
        %v5303 = vmul.f32 %v4898, %v5271
        %v5304 = vmul.f32 %v4902, %v5272
        %v5305 = vmul.f32 %v4906, %v5273
        %v5306 = vmul.f32 %v4910, %v5274
        %v5307 = vmul.f32 %v4914, %v5275
        %v5308 = vmul.f32 %v4918, %v5276
        %v5309 = vmul.f32 %v4922, %v5277
        %v5310 = vmul.f32 %v4926, %v5278
        %v5311 = vadd.f32 %v4763, %v5279
        %v5312 = vadd.f32 %v4764, %v5280
        %v5313 = vadd.f32 %v4765, %v5281
        %v5314 = vadd.f32 %v4766, %v5282
        %v5315 = vadd.f32 %v4767, %v5283
        %v5316 = vadd.f32 %v4768, %v5284
        %v5317 = vadd.f32 %v4769, %v5285
        %v5318 = vadd.f32 %v4770, %v5286
        %v5319 = vadd.f32 %v4771, %v5287
        %v5320 = vadd.f32 %v4772, %v5288
        %v5321 = vadd.f32 %v4773, %v5289
        %v5322 = vadd.f32 %v4774, %v5290
        %v5323 = vadd.f32 %v4775, %v5291
        %v5324 = vadd.f32 %v4776, %v5292
        %v5325 = vadd.f32 %v4777, %v5293
        %v5326 = vadd.f32 %v4778, %v5294
        %v5327 = vadd.f32 %v4779, %v5295
        %v5328 = vadd.f32 %v4780, %v5296
        %v5329 = vadd.f32 %v4781, %v5297
        %v5330 = vadd.f32 %v4782, %v5298
        %v5331 = vadd.f32 %v4783, %v5299
        %v5332 = vadd.f32 %v4784, %v5300
        %v5333 = vadd.f32 %v4785, %v5301
        %v5334 = vadd.f32 %v4786, %v5302
        %v5335 = vadd.f32 %v4787, %v5303
        %v5336 = vadd.f32 %v4788, %v5304
        %v5337 = vadd.f32 %v4789, %v5305
        %v5338 = vadd.f32 %v4790, %v5306
        %v5339 = vadd.f32 %v4791, %v5307
        %v5340 = vadd.f32 %v4792, %v5308
        %v5341 = vadd.f32 %v4793, %v5309
        %v5342 = vadd.f32 %v4794, %v5310
        %v5343 = vmul.f32 %v4535, 0.45186275
        %v5344 = vmul.f32 %v4536, 0.45186275
        %v5345 = vmul.f32 %v4537, 0.45186275
        %v5346 = vmul.f32 %v4538, 0.45186275
        %v5347 = vmul.f32 %v4539, 0.45186275
        %v5348 = vmul.f32 %v4540, 0.45186275
        %v5349 = vmul.f32 %v4541, 0.45186275
        %v5350 = vmul.f32 %v4542, 0.45186275
        %v5351 = vmul.f32 %v4543, 0.45186275
        %v5352 = vmul.f32 %v4544, 0.45186275
        %v5353 = vmul.f32 %v4545, 0.45186275
        %v5354 = vmul.f32 %v4546, 0.45186275
        %v5355 = vmul.f32 %v4547, 0.45186275
        %v5356 = vmul.f32 %v4548, 0.45186275
        %v5357 = vmul.f32 %v4549, 0.45186275
        %v5358 = vmul.f32 %v4550, 0.45186275
        %v5359 = vmul.f32 %v4551, 0.45186275
        %v5360 = vmul.f32 %v4552, 0.45186275
        %v5361 = vmul.f32 %v4553, 0.45186275
        %v5362 = vmul.f32 %v4554, 0.45186275
        %v5363 = vmul.f32 %v4555, 0.45186275
        %v5364 = vmul.f32 %v4556, 0.45186275
        %v5365 = vmul.f32 %v4557, 0.45186275
        %v5366 = vmul.f32 %v4558, 0.45186275
        %v5367 = vmul.f32 %v4559, 0.45186275
        %v5368 = vmul.f32 %v4560, 0.45186275
        %v5369 = vmul.f32 %v4561, 0.45186275
        %v5370 = vmul.f32 %v4562, 0.45186275
        %v5371 = vmul.f32 %v4563, 0.45186275
        %v5372 = vmul.f32 %v4564, 0.45186275
        %v5373 = vmul.f32 %v4565, 0.45186275
        %v5374 = vmul.f32 %v4566, 0.45186275
        %v5375 = vmul.f32 %v5311, 0.27406862
        %v5376 = vmul.f32 %v5312, 0.27406862
        %v5377 = vmul.f32 %v5313, 0.27406862
        %v5378 = vmul.f32 %v5314, 0.27406862
        %v5379 = vmul.f32 %v5315, 0.27406862
        %v5380 = vmul.f32 %v5316, 0.27406862
        %v5381 = vmul.f32 %v5317, 0.27406862
        %v5382 = vmul.f32 %v5318, 0.27406862
        %v5383 = vmul.f32 %v5319, 0.27406862
        %v5384 = vmul.f32 %v5320, 0.27406862
        %v5385 = vmul.f32 %v5321, 0.27406862
        %v5386 = vmul.f32 %v5322, 0.27406862
        %v5387 = vmul.f32 %v5323, 0.27406862
        %v5388 = vmul.f32 %v5324, 0.27406862
        %v5389 = vmul.f32 %v5325, 0.27406862
        %v5390 = vmul.f32 %v5326, 0.27406862
        %v5391 = vmul.f32 %v5327, 0.27406862
        %v5392 = vmul.f32 %v5328, 0.27406862
        %v5393 = vmul.f32 %v5329, 0.27406862
        %v5394 = vmul.f32 %v5330, 0.27406862
        %v5395 = vmul.f32 %v5331, 0.27406862
        %v5396 = vmul.f32 %v5332, 0.27406862
        %v5397 = vmul.f32 %v5333, 0.27406862
        %v5398 = vmul.f32 %v5334, 0.27406862
        %v5399 = vmul.f32 %v5335, 0.27406862
        %v5400 = vmul.f32 %v5336, 0.27406862
        %v5401 = vmul.f32 %v5337, 0.27406862
        %v5402 = vmul.f32 %v5338, 0.27406862
        %v5403 = vmul.f32 %v5339, 0.27406862
        %v5404 = vmul.f32 %v5340, 0.27406862
        %v5405 = vmul.f32 %v5341, 0.27406862
        %v5406 = vmul.f32 %v5342, 0.27406862
        %v5407 = vadd.f32 %v5343, %v5375
        %v5408 = vadd.f32 %v5344, %v5376
        %v5409 = vadd.f32 %v5345, %v5377
        %v5410 = vadd.f32 %v5346, %v5378
        %v5411 = vadd.f32 %v5347, %v5379
        %v5412 = vadd.f32 %v5348, %v5380
        %v5413 = vadd.f32 %v5349, %v5381
        %v5414 = vadd.f32 %v5350, %v5382
        %v5415 = vadd.f32 %v5351, %v5383
        %v5416 = vadd.f32 %v5352, %v5384
        %v5417 = vadd.f32 %v5353, %v5385
        %v5418 = vadd.f32 %v5354, %v5386
        %v5419 = vadd.f32 %v5355, %v5387
        %v5420 = vadd.f32 %v5356, %v5388
        %v5421 = vadd.f32 %v5357, %v5389
        %v5422 = vadd.f32 %v5358, %v5390
        %v5423 = vadd.f32 %v5359, %v5391
        %v5424 = vadd.f32 %v5360, %v5392
        %v5425 = vadd.f32 %v5361, %v5393
        %v5426 = vadd.f32 %v5362, %v5394
        %v5427 = vadd.f32 %v5363, %v5395
        %v5428 = vadd.f32 %v5364, %v5396
        %v5429 = vadd.f32 %v5365, %v5397
        %v5430 = vadd.f32 %v5366, %v5398
        %v5431 = vadd.f32 %v5367, %v5399
        %v5432 = vadd.f32 %v5368, %v5400
        %v5433 = vadd.f32 %v5369, %v5401
        %v5434 = vadd.f32 %v5370, %v5402
        %v5435 = vadd.f32 %v5371, %v5403
        %v5436 = vadd.f32 %v5372, %v5404
        %v5437 = vadd.f32 %v5373, %v5405
        %v5438 = vadd.f32 %v5374, %v5406
        %5439 = vrot.lane.b32.xlu0 %v5407, 64
        %v5440 = vpop.permute.xlu0 %5439
        %5441 = vrot.lane.b32.xlu0 %v5408, 64
        %v5442 = vpop.permute.xlu0 %5441
        %5443 = vrot.lane.b32.xlu0 %v5409, 64
        %v5444 = vpop.permute.xlu0 %5443
        %5445 = vrot.lane.b32.xlu0 %v5410, 64
        %v5446 = vpop.permute.xlu0 %5445
        %5447 = vrot.lane.b32.xlu0 %v5411, 64
        %v5448 = vpop.permute.xlu0 %5447
        %5449 = vrot.lane.b32.xlu0 %v5412, 64
        %v5450 = vpop.permute.xlu0 %5449
        %5451 = vrot.lane.b32.xlu0 %v5413, 64
        %v5452 = vpop.permute.xlu0 %5451
        %5453 = vrot.lane.b32.xlu0 %v5414, 64
        %v5454 = vpop.permute.xlu0 %5453
        %5455 = vrot.lane.b32.xlu0 %v5415, 64
        %v5456 = vpop.permute.xlu0 %5455
        %5457 = vrot.lane.b32.xlu0 %v5416, 64
        %v5458 = vpop.permute.xlu0 %5457
        %5459 = vrot.lane.b32.xlu0 %v5417, 64
        %v5460 = vpop.permute.xlu0 %5459
        %5461 = vrot.lane.b32.xlu0 %v5418, 64
        %v5462 = vpop.permute.xlu0 %5461
        %5463 = vrot.lane.b32.xlu0 %v5419, 64
        %v5464 = vpop.permute.xlu0 %5463
        %5465 = vrot.lane.b32.xlu0 %v5420, 64
        %v5466 = vpop.permute.xlu0 %5465
        %5467 = vrot.lane.b32.xlu0 %v5421, 64
        %v5468 = vpop.permute.xlu0 %5467
        %5469 = vrot.lane.b32.xlu0 %v5422, 64
        %v5470 = vpop.permute.xlu0 %5469
        %5471 = vrot.lane.b32.xlu0 %v5423, 64
        %v5472 = vpop.permute.xlu0 %5471
        %5473 = vrot.lane.b32.xlu0 %v5424, 64
        %v5474 = vpop.permute.xlu0 %5473
        %5475 = vrot.lane.b32.xlu0 %v5425, 64
        %v5476 = vpop.permute.xlu0 %5475
        %5477 = vrot.lane.b32.xlu0 %v5426, 64
        %v5478 = vpop.permute.xlu0 %5477
        %5479 = vrot.lane.b32.xlu0 %v5427, 64
        %v5480 = vpop.permute.xlu0 %5479
        %5481 = vrot.lane.b32.xlu0 %v5428, 64
        %v5482 = vpop.permute.xlu0 %5481
        %5483 = vrot.lane.b32.xlu0 %v5429, 64
        %v5484 = vpop.permute.xlu0 %5483
        %5485 = vrot.lane.b32.xlu0 %v5430, 64
        %v5486 = vpop.permute.xlu0 %5485
        %5487 = vrot.lane.b32.xlu0 %v5431, 64
        %v5488 = vpop.permute.xlu0 %5487
        %5489 = vrot.lane.b32.xlu0 %v5432, 64
        %v5490 = vpop.permute.xlu0 %5489
        %5491 = vrot.lane.b32.xlu0 %v5433, 64
        %v5492 = vpop.permute.xlu0 %5491
        %5493 = vrot.lane.b32.xlu0 %v5434, 64
        %v5494 = vpop.permute.xlu0 %5493
        %5495 = vrot.lane.b32.xlu0 %v5435, 64
        %v5496 = vpop.permute.xlu0 %5495
        %5497 = vrot.lane.b32.xlu0 %v5436, 64
        %v5498 = vpop.permute.xlu0 %5497
        %5499 = vrot.lane.b32.xlu0 %v5437, 64
        %v5500 = vpop.permute.xlu0 %5499
        %5501 = vrot.lane.b32.xlu0 %v5438, 64
        %v5502 = vpop.permute.xlu0 %5501
        %vm5503 = vcmp.lt.s32.totalorder %v4632, 64
        %v5504 = vsel %vm5503, %v5500, %v5502
        %v5505 = vsel %vm5503, %v5498, %v5500
        %v5506 = vsel %vm5503, %v5496, %v5498
        %v5507 = vsel %vm5503, %v5494, %v5496
        %v5508 = vsel %vm5503, %v5492, %v5494
        %v5509 = vsel %vm5503, %v5490, %v5492
        %v5510 = vsel %vm5503, %v5488, %v5490
        %v5511 = vsel %vm5503, %v5486, %v5488
        %v5512 = vsel %vm5503, %v5484, %v5486
        %v5513 = vsel %vm5503, %v5482, %v5484
        %v5514 = vsel %vm5503, %v5480, %v5482
        %v5515 = vsel %vm5503, %v5478, %v5480
        %v5516 = vsel %vm5503, %v5476, %v5478
        %v5517 = vsel %vm5503, %v5474, %v5476
        %v5518 = vsel %vm5503, %v5472, %v5474
        %v5519 = vsel %vm5503, %v5470, %v5472
        %v5520 = vsel %vm5503, %v5468, %v5470
        %v5521 = vsel %vm5503, %v5466, %v5468
        %v5522 = vsel %vm5503, %v5464, %v5466
        %v5523 = vsel %vm5503, %v5462, %v5464
        %v5524 = vsel %vm5503, %v5460, %v5462
        %v5525 = vsel %vm5503, %v5458, %v5460
        %v5526 = vsel %vm5503, %v5456, %v5458
        %v5527 = vsel %vm5503, %v5454, %v5456
        %v5528 = vsel %vm5503, %v5452, %v5454
        %v5529 = vsel %vm5503, %v5450, %v5452
        %v5530 = vsel %vm5503, %v5448, %v5450
        %v5531 = vsel %vm5503, %v5446, %v5448
        %v5532 = vsel %vm5503, %v5444, %v5446
        %v5533 = vsel %vm5503, %v5442, %v5444
        %v5534 = vsel %vm5503, %v5440, %v5442
        %v5535 = vsel %vm5503, %v5502, %v5440
        %v5536 = vadd.f32 %v5535, %v5534
        %v5537 = vadd.f32 %v5534, %v5533
        %v5538 = vadd.f32 %v5533, %v5532
        %v5539 = vadd.f32 %v5532, %v5531
        %v5540 = vadd.f32 %v5531, %v5530
        %v5541 = vadd.f32 %v5530, %v5529
        %v5542 = vadd.f32 %v5529, %v5528
        %v5543 = vadd.f32 %v5528, %v5527
        %v5544 = vadd.f32 %v5527, %v5526
        %v5545 = vadd.f32 %v5526, %v5525
        %v5546 = vadd.f32 %v5525, %v5524
        %v5547 = vadd.f32 %v5524, %v5523
        %v5548 = vadd.f32 %v5523, %v5522
        %v5549 = vadd.f32 %v5522, %v5521
        %v5550 = vadd.f32 %v5521, %v5520
        %v5551 = vadd.f32 %v5520, %v5519
        %v5552 = vadd.f32 %v5519, %v5518
        %v5553 = vadd.f32 %v5518, %v5517
        %v5554 = vadd.f32 %v5517, %v5516
        %v5555 = vadd.f32 %v5516, %v5515
        %v5556 = vadd.f32 %v5515, %v5514
        %v5557 = vadd.f32 %v5514, %v5513
        %v5558 = vadd.f32 %v5513, %v5512
        %v5559 = vadd.f32 %v5512, %v5511
        %v5560 = vadd.f32 %v5511, %v5510
        %v5561 = vadd.f32 %v5510, %v5509
        %v5562 = vadd.f32 %v5509, %v5508
        %v5563 = vadd.f32 %v5508, %v5507
        %v5564 = vadd.f32 %v5507, %v5506
        %v5565 = vadd.f32 %v5506, %v5505
        %v5566 = vadd.f32 %v5505, %v5504
        %v5567 = vadd.f32 %v5504, %v5535
        %v5572 = vlaneseq
        %v5573 = vshrl.u32 %v5572, 7
        %v5574 = vsub.s32 0, %v5573
        %v5575 = vrot.slane %v558, %v5574
        %v5576 = vlaneseq
        %v5577 = vshrl.u32 %v5576, 7
        %v5578 = vsub.s32 1, %v5577
        %v5579 = vrot.slane %v558, %v5578
        %v5580 = vlaneseq
        %v5581 = vshrl.u32 %v5580, 7
        %v5582 = vsub.s32 2, %v5581
        %v5583 = vrot.slane %v558, %v5582
        %v5584 = vlaneseq
        %v5585 = vshrl.u32 %v5584, 7
        %v5586 = vsub.s32 3, %v5585
        %v5587 = vrot.slane %v558, %v5586
        %v5588 = vlaneseq
        %v5589 = vshrl.u32 %v5588, 7
        %v5590 = vsub.s32 4, %v5589
        %v5591 = vrot.slane %v558, %v5590
        %v5592 = vlaneseq
        %v5593 = vshrl.u32 %v5592, 7
        %v5594 = vsub.s32 5, %v5593
        %v5595 = vrot.slane %v558, %v5594
        %v5596 = vlaneseq
        %v5597 = vshrl.u32 %v5596, 7
        %v5598 = vsub.s32 6, %v5597
        %v5599 = vrot.slane %v558, %v5598
        %v5600 = vlaneseq
        %v5601 = vshrl.u32 %v5600, 7
        %v5602 = vsub.s32 7, %v5601
        %v5603 = vrot.slane %v558, %v5602
        %v5604 = vlaneseq
        %v5605 = vshrl.u32 %v5604, 7
        %v5606 = vsub.s32 0, %v5605
        %v5607 = vrot.slane %v560, %v5606
        %v5608 = vlaneseq
        %v5609 = vshrl.u32 %v5608, 7
        %v5610 = vsub.s32 1, %v5609
        %v5611 = vrot.slane %v560, %v5610
        %v5612 = vlaneseq
        %v5613 = vshrl.u32 %v5612, 7
        %v5614 = vsub.s32 2, %v5613
        %v5615 = vrot.slane %v560, %v5614
        %v5616 = vlaneseq
        %v5617 = vshrl.u32 %v5616, 7
        %v5618 = vsub.s32 3, %v5617
        %v5619 = vrot.slane %v560, %v5618
        %v5620 = vlaneseq
        %v5621 = vshrl.u32 %v5620, 7
        %v5622 = vsub.s32 4, %v5621
        %v5623 = vrot.slane %v560, %v5622
        %v5624 = vlaneseq
        %v5625 = vshrl.u32 %v5624, 7
        %v5626 = vsub.s32 5, %v5625
        %v5627 = vrot.slane %v560, %v5626
        %v5628 = vlaneseq
        %v5629 = vshrl.u32 %v5628, 7
        %v5630 = vsub.s32 6, %v5629
        %v5631 = vrot.slane %v560, %v5630
        %v5632 = vlaneseq
        %v5633 = vshrl.u32 %v5632, 7
        %v5634 = vsub.s32 7, %v5633
        %v5635 = vrot.slane %v560, %v5634
        %v5636 = vlaneseq
        %v5637 = vshrl.u32 %v5636, 7
        %v5638 = vsub.s32 0, %v5637
        %v5639 = vrot.slane %v562, %v5638
        %v5640 = vlaneseq
        %v5641 = vshrl.u32 %v5640, 7
        %v5642 = vsub.s32 1, %v5641
        %v5643 = vrot.slane %v562, %v5642
        %v5644 = vlaneseq
        %v5645 = vshrl.u32 %v5644, 7
        %v5646 = vsub.s32 2, %v5645
        %v5647 = vrot.slane %v562, %v5646
        %v5648 = vlaneseq
        %v5649 = vshrl.u32 %v5648, 7
        %v5650 = vsub.s32 3, %v5649
        %v5651 = vrot.slane %v562, %v5650
        %v5652 = vlaneseq
        %v5653 = vshrl.u32 %v5652, 7
        %v5654 = vsub.s32 4, %v5653
        %v5655 = vrot.slane %v562, %v5654
        %v5656 = vlaneseq
        %v5657 = vshrl.u32 %v5656, 7
        %v5658 = vsub.s32 5, %v5657
        %v5659 = vrot.slane %v562, %v5658
        %v5660 = vlaneseq
        %v5661 = vshrl.u32 %v5660, 7
        %v5662 = vsub.s32 6, %v5661
        %v5663 = vrot.slane %v562, %v5662
        %v5664 = vlaneseq
        %v5665 = vshrl.u32 %v5664, 7
        %v5666 = vsub.s32 7, %v5665
        %v5667 = vrot.slane %v562, %v5666
        %v5668 = vlaneseq
        %v5669 = vshrl.u32 %v5668, 7
        %v5670 = vsub.s32 0, %v5669
        %v5671 = vrot.slane %v564, %v5670
        %v5672 = vlaneseq
        %v5673 = vshrl.u32 %v5672, 7
        %v5674 = vsub.s32 1, %v5673
        %v5675 = vrot.slane %v564, %v5674
        %v5676 = vlaneseq
        %v5677 = vshrl.u32 %v5676, 7
        %v5678 = vsub.s32 2, %v5677
        %v5679 = vrot.slane %v564, %v5678
        %v5680 = vlaneseq
        %v5681 = vshrl.u32 %v5680, 7
        %v5682 = vsub.s32 3, %v5681
        %v5683 = vrot.slane %v564, %v5682
        %v5684 = vlaneseq
        %v5685 = vshrl.u32 %v5684, 7
        %v5686 = vsub.s32 4, %v5685
        %v5687 = vrot.slane %v564, %v5686
        %v5688 = vlaneseq
        %v5689 = vshrl.u32 %v5688, 7
        %v5690 = vsub.s32 5, %v5689
        %v5691 = vrot.slane %v564, %v5690
        %v5692 = vlaneseq
        %v5693 = vshrl.u32 %v5692, 7
        %v5694 = vsub.s32 6, %v5693
        %v5695 = vrot.slane %v564, %v5694
        %v5696 = vlaneseq
        %v5697 = vshrl.u32 %v5696, 7
        %v5698 = vsub.s32 7, %v5697
        %v5699 = vrot.slane %v564, %v5698
        %v5732 = vmul.f32 %v5407, %v5575
        %v5733 = vmul.f32 %v5408, %v5579
        %v5734 = vmul.f32 %v5409, %v5583
        %v5735 = vmul.f32 %v5410, %v5587
        %v5736 = vmul.f32 %v5411, %v5591
        %v5737 = vmul.f32 %v5412, %v5595
        %v5738 = vmul.f32 %v5413, %v5599
        %v5739 = vmul.f32 %v5414, %v5603
        %v5740 = vmul.f32 %v5415, %v5607
        %v5741 = vmul.f32 %v5416, %v5611
        %v5742 = vmul.f32 %v5417, %v5615
        %v5743 = vmul.f32 %v5418, %v5619
        %v5744 = vmul.f32 %v5419, %v5623
        %v5745 = vmul.f32 %v5420, %v5627
        %v5746 = vmul.f32 %v5421, %v5631
        %v5747 = vmul.f32 %v5422, %v5635
        %v5748 = vmul.f32 %v5423, %v5639
        %v5749 = vmul.f32 %v5424, %v5643
        %v5750 = vmul.f32 %v5425, %v5647
        %v5751 = vmul.f32 %v5426, %v5651
        %v5752 = vmul.f32 %v5427, %v5655
        %v5753 = vmul.f32 %v5428, %v5659
        %v5754 = vmul.f32 %v5429, %v5663
        %v5755 = vmul.f32 %v5430, %v5667
        %v5756 = vmul.f32 %v5431, %v5671
        %v5757 = vmul.f32 %v5432, %v5675
        %v5758 = vmul.f32 %v5433, %v5679
        %v5759 = vmul.f32 %v5434, %v5683
        %v5760 = vmul.f32 %v5435, %v5687
        %v5761 = vmul.f32 %v5436, %v5691
        %v5762 = vmul.f32 %v5437, %v5695
        %v5763 = vmul.f32 %v5438, %v5699
        %5764 = vrot.lane.b32.xlu0 %v5732, 64
        %v5765 = vpop.permute.xlu0 %5764
        %5766 = vrot.lane.b32.xlu0 %v5733, 64
        %v5767 = vpop.permute.xlu0 %5766
        %5768 = vrot.lane.b32.xlu0 %v5734, 64
        %v5769 = vpop.permute.xlu0 %5768
        %5770 = vrot.lane.b32.xlu0 %v5735, 64
        %v5771 = vpop.permute.xlu0 %5770
        %5772 = vrot.lane.b32.xlu0 %v5736, 64
        %v5773 = vpop.permute.xlu0 %5772
        %5774 = vrot.lane.b32.xlu0 %v5737, 64
        %v5775 = vpop.permute.xlu0 %5774
        %5776 = vrot.lane.b32.xlu0 %v5738, 64
        %v5777 = vpop.permute.xlu0 %5776
        %5778 = vrot.lane.b32.xlu0 %v5739, 64
        %v5779 = vpop.permute.xlu0 %5778
        %5780 = vrot.lane.b32.xlu0 %v5740, 64
        %v5781 = vpop.permute.xlu0 %5780
        %5782 = vrot.lane.b32.xlu0 %v5741, 64
        %v5783 = vpop.permute.xlu0 %5782
        %5784 = vrot.lane.b32.xlu0 %v5742, 64
        %v5785 = vpop.permute.xlu0 %5784
        %5786 = vrot.lane.b32.xlu0 %v5743, 64
        %v5787 = vpop.permute.xlu0 %5786
        %5788 = vrot.lane.b32.xlu0 %v5744, 64
        %v5789 = vpop.permute.xlu0 %5788
        %5790 = vrot.lane.b32.xlu0 %v5745, 64
        %v5791 = vpop.permute.xlu0 %5790
        %5792 = vrot.lane.b32.xlu0 %v5746, 64
        %v5793 = vpop.permute.xlu0 %5792
        %5794 = vrot.lane.b32.xlu0 %v5747, 64
        %v5795 = vpop.permute.xlu0 %5794
        %5796 = vrot.lane.b32.xlu0 %v5748, 64
        %v5797 = vpop.permute.xlu0 %5796
        %5798 = vrot.lane.b32.xlu0 %v5749, 64
        %v5799 = vpop.permute.xlu0 %5798
        %5800 = vrot.lane.b32.xlu0 %v5750, 64
        %v5801 = vpop.permute.xlu0 %5800
        %5802 = vrot.lane.b32.xlu0 %v5751, 64
        %v5803 = vpop.permute.xlu0 %5802
        %5804 = vrot.lane.b32.xlu0 %v5752, 64
        %v5805 = vpop.permute.xlu0 %5804
        %5806 = vrot.lane.b32.xlu0 %v5753, 64
        %v5807 = vpop.permute.xlu0 %5806
        %5808 = vrot.lane.b32.xlu0 %v5754, 64
        %v5809 = vpop.permute.xlu0 %5808
        %5810 = vrot.lane.b32.xlu0 %v5755, 64
        %v5811 = vpop.permute.xlu0 %5810
        %5812 = vrot.lane.b32.xlu0 %v5756, 64
        %v5813 = vpop.permute.xlu0 %5812
        %5814 = vrot.lane.b32.xlu0 %v5757, 64
        %v5815 = vpop.permute.xlu0 %5814
        %5816 = vrot.lane.b32.xlu0 %v5758, 64
        %v5817 = vpop.permute.xlu0 %5816
        %5818 = vrot.lane.b32.xlu0 %v5759, 64
        %v5819 = vpop.permute.xlu0 %5818
        %5820 = vrot.lane.b32.xlu0 %v5760, 64
        %v5821 = vpop.permute.xlu0 %5820
        %5822 = vrot.lane.b32.xlu0 %v5761, 64
        %v5823 = vpop.permute.xlu0 %5822
        %5824 = vrot.lane.b32.xlu0 %v5762, 64
        %v5825 = vpop.permute.xlu0 %5824
        %5826 = vrot.lane.b32.xlu0 %v5763, 64
        %v5827 = vpop.permute.xlu0 %5826
        %v5828 = vsel %vm5503, %v5825, %v5827
        %v5829 = vsel %vm5503, %v5823, %v5825
        %v5830 = vsel %vm5503, %v5821, %v5823
        %v5831 = vsel %vm5503, %v5819, %v5821
        %v5832 = vsel %vm5503, %v5817, %v5819
        %v5833 = vsel %vm5503, %v5815, %v5817
        %v5834 = vsel %vm5503, %v5813, %v5815
        %v5835 = vsel %vm5503, %v5811, %v5813
        %v5836 = vsel %vm5503, %v5809, %v5811
        %v5837 = vsel %vm5503, %v5807, %v5809
        %v5838 = vsel %vm5503, %v5805, %v5807
        %v5839 = vsel %vm5503, %v5803, %v5805
        %v5840 = vsel %vm5503, %v5801, %v5803
        %v5841 = vsel %vm5503, %v5799, %v5801
        %v5842 = vsel %vm5503, %v5797, %v5799
        %v5843 = vsel %vm5503, %v5795, %v5797
        %v5844 = vsel %vm5503, %v5793, %v5795
        %v5845 = vsel %vm5503, %v5791, %v5793
        %v5846 = vsel %vm5503, %v5789, %v5791
        %v5847 = vsel %vm5503, %v5787, %v5789
        %v5848 = vsel %vm5503, %v5785, %v5787
        %v5849 = vsel %vm5503, %v5783, %v5785
        %v5850 = vsel %vm5503, %v5781, %v5783
        %v5851 = vsel %vm5503, %v5779, %v5781
        %v5852 = vsel %vm5503, %v5777, %v5779
        %v5853 = vsel %vm5503, %v5775, %v5777
        %v5854 = vsel %vm5503, %v5773, %v5775
        %v5855 = vsel %vm5503, %v5771, %v5773
        %v5856 = vsel %vm5503, %v5769, %v5771
        %v5857 = vsel %vm5503, %v5767, %v5769
        %v5858 = vsel %vm5503, %v5765, %v5767
        %v5859 = vsel %vm5503, %v5827, %v5765
        %v5860 = vadd.f32 %v5859, %v5858
        %v5861 = vadd.f32 %v5858, %v5857
        %v5862 = vadd.f32 %v5857, %v5856
        %v5863 = vadd.f32 %v5856, %v5855
        %v5864 = vadd.f32 %v5855, %v5854
        %v5865 = vadd.f32 %v5854, %v5853
        %v5866 = vadd.f32 %v5853, %v5852
        %v5867 = vadd.f32 %v5852, %v5851
        %v5868 = vadd.f32 %v5851, %v5850
        %v5869 = vadd.f32 %v5850, %v5849
        %v5870 = vadd.f32 %v5849, %v5848
        %v5871 = vadd.f32 %v5848, %v5847
        %v5872 = vadd.f32 %v5847, %v5846
        %v5873 = vadd.f32 %v5846, %v5845
        %v5874 = vadd.f32 %v5845, %v5844
        %v5875 = vadd.f32 %v5844, %v5843
        %v5876 = vadd.f32 %v5843, %v5842
        %v5877 = vadd.f32 %v5842, %v5841
        %v5878 = vadd.f32 %v5841, %v5840
        %v5879 = vadd.f32 %v5840, %v5839
        %v5880 = vadd.f32 %v5839, %v5838
        %v5881 = vadd.f32 %v5838, %v5837
        %v5882 = vadd.f32 %v5837, %v5836
        %v5883 = vadd.f32 %v5836, %v5835
        %v5884 = vadd.f32 %v5835, %v5834
        %v5885 = vadd.f32 %v5834, %v5833
        %v5886 = vadd.f32 %v5833, %v5832
        %v5887 = vadd.f32 %v5832, %v5831
        %v5888 = vadd.f32 %v5831, %v5830
        %v5889 = vadd.f32 %v5830, %v5829
        %v5890 = vadd.f32 %v5829, %v5828
        %v5891 = vadd.f32 %v5828, %v5859
        %v5892 = vmul.f32 %v5860, 2.0
        %v5893 = vmul.f32 %v5861, 2.0
        %v5894 = vmul.f32 %v5862, 2.0
        %v5895 = vmul.f32 %v5863, 2.0
        %v5896 = vmul.f32 %v5864, 2.0
        %v5897 = vmul.f32 %v5865, 2.0
        %v5898 = vmul.f32 %v5866, 2.0
        %v5899 = vmul.f32 %v5867, 2.0
        %v5900 = vmul.f32 %v5868, 2.0
        %v5901 = vmul.f32 %v5869, 2.0
        %v5902 = vmul.f32 %v5870, 2.0
        %v5903 = vmul.f32 %v5871, 2.0
        %v5904 = vmul.f32 %v5872, 2.0
        %v5905 = vmul.f32 %v5873, 2.0
        %v5906 = vmul.f32 %v5874, 2.0
        %v5907 = vmul.f32 %v5875, 2.0
        %v5908 = vmul.f32 %v5876, 2.0
        %v5909 = vmul.f32 %v5877, 2.0
        %v5910 = vmul.f32 %v5878, 2.0
        %v5911 = vmul.f32 %v5879, 2.0
        %v5912 = vmul.f32 %v5880, 2.0
        %v5913 = vmul.f32 %v5881, 2.0
        %v5914 = vmul.f32 %v5882, 2.0
        %v5915 = vmul.f32 %v5883, 2.0
        %v5916 = vmul.f32 %v5884, 2.0
        %v5917 = vmul.f32 %v5885, 2.0
        %v5918 = vmul.f32 %v5886, 2.0
        %v5919 = vmul.f32 %v5887, 2.0
        %v5920 = vmul.f32 %v5888, 2.0
        %v5921 = vmul.f32 %v5889, 2.0
        %v5922 = vmul.f32 %v5890, 2.0
        %v5923 = vmul.f32 %v5891, 2.0
        %v5924 = vsub.f32 %v5536, %v5892
        %v5925 = vsub.f32 %v5537, %v5893
        %v5926 = vsub.f32 %v5538, %v5894
        %v5927 = vsub.f32 %v5539, %v5895
        %v5928 = vsub.f32 %v5540, %v5896
        %v5929 = vsub.f32 %v5541, %v5897
        %v5930 = vsub.f32 %v5542, %v5898
        %v5931 = vsub.f32 %v5543, %v5899
        %v5932 = vsub.f32 %v5544, %v5900
        %v5933 = vsub.f32 %v5545, %v5901
        %v5934 = vsub.f32 %v5546, %v5902
        %v5935 = vsub.f32 %v5547, %v5903
        %v5936 = vsub.f32 %v5548, %v5904
        %v5937 = vsub.f32 %v5549, %v5905
        %v5938 = vsub.f32 %v5550, %v5906
        %v5939 = vsub.f32 %v5551, %v5907
        %v5940 = vsub.f32 %v5552, %v5908
        %v5941 = vsub.f32 %v5553, %v5909
        %v5942 = vsub.f32 %v5554, %v5910
        %v5943 = vsub.f32 %v5555, %v5911
        %v5944 = vsub.f32 %v5556, %v5912
        %v5945 = vsub.f32 %v5557, %v5913
        %v5946 = vsub.f32 %v5558, %v5914
        %v5947 = vsub.f32 %v5559, %v5915
        %v5948 = vsub.f32 %v5560, %v5916
        %v5949 = vsub.f32 %v5561, %v5917
        %v5950 = vsub.f32 %v5562, %v5918
        %v5951 = vsub.f32 %v5563, %v5919
        %v5952 = vsub.f32 %v5564, %v5920
        %v5953 = vsub.f32 %v5565, %v5921
        %v5954 = vsub.f32 %v5566, %v5922
        %v5955 = vsub.f32 %v5567, %v5923
        %v5956 = vmul.f32 %v5575, %v5924
        %v5957 = vmul.f32 %v5579, %v5925
        %v5958 = vmul.f32 %v5583, %v5926
        %v5959 = vmul.f32 %v5587, %v5927
        %v5960 = vmul.f32 %v5591, %v5928
        %v5961 = vmul.f32 %v5595, %v5929
        %v5962 = vmul.f32 %v5599, %v5930
        %v5963 = vmul.f32 %v5603, %v5931
        %v5964 = vmul.f32 %v5607, %v5932
        %v5965 = vmul.f32 %v5611, %v5933
        %v5966 = vmul.f32 %v5615, %v5934
        %v5967 = vmul.f32 %v5619, %v5935
        %v5968 = vmul.f32 %v5623, %v5936
        %v5969 = vmul.f32 %v5627, %v5937
        %v5970 = vmul.f32 %v5631, %v5938
        %v5971 = vmul.f32 %v5635, %v5939
        %v5972 = vmul.f32 %v5639, %v5940
        %v5973 = vmul.f32 %v5643, %v5941
        %v5974 = vmul.f32 %v5647, %v5942
        %v5975 = vmul.f32 %v5651, %v5943
        %v5976 = vmul.f32 %v5655, %v5944
        %v5977 = vmul.f32 %v5659, %v5945
        %v5978 = vmul.f32 %v5663, %v5946
        %v5979 = vmul.f32 %v5667, %v5947
        %v5980 = vmul.f32 %v5671, %v5948
        %v5981 = vmul.f32 %v5675, %v5949
        %v5982 = vmul.f32 %v5679, %v5950
        %v5983 = vmul.f32 %v5683, %v5951
        %v5984 = vmul.f32 %v5687, %v5952
        %v5985 = vmul.f32 %v5691, %v5953
        %v5986 = vmul.f32 %v5695, %v5954
        %v5987 = vmul.f32 %v5699, %v5955
        %v5988 = vadd.f32 %v5536, %v5956
        %v5989 = vadd.f32 %v5537, %v5957
        %v5990 = vadd.f32 %v5538, %v5958
        %v5991 = vadd.f32 %v5539, %v5959
        %v5992 = vadd.f32 %v5540, %v5960
        %v5993 = vadd.f32 %v5541, %v5961
        %v5994 = vadd.f32 %v5542, %v5962
        %v5995 = vadd.f32 %v5543, %v5963
        %v5996 = vadd.f32 %v5544, %v5964
        %v5997 = vadd.f32 %v5545, %v5965
        %v5998 = vadd.f32 %v5546, %v5966
        %v5999 = vadd.f32 %v5547, %v5967
        %v6000 = vadd.f32 %v5548, %v5968
        %v6001 = vadd.f32 %v5549, %v5969
        %v6002 = vadd.f32 %v5550, %v5970
        %v6003 = vadd.f32 %v5551, %v5971
        %v6004 = vadd.f32 %v5552, %v5972
        %v6005 = vadd.f32 %v5553, %v5973
        %v6006 = vadd.f32 %v5554, %v5974
        %v6007 = vadd.f32 %v5555, %v5975
        %v6008 = vadd.f32 %v5556, %v5976
        %v6009 = vadd.f32 %v5557, %v5977
        %v6010 = vadd.f32 %v5558, %v5978
        %v6011 = vadd.f32 %v5559, %v5979
        %v6012 = vadd.f32 %v5560, %v5980
        %v6013 = vadd.f32 %v5561, %v5981
        %v6014 = vadd.f32 %v5562, %v5982
        %v6015 = vadd.f32 %v5563, %v5983
        %v6016 = vadd.f32 %v5564, %v5984
        %v6017 = vadd.f32 %v5565, %v5985
        %v6018 = vadd.f32 %v5566, %v5986
        %v6019 = vadd.f32 %v5567, %v5987
        %v6020 = vmul.f32 %v5407, 0.45186275
        %v6021 = vmul.f32 %v5408, 0.45186275
        %v6022 = vmul.f32 %v5409, 0.45186275
        %v6023 = vmul.f32 %v5410, 0.45186275
        %v6024 = vmul.f32 %v5411, 0.45186275
        %v6025 = vmul.f32 %v5412, 0.45186275
        %v6026 = vmul.f32 %v5413, 0.45186275
        %v6027 = vmul.f32 %v5414, 0.45186275
        %v6028 = vmul.f32 %v5415, 0.45186275
        %v6029 = vmul.f32 %v5416, 0.45186275
        %v6030 = vmul.f32 %v5417, 0.45186275
        %v6031 = vmul.f32 %v5418, 0.45186275
        %v6032 = vmul.f32 %v5419, 0.45186275
        %v6033 = vmul.f32 %v5420, 0.45186275
        %v6034 = vmul.f32 %v5421, 0.45186275
        %v6035 = vmul.f32 %v5422, 0.45186275
        %v6036 = vmul.f32 %v5423, 0.45186275
        %v6037 = vmul.f32 %v5424, 0.45186275
        %v6038 = vmul.f32 %v5425, 0.45186275
        %v6039 = vmul.f32 %v5426, 0.45186275
        %v6040 = vmul.f32 %v5427, 0.45186275
        %v6041 = vmul.f32 %v5428, 0.45186275
        %v6042 = vmul.f32 %v5429, 0.45186275
        %v6043 = vmul.f32 %v5430, 0.45186275
        %v6044 = vmul.f32 %v5431, 0.45186275
        %v6045 = vmul.f32 %v5432, 0.45186275
        %v6046 = vmul.f32 %v5433, 0.45186275
        %v6047 = vmul.f32 %v5434, 0.45186275
        %v6048 = vmul.f32 %v5435, 0.45186275
        %v6049 = vmul.f32 %v5436, 0.45186275
        %v6050 = vmul.f32 %v5437, 0.45186275
        %v6051 = vmul.f32 %v5438, 0.45186275
        %v6052 = vmul.f32 %v5988, 0.27406862
        %v6053 = vmul.f32 %v5989, 0.27406862
        %v6054 = vmul.f32 %v5990, 0.27406862
        %v6055 = vmul.f32 %v5991, 0.27406862
        %v6056 = vmul.f32 %v5992, 0.27406862
        %v6057 = vmul.f32 %v5993, 0.27406862
        %v6058 = vmul.f32 %v5994, 0.27406862
        %v6059 = vmul.f32 %v5995, 0.27406862
        %v6060 = vmul.f32 %v5996, 0.27406862
        %v6061 = vmul.f32 %v5997, 0.27406862
        %v6062 = vmul.f32 %v5998, 0.27406862
        %v6063 = vmul.f32 %v5999, 0.27406862
        %v6064 = vmul.f32 %v6000, 0.27406862
        %v6065 = vmul.f32 %v6001, 0.27406862
        %v6066 = vmul.f32 %v6002, 0.27406862
        %v6067 = vmul.f32 %v6003, 0.27406862
        %v6068 = vmul.f32 %v6004, 0.27406862
        %v6069 = vmul.f32 %v6005, 0.27406862
        %v6070 = vmul.f32 %v6006, 0.27406862
        %v6071 = vmul.f32 %v6007, 0.27406862
        %v6072 = vmul.f32 %v6008, 0.27406862
        %v6073 = vmul.f32 %v6009, 0.27406862
        %v6074 = vmul.f32 %v6010, 0.27406862
        %v6075 = vmul.f32 %v6011, 0.27406862
        %v6076 = vmul.f32 %v6012, 0.27406862
        %v6077 = vmul.f32 %v6013, 0.27406862
        %v6078 = vmul.f32 %v6014, 0.27406862
        %v6079 = vmul.f32 %v6015, 0.27406862
        %v6080 = vmul.f32 %v6016, 0.27406862
        %v6081 = vmul.f32 %v6017, 0.27406862
        %v6082 = vmul.f32 %v6018, 0.27406862
        %v6083 = vmul.f32 %v6019, 0.27406862
        %v6084 = vadd.f32 %v6020, %v6052
        %v6085 = vadd.f32 %v6021, %v6053
        %v6086 = vadd.f32 %v6022, %v6054
        %v6087 = vadd.f32 %v6023, %v6055
        %v6088 = vadd.f32 %v6024, %v6056
        %v6089 = vadd.f32 %v6025, %v6057
        %v6090 = vadd.f32 %v6026, %v6058
        %v6091 = vadd.f32 %v6027, %v6059
        %v6092 = vadd.f32 %v6028, %v6060
        %v6093 = vadd.f32 %v6029, %v6061
        %v6094 = vadd.f32 %v6030, %v6062
        %v6095 = vadd.f32 %v6031, %v6063
        %v6096 = vadd.f32 %v6032, %v6064
        %v6097 = vadd.f32 %v6033, %v6065
        %v6098 = vadd.f32 %v6034, %v6066
        %v6099 = vadd.f32 %v6035, %v6067
        %v6100 = vadd.f32 %v6036, %v6068
        %v6101 = vadd.f32 %v6037, %v6069
        %v6102 = vadd.f32 %v6038, %v6070
        %v6103 = vadd.f32 %v6039, %v6071
        %v6104 = vadd.f32 %v6040, %v6072
        %v6105 = vadd.f32 %v6041, %v6073
        %v6106 = vadd.f32 %v6042, %v6074
        %v6107 = vadd.f32 %v6043, %v6075
        %v6108 = vadd.f32 %v6044, %v6076
        %v6109 = vadd.f32 %v6045, %v6077
        %v6110 = vadd.f32 %v6046, %v6078
        %v6111 = vadd.f32 %v6047, %v6079
        %v6112 = vadd.f32 %v6048, %v6080
        %v6113 = vadd.f32 %v6049, %v6081
        %v6114 = vadd.f32 %v6050, %v6082
        %v6115 = vadd.f32 %v6051, %v6083
        %v6116 = vmul.f32 %v6084, %v4535
        %v6117 = vmul.f32 %v6085, %v4536
        %v6118 = vmul.f32 %v6086, %v4537
        %v6119 = vmul.f32 %v6087, %v4538
        %v6120 = vmul.f32 %v6088, %v4539
        %v6121 = vmul.f32 %v6089, %v4540
        %v6122 = vmul.f32 %v6090, %v4541
        %v6123 = vmul.f32 %v6091, %v4542
        %v6124 = vmul.f32 %v6092, %v4543
        %v6125 = vmul.f32 %v6093, %v4544
        %v6126 = vmul.f32 %v6094, %v4545
        %v6127 = vmul.f32 %v6095, %v4546
        %v6128 = vmul.f32 %v6096, %v4547
        %v6129 = vmul.f32 %v6097, %v4548
        %v6130 = vmul.f32 %v6098, %v4549
        %v6131 = vmul.f32 %v6099, %v4550
        %v6132 = vmul.f32 %v6100, %v4551
        %v6133 = vmul.f32 %v6101, %v4552
        %v6134 = vmul.f32 %v6102, %v4553
        %v6135 = vmul.f32 %v6103, %v4554
        %v6136 = vmul.f32 %v6104, %v4555
        %v6137 = vmul.f32 %v6105, %v4556
        %v6138 = vmul.f32 %v6106, %v4557
        %v6139 = vmul.f32 %v6107, %v4558
        %v6140 = vmul.f32 %v6108, %v4559
        %v6141 = vmul.f32 %v6109, %v4560
        %v6142 = vmul.f32 %v6110, %v4561
        %v6143 = vmul.f32 %v6111, %v4562
        %v6144 = vmul.f32 %v6112, %v4563
        %v6145 = vmul.f32 %v6113, %v4564
        %v6146 = vmul.f32 %v6114, %v4565
        %v6147 = vmul.f32 %v6115, %v4566
        %v6148 = vmul.f32 %v6116, %v772
        %v6149 = vmul.f32 %v6117, %v776
        %v6150 = vmul.f32 %v6118, %v780
        %v6151 = vmul.f32 %v6119, %v784
        %v6152 = vmul.f32 %v6120, %v788
        %v6153 = vmul.f32 %v6121, %v792
        %v6154 = vmul.f32 %v6122, %v796
        %v6155 = vmul.f32 %v6123, %v800
        %v6156 = vmul.f32 %v6124, %v804
        %v6157 = vmul.f32 %v6125, %v808
        %v6158 = vmul.f32 %v6126, %v812
        %v6159 = vmul.f32 %v6127, %v816
        %v6160 = vmul.f32 %v6128, %v820
        %v6161 = vmul.f32 %v6129, %v824
        %v6162 = vmul.f32 %v6130, %v828
        %v6163 = vmul.f32 %v6131, %v832
        %v6164 = vmul.f32 %v6132, %v836
        %v6165 = vmul.f32 %v6133, %v840
        %v6166 = vmul.f32 %v6134, %v844
        %v6167 = vmul.f32 %v6135, %v848
        %v6168 = vmul.f32 %v6136, %v852
        %v6169 = vmul.f32 %v6137, %v856
        %v6170 = vmul.f32 %v6138, %v860
        %v6171 = vmul.f32 %v6139, %v864
        %v6172 = vmul.f32 %v6140, %v868
        %v6173 = vmul.f32 %v6141, %v872
        %v6174 = vmul.f32 %v6142, %v876
        %v6175 = vmul.f32 %v6143, %v880
        %v6176 = vmul.f32 %v6144, %v884
        %v6177 = vmul.f32 %v6145, %v888
        %v6178 = vmul.f32 %v6146, %v892
        %v6179 = vmul.f32 %v6147, %v896
        %v6180 = vadd.f32 %v6148, %v6149
        %v6181 = vadd.f32 %v6180, %v6150
        %v6182 = vadd.f32 %v6181, %v6151
        %v6183 = vadd.f32 %v6182, %v6152
        %v6184 = vadd.f32 %v6183, %v6153
        %v6185 = vadd.f32 %v6184, %v6154
        %v6186 = vadd.f32 %v6185, %v6155
        %v6187 = vadd.f32 %v6186, %v6156
        %v6188 = vadd.f32 %v6187, %v6157
        %v6189 = vadd.f32 %v6188, %v6158
        %v6190 = vadd.f32 %v6189, %v6159
        %v6191 = vadd.f32 %v6190, %v6160
        %v6192 = vadd.f32 %v6191, %v6161
        %v6193 = vadd.f32 %v6192, %v6162
        %v6194 = vadd.f32 %v6193, %v6163
        %v6195 = vadd.f32 %v6194, %v6164
        %v6196 = vadd.f32 %v6195, %v6165
        %v6197 = vadd.f32 %v6196, %v6166
        %v6198 = vadd.f32 %v6197, %v6167
        %v6199 = vadd.f32 %v6198, %v6168
        %v6200 = vadd.f32 %v6199, %v6169
        %v6201 = vadd.f32 %v6200, %v6170
        %v6202 = vadd.f32 %v6201, %v6171
        %v6203 = vadd.f32 %v6202, %v6172
        %v6204 = vadd.f32 %v6203, %v6173
        %v6205 = vadd.f32 %v6204, %v6174
        %v6206 = vadd.f32 %v6205, %v6175
        %v6207 = vadd.f32 %v6206, %v6176
        %v6208 = vadd.f32 %v6207, %v6177
        %v6209 = vadd.f32 %v6208, %v6178
        %v6210 = vadd.f32 %v6209, %v6179
        %6211 = vadd.xlane.f32.xlu0 %v6210
        %v6212 = vpop.xlane.xlu0 %6211
        %v6213 = vrcp.pop %v6212
        %v6214 = vmul.f32 1.0, %v6213
        %v6215 = vmul.f32 %v2207, %v6148
        %v6216 = vmul.f32 %v2208, %v6149
        %v6217 = vmul.f32 %v2209, %v6150
        %v6218 = vmul.f32 %v2210, %v6151
        %v6219 = vmul.f32 %v2211, %v6152
        %v6220 = vmul.f32 %v2212, %v6153
        %v6221 = vmul.f32 %v2213, %v6154
        %v6222 = vmul.f32 %v2214, %v6155
        %v6223 = vmul.f32 %v2215, %v6156
        %v6224 = vmul.f32 %v2216, %v6157
        %v6225 = vmul.f32 %v2217, %v6158
        %v6226 = vmul.f32 %v2218, %v6159
        %v6227 = vmul.f32 %v2219, %v6160
        %v6228 = vmul.f32 %v2220, %v6161
        %v6229 = vmul.f32 %v2221, %v6162
        %v6230 = vmul.f32 %v2222, %v6163
        %v6231 = vmul.f32 %v2223, %v6164
        %v6232 = vmul.f32 %v2224, %v6165
        %v6233 = vmul.f32 %v2225, %v6166
        %v6234 = vmul.f32 %v2226, %v6167
        %v6235 = vmul.f32 %v2227, %v6168
        %v6236 = vmul.f32 %v2228, %v6169
        %v6237 = vmul.f32 %v2229, %v6170
        %v6238 = vmul.f32 %v2230, %v6171
        %v6239 = vmul.f32 %v2231, %v6172
        %v6240 = vmul.f32 %v2232, %v6173
        %v6241 = vmul.f32 %v2233, %v6174
        %v6242 = vmul.f32 %v2234, %v6175
        %v6243 = vmul.f32 %v2235, %v6176
        %v6244 = vmul.f32 %v2236, %v6177
        %v6245 = vmul.f32 %v2237, %v6178
        %v6246 = vmul.f32 %v2238, %v6179
        %v6247 = vadd.f32 %v6215, %v6216
        %v6248 = vadd.f32 %v6247, %v6217
        %v6249 = vadd.f32 %v6248, %v6218
        %v6250 = vadd.f32 %v6249, %v6219
        %v6251 = vadd.f32 %v6250, %v6220
        %v6252 = vadd.f32 %v6251, %v6221
        %v6253 = vadd.f32 %v6252, %v6222
        %v6254 = vadd.f32 %v6253, %v6223
        %v6255 = vadd.f32 %v6254, %v6224
        %v6256 = vadd.f32 %v6255, %v6225
        %v6257 = vadd.f32 %v6256, %v6226
        %v6258 = vadd.f32 %v6257, %v6227
        %v6259 = vadd.f32 %v6258, %v6228
        %v6260 = vadd.f32 %v6259, %v6229
        %v6261 = vadd.f32 %v6260, %v6230
        %v6262 = vadd.f32 %v6261, %v6231
        %v6263 = vadd.f32 %v6262, %v6232
        %v6264 = vadd.f32 %v6263, %v6233
        %v6265 = vadd.f32 %v6264, %v6234
        %v6266 = vadd.f32 %v6265, %v6235
        %v6267 = vadd.f32 %v6266, %v6236
        %v6268 = vadd.f32 %v6267, %v6237
        %v6269 = vadd.f32 %v6268, %v6238
        %v6270 = vadd.f32 %v6269, %v6239
        %v6271 = vadd.f32 %v6270, %v6240
        %v6272 = vadd.f32 %v6271, %v6241
        %v6273 = vadd.f32 %v6272, %v6242
        %v6274 = vadd.f32 %v6273, %v6243
        %v6275 = vadd.f32 %v6274, %v6244
        %v6276 = vadd.f32 %v6275, %v6245
        %v6277 = vadd.f32 %v6276, %v6246
        %6278 = vadd.xlane.f32.xlu0 %v6277
        %v6279 = vpop.xlane.xlu0 %6278
        %v6280 = vmul.f32 %v6279, %v6214
        %v6281 = vadd.f32 %v3751, 0.055
        %v6282 = vadd.f32 %v3752, 0.055
        %v6283 = vadd.f32 %v3753, 0.055
        %v6284 = vadd.f32 %v3754, 0.055
        %v6285 = vadd.f32 %v3755, 0.055
        %v6286 = vadd.f32 %v3756, 0.055
        %v6287 = vadd.f32 %v3757, 0.055
        %v6288 = vadd.f32 %v3758, 0.055
        %v6289 = vadd.f32 %v3759, 0.055
        %v6290 = vadd.f32 %v3760, 0.055
        %v6291 = vadd.f32 %v3761, 0.055
        %v6292 = vadd.f32 %v3762, 0.055
        %v6293 = vadd.f32 %v3763, 0.055
        %v6294 = vadd.f32 %v3764, 0.055
        %v6295 = vadd.f32 %v3765, 0.055
        %v6296 = vadd.f32 %v3766, 0.055
        %v6297 = vadd.f32 %v3767, 0.055
        %v6298 = vadd.f32 %v3768, 0.055
        %v6299 = vadd.f32 %v3769, 0.055
        %v6300 = vadd.f32 %v3770, 0.055
        %v6301 = vadd.f32 %v3771, 0.055
        %v6302 = vadd.f32 %v3772, 0.055
        %v6303 = vadd.f32 %v3773, 0.055
        %v6304 = vadd.f32 %v3774, 0.055
        %v6305 = vadd.f32 %v3775, 0.055
        %v6306 = vadd.f32 %v3776, 0.055
        %v6307 = vadd.f32 %v3777, 0.055
        %v6308 = vadd.f32 %v3778, 0.055
        %v6309 = vadd.f32 %v3779, 0.055
        %v6310 = vadd.f32 %v3780, 0.055
        %v6311 = vadd.f32 %v3781, 0.055
        %v6312 = vadd.f32 %v3782, 0.055
        %v6313 = vrcp.pop 1.055
        %v6314 = vmul.f32 %v6281, %v6313
        %v6315 = vmul.f32 %v6282, %v6313
        %v6316 = vmul.f32 %v6283, %v6313
        %v6317 = vmul.f32 %v6284, %v6313
        %v6318 = vmul.f32 %v6285, %v6313
        %v6319 = vmul.f32 %v6286, %v6313
        %v6320 = vmul.f32 %v6287, %v6313
        %v6321 = vmul.f32 %v6288, %v6313
        %v6322 = vmul.f32 %v6289, %v6313
        %v6323 = vmul.f32 %v6290, %v6313
        %v6324 = vmul.f32 %v6291, %v6313
        %v6325 = vmul.f32 %v6292, %v6313
        %v6326 = vmul.f32 %v6293, %v6313
        %v6327 = vmul.f32 %v6294, %v6313
        %v6328 = vmul.f32 %v6295, %v6313
        %v6329 = vmul.f32 %v6296, %v6313
        %v6330 = vmul.f32 %v6297, %v6313
        %v6331 = vmul.f32 %v6298, %v6313
        %v6332 = vmul.f32 %v6299, %v6313
        %v6333 = vmul.f32 %v6300, %v6313
        %v6334 = vmul.f32 %v6301, %v6313
        %v6335 = vmul.f32 %v6302, %v6313
        %v6336 = vmul.f32 %v6303, %v6313
        %v6337 = vmul.f32 %v6304, %v6313
        %v6338 = vmul.f32 %v6305, %v6313
        %v6339 = vmul.f32 %v6306, %v6313
        %v6340 = vmul.f32 %v6307, %v6313
        %v6341 = vmul.f32 %v6308, %v6313
        %v6342 = vmul.f32 %v6309, %v6313
        %v6343 = vmul.f32 %v6310, %v6313
        %v6344 = vmul.f32 %v6311, %v6313
        %v6345 = vmul.f32 %v6312, %v6313
        %v6346 = vmax.f32 %v6314, 1e-12
        %v6347 = vmax.f32 %v6315, 1e-12
        %v6348 = vmax.f32 %v6316, 1e-12
        %v6349 = vmax.f32 %v6317, 1e-12
        %v6350 = vmax.f32 %v6318, 1e-12
        %v6351 = vmax.f32 %v6319, 1e-12
        %v6352 = vmax.f32 %v6320, 1e-12
        %v6353 = vmax.f32 %v6321, 1e-12
        %v6354 = vmax.f32 %v6322, 1e-12
        %v6355 = vmax.f32 %v6323, 1e-12
        %v6356 = vmax.f32 %v6324, 1e-12
        %v6357 = vmax.f32 %v6325, 1e-12
        %v6358 = vmax.f32 %v6326, 1e-12
        %v6359 = vmax.f32 %v6327, 1e-12
        %v6360 = vmax.f32 %v6328, 1e-12
        %v6361 = vmax.f32 %v6329, 1e-12
        %v6362 = vmax.f32 %v6330, 1e-12
        %v6363 = vmax.f32 %v6331, 1e-12
        %v6364 = vmax.f32 %v6332, 1e-12
        %v6365 = vmax.f32 %v6333, 1e-12
        %v6366 = vmax.f32 %v6334, 1e-12
        %v6367 = vmax.f32 %v6335, 1e-12
        %v6368 = vmax.f32 %v6336, 1e-12
        %v6369 = vmax.f32 %v6337, 1e-12
        %v6370 = vmax.f32 %v6338, 1e-12
        %v6371 = vmax.f32 %v6339, 1e-12
        %v6372 = vmax.f32 %v6340, 1e-12
        %v6373 = vmax.f32 %v6341, 1e-12
        %v6374 = vmax.f32 %v6342, 1e-12
        %v6375 = vmax.f32 %v6343, 1e-12
        %v6376 = vmax.f32 %v6344, 1e-12
        %v6377 = vmax.f32 %v6345, 1e-12
        %v6378 = vlog2.pop %v6346
        %v6379 = vmul.f32 %v6378, 0.6931472
        %v6380 = vlog2.pop %v6347
        %v6381 = vmul.f32 %v6380, 0.6931472
        %v6382 = vlog2.pop %v6348
        %v6383 = vmul.f32 %v6382, 0.6931472
        %v6384 = vlog2.pop %v6349
        %v6385 = vmul.f32 %v6384, 0.6931472
        %v6386 = vlog2.pop %v6350
        %v6387 = vmul.f32 %v6386, 0.6931472
        %v6388 = vlog2.pop %v6351
        %v6389 = vmul.f32 %v6388, 0.6931472
        %v6390 = vlog2.pop %v6352
        %v6391 = vmul.f32 %v6390, 0.6931472
        %v6392 = vlog2.pop %v6353
        %v6393 = vmul.f32 %v6392, 0.6931472
        %v6394 = vlog2.pop %v6354
        %v6395 = vmul.f32 %v6394, 0.6931472
        %v6396 = vlog2.pop %v6355
        %v6397 = vmul.f32 %v6396, 0.6931472
        %v6398 = vlog2.pop %v6356
        %v6399 = vmul.f32 %v6398, 0.6931472
        %v6400 = vlog2.pop %v6357
        %v6401 = vmul.f32 %v6400, 0.6931472
        %v6402 = vlog2.pop %v6358
        %v6403 = vmul.f32 %v6402, 0.6931472
        %v6404 = vlog2.pop %v6359
        %v6405 = vmul.f32 %v6404, 0.6931472
        %v6406 = vlog2.pop %v6360
        %v6407 = vmul.f32 %v6406, 0.6931472
        %v6408 = vlog2.pop %v6361
        %v6409 = vmul.f32 %v6408, 0.6931472
        %v6410 = vlog2.pop %v6362
        %v6411 = vmul.f32 %v6410, 0.6931472
        %v6412 = vlog2.pop %v6363
        %v6413 = vmul.f32 %v6412, 0.6931472
        %v6414 = vlog2.pop %v6364
        %v6415 = vmul.f32 %v6414, 0.6931472
        %v6416 = vlog2.pop %v6365
        %v6417 = vmul.f32 %v6416, 0.6931472
        %v6418 = vlog2.pop %v6366
        %v6419 = vmul.f32 %v6418, 0.6931472
        %v6420 = vlog2.pop %v6367
        %v6421 = vmul.f32 %v6420, 0.6931472
        %v6422 = vlog2.pop %v6368
        %v6423 = vmul.f32 %v6422, 0.6931472
        %v6424 = vlog2.pop %v6369
        %v6425 = vmul.f32 %v6424, 0.6931472
        %v6426 = vlog2.pop %v6370
        %v6427 = vmul.f32 %v6426, 0.6931472
        %v6428 = vlog2.pop %v6371
        %v6429 = vmul.f32 %v6428, 0.6931472
        %v6430 = vlog2.pop %v6372
        %v6431 = vmul.f32 %v6430, 0.6931472
        %v6432 = vlog2.pop %v6373
        %v6433 = vmul.f32 %v6432, 0.6931472
        %v6434 = vlog2.pop %v6374
        %v6435 = vmul.f32 %v6434, 0.6931472
        %v6436 = vlog2.pop %v6375
        %v6437 = vmul.f32 %v6436, 0.6931472
        %v6438 = vlog2.pop %v6376
        %v6439 = vmul.f32 %v6438, 0.6931472
        %v6440 = vlog2.pop %v6377
        %v6441 = vmul.f32 %v6440, 0.6931472
        %v6442 = vmul.f32 %v6379, 2.4
        %v6443 = vmul.f32 %v6381, 2.4
        %v6444 = vmul.f32 %v6383, 2.4
        %v6445 = vmul.f32 %v6385, 2.4
        %v6446 = vmul.f32 %v6387, 2.4
        %v6447 = vmul.f32 %v6389, 2.4
        %v6448 = vmul.f32 %v6391, 2.4
        %v6449 = vmul.f32 %v6393, 2.4
        %v6450 = vmul.f32 %v6395, 2.4
        %v6451 = vmul.f32 %v6397, 2.4
        %v6452 = vmul.f32 %v6399, 2.4
        %v6453 = vmul.f32 %v6401, 2.4
        %v6454 = vmul.f32 %v6403, 2.4
        %v6455 = vmul.f32 %v6405, 2.4
        %v6456 = vmul.f32 %v6407, 2.4
        %v6457 = vmul.f32 %v6409, 2.4
        %v6458 = vmul.f32 %v6411, 2.4
        %v6459 = vmul.f32 %v6413, 2.4
        %v6460 = vmul.f32 %v6415, 2.4
        %v6461 = vmul.f32 %v6417, 2.4
        %v6462 = vmul.f32 %v6419, 2.4
        %v6463 = vmul.f32 %v6421, 2.4
        %v6464 = vmul.f32 %v6423, 2.4
        %v6465 = vmul.f32 %v6425, 2.4
        %v6466 = vmul.f32 %v6427, 2.4
        %v6467 = vmul.f32 %v6429, 2.4
        %v6468 = vmul.f32 %v6431, 2.4
        %v6469 = vmul.f32 %v6433, 2.4
        %v6470 = vmul.f32 %v6435, 2.4
        %v6471 = vmul.f32 %v6437, 2.4
        %v6472 = vmul.f32 %v6439, 2.4
        %v6473 = vmul.f32 %v6441, 2.4
        %v6474 = vmul.f32 %v6442, 1.442695
        %v6475 = vpow.pop %v6474
        %v6476 = vmul.f32 %v6443, 1.442695
        %v6477 = vpow.pop %v6476
        %v6478 = vmul.f32 %v6444, 1.442695
        %v6479 = vpow.pop %v6478
        %v6480 = vmul.f32 %v6445, 1.442695
        %v6481 = vpow.pop %v6480
        %v6482 = vmul.f32 %v6446, 1.442695
        %v6483 = vpow.pop %v6482
        %v6484 = vmul.f32 %v6447, 1.442695
        %v6485 = vpow.pop %v6484
        %v6486 = vmul.f32 %v6448, 1.442695
        %v6487 = vpow.pop %v6486
        %v6488 = vmul.f32 %v6449, 1.442695
        %v6489 = vpow.pop %v6488
        %v6490 = vmul.f32 %v6450, 1.442695
        %v6491 = vpow.pop %v6490
        %v6492 = vmul.f32 %v6451, 1.442695
        %v6493 = vpow.pop %v6492
        %v6494 = vmul.f32 %v6452, 1.442695
        %v6495 = vpow.pop %v6494
        %v6496 = vmul.f32 %v6453, 1.442695
        %v6497 = vpow.pop %v6496
        %v6498 = vmul.f32 %v6454, 1.442695
        %v6499 = vpow.pop %v6498
        %v6500 = vmul.f32 %v6455, 1.442695
        %v6501 = vpow.pop %v6500
        %v6502 = vmul.f32 %v6456, 1.442695
        %v6503 = vpow.pop %v6502
        %v6504 = vmul.f32 %v6457, 1.442695
        %v6505 = vpow.pop %v6504
        %v6506 = vmul.f32 %v6458, 1.442695
        %v6507 = vpow.pop %v6506
        %v6508 = vmul.f32 %v6459, 1.442695
        %v6509 = vpow.pop %v6508
        %v6510 = vmul.f32 %v6460, 1.442695
        %v6511 = vpow.pop %v6510
        %v6512 = vmul.f32 %v6461, 1.442695
        %v6513 = vpow.pop %v6512
        %v6514 = vmul.f32 %v6462, 1.442695
        %v6515 = vpow.pop %v6514
        %v6516 = vmul.f32 %v6463, 1.442695
        %v6517 = vpow.pop %v6516
        %v6518 = vmul.f32 %v6464, 1.442695
        %v6519 = vpow.pop %v6518
        %v6520 = vmul.f32 %v6465, 1.442695
        %v6521 = vpow.pop %v6520
        %v6522 = vmul.f32 %v6466, 1.442695
        %v6523 = vpow.pop %v6522
        %v6524 = vmul.f32 %v6467, 1.442695
        %v6525 = vpow.pop %v6524
        %v6526 = vmul.f32 %v6468, 1.442695
        %v6527 = vpow.pop %v6526
        %v6528 = vmul.f32 %v6469, 1.442695
        %v6529 = vpow.pop %v6528
        %v6530 = vmul.f32 %v6470, 1.442695
        %v6531 = vpow.pop %v6530
        %v6532 = vmul.f32 %v6471, 1.442695
        %v6533 = vpow.pop %v6532
        %v6534 = vmul.f32 %v6472, 1.442695
        %v6535 = vpow.pop %v6534
        %v6536 = vmul.f32 %v6473, 1.442695
        %v6537 = vpow.pop %v6536
        %vm6538 = vcmp.le.f32.partialorder %v3751, 0.04045
        %vm6539 = vcmp.le.f32.partialorder %v3752, 0.04045
        %vm6540 = vcmp.le.f32.partialorder %v3753, 0.04045
        %vm6541 = vcmp.le.f32.partialorder %v3754, 0.04045
        %vm6542 = vcmp.le.f32.partialorder %v3755, 0.04045
        %vm6543 = vcmp.le.f32.partialorder %v3756, 0.04045
        %vm6544 = vcmp.le.f32.partialorder %v3757, 0.04045
        %vm6545 = vcmp.le.f32.partialorder %v3758, 0.04045
        %vm6546 = vcmp.le.f32.partialorder %v3759, 0.04045
        %vm6547 = vcmp.le.f32.partialorder %v3760, 0.04045
        %vm6548 = vcmp.le.f32.partialorder %v3761, 0.04045
        %vm6549 = vcmp.le.f32.partialorder %v3762, 0.04045
        %vm6550 = vcmp.le.f32.partialorder %v3763, 0.04045
        %vm6551 = vcmp.le.f32.partialorder %v3764, 0.04045
        %vm6552 = vcmp.le.f32.partialorder %v3765, 0.04045
        %vm6553 = vcmp.le.f32.partialorder %v3766, 0.04045
        %vm6554 = vcmp.le.f32.partialorder %v3767, 0.04045
        %vm6555 = vcmp.le.f32.partialorder %v3768, 0.04045
        %vm6556 = vcmp.le.f32.partialorder %v3769, 0.04045
        %vm6557 = vcmp.le.f32.partialorder %v3770, 0.04045
        %vm6558 = vcmp.le.f32.partialorder %v3771, 0.04045
        %vm6559 = vcmp.le.f32.partialorder %v3772, 0.04045
        %vm6560 = vcmp.le.f32.partialorder %v3773, 0.04045
        %vm6561 = vcmp.le.f32.partialorder %v3774, 0.04045
        %vm6562 = vcmp.le.f32.partialorder %v3775, 0.04045
        %vm6563 = vcmp.le.f32.partialorder %v3776, 0.04045
        %vm6564 = vcmp.le.f32.partialorder %v3777, 0.04045
        %vm6565 = vcmp.le.f32.partialorder %v3778, 0.04045
        %vm6566 = vcmp.le.f32.partialorder %v3779, 0.04045
        %vm6567 = vcmp.le.f32.partialorder %v3780, 0.04045
        %vm6568 = vcmp.le.f32.partialorder %v3781, 0.04045
        %vm6569 = vcmp.le.f32.partialorder %v3782, 0.04045
        %v6570 = vrcp.pop 12.92
        %v6571 = vmul.f32 %v3751, %v6570
        %v6572 = vmul.f32 %v3752, %v6570
        %v6573 = vmul.f32 %v3753, %v6570
        %v6574 = vmul.f32 %v3754, %v6570
        %v6575 = vmul.f32 %v3755, %v6570
        %v6576 = vmul.f32 %v3756, %v6570
        %v6577 = vmul.f32 %v3757, %v6570
        %v6578 = vmul.f32 %v3758, %v6570
        %v6579 = vmul.f32 %v3759, %v6570
        %v6580 = vmul.f32 %v3760, %v6570
        %v6581 = vmul.f32 %v3761, %v6570
        %v6582 = vmul.f32 %v3762, %v6570
        %v6583 = vmul.f32 %v3763, %v6570
        %v6584 = vmul.f32 %v3764, %v6570
        %v6585 = vmul.f32 %v3765, %v6570
        %v6586 = vmul.f32 %v3766, %v6570
        %v6587 = vmul.f32 %v3767, %v6570
        %v6588 = vmul.f32 %v3768, %v6570
        %v6589 = vmul.f32 %v3769, %v6570
        %v6590 = vmul.f32 %v3770, %v6570
        %v6591 = vmul.f32 %v3771, %v6570
        %v6592 = vmul.f32 %v3772, %v6570
        %v6593 = vmul.f32 %v3773, %v6570
        %v6594 = vmul.f32 %v3774, %v6570
        %v6595 = vmul.f32 %v3775, %v6570
        %v6596 = vmul.f32 %v3776, %v6570
        %v6597 = vmul.f32 %v3777, %v6570
        %v6598 = vmul.f32 %v3778, %v6570
        %v6599 = vmul.f32 %v3779, %v6570
        %v6600 = vmul.f32 %v3780, %v6570
        %v6601 = vmul.f32 %v3781, %v6570
        %v6602 = vmul.f32 %v3782, %v6570
        %v6603 = vsel %vm6538, %v6571, %v6475
        %v6604 = vsel %vm6539, %v6572, %v6477
        %v6605 = vsel %vm6540, %v6573, %v6479
        %v6606 = vsel %vm6541, %v6574, %v6481
        %v6607 = vsel %vm6542, %v6575, %v6483
        %v6608 = vsel %vm6543, %v6576, %v6485
        %v6609 = vsel %vm6544, %v6577, %v6487
        %v6610 = vsel %vm6545, %v6578, %v6489
        %v6611 = vsel %vm6546, %v6579, %v6491
        %v6612 = vsel %vm6547, %v6580, %v6493
        %v6613 = vsel %vm6548, %v6581, %v6495
        %v6614 = vsel %vm6549, %v6582, %v6497
        %v6615 = vsel %vm6550, %v6583, %v6499
        %v6616 = vsel %vm6551, %v6584, %v6501
        %v6617 = vsel %vm6552, %v6585, %v6503
        %v6618 = vsel %vm6553, %v6586, %v6505
        %v6619 = vsel %vm6554, %v6587, %v6507
        %v6620 = vsel %vm6555, %v6588, %v6509
        %v6621 = vsel %vm6556, %v6589, %v6511
        %v6622 = vsel %vm6557, %v6590, %v6513
        %v6623 = vsel %vm6558, %v6591, %v6515
        %v6624 = vsel %vm6559, %v6592, %v6517
        %v6625 = vsel %vm6560, %v6593, %v6519
        %v6626 = vsel %vm6561, %v6594, %v6521
        %v6627 = vsel %vm6562, %v6595, %v6523
        %v6628 = vsel %vm6563, %v6596, %v6525
        %v6629 = vsel %vm6564, %v6597, %v6527
        %v6630 = vsel %vm6565, %v6598, %v6529
        %v6631 = vsel %vm6566, %v6599, %v6531
        %v6632 = vsel %vm6567, %v6600, %v6533
        %v6633 = vsel %vm6568, %v6601, %v6535
        %v6634 = vsel %vm6569, %v6602, %v6537
        %v6635 = vmul.f32 %v6603, %v6148
        %v6636 = vmul.f32 %v6604, %v6149
        %v6637 = vmul.f32 %v6605, %v6150
        %v6638 = vmul.f32 %v6606, %v6151
        %v6639 = vmul.f32 %v6607, %v6152
        %v6640 = vmul.f32 %v6608, %v6153
        %v6641 = vmul.f32 %v6609, %v6154
        %v6642 = vmul.f32 %v6610, %v6155
        %v6643 = vmul.f32 %v6611, %v6156
        %v6644 = vmul.f32 %v6612, %v6157
        %v6645 = vmul.f32 %v6613, %v6158
        %v6646 = vmul.f32 %v6614, %v6159
        %v6647 = vmul.f32 %v6615, %v6160
        %v6648 = vmul.f32 %v6616, %v6161
        %v6649 = vmul.f32 %v6617, %v6162
        %v6650 = vmul.f32 %v6618, %v6163
        %v6651 = vmul.f32 %v6619, %v6164
        %v6652 = vmul.f32 %v6620, %v6165
        %v6653 = vmul.f32 %v6621, %v6166
        %v6654 = vmul.f32 %v6622, %v6167
        %v6655 = vmul.f32 %v6623, %v6168
        %v6656 = vmul.f32 %v6624, %v6169
        %v6657 = vmul.f32 %v6625, %v6170
        %v6658 = vmul.f32 %v6626, %v6171
        %v6659 = vmul.f32 %v6627, %v6172
        %v6660 = vmul.f32 %v6628, %v6173
        %v6661 = vmul.f32 %v6629, %v6174
        %v6662 = vmul.f32 %v6630, %v6175
        %v6663 = vmul.f32 %v6631, %v6176
        %v6664 = vmul.f32 %v6632, %v6177
        %v6665 = vmul.f32 %v6633, %v6178
        %v6666 = vmul.f32 %v6634, %v6179
        %v6667 = vadd.f32 %v6635, %v6636
        %v6668 = vadd.f32 %v6667, %v6637
        %v6669 = vadd.f32 %v6668, %v6638
        %v6670 = vadd.f32 %v6669, %v6639
        %v6671 = vadd.f32 %v6670, %v6640
        %v6672 = vadd.f32 %v6671, %v6641
        %v6673 = vadd.f32 %v6672, %v6642
        %v6674 = vadd.f32 %v6673, %v6643
        %v6675 = vadd.f32 %v6674, %v6644
        %v6676 = vadd.f32 %v6675, %v6645
        %v6677 = vadd.f32 %v6676, %v6646
        %v6678 = vadd.f32 %v6677, %v6647
        %v6679 = vadd.f32 %v6678, %v6648
        %v6680 = vadd.f32 %v6679, %v6649
        %v6681 = vadd.f32 %v6680, %v6650
        %v6682 = vadd.f32 %v6681, %v6651
        %v6683 = vadd.f32 %v6682, %v6652
        %v6684 = vadd.f32 %v6683, %v6653
        %v6685 = vadd.f32 %v6684, %v6654
        %v6686 = vadd.f32 %v6685, %v6655
        %v6687 = vadd.f32 %v6686, %v6656
        %v6688 = vadd.f32 %v6687, %v6657
        %v6689 = vadd.f32 %v6688, %v6658
        %v6690 = vadd.f32 %v6689, %v6659
        %v6691 = vadd.f32 %v6690, %v6660
        %v6692 = vadd.f32 %v6691, %v6661
        %v6693 = vadd.f32 %v6692, %v6662
        %v6694 = vadd.f32 %v6693, %v6663
        %v6695 = vadd.f32 %v6694, %v6664
        %v6696 = vadd.f32 %v6695, %v6665
        %v6697 = vadd.f32 %v6696, %v6666
        %6698 = vadd.xlane.f32.xlu0 %v6697
        %v6699 = vpop.xlane.xlu0 %6698
        %v6700 = vmul.f32 %v6699, %v6214
        %v6701 = vadd.f32 %v6700, 1e-06
        %v6702 = vrcp.pop %v6701
        %v6703 = vmul.f32 %v6280, %v6702
        %v6704 = vmul.f32 %v6703, %v2142
        %v6705 = vsub.f32 1.0, %v6148
        %v6706 = vsub.f32 1.0, %v6149
        %v6707 = vsub.f32 1.0, %v6150
        %v6708 = vsub.f32 1.0, %v6151
        %v6709 = vsub.f32 1.0, %v6152
        %v6710 = vsub.f32 1.0, %v6153
        %v6711 = vsub.f32 1.0, %v6154
        %v6712 = vsub.f32 1.0, %v6155
        %v6713 = vsub.f32 1.0, %v6156
        %v6714 = vsub.f32 1.0, %v6157
        %v6715 = vsub.f32 1.0, %v6158
        %v6716 = vsub.f32 1.0, %v6159
        %v6717 = vsub.f32 1.0, %v6160
        %v6718 = vsub.f32 1.0, %v6161
        %v6719 = vsub.f32 1.0, %v6162
        %v6720 = vsub.f32 1.0, %v6163
        %v6721 = vsub.f32 1.0, %v6164
        %v6722 = vsub.f32 1.0, %v6165
        %v6723 = vsub.f32 1.0, %v6166
        %v6724 = vsub.f32 1.0, %v6167
        %v6725 = vsub.f32 1.0, %v6168
        %v6726 = vsub.f32 1.0, %v6169
        %v6727 = vsub.f32 1.0, %v6170
        %v6728 = vsub.f32 1.0, %v6171
        %v6729 = vsub.f32 1.0, %v6172
        %v6730 = vsub.f32 1.0, %v6173
        %v6731 = vsub.f32 1.0, %v6174
        %v6732 = vsub.f32 1.0, %v6175
        %v6733 = vsub.f32 1.0, %v6176
        %v6734 = vsub.f32 1.0, %v6177
        %v6735 = vsub.f32 1.0, %v6178
        %v6736 = vsub.f32 1.0, %v6179
        %v6737 = vmul.f32 %v6705, %v1025
        %v6738 = vmul.f32 %v6706, %v1026
        %v6739 = vmul.f32 %v6707, %v1027
        %v6740 = vmul.f32 %v6708, %v1028
        %v6741 = vmul.f32 %v6709, %v1029
        %v6742 = vmul.f32 %v6710, %v1030
        %v6743 = vmul.f32 %v6711, %v1031
        %v6744 = vmul.f32 %v6712, %v1032
        %v6745 = vmul.f32 %v6713, %v1033
        %v6746 = vmul.f32 %v6714, %v1034
        %v6747 = vmul.f32 %v6715, %v1035
        %v6748 = vmul.f32 %v6716, %v1036
        %v6749 = vmul.f32 %v6717, %v1037
        %v6750 = vmul.f32 %v6718, %v1038
        %v6751 = vmul.f32 %v6719, %v1039
        %v6752 = vmul.f32 %v6720, %v1040
        %v6753 = vmul.f32 %v6721, %v1041
        %v6754 = vmul.f32 %v6722, %v1042
        %v6755 = vmul.f32 %v6723, %v1043
        %v6756 = vmul.f32 %v6724, %v1044
        %v6757 = vmul.f32 %v6725, %v1045
        %v6758 = vmul.f32 %v6726, %v1046
        %v6759 = vmul.f32 %v6727, %v1047
        %v6760 = vmul.f32 %v6728, %v1048
        %v6761 = vmul.f32 %v6729, %v1049
        %v6762 = vmul.f32 %v6730, %v1050
        %v6763 = vmul.f32 %v6731, %v1051
        %v6764 = vmul.f32 %v6732, %v1052
        %v6765 = vmul.f32 %v6733, %v1053
        %v6766 = vmul.f32 %v6734, %v1054
        %v6767 = vmul.f32 %v6735, %v1055
        %v6768 = vmul.f32 %v6736, %v1056
        %v6769 = vmul.f32 %v6635, %v6704
        %v6770 = vmul.f32 %v6636, %v6704
        %v6771 = vmul.f32 %v6637, %v6704
        %v6772 = vmul.f32 %v6638, %v6704
        %v6773 = vmul.f32 %v6639, %v6704
        %v6774 = vmul.f32 %v6640, %v6704
        %v6775 = vmul.f32 %v6641, %v6704
        %v6776 = vmul.f32 %v6642, %v6704
        %v6777 = vmul.f32 %v6643, %v6704
        %v6778 = vmul.f32 %v6644, %v6704
        %v6779 = vmul.f32 %v6645, %v6704
        %v6780 = vmul.f32 %v6646, %v6704
        %v6781 = vmul.f32 %v6647, %v6704
        %v6782 = vmul.f32 %v6648, %v6704
        %v6783 = vmul.f32 %v6649, %v6704
        %v6784 = vmul.f32 %v6650, %v6704
        %v6785 = vmul.f32 %v6651, %v6704
        %v6786 = vmul.f32 %v6652, %v6704
        %v6787 = vmul.f32 %v6653, %v6704
        %v6788 = vmul.f32 %v6654, %v6704
        %v6789 = vmul.f32 %v6655, %v6704
        %v6790 = vmul.f32 %v6656, %v6704
        %v6791 = vmul.f32 %v6657, %v6704
        %v6792 = vmul.f32 %v6658, %v6704
        %v6793 = vmul.f32 %v6659, %v6704
        %v6794 = vmul.f32 %v6660, %v6704
        %v6795 = vmul.f32 %v6661, %v6704
        %v6796 = vmul.f32 %v6662, %v6704
        %v6797 = vmul.f32 %v6663, %v6704
        %v6798 = vmul.f32 %v6664, %v6704
        %v6799 = vmul.f32 %v6665, %v6704
        %v6800 = vmul.f32 %v6666, %v6704
        %v6801 = vadd.f32 %v6737, %v6769
        %v6802 = vadd.f32 %v6738, %v6770
        %v6803 = vadd.f32 %v6739, %v6771
        %v6804 = vadd.f32 %v6740, %v6772
        %v6805 = vadd.f32 %v6741, %v6773
        %v6806 = vadd.f32 %v6742, %v6774
        %v6807 = vadd.f32 %v6743, %v6775
        %v6808 = vadd.f32 %v6744, %v6776
        %v6809 = vadd.f32 %v6745, %v6777
        %v6810 = vadd.f32 %v6746, %v6778
        %v6811 = vadd.f32 %v6747, %v6779
        %v6812 = vadd.f32 %v6748, %v6780
        %v6813 = vadd.f32 %v6749, %v6781
        %v6814 = vadd.f32 %v6750, %v6782
        %v6815 = vadd.f32 %v6751, %v6783
        %v6816 = vadd.f32 %v6752, %v6784
        %v6817 = vadd.f32 %v6753, %v6785
        %v6818 = vadd.f32 %v6754, %v6786
        %v6819 = vadd.f32 %v6755, %v6787
        %v6820 = vadd.f32 %v6756, %v6788
        %v6821 = vadd.f32 %v6757, %v6789
        %v6822 = vadd.f32 %v6758, %v6790
        %v6823 = vadd.f32 %v6759, %v6791
        %v6824 = vadd.f32 %v6760, %v6792
        %v6825 = vadd.f32 %v6761, %v6793
        %v6826 = vadd.f32 %v6762, %v6794
        %v6827 = vadd.f32 %v6763, %v6795
        %v6828 = vadd.f32 %v6764, %v6796
        %v6829 = vadd.f32 %v6765, %v6797
        %v6830 = vadd.f32 %v6766, %v6798
        %v6831 = vadd.f32 %v6767, %v6799
        %v6832 = vadd.f32 %v6768, %v6800
        %6833 = vst [vmem:[%s427] sm:$0xff] %v1025
        %6834 = vst [vmem:[%s427 + $0x8] sm:$0xff] %v1026
        %6835 = vst [vmem:[%s427 + $0x10] sm:$0xff] %v1027
        %6836 = vst [vmem:[%s427 + $0x18] sm:$0xff] %v1028
        %6837 = vst [vmem:[%s427 + $0x20] sm:$0xff] %v1029
        %6838 = vst [vmem:[%s427 + $0x28] sm:$0xff] %v1030
        %6839 = vst [vmem:[%s427 + $0x30] sm:$0xff] %v1031
        %6840 = vst [vmem:[%s427 + $0x38] sm:$0xff] %v1032
        %6841 = vst [vmem:[%s427 + $0x40] sm:$0xff] %v1033
        %6842 = vst [vmem:[%s427 + $0x48] sm:$0xff] %v1034
        %6843 = vst [vmem:[%s427 + $0x50] sm:$0xff] %v1035
        %6844 = vst [vmem:[%s427 + $0x58] sm:$0xff] %v1036
        %6845 = vst [vmem:[%s427 + $0x60] sm:$0xff] %v1037
        %6846 = vst [vmem:[%s427 + $0x68] sm:$0xff] %v1038
        %6847 = vst [vmem:[%s427 + $0x70] sm:$0xff] %v1039
        %6848 = vst [vmem:[%s427 + $0x78] sm:$0xff] %v1040
        %6849 = vst [vmem:[%s427 + $0x80] sm:$0xff] %v1041
        %6850 = vst [vmem:[%s427 + $0x88] sm:$0xff] %v1042
        %6851 = vst [vmem:[%s427 + $0x90] sm:$0xff] %v1043
        %6852 = vst [vmem:[%s427 + $0x98] sm:$0xff] %v1044
        %6853 = vst [vmem:[%s427 + $0xa0] sm:$0xff] %v1045
        %6854 = vst [vmem:[%s427 + $0xa8] sm:$0xff] %v1046
        %6855 = vst [vmem:[%s427 + $0xb0] sm:$0xff] %v1047
        %6856 = vst [vmem:[%s427 + $0xb8] sm:$0xff] %v1048
        %6857 = vst [vmem:[%s427 + $0xc0] sm:$0xff] %v1049
        %6858 = vst [vmem:[%s427 + $0xc8] sm:$0xff] %v1050
        %6859 = vst [vmem:[%s427 + $0xd0] sm:$0xff] %v1051
        %6860 = vst [vmem:[%s427 + $0xd8] sm:$0xff] %v1052
        %6861 = vst [vmem:[%s427 + $0xe0] sm:$0xff] %v1053
        %6862 = vst [vmem:[%s427 + $0xe8] sm:$0xff] %v1054
        %6863 = vst [vmem:[%s427 + $0xf0] sm:$0xff] %v1055
        %6864 = vst [vmem:[%s427 + $0xf8] sm:$0xff] %v1056
        %6865 = vst [vmem:[%s434] sm:$0xff] %v3751
        %6866 = vst [vmem:[%s434 + $0x8] sm:$0xff] %v3752
        %6867 = vst [vmem:[%s434 + $0x10] sm:$0xff] %v3753
        %6868 = vst [vmem:[%s434 + $0x18] sm:$0xff] %v3754
        %6869 = vst [vmem:[%s434 + $0x20] sm:$0xff] %v3755
        %6870 = vst [vmem:[%s434 + $0x28] sm:$0xff] %v3756
        %6871 = vst [vmem:[%s434 + $0x30] sm:$0xff] %v3757
        %6872 = vst [vmem:[%s434 + $0x38] sm:$0xff] %v3758
        %6873 = vst [vmem:[%s434 + $0x40] sm:$0xff] %v3759
        %6874 = vst [vmem:[%s434 + $0x48] sm:$0xff] %v3760
        %6875 = vst [vmem:[%s434 + $0x50] sm:$0xff] %v3761
        %6876 = vst [vmem:[%s434 + $0x58] sm:$0xff] %v3762
        %6877 = vst [vmem:[%s434 + $0x60] sm:$0xff] %v3763
        %6878 = vst [vmem:[%s434 + $0x68] sm:$0xff] %v3764
        %6879 = vst [vmem:[%s434 + $0x70] sm:$0xff] %v3765
        %6880 = vst [vmem:[%s434 + $0x78] sm:$0xff] %v3766
        %6881 = vst [vmem:[%s434 + $0x80] sm:$0xff] %v3767
        %6882 = vst [vmem:[%s434 + $0x88] sm:$0xff] %v3768
        %6883 = vst [vmem:[%s434 + $0x90] sm:$0xff] %v3769
        %6884 = vst [vmem:[%s434 + $0x98] sm:$0xff] %v3770
        %6885 = vst [vmem:[%s434 + $0xa0] sm:$0xff] %v3771
        %6886 = vst [vmem:[%s434 + $0xa8] sm:$0xff] %v3772
        %6887 = vst [vmem:[%s434 + $0xb0] sm:$0xff] %v3773
        %6888 = vst [vmem:[%s434 + $0xb8] sm:$0xff] %v3774
        %6889 = vst [vmem:[%s434 + $0xc0] sm:$0xff] %v3775
        %6890 = vst [vmem:[%s434 + $0xc8] sm:$0xff] %v3776
        %6891 = vst [vmem:[%s434 + $0xd0] sm:$0xff] %v3777
        %6892 = vst [vmem:[%s434 + $0xd8] sm:$0xff] %v3778
        %6893 = vst [vmem:[%s434 + $0xe0] sm:$0xff] %v3779
        %6894 = vst [vmem:[%s434 + $0xe8] sm:$0xff] %v3780
        %6895 = vst [vmem:[%s434 + $0xf0] sm:$0xff] %v3781
        %6896 = vst [vmem:[%s434 + $0xf8] sm:$0xff] %v3782
        %6897 = vst [vmem:[%s441] sm:$0xff] %v6801
        %6898 = vst [vmem:[%s441 + $0x8] sm:$0xff] %v6802
        %6899 = vst [vmem:[%s441 + $0x10] sm:$0xff] %v6803
        %6900 = vst [vmem:[%s441 + $0x18] sm:$0xff] %v6804
        %6901 = vst [vmem:[%s441 + $0x20] sm:$0xff] %v6805
        %6902 = vst [vmem:[%s441 + $0x28] sm:$0xff] %v6806
        %6903 = vst [vmem:[%s441 + $0x30] sm:$0xff] %v6807
        %6904 = vst [vmem:[%s441 + $0x38] sm:$0xff] %v6808
        %6905 = vst [vmem:[%s441 + $0x40] sm:$0xff] %v6809
        %6906 = vst [vmem:[%s441 + $0x48] sm:$0xff] %v6810
        %6907 = vst [vmem:[%s441 + $0x50] sm:$0xff] %v6811
        %6908 = vst [vmem:[%s441 + $0x58] sm:$0xff] %v6812
        %6909 = vst [vmem:[%s441 + $0x60] sm:$0xff] %v6813
        %6910 = vst [vmem:[%s441 + $0x68] sm:$0xff] %v6814
        %6911 = vst [vmem:[%s441 + $0x70] sm:$0xff] %v6815
        %6912 = vst [vmem:[%s441 + $0x78] sm:$0xff] %v6816
        %6913 = vst [vmem:[%s441 + $0x80] sm:$0xff] %v6817
        %6914 = vst [vmem:[%s441 + $0x88] sm:$0xff] %v6818
        %6915 = vst [vmem:[%s441 + $0x90] sm:$0xff] %v6819
        %6916 = vst [vmem:[%s441 + $0x98] sm:$0xff] %v6820
        %6917 = vst [vmem:[%s441 + $0xa0] sm:$0xff] %v6821
        %6918 = vst [vmem:[%s441 + $0xa8] sm:$0xff] %v6822
        %6919 = vst [vmem:[%s441 + $0xb0] sm:$0xff] %v6823
        %6920 = vst [vmem:[%s441 + $0xb8] sm:$0xff] %v6824
        %6921 = vst [vmem:[%s441 + $0xc0] sm:$0xff] %v6825
        %6922 = vst [vmem:[%s441 + $0xc8] sm:$0xff] %v6826
        %6923 = vst [vmem:[%s441 + $0xd0] sm:$0xff] %v6827
        %6924 = vst [vmem:[%s441 + $0xd8] sm:$0xff] %v6828
        %6925 = vst [vmem:[%s441 + $0xe0] sm:$0xff] %v6829
        %6926 = vst [vmem:[%s441 + $0xe8] sm:$0xff] %v6830
        %6927 = vst [vmem:[%s441 + $0xf0] sm:$0xff] %v6831
        %6928 = vst [vmem:[%s441 + $0xf8] sm:$0xff] %v6832
        %v6929 = vmul.f32 %v6116, %v1264
        %v6930 = vmul.f32 %v6117, %v1268
        %v6931 = vmul.f32 %v6118, %v1272
        %v6932 = vmul.f32 %v6119, %v1276
        %v6933 = vmul.f32 %v6120, %v1280
        %v6934 = vmul.f32 %v6121, %v1284
        %v6935 = vmul.f32 %v6122, %v1288
        %v6936 = vmul.f32 %v6123, %v1292
        %v6937 = vmul.f32 %v6124, %v1296
        %v6938 = vmul.f32 %v6125, %v1300
        %v6939 = vmul.f32 %v6126, %v1304
        %v6940 = vmul.f32 %v6127, %v1308
        %v6941 = vmul.f32 %v6128, %v1312
        %v6942 = vmul.f32 %v6129, %v1316
        %v6943 = vmul.f32 %v6130, %v1320
        %v6944 = vmul.f32 %v6131, %v1324
        %v6945 = vmul.f32 %v6132, %v1328
        %v6946 = vmul.f32 %v6133, %v1332
        %v6947 = vmul.f32 %v6134, %v1336
        %v6948 = vmul.f32 %v6135, %v1340
        %v6949 = vmul.f32 %v6136, %v1344
        %v6950 = vmul.f32 %v6137, %v1348
        %v6951 = vmul.f32 %v6138, %v1352
        %v6952 = vmul.f32 %v6139, %v1356
        %v6953 = vmul.f32 %v6140, %v1360
        %v6954 = vmul.f32 %v6141, %v1364
        %v6955 = vmul.f32 %v6142, %v1368
        %v6956 = vmul.f32 %v6143, %v1372
        %v6957 = vmul.f32 %v6144, %v1376
        %v6958 = vmul.f32 %v6145, %v1380
        %v6959 = vmul.f32 %v6146, %v1384
        %v6960 = vmul.f32 %v6147, %v1388
        %v6961 = vadd.f32 %v6929, %v6930
        %v6962 = vadd.f32 %v6961, %v6931
        %v6963 = vadd.f32 %v6962, %v6932
        %v6964 = vadd.f32 %v6963, %v6933
        %v6965 = vadd.f32 %v6964, %v6934
        %v6966 = vadd.f32 %v6965, %v6935
        %v6967 = vadd.f32 %v6966, %v6936
        %v6968 = vadd.f32 %v6967, %v6937
        %v6969 = vadd.f32 %v6968, %v6938
        %v6970 = vadd.f32 %v6969, %v6939
        %v6971 = vadd.f32 %v6970, %v6940
        %v6972 = vadd.f32 %v6971, %v6941
        %v6973 = vadd.f32 %v6972, %v6942
        %v6974 = vadd.f32 %v6973, %v6943
        %v6975 = vadd.f32 %v6974, %v6944
        %v6976 = vadd.f32 %v6975, %v6945
        %v6977 = vadd.f32 %v6976, %v6946
        %v6978 = vadd.f32 %v6977, %v6947
        %v6979 = vadd.f32 %v6978, %v6948
        %v6980 = vadd.f32 %v6979, %v6949
        %v6981 = vadd.f32 %v6980, %v6950
        %v6982 = vadd.f32 %v6981, %v6951
        %v6983 = vadd.f32 %v6982, %v6952
        %v6984 = vadd.f32 %v6983, %v6953
        %v6985 = vadd.f32 %v6984, %v6954
        %v6986 = vadd.f32 %v6985, %v6955
        %v6987 = vadd.f32 %v6986, %v6956
        %v6988 = vadd.f32 %v6987, %v6957
        %v6989 = vadd.f32 %v6988, %v6958
        %v6990 = vadd.f32 %v6989, %v6959
        %v6991 = vadd.f32 %v6990, %v6960
        %6992 = vadd.xlane.f32.xlu0 %v6991
        %v6993 = vpop.xlane.xlu0 %6992
        %v6994 = vrcp.pop %v6993
        %v6995 = vmul.f32 1.0, %v6994
        %v6996 = vmul.f32 %v2655, %v6929
        %v6997 = vmul.f32 %v2656, %v6930
        %v6998 = vmul.f32 %v2657, %v6931
        %v6999 = vmul.f32 %v2658, %v6932
        %v7000 = vmul.f32 %v2659, %v6933
        %v7001 = vmul.f32 %v2660, %v6934
        %v7002 = vmul.f32 %v2661, %v6935
        %v7003 = vmul.f32 %v2662, %v6936
        %v7004 = vmul.f32 %v2663, %v6937
        %v7005 = vmul.f32 %v2664, %v6938
        %v7006 = vmul.f32 %v2665, %v6939
        %v7007 = vmul.f32 %v2666, %v6940
        %v7008 = vmul.f32 %v2667, %v6941
        %v7009 = vmul.f32 %v2668, %v6942
        %v7010 = vmul.f32 %v2669, %v6943
        %v7011 = vmul.f32 %v2670, %v6944
        %v7012 = vmul.f32 %v2671, %v6945
        %v7013 = vmul.f32 %v2672, %v6946
        %v7014 = vmul.f32 %v2673, %v6947
        %v7015 = vmul.f32 %v2674, %v6948
        %v7016 = vmul.f32 %v2675, %v6949
        %v7017 = vmul.f32 %v2676, %v6950
        %v7018 = vmul.f32 %v2677, %v6951
        %v7019 = vmul.f32 %v2678, %v6952
        %v7020 = vmul.f32 %v2679, %v6953
        %v7021 = vmul.f32 %v2680, %v6954
        %v7022 = vmul.f32 %v2681, %v6955
        %v7023 = vmul.f32 %v2682, %v6956
        %v7024 = vmul.f32 %v2683, %v6957
        %v7025 = vmul.f32 %v2684, %v6958
        %v7026 = vmul.f32 %v2685, %v6959
        %v7027 = vmul.f32 %v2686, %v6960
        %v7028 = vadd.f32 %v6996, %v6997
        %v7029 = vadd.f32 %v7028, %v6998
        %v7030 = vadd.f32 %v7029, %v6999
        %v7031 = vadd.f32 %v7030, %v7000
        %v7032 = vadd.f32 %v7031, %v7001
        %v7033 = vadd.f32 %v7032, %v7002
        %v7034 = vadd.f32 %v7033, %v7003
        %v7035 = vadd.f32 %v7034, %v7004
        %v7036 = vadd.f32 %v7035, %v7005
        %v7037 = vadd.f32 %v7036, %v7006
        %v7038 = vadd.f32 %v7037, %v7007
        %v7039 = vadd.f32 %v7038, %v7008
        %v7040 = vadd.f32 %v7039, %v7009
        %v7041 = vadd.f32 %v7040, %v7010
        %v7042 = vadd.f32 %v7041, %v7011
        %v7043 = vadd.f32 %v7042, %v7012
        %v7044 = vadd.f32 %v7043, %v7013
        %v7045 = vadd.f32 %v7044, %v7014
        %v7046 = vadd.f32 %v7045, %v7015
        %v7047 = vadd.f32 %v7046, %v7016
        %v7048 = vadd.f32 %v7047, %v7017
        %v7049 = vadd.f32 %v7048, %v7018
        %v7050 = vadd.f32 %v7049, %v7019
        %v7051 = vadd.f32 %v7050, %v7020
        %v7052 = vadd.f32 %v7051, %v7021
        %v7053 = vadd.f32 %v7052, %v7022
        %v7054 = vadd.f32 %v7053, %v7023
        %v7055 = vadd.f32 %v7054, %v7024
        %v7056 = vadd.f32 %v7055, %v7025
        %v7057 = vadd.f32 %v7056, %v7026
        %v7058 = vadd.f32 %v7057, %v7027
        %7059 = vadd.xlane.f32.xlu0 %v7058
        %v7060 = vpop.xlane.xlu0 %7059
        %v7061 = vmul.f32 %v7060, %v6995
        %v7062 = vadd.f32 %v4047, 0.055
        %v7063 = vadd.f32 %v4048, 0.055
        %v7064 = vadd.f32 %v4049, 0.055
        %v7065 = vadd.f32 %v4050, 0.055
        %v7066 = vadd.f32 %v4051, 0.055
        %v7067 = vadd.f32 %v4052, 0.055
        %v7068 = vadd.f32 %v4053, 0.055
        %v7069 = vadd.f32 %v4054, 0.055
        %v7070 = vadd.f32 %v4055, 0.055
        %v7071 = vadd.f32 %v4056, 0.055
        %v7072 = vadd.f32 %v4057, 0.055
        %v7073 = vadd.f32 %v4058, 0.055
        %v7074 = vadd.f32 %v4059, 0.055
        %v7075 = vadd.f32 %v4060, 0.055
        %v7076 = vadd.f32 %v4061, 0.055
        %v7077 = vadd.f32 %v4062, 0.055
        %v7078 = vadd.f32 %v4063, 0.055
        %v7079 = vadd.f32 %v4064, 0.055
        %v7080 = vadd.f32 %v4065, 0.055
        %v7081 = vadd.f32 %v4066, 0.055
        %v7082 = vadd.f32 %v4067, 0.055
        %v7083 = vadd.f32 %v4068, 0.055
        %v7084 = vadd.f32 %v4069, 0.055
        %v7085 = vadd.f32 %v4070, 0.055
        %v7086 = vadd.f32 %v4071, 0.055
        %v7087 = vadd.f32 %v4072, 0.055
        %v7088 = vadd.f32 %v4073, 0.055
        %v7089 = vadd.f32 %v4074, 0.055
        %v7090 = vadd.f32 %v4075, 0.055
        %v7091 = vadd.f32 %v4076, 0.055
        %v7092 = vadd.f32 %v4077, 0.055
        %v7093 = vadd.f32 %v4078, 0.055
        %v7094 = vmul.f32 %v7062, %v6313
        %v7095 = vmul.f32 %v7063, %v6313
        %v7096 = vmul.f32 %v7064, %v6313
        %v7097 = vmul.f32 %v7065, %v6313
        %v7098 = vmul.f32 %v7066, %v6313
        %v7099 = vmul.f32 %v7067, %v6313
        %v7100 = vmul.f32 %v7068, %v6313
        %v7101 = vmul.f32 %v7069, %v6313
        %v7102 = vmul.f32 %v7070, %v6313
        %v7103 = vmul.f32 %v7071, %v6313
        %v7104 = vmul.f32 %v7072, %v6313
        %v7105 = vmul.f32 %v7073, %v6313
        %v7106 = vmul.f32 %v7074, %v6313
        %v7107 = vmul.f32 %v7075, %v6313
        %v7108 = vmul.f32 %v7076, %v6313
        %v7109 = vmul.f32 %v7077, %v6313
        %v7110 = vmul.f32 %v7078, %v6313
        %v7111 = vmul.f32 %v7079, %v6313
        %v7112 = vmul.f32 %v7080, %v6313
        %v7113 = vmul.f32 %v7081, %v6313
        %v7114 = vmul.f32 %v7082, %v6313
        %v7115 = vmul.f32 %v7083, %v6313
        %v7116 = vmul.f32 %v7084, %v6313
        %v7117 = vmul.f32 %v7085, %v6313
        %v7118 = vmul.f32 %v7086, %v6313
        %v7119 = vmul.f32 %v7087, %v6313
        %v7120 = vmul.f32 %v7088, %v6313
        %v7121 = vmul.f32 %v7089, %v6313
        %v7122 = vmul.f32 %v7090, %v6313
        %v7123 = vmul.f32 %v7091, %v6313
        %v7124 = vmul.f32 %v7092, %v6313
        %v7125 = vmul.f32 %v7093, %v6313
        %v7126 = vmax.f32 %v7094, 1e-12
        %v7127 = vmax.f32 %v7095, 1e-12
        %v7128 = vmax.f32 %v7096, 1e-12
        %v7129 = vmax.f32 %v7097, 1e-12
        %v7130 = vmax.f32 %v7098, 1e-12
        %v7131 = vmax.f32 %v7099, 1e-12
        %v7132 = vmax.f32 %v7100, 1e-12
        %v7133 = vmax.f32 %v7101, 1e-12
        %v7134 = vmax.f32 %v7102, 1e-12
        %v7135 = vmax.f32 %v7103, 1e-12
        %v7136 = vmax.f32 %v7104, 1e-12
        %v7137 = vmax.f32 %v7105, 1e-12
        %v7138 = vmax.f32 %v7106, 1e-12
        %v7139 = vmax.f32 %v7107, 1e-12
        %v7140 = vmax.f32 %v7108, 1e-12
        %v7141 = vmax.f32 %v7109, 1e-12
        %v7142 = vmax.f32 %v7110, 1e-12
        %v7143 = vmax.f32 %v7111, 1e-12
        %v7144 = vmax.f32 %v7112, 1e-12
        %v7145 = vmax.f32 %v7113, 1e-12
        %v7146 = vmax.f32 %v7114, 1e-12
        %v7147 = vmax.f32 %v7115, 1e-12
        %v7148 = vmax.f32 %v7116, 1e-12
        %v7149 = vmax.f32 %v7117, 1e-12
        %v7150 = vmax.f32 %v7118, 1e-12
        %v7151 = vmax.f32 %v7119, 1e-12
        %v7152 = vmax.f32 %v7120, 1e-12
        %v7153 = vmax.f32 %v7121, 1e-12
        %v7154 = vmax.f32 %v7122, 1e-12
        %v7155 = vmax.f32 %v7123, 1e-12
        %v7156 = vmax.f32 %v7124, 1e-12
        %v7157 = vmax.f32 %v7125, 1e-12
        %v7158 = vlog2.pop %v7126
        %v7159 = vmul.f32 %v7158, 0.6931472
        %v7160 = vlog2.pop %v7127
        %v7161 = vmul.f32 %v7160, 0.6931472
        %v7162 = vlog2.pop %v7128
        %v7163 = vmul.f32 %v7162, 0.6931472
        %v7164 = vlog2.pop %v7129
        %v7165 = vmul.f32 %v7164, 0.6931472
        %v7166 = vlog2.pop %v7130
        %v7167 = vmul.f32 %v7166, 0.6931472
        %v7168 = vlog2.pop %v7131
        %v7169 = vmul.f32 %v7168, 0.6931472
        %v7170 = vlog2.pop %v7132
        %v7171 = vmul.f32 %v7170, 0.6931472
        %v7172 = vlog2.pop %v7133
        %v7173 = vmul.f32 %v7172, 0.6931472
        %v7174 = vlog2.pop %v7134
        %v7175 = vmul.f32 %v7174, 0.6931472
        %v7176 = vlog2.pop %v7135
        %v7177 = vmul.f32 %v7176, 0.6931472
        %v7178 = vlog2.pop %v7136
        %v7179 = vmul.f32 %v7178, 0.6931472
        %v7180 = vlog2.pop %v7137
        %v7181 = vmul.f32 %v7180, 0.6931472
        %v7182 = vlog2.pop %v7138
        %v7183 = vmul.f32 %v7182, 0.6931472
        %v7184 = vlog2.pop %v7139
        %v7185 = vmul.f32 %v7184, 0.6931472
        %v7186 = vlog2.pop %v7140
        %v7187 = vmul.f32 %v7186, 0.6931472
        %v7188 = vlog2.pop %v7141
        %v7189 = vmul.f32 %v7188, 0.6931472
        %v7190 = vlog2.pop %v7142
        %v7191 = vmul.f32 %v7190, 0.6931472
        %v7192 = vlog2.pop %v7143
        %v7193 = vmul.f32 %v7192, 0.6931472
        %v7194 = vlog2.pop %v7144
        %v7195 = vmul.f32 %v7194, 0.6931472
        %v7196 = vlog2.pop %v7145
        %v7197 = vmul.f32 %v7196, 0.6931472
        %v7198 = vlog2.pop %v7146
        %v7199 = vmul.f32 %v7198, 0.6931472
        %v7200 = vlog2.pop %v7147
        %v7201 = vmul.f32 %v7200, 0.6931472
        %v7202 = vlog2.pop %v7148
        %v7203 = vmul.f32 %v7202, 0.6931472
        %v7204 = vlog2.pop %v7149
        %v7205 = vmul.f32 %v7204, 0.6931472
        %v7206 = vlog2.pop %v7150
        %v7207 = vmul.f32 %v7206, 0.6931472
        %v7208 = vlog2.pop %v7151
        %v7209 = vmul.f32 %v7208, 0.6931472
        %v7210 = vlog2.pop %v7152
        %v7211 = vmul.f32 %v7210, 0.6931472
        %v7212 = vlog2.pop %v7153
        %v7213 = vmul.f32 %v7212, 0.6931472
        %v7214 = vlog2.pop %v7154
        %v7215 = vmul.f32 %v7214, 0.6931472
        %v7216 = vlog2.pop %v7155
        %v7217 = vmul.f32 %v7216, 0.6931472
        %v7218 = vlog2.pop %v7156
        %v7219 = vmul.f32 %v7218, 0.6931472
        %v7220 = vlog2.pop %v7157
        %v7221 = vmul.f32 %v7220, 0.6931472
        %v7222 = vmul.f32 %v7159, 2.4
        %v7223 = vmul.f32 %v7161, 2.4
        %v7224 = vmul.f32 %v7163, 2.4
        %v7225 = vmul.f32 %v7165, 2.4
        %v7226 = vmul.f32 %v7167, 2.4
        %v7227 = vmul.f32 %v7169, 2.4
        %v7228 = vmul.f32 %v7171, 2.4
        %v7229 = vmul.f32 %v7173, 2.4
        %v7230 = vmul.f32 %v7175, 2.4
        %v7231 = vmul.f32 %v7177, 2.4
        %v7232 = vmul.f32 %v7179, 2.4
        %v7233 = vmul.f32 %v7181, 2.4
        %v7234 = vmul.f32 %v7183, 2.4
        %v7235 = vmul.f32 %v7185, 2.4
        %v7236 = vmul.f32 %v7187, 2.4
        %v7237 = vmul.f32 %v7189, 2.4
        %v7238 = vmul.f32 %v7191, 2.4
        %v7239 = vmul.f32 %v7193, 2.4
        %v7240 = vmul.f32 %v7195, 2.4
        %v7241 = vmul.f32 %v7197, 2.4
        %v7242 = vmul.f32 %v7199, 2.4
        %v7243 = vmul.f32 %v7201, 2.4
        %v7244 = vmul.f32 %v7203, 2.4
        %v7245 = vmul.f32 %v7205, 2.4
        %v7246 = vmul.f32 %v7207, 2.4
        %v7247 = vmul.f32 %v7209, 2.4
        %v7248 = vmul.f32 %v7211, 2.4
        %v7249 = vmul.f32 %v7213, 2.4
        %v7250 = vmul.f32 %v7215, 2.4
        %v7251 = vmul.f32 %v7217, 2.4
        %v7252 = vmul.f32 %v7219, 2.4
        %v7253 = vmul.f32 %v7221, 2.4
        %v7254 = vmul.f32 %v7222, 1.442695
        %v7255 = vpow.pop %v7254
        %v7256 = vmul.f32 %v7223, 1.442695
        %v7257 = vpow.pop %v7256
        %v7258 = vmul.f32 %v7224, 1.442695
        %v7259 = vpow.pop %v7258
        %v7260 = vmul.f32 %v7225, 1.442695
        %v7261 = vpow.pop %v7260
        %v7262 = vmul.f32 %v7226, 1.442695
        %v7263 = vpow.pop %v7262
        %v7264 = vmul.f32 %v7227, 1.442695
        %v7265 = vpow.pop %v7264
        %v7266 = vmul.f32 %v7228, 1.442695
        %v7267 = vpow.pop %v7266
        %v7268 = vmul.f32 %v7229, 1.442695
        %v7269 = vpow.pop %v7268
        %v7270 = vmul.f32 %v7230, 1.442695
        %v7271 = vpow.pop %v7270
        %v7272 = vmul.f32 %v7231, 1.442695
        %v7273 = vpow.pop %v7272
        %v7274 = vmul.f32 %v7232, 1.442695
        %v7275 = vpow.pop %v7274
        %v7276 = vmul.f32 %v7233, 1.442695
        %v7277 = vpow.pop %v7276
        %v7278 = vmul.f32 %v7234, 1.442695
        %v7279 = vpow.pop %v7278
        %v7280 = vmul.f32 %v7235, 1.442695
        %v7281 = vpow.pop %v7280
        %v7282 = vmul.f32 %v7236, 1.442695
        %v7283 = vpow.pop %v7282
        %v7284 = vmul.f32 %v7237, 1.442695
        %v7285 = vpow.pop %v7284
        %v7286 = vmul.f32 %v7238, 1.442695
        %v7287 = vpow.pop %v7286
        %v7288 = vmul.f32 %v7239, 1.442695
        %v7289 = vpow.pop %v7288
        %v7290 = vmul.f32 %v7240, 1.442695
        %v7291 = vpow.pop %v7290
        %v7292 = vmul.f32 %v7241, 1.442695
        %v7293 = vpow.pop %v7292
        %v7294 = vmul.f32 %v7242, 1.442695
        %v7295 = vpow.pop %v7294
        %v7296 = vmul.f32 %v7243, 1.442695
        %v7297 = vpow.pop %v7296
        %v7298 = vmul.f32 %v7244, 1.442695
        %v7299 = vpow.pop %v7298
        %v7300 = vmul.f32 %v7245, 1.442695
        %v7301 = vpow.pop %v7300
        %v7302 = vmul.f32 %v7246, 1.442695
        %v7303 = vpow.pop %v7302
        %v7304 = vmul.f32 %v7247, 1.442695
        %v7305 = vpow.pop %v7304
        %v7306 = vmul.f32 %v7248, 1.442695
        %v7307 = vpow.pop %v7306
        %v7308 = vmul.f32 %v7249, 1.442695
        %v7309 = vpow.pop %v7308
        %v7310 = vmul.f32 %v7250, 1.442695
        %v7311 = vpow.pop %v7310
        %v7312 = vmul.f32 %v7251, 1.442695
        %v7313 = vpow.pop %v7312
        %v7314 = vmul.f32 %v7252, 1.442695
        %v7315 = vpow.pop %v7314
        %v7316 = vmul.f32 %v7253, 1.442695
        %v7317 = vpow.pop %v7316
        %vm7318 = vcmp.le.f32.partialorder %v4047, 0.04045
        %vm7319 = vcmp.le.f32.partialorder %v4048, 0.04045
        %vm7320 = vcmp.le.f32.partialorder %v4049, 0.04045
        %vm7321 = vcmp.le.f32.partialorder %v4050, 0.04045
        %vm7322 = vcmp.le.f32.partialorder %v4051, 0.04045
        %vm7323 = vcmp.le.f32.partialorder %v4052, 0.04045
        %vm7324 = vcmp.le.f32.partialorder %v4053, 0.04045
        %vm7325 = vcmp.le.f32.partialorder %v4054, 0.04045
        %vm7326 = vcmp.le.f32.partialorder %v4055, 0.04045
        %vm7327 = vcmp.le.f32.partialorder %v4056, 0.04045
        %vm7328 = vcmp.le.f32.partialorder %v4057, 0.04045
        %vm7329 = vcmp.le.f32.partialorder %v4058, 0.04045
        %vm7330 = vcmp.le.f32.partialorder %v4059, 0.04045
        %vm7331 = vcmp.le.f32.partialorder %v4060, 0.04045
        %vm7332 = vcmp.le.f32.partialorder %v4061, 0.04045
        %vm7333 = vcmp.le.f32.partialorder %v4062, 0.04045
        %vm7334 = vcmp.le.f32.partialorder %v4063, 0.04045
        %vm7335 = vcmp.le.f32.partialorder %v4064, 0.04045
        %vm7336 = vcmp.le.f32.partialorder %v4065, 0.04045
        %vm7337 = vcmp.le.f32.partialorder %v4066, 0.04045
        %vm7338 = vcmp.le.f32.partialorder %v4067, 0.04045
        %vm7339 = vcmp.le.f32.partialorder %v4068, 0.04045
        %vm7340 = vcmp.le.f32.partialorder %v4069, 0.04045
        %vm7341 = vcmp.le.f32.partialorder %v4070, 0.04045
        %vm7342 = vcmp.le.f32.partialorder %v4071, 0.04045
        %vm7343 = vcmp.le.f32.partialorder %v4072, 0.04045
        %vm7344 = vcmp.le.f32.partialorder %v4073, 0.04045
        %vm7345 = vcmp.le.f32.partialorder %v4074, 0.04045
        %vm7346 = vcmp.le.f32.partialorder %v4075, 0.04045
        %vm7347 = vcmp.le.f32.partialorder %v4076, 0.04045
        %vm7348 = vcmp.le.f32.partialorder %v4077, 0.04045
        %vm7349 = vcmp.le.f32.partialorder %v4078, 0.04045
        %v7350 = vmul.f32 %v4047, %v6570
        %v7351 = vmul.f32 %v4048, %v6570
        %v7352 = vmul.f32 %v4049, %v6570
        %v7353 = vmul.f32 %v4050, %v6570
        %v7354 = vmul.f32 %v4051, %v6570
        %v7355 = vmul.f32 %v4052, %v6570
        %v7356 = vmul.f32 %v4053, %v6570
        %v7357 = vmul.f32 %v4054, %v6570
        %v7358 = vmul.f32 %v4055, %v6570
        %v7359 = vmul.f32 %v4056, %v6570
        %v7360 = vmul.f32 %v4057, %v6570
        %v7361 = vmul.f32 %v4058, %v6570
        %v7362 = vmul.f32 %v4059, %v6570
        %v7363 = vmul.f32 %v4060, %v6570
        %v7364 = vmul.f32 %v4061, %v6570
        %v7365 = vmul.f32 %v4062, %v6570
        %v7366 = vmul.f32 %v4063, %v6570
        %v7367 = vmul.f32 %v4064, %v6570
        %v7368 = vmul.f32 %v4065, %v6570
        %v7369 = vmul.f32 %v4066, %v6570
        %v7370 = vmul.f32 %v4067, %v6570
        %v7371 = vmul.f32 %v4068, %v6570
        %v7372 = vmul.f32 %v4069, %v6570
        %v7373 = vmul.f32 %v4070, %v6570
        %v7374 = vmul.f32 %v4071, %v6570
        %v7375 = vmul.f32 %v4072, %v6570
        %v7376 = vmul.f32 %v4073, %v6570
        %v7377 = vmul.f32 %v4074, %v6570
        %v7378 = vmul.f32 %v4075, %v6570
        %v7379 = vmul.f32 %v4076, %v6570
        %v7380 = vmul.f32 %v4077, %v6570
        %v7381 = vmul.f32 %v4078, %v6570
        %v7382 = vsel %vm7318, %v7350, %v7255
        %v7383 = vsel %vm7319, %v7351, %v7257
        %v7384 = vsel %vm7320, %v7352, %v7259
        %v7385 = vsel %vm7321, %v7353, %v7261
        %v7386 = vsel %vm7322, %v7354, %v7263
        %v7387 = vsel %vm7323, %v7355, %v7265
        %v7388 = vsel %vm7324, %v7356, %v7267
        %v7389 = vsel %vm7325, %v7357, %v7269
        %v7390 = vsel %vm7326, %v7358, %v7271
        %v7391 = vsel %vm7327, %v7359, %v7273
        %v7392 = vsel %vm7328, %v7360, %v7275
        %v7393 = vsel %vm7329, %v7361, %v7277
        %v7394 = vsel %vm7330, %v7362, %v7279
        %v7395 = vsel %vm7331, %v7363, %v7281
        %v7396 = vsel %vm7332, %v7364, %v7283
        %v7397 = vsel %vm7333, %v7365, %v7285
        %v7398 = vsel %vm7334, %v7366, %v7287
        %v7399 = vsel %vm7335, %v7367, %v7289
        %v7400 = vsel %vm7336, %v7368, %v7291
        %v7401 = vsel %vm7337, %v7369, %v7293
        %v7402 = vsel %vm7338, %v7370, %v7295
        %v7403 = vsel %vm7339, %v7371, %v7297
        %v7404 = vsel %vm7340, %v7372, %v7299
        %v7405 = vsel %vm7341, %v7373, %v7301
        %v7406 = vsel %vm7342, %v7374, %v7303
        %v7407 = vsel %vm7343, %v7375, %v7305
        %v7408 = vsel %vm7344, %v7376, %v7307
        %v7409 = vsel %vm7345, %v7377, %v7309
        %v7410 = vsel %vm7346, %v7378, %v7311
        %v7411 = vsel %vm7347, %v7379, %v7313
        %v7412 = vsel %vm7348, %v7380, %v7315
        %v7413 = vsel %vm7349, %v7381, %v7317
        %v7414 = vmul.f32 %v7382, %v6929
        %v7415 = vmul.f32 %v7383, %v6930
        %v7416 = vmul.f32 %v7384, %v6931
        %v7417 = vmul.f32 %v7385, %v6932
        %v7418 = vmul.f32 %v7386, %v6933
        %v7419 = vmul.f32 %v7387, %v6934
        %v7420 = vmul.f32 %v7388, %v6935
        %v7421 = vmul.f32 %v7389, %v6936
        %v7422 = vmul.f32 %v7390, %v6937
        %v7423 = vmul.f32 %v7391, %v6938
        %v7424 = vmul.f32 %v7392, %v6939
        %v7425 = vmul.f32 %v7393, %v6940
        %v7426 = vmul.f32 %v7394, %v6941
        %v7427 = vmul.f32 %v7395, %v6942
        %v7428 = vmul.f32 %v7396, %v6943
        %v7429 = vmul.f32 %v7397, %v6944
        %v7430 = vmul.f32 %v7398, %v6945
        %v7431 = vmul.f32 %v7399, %v6946
        %v7432 = vmul.f32 %v7400, %v6947
        %v7433 = vmul.f32 %v7401, %v6948
        %v7434 = vmul.f32 %v7402, %v6949
        %v7435 = vmul.f32 %v7403, %v6950
        %v7436 = vmul.f32 %v7404, %v6951
        %v7437 = vmul.f32 %v7405, %v6952
        %v7438 = vmul.f32 %v7406, %v6953
        %v7439 = vmul.f32 %v7407, %v6954
        %v7440 = vmul.f32 %v7408, %v6955
        %v7441 = vmul.f32 %v7409, %v6956
        %v7442 = vmul.f32 %v7410, %v6957
        %v7443 = vmul.f32 %v7411, %v6958
        %v7444 = vmul.f32 %v7412, %v6959
        %v7445 = vmul.f32 %v7413, %v6960
        %v7446 = vadd.f32 %v7414, %v7415
        %v7447 = vadd.f32 %v7446, %v7416
        %v7448 = vadd.f32 %v7447, %v7417
        %v7449 = vadd.f32 %v7448, %v7418
        %v7450 = vadd.f32 %v7449, %v7419
        %v7451 = vadd.f32 %v7450, %v7420
        %v7452 = vadd.f32 %v7451, %v7421
        %v7453 = vadd.f32 %v7452, %v7422
        %v7454 = vadd.f32 %v7453, %v7423
        %v7455 = vadd.f32 %v7454, %v7424
        %v7456 = vadd.f32 %v7455, %v7425
        %v7457 = vadd.f32 %v7456, %v7426
        %v7458 = vadd.f32 %v7457, %v7427
        %v7459 = vadd.f32 %v7458, %v7428
        %v7460 = vadd.f32 %v7459, %v7429
        %v7461 = vadd.f32 %v7460, %v7430
        %v7462 = vadd.f32 %v7461, %v7431
        %v7463 = vadd.f32 %v7462, %v7432
        %v7464 = vadd.f32 %v7463, %v7433
        %v7465 = vadd.f32 %v7464, %v7434
        %v7466 = vadd.f32 %v7465, %v7435
        %v7467 = vadd.f32 %v7466, %v7436
        %v7468 = vadd.f32 %v7467, %v7437
        %v7469 = vadd.f32 %v7468, %v7438
        %v7470 = vadd.f32 %v7469, %v7439
        %v7471 = vadd.f32 %v7470, %v7440
        %v7472 = vadd.f32 %v7471, %v7441
        %v7473 = vadd.f32 %v7472, %v7442
        %v7474 = vadd.f32 %v7473, %v7443
        %v7475 = vadd.f32 %v7474, %v7444
        %v7476 = vadd.f32 %v7475, %v7445
        %7477 = vadd.xlane.f32.xlu0 %v7476
        %v7478 = vpop.xlane.xlu0 %7477
        %v7479 = vmul.f32 %v7478, %v6995
        %v7480 = vadd.f32 %v7479, 1e-06
        %v7481 = vrcp.pop %v7480
        %v7482 = vmul.f32 %v7061, %v7481
        %v7483 = vmul.f32 %v7482, %v2142
        %v7484 = vsub.f32 1.0, %v6929
        %v7485 = vsub.f32 1.0, %v6930
        %v7486 = vsub.f32 1.0, %v6931
        %v7487 = vsub.f32 1.0, %v6932
        %v7488 = vsub.f32 1.0, %v6933
        %v7489 = vsub.f32 1.0, %v6934
        %v7490 = vsub.f32 1.0, %v6935
        %v7491 = vsub.f32 1.0, %v6936
        %v7492 = vsub.f32 1.0, %v6937
        %v7493 = vsub.f32 1.0, %v6938
        %v7494 = vsub.f32 1.0, %v6939
        %v7495 = vsub.f32 1.0, %v6940
        %v7496 = vsub.f32 1.0, %v6941
        %v7497 = vsub.f32 1.0, %v6942
        %v7498 = vsub.f32 1.0, %v6943
        %v7499 = vsub.f32 1.0, %v6944
        %v7500 = vsub.f32 1.0, %v6945
        %v7501 = vsub.f32 1.0, %v6946
        %v7502 = vsub.f32 1.0, %v6947
        %v7503 = vsub.f32 1.0, %v6948
        %v7504 = vsub.f32 1.0, %v6949
        %v7505 = vsub.f32 1.0, %v6950
        %v7506 = vsub.f32 1.0, %v6951
        %v7507 = vsub.f32 1.0, %v6952
        %v7508 = vsub.f32 1.0, %v6953
        %v7509 = vsub.f32 1.0, %v6954
        %v7510 = vsub.f32 1.0, %v6955
        %v7511 = vsub.f32 1.0, %v6956
        %v7512 = vsub.f32 1.0, %v6957
        %v7513 = vsub.f32 1.0, %v6958
        %v7514 = vsub.f32 1.0, %v6959
        %v7515 = vsub.f32 1.0, %v6960
        %v7516 = vmul.f32 %v7484, %v1517
        %v7517 = vmul.f32 %v7485, %v1518
        %v7518 = vmul.f32 %v7486, %v1519
        %v7519 = vmul.f32 %v7487, %v1520
        %v7520 = vmul.f32 %v7488, %v1521
        %v7521 = vmul.f32 %v7489, %v1522
        %v7522 = vmul.f32 %v7490, %v1523
        %v7523 = vmul.f32 %v7491, %v1524
        %v7524 = vmul.f32 %v7492, %v1525
        %v7525 = vmul.f32 %v7493, %v1526
        %v7526 = vmul.f32 %v7494, %v1527
        %v7527 = vmul.f32 %v7495, %v1528
        %v7528 = vmul.f32 %v7496, %v1529
        %v7529 = vmul.f32 %v7497, %v1530
        %v7530 = vmul.f32 %v7498, %v1531
        %v7531 = vmul.f32 %v7499, %v1532
        %v7532 = vmul.f32 %v7500, %v1533
        %v7533 = vmul.f32 %v7501, %v1534
        %v7534 = vmul.f32 %v7502, %v1535
        %v7535 = vmul.f32 %v7503, %v1536
        %v7536 = vmul.f32 %v7504, %v1537
        %v7537 = vmul.f32 %v7505, %v1538
        %v7538 = vmul.f32 %v7506, %v1539
        %v7539 = vmul.f32 %v7507, %v1540
        %v7540 = vmul.f32 %v7508, %v1541
        %v7541 = vmul.f32 %v7509, %v1542
        %v7542 = vmul.f32 %v7510, %v1543
        %v7543 = vmul.f32 %v7511, %v1544
        %v7544 = vmul.f32 %v7512, %v1545
        %v7545 = vmul.f32 %v7513, %v1546
        %v7546 = vmul.f32 %v7514, %v1547
        %v7547 = vmul.f32 %v7515, %v1548
        %v7548 = vmul.f32 %v7414, %v7483
        %v7549 = vmul.f32 %v7415, %v7483
        %v7550 = vmul.f32 %v7416, %v7483
        %v7551 = vmul.f32 %v7417, %v7483
        %v7552 = vmul.f32 %v7418, %v7483
        %v7553 = vmul.f32 %v7419, %v7483
        %v7554 = vmul.f32 %v7420, %v7483
        %v7555 = vmul.f32 %v7421, %v7483
        %v7556 = vmul.f32 %v7422, %v7483
        %v7557 = vmul.f32 %v7423, %v7483
        %v7558 = vmul.f32 %v7424, %v7483
        %v7559 = vmul.f32 %v7425, %v7483
        %v7560 = vmul.f32 %v7426, %v7483
        %v7561 = vmul.f32 %v7427, %v7483
        %v7562 = vmul.f32 %v7428, %v7483
        %v7563 = vmul.f32 %v7429, %v7483
        %v7564 = vmul.f32 %v7430, %v7483
        %v7565 = vmul.f32 %v7431, %v7483
        %v7566 = vmul.f32 %v7432, %v7483
        %v7567 = vmul.f32 %v7433, %v7483
        %v7568 = vmul.f32 %v7434, %v7483
        %v7569 = vmul.f32 %v7435, %v7483
        %v7570 = vmul.f32 %v7436, %v7483
        %v7571 = vmul.f32 %v7437, %v7483
        %v7572 = vmul.f32 %v7438, %v7483
        %v7573 = vmul.f32 %v7439, %v7483
        %v7574 = vmul.f32 %v7440, %v7483
        %v7575 = vmul.f32 %v7441, %v7483
        %v7576 = vmul.f32 %v7442, %v7483
        %v7577 = vmul.f32 %v7443, %v7483
        %v7578 = vmul.f32 %v7444, %v7483
        %v7579 = vmul.f32 %v7445, %v7483
        %v7580 = vadd.f32 %v7516, %v7548
        %v7581 = vadd.f32 %v7517, %v7549
        %v7582 = vadd.f32 %v7518, %v7550
        %v7583 = vadd.f32 %v7519, %v7551
        %v7584 = vadd.f32 %v7520, %v7552
        %v7585 = vadd.f32 %v7521, %v7553
        %v7586 = vadd.f32 %v7522, %v7554
        %v7587 = vadd.f32 %v7523, %v7555
        %v7588 = vadd.f32 %v7524, %v7556
        %v7589 = vadd.f32 %v7525, %v7557
        %v7590 = vadd.f32 %v7526, %v7558
        %v7591 = vadd.f32 %v7527, %v7559
        %v7592 = vadd.f32 %v7528, %v7560
        %v7593 = vadd.f32 %v7529, %v7561
        %v7594 = vadd.f32 %v7530, %v7562
        %v7595 = vadd.f32 %v7531, %v7563
        %v7596 = vadd.f32 %v7532, %v7564
        %v7597 = vadd.f32 %v7533, %v7565
        %v7598 = vadd.f32 %v7534, %v7566
        %v7599 = vadd.f32 %v7535, %v7567
        %v7600 = vadd.f32 %v7536, %v7568
        %v7601 = vadd.f32 %v7537, %v7569
        %v7602 = vadd.f32 %v7538, %v7570
        %v7603 = vadd.f32 %v7539, %v7571
        %v7604 = vadd.f32 %v7540, %v7572
        %v7605 = vadd.f32 %v7541, %v7573
        %v7606 = vadd.f32 %v7542, %v7574
        %v7607 = vadd.f32 %v7543, %v7575
        %v7608 = vadd.f32 %v7544, %v7576
        %v7609 = vadd.f32 %v7545, %v7577
        %v7610 = vadd.f32 %v7546, %v7578
        %v7611 = vadd.f32 %v7547, %v7579
        %7612 = vst [vmem:[%s427 + $0x100] sm:$0xff] %v1517
        %7613 = vst [vmem:[%s427 + $0x108] sm:$0xff] %v1518
        %7614 = vst [vmem:[%s427 + $0x110] sm:$0xff] %v1519
        %7615 = vst [vmem:[%s427 + $0x118] sm:$0xff] %v1520
        %7616 = vst [vmem:[%s427 + $0x120] sm:$0xff] %v1521
        %7617 = vst [vmem:[%s427 + $0x128] sm:$0xff] %v1522
        %7618 = vst [vmem:[%s427 + $0x130] sm:$0xff] %v1523
        %7619 = vst [vmem:[%s427 + $0x138] sm:$0xff] %v1524
        %7620 = vst [vmem:[%s427 + $0x140] sm:$0xff] %v1525
        %7621 = vst [vmem:[%s427 + $0x148] sm:$0xff] %v1526
        %7622 = vst [vmem:[%s427 + $0x150] sm:$0xff] %v1527
        %7623 = vst [vmem:[%s427 + $0x158] sm:$0xff] %v1528
        %7624 = vst [vmem:[%s427 + $0x160] sm:$0xff] %v1529
        %7625 = vst [vmem:[%s427 + $0x168] sm:$0xff] %v1530
        %7626 = vst [vmem:[%s427 + $0x170] sm:$0xff] %v1531
        %7627 = vst [vmem:[%s427 + $0x178] sm:$0xff] %v1532
        %7628 = vst [vmem:[%s427 + $0x180] sm:$0xff] %v1533
        %7629 = vst [vmem:[%s427 + $0x188] sm:$0xff] %v1534
        %7630 = vst [vmem:[%s427 + $0x190] sm:$0xff] %v1535
        %7631 = vst [vmem:[%s427 + $0x198] sm:$0xff] %v1536
        %7632 = vst [vmem:[%s427 + $0x1a0] sm:$0xff] %v1537
        %7633 = vst [vmem:[%s427 + $0x1a8] sm:$0xff] %v1538
        %7634 = vst [vmem:[%s427 + $0x1b0] sm:$0xff] %v1539
        %7635 = vst [vmem:[%s427 + $0x1b8] sm:$0xff] %v1540
        %7636 = vst [vmem:[%s427 + $0x1c0] sm:$0xff] %v1541
        %7637 = vst [vmem:[%s427 + $0x1c8] sm:$0xff] %v1542
        %7638 = vst [vmem:[%s427 + $0x1d0] sm:$0xff] %v1543
        %7639 = vst [vmem:[%s427 + $0x1d8] sm:$0xff] %v1544
        %7640 = vst [vmem:[%s427 + $0x1e0] sm:$0xff] %v1545
        %7641 = vst [vmem:[%s427 + $0x1e8] sm:$0xff] %v1546
        %7642 = vst [vmem:[%s427 + $0x1f0] sm:$0xff] %v1547
        %7643 = vst [vmem:[%s427 + $0x1f8] sm:$0xff] %v1548
        %7644 = vst [vmem:[%s434 + $0x100] sm:$0xff] %v4047
        %7645 = vst [vmem:[%s434 + $0x108] sm:$0xff] %v4048
        %7646 = vst [vmem:[%s434 + $0x110] sm:$0xff] %v4049
        %7647 = vst [vmem:[%s434 + $0x118] sm:$0xff] %v4050
        %7648 = vst [vmem:[%s434 + $0x120] sm:$0xff] %v4051
        %7649 = vst [vmem:[%s434 + $0x128] sm:$0xff] %v4052
        %7650 = vst [vmem:[%s434 + $0x130] sm:$0xff] %v4053
        %7651 = vst [vmem:[%s434 + $0x138] sm:$0xff] %v4054
        %7652 = vst [vmem:[%s434 + $0x140] sm:$0xff] %v4055
        %7653 = vst [vmem:[%s434 + $0x148] sm:$0xff] %v4056
        %7654 = vst [vmem:[%s434 + $0x150] sm:$0xff] %v4057
        %7655 = vst [vmem:[%s434 + $0x158] sm:$0xff] %v4058
        %7656 = vst [vmem:[%s434 + $0x160] sm:$0xff] %v4059
        %7657 = vst [vmem:[%s434 + $0x168] sm:$0xff] %v4060
        %7658 = vst [vmem:[%s434 + $0x170] sm:$0xff] %v4061
        %7659 = vst [vmem:[%s434 + $0x178] sm:$0xff] %v4062
        %7660 = vst [vmem:[%s434 + $0x180] sm:$0xff] %v4063
        %7661 = vst [vmem:[%s434 + $0x188] sm:$0xff] %v4064
        %7662 = vst [vmem:[%s434 + $0x190] sm:$0xff] %v4065
        %7663 = vst [vmem:[%s434 + $0x198] sm:$0xff] %v4066
        %7664 = vst [vmem:[%s434 + $0x1a0] sm:$0xff] %v4067
        %7665 = vst [vmem:[%s434 + $0x1a8] sm:$0xff] %v4068
        %7666 = vst [vmem:[%s434 + $0x1b0] sm:$0xff] %v4069
        %7667 = vst [vmem:[%s434 + $0x1b8] sm:$0xff] %v4070
        %7668 = vst [vmem:[%s434 + $0x1c0] sm:$0xff] %v4071
        %7669 = vst [vmem:[%s434 + $0x1c8] sm:$0xff] %v4072
        %7670 = vst [vmem:[%s434 + $0x1d0] sm:$0xff] %v4073
        %7671 = vst [vmem:[%s434 + $0x1d8] sm:$0xff] %v4074
        %7672 = vst [vmem:[%s434 + $0x1e0] sm:$0xff] %v4075
        %7673 = vst [vmem:[%s434 + $0x1e8] sm:$0xff] %v4076
        %7674 = vst [vmem:[%s434 + $0x1f0] sm:$0xff] %v4077
        %7675 = vst [vmem:[%s434 + $0x1f8] sm:$0xff] %v4078
        %7676 = vst [vmem:[%s441 + $0x100] sm:$0xff] %v7580
        %7677 = vst [vmem:[%s441 + $0x108] sm:$0xff] %v7581
        %7678 = vst [vmem:[%s441 + $0x110] sm:$0xff] %v7582
        %7679 = vst [vmem:[%s441 + $0x118] sm:$0xff] %v7583
        %7680 = vst [vmem:[%s441 + $0x120] sm:$0xff] %v7584
        %7681 = vst [vmem:[%s441 + $0x128] sm:$0xff] %v7585
        %7682 = vst [vmem:[%s441 + $0x130] sm:$0xff] %v7586
        %7683 = vst [vmem:[%s441 + $0x138] sm:$0xff] %v7587
        %7684 = vst [vmem:[%s441 + $0x140] sm:$0xff] %v7588
        %7685 = vst [vmem:[%s441 + $0x148] sm:$0xff] %v7589
        %7686 = vst [vmem:[%s441 + $0x150] sm:$0xff] %v7590
        %7687 = vst [vmem:[%s441 + $0x158] sm:$0xff] %v7591
        %7688 = vst [vmem:[%s441 + $0x160] sm:$0xff] %v7592
        %7689 = vst [vmem:[%s441 + $0x168] sm:$0xff] %v7593
        %7690 = vst [vmem:[%s441 + $0x170] sm:$0xff] %v7594
        %7691 = vst [vmem:[%s441 + $0x178] sm:$0xff] %v7595
        %7692 = vst [vmem:[%s441 + $0x180] sm:$0xff] %v7596
        %7693 = vst [vmem:[%s441 + $0x188] sm:$0xff] %v7597
        %7694 = vst [vmem:[%s441 + $0x190] sm:$0xff] %v7598
        %7695 = vst [vmem:[%s441 + $0x198] sm:$0xff] %v7599
        %7696 = vst [vmem:[%s441 + $0x1a0] sm:$0xff] %v7600
        %7697 = vst [vmem:[%s441 + $0x1a8] sm:$0xff] %v7601
        %7698 = vst [vmem:[%s441 + $0x1b0] sm:$0xff] %v7602
        %7699 = vst [vmem:[%s441 + $0x1b8] sm:$0xff] %v7603
        %7700 = vst [vmem:[%s441 + $0x1c0] sm:$0xff] %v7604
        %7701 = vst [vmem:[%s441 + $0x1c8] sm:$0xff] %v7605
        %7702 = vst [vmem:[%s441 + $0x1d0] sm:$0xff] %v7606
        %7703 = vst [vmem:[%s441 + $0x1d8] sm:$0xff] %v7607
        %7704 = vst [vmem:[%s441 + $0x1e0] sm:$0xff] %v7608
        %7705 = vst [vmem:[%s441 + $0x1e8] sm:$0xff] %v7609
        %7706 = vst [vmem:[%s441 + $0x1f0] sm:$0xff] %v7610
        %7707 = vst [vmem:[%s441 + $0x1f8] sm:$0xff] %v7611
        %v7708 = vmul.f32 %v6116, %v1756
        %v7709 = vmul.f32 %v6117, %v1760
        %v7710 = vmul.f32 %v6118, %v1764
        %v7711 = vmul.f32 %v6119, %v1768
        %v7712 = vmul.f32 %v6120, %v1772
        %v7713 = vmul.f32 %v6121, %v1776
        %v7714 = vmul.f32 %v6122, %v1780
        %v7715 = vmul.f32 %v6123, %v1784
        %v7716 = vmul.f32 %v6124, %v1788
        %v7717 = vmul.f32 %v6125, %v1792
        %v7718 = vmul.f32 %v6126, %v1796
        %v7719 = vmul.f32 %v6127, %v1800
        %v7720 = vmul.f32 %v6128, %v1804
        %v7721 = vmul.f32 %v6129, %v1808
        %v7722 = vmul.f32 %v6130, %v1812
        %v7723 = vmul.f32 %v6131, %v1816
        %v7724 = vmul.f32 %v6132, %v1820
        %v7725 = vmul.f32 %v6133, %v1824
        %v7726 = vmul.f32 %v6134, %v1828
        %v7727 = vmul.f32 %v6135, %v1832
        %v7728 = vmul.f32 %v6136, %v1836
        %v7729 = vmul.f32 %v6137, %v1840
        %v7730 = vmul.f32 %v6138, %v1844
        %v7731 = vmul.f32 %v6139, %v1848
        %v7732 = vmul.f32 %v6140, %v1852
        %v7733 = vmul.f32 %v6141, %v1856
        %v7734 = vmul.f32 %v6142, %v1860
        %v7735 = vmul.f32 %v6143, %v1864
        %v7736 = vmul.f32 %v6144, %v1868
        %v7737 = vmul.f32 %v6145, %v1872
        %v7738 = vmul.f32 %v6146, %v1876
        %v7739 = vmul.f32 %v6147, %v1880
        %v7740 = vadd.f32 %v7708, %v7709
        %v7741 = vadd.f32 %v7740, %v7710
        %v7742 = vadd.f32 %v7741, %v7711
        %v7743 = vadd.f32 %v7742, %v7712
        %v7744 = vadd.f32 %v7743, %v7713
        %v7745 = vadd.f32 %v7744, %v7714
        %v7746 = vadd.f32 %v7745, %v7715
        %v7747 = vadd.f32 %v7746, %v7716
        %v7748 = vadd.f32 %v7747, %v7717
        %v7749 = vadd.f32 %v7748, %v7718
        %v7750 = vadd.f32 %v7749, %v7719
        %v7751 = vadd.f32 %v7750, %v7720
        %v7752 = vadd.f32 %v7751, %v7721
        %v7753 = vadd.f32 %v7752, %v7722
        %v7754 = vadd.f32 %v7753, %v7723
        %v7755 = vadd.f32 %v7754, %v7724
        %v7756 = vadd.f32 %v7755, %v7725
        %v7757 = vadd.f32 %v7756, %v7726
        %v7758 = vadd.f32 %v7757, %v7727
        %v7759 = vadd.f32 %v7758, %v7728
        %v7760 = vadd.f32 %v7759, %v7729
        %v7761 = vadd.f32 %v7760, %v7730
        %v7762 = vadd.f32 %v7761, %v7731
        %v7763 = vadd.f32 %v7762, %v7732
        %v7764 = vadd.f32 %v7763, %v7733
        %v7765 = vadd.f32 %v7764, %v7734
        %v7766 = vadd.f32 %v7765, %v7735
        %v7767 = vadd.f32 %v7766, %v7736
        %v7768 = vadd.f32 %v7767, %v7737
        %v7769 = vadd.f32 %v7768, %v7738
        %v7770 = vadd.f32 %v7769, %v7739
        %7771 = vadd.xlane.f32.xlu0 %v7770
        %v7772 = vpop.xlane.xlu0 %7771
        %v7773 = vrcp.pop %v7772
        %v7774 = vmul.f32 1.0, %v7773
        %v7775 = vmul.f32 %v3103, %v7708
        %v7776 = vmul.f32 %v3104, %v7709
        %v7777 = vmul.f32 %v3105, %v7710
        %v7778 = vmul.f32 %v3106, %v7711
        %v7779 = vmul.f32 %v3107, %v7712
        %v7780 = vmul.f32 %v3108, %v7713
        %v7781 = vmul.f32 %v3109, %v7714
        %v7782 = vmul.f32 %v3110, %v7715
        %v7783 = vmul.f32 %v3111, %v7716
        %v7784 = vmul.f32 %v3112, %v7717
        %v7785 = vmul.f32 %v3113, %v7718
        %v7786 = vmul.f32 %v3114, %v7719
        %v7787 = vmul.f32 %v3115, %v7720
        %v7788 = vmul.f32 %v3116, %v7721
        %v7789 = vmul.f32 %v3117, %v7722
        %v7790 = vmul.f32 %v3118, %v7723
        %v7791 = vmul.f32 %v3119, %v7724
        %v7792 = vmul.f32 %v3120, %v7725
        %v7793 = vmul.f32 %v3121, %v7726
        %v7794 = vmul.f32 %v3122, %v7727
        %v7795 = vmul.f32 %v3123, %v7728
        %v7796 = vmul.f32 %v3124, %v7729
        %v7797 = vmul.f32 %v3125, %v7730
        %v7798 = vmul.f32 %v3126, %v7731
        %v7799 = vmul.f32 %v3127, %v7732
        %v7800 = vmul.f32 %v3128, %v7733
        %v7801 = vmul.f32 %v3129, %v7734
        %v7802 = vmul.f32 %v3130, %v7735
        %v7803 = vmul.f32 %v3131, %v7736
        %v7804 = vmul.f32 %v3132, %v7737
        %v7805 = vmul.f32 %v3133, %v7738
        %v7806 = vmul.f32 %v3134, %v7739
        %v7807 = vadd.f32 %v7775, %v7776
        %v7808 = vadd.f32 %v7807, %v7777
        %v7809 = vadd.f32 %v7808, %v7778
        %v7810 = vadd.f32 %v7809, %v7779
        %v7811 = vadd.f32 %v7810, %v7780
        %v7812 = vadd.f32 %v7811, %v7781
        %v7813 = vadd.f32 %v7812, %v7782
        %v7814 = vadd.f32 %v7813, %v7783
        %v7815 = vadd.f32 %v7814, %v7784
        %v7816 = vadd.f32 %v7815, %v7785
        %v7817 = vadd.f32 %v7816, %v7786
        %v7818 = vadd.f32 %v7817, %v7787
        %v7819 = vadd.f32 %v7818, %v7788
        %v7820 = vadd.f32 %v7819, %v7789
        %v7821 = vadd.f32 %v7820, %v7790
        %v7822 = vadd.f32 %v7821, %v7791
        %v7823 = vadd.f32 %v7822, %v7792
        %v7824 = vadd.f32 %v7823, %v7793
        %v7825 = vadd.f32 %v7824, %v7794
        %v7826 = vadd.f32 %v7825, %v7795
        %v7827 = vadd.f32 %v7826, %v7796
        %v7828 = vadd.f32 %v7827, %v7797
        %v7829 = vadd.f32 %v7828, %v7798
        %v7830 = vadd.f32 %v7829, %v7799
        %v7831 = vadd.f32 %v7830, %v7800
        %v7832 = vadd.f32 %v7831, %v7801
        %v7833 = vadd.f32 %v7832, %v7802
        %v7834 = vadd.f32 %v7833, %v7803
        %v7835 = vadd.f32 %v7834, %v7804
        %v7836 = vadd.f32 %v7835, %v7805
        %v7837 = vadd.f32 %v7836, %v7806
        %7838 = vadd.xlane.f32.xlu0 %v7837
        %v7839 = vpop.xlane.xlu0 %7838
        %v7840 = vmul.f32 %v7839, %v7774
        %v7841 = vadd.f32 %v4343, 0.055
        %v7842 = vadd.f32 %v4344, 0.055
        %v7843 = vadd.f32 %v4345, 0.055
        %v7844 = vadd.f32 %v4346, 0.055
        %v7845 = vadd.f32 %v4347, 0.055
        %v7846 = vadd.f32 %v4348, 0.055
        %v7847 = vadd.f32 %v4349, 0.055
        %v7848 = vadd.f32 %v4350, 0.055
        %v7849 = vadd.f32 %v4351, 0.055
        %v7850 = vadd.f32 %v4352, 0.055
        %v7851 = vadd.f32 %v4353, 0.055
        %v7852 = vadd.f32 %v4354, 0.055
        %v7853 = vadd.f32 %v4355, 0.055
        %v7854 = vadd.f32 %v4356, 0.055
        %v7855 = vadd.f32 %v4357, 0.055
        %v7856 = vadd.f32 %v4358, 0.055
        %v7857 = vadd.f32 %v4359, 0.055
        %v7858 = vadd.f32 %v4360, 0.055
        %v7859 = vadd.f32 %v4361, 0.055
        %v7860 = vadd.f32 %v4362, 0.055
        %v7861 = vadd.f32 %v4363, 0.055
        %v7862 = vadd.f32 %v4364, 0.055
        %v7863 = vadd.f32 %v4365, 0.055
        %v7864 = vadd.f32 %v4366, 0.055
        %v7865 = vadd.f32 %v4367, 0.055
        %v7866 = vadd.f32 %v4368, 0.055
        %v7867 = vadd.f32 %v4369, 0.055
        %v7868 = vadd.f32 %v4370, 0.055
        %v7869 = vadd.f32 %v4371, 0.055
        %v7870 = vadd.f32 %v4372, 0.055
        %v7871 = vadd.f32 %v4373, 0.055
        %v7872 = vadd.f32 %v4374, 0.055
        %v7873 = vmul.f32 %v7841, %v6313
        %v7874 = vmul.f32 %v7842, %v6313
        %v7875 = vmul.f32 %v7843, %v6313
        %v7876 = vmul.f32 %v7844, %v6313
        %v7877 = vmul.f32 %v7845, %v6313
        %v7878 = vmul.f32 %v7846, %v6313
        %v7879 = vmul.f32 %v7847, %v6313
        %v7880 = vmul.f32 %v7848, %v6313
        %v7881 = vmul.f32 %v7849, %v6313
        %v7882 = vmul.f32 %v7850, %v6313
        %v7883 = vmul.f32 %v7851, %v6313
        %v7884 = vmul.f32 %v7852, %v6313
        %v7885 = vmul.f32 %v7853, %v6313
        %v7886 = vmul.f32 %v7854, %v6313
        %v7887 = vmul.f32 %v7855, %v6313
        %v7888 = vmul.f32 %v7856, %v6313
        %v7889 = vmul.f32 %v7857, %v6313
        %v7890 = vmul.f32 %v7858, %v6313
        %v7891 = vmul.f32 %v7859, %v6313
        %v7892 = vmul.f32 %v7860, %v6313
        %v7893 = vmul.f32 %v7861, %v6313
        %v7894 = vmul.f32 %v7862, %v6313
        %v7895 = vmul.f32 %v7863, %v6313
        %v7896 = vmul.f32 %v7864, %v6313
        %v7897 = vmul.f32 %v7865, %v6313
        %v7898 = vmul.f32 %v7866, %v6313
        %v7899 = vmul.f32 %v7867, %v6313
        %v7900 = vmul.f32 %v7868, %v6313
        %v7901 = vmul.f32 %v7869, %v6313
        %v7902 = vmul.f32 %v7870, %v6313
        %v7903 = vmul.f32 %v7871, %v6313
        %v7904 = vmul.f32 %v7872, %v6313
        %v7905 = vmax.f32 %v7873, 1e-12
        %v7906 = vmax.f32 %v7874, 1e-12
        %v7907 = vmax.f32 %v7875, 1e-12
        %v7908 = vmax.f32 %v7876, 1e-12
        %v7909 = vmax.f32 %v7877, 1e-12
        %v7910 = vmax.f32 %v7878, 1e-12
        %v7911 = vmax.f32 %v7879, 1e-12
        %v7912 = vmax.f32 %v7880, 1e-12
        %v7913 = vmax.f32 %v7881, 1e-12
        %v7914 = vmax.f32 %v7882, 1e-12
        %v7915 = vmax.f32 %v7883, 1e-12
        %v7916 = vmax.f32 %v7884, 1e-12
        %v7917 = vmax.f32 %v7885, 1e-12
        %v7918 = vmax.f32 %v7886, 1e-12
        %v7919 = vmax.f32 %v7887, 1e-12
        %v7920 = vmax.f32 %v7888, 1e-12
        %v7921 = vmax.f32 %v7889, 1e-12
        %v7922 = vmax.f32 %v7890, 1e-12
        %v7923 = vmax.f32 %v7891, 1e-12
        %v7924 = vmax.f32 %v7892, 1e-12
        %v7925 = vmax.f32 %v7893, 1e-12
        %v7926 = vmax.f32 %v7894, 1e-12
        %v7927 = vmax.f32 %v7895, 1e-12
        %v7928 = vmax.f32 %v7896, 1e-12
        %v7929 = vmax.f32 %v7897, 1e-12
        %v7930 = vmax.f32 %v7898, 1e-12
        %v7931 = vmax.f32 %v7899, 1e-12
        %v7932 = vmax.f32 %v7900, 1e-12
        %v7933 = vmax.f32 %v7901, 1e-12
        %v7934 = vmax.f32 %v7902, 1e-12
        %v7935 = vmax.f32 %v7903, 1e-12
        %v7936 = vmax.f32 %v7904, 1e-12
        %v7937 = vlog2.pop %v7905
        %v7938 = vmul.f32 %v7937, 0.6931472
        %v7939 = vlog2.pop %v7906
        %v7940 = vmul.f32 %v7939, 0.6931472
        %v7941 = vlog2.pop %v7907
        %v7942 = vmul.f32 %v7941, 0.6931472
        %v7943 = vlog2.pop %v7908
        %v7944 = vmul.f32 %v7943, 0.6931472
        %v7945 = vlog2.pop %v7909
        %v7946 = vmul.f32 %v7945, 0.6931472
        %v7947 = vlog2.pop %v7910
        %v7948 = vmul.f32 %v7947, 0.6931472
        %v7949 = vlog2.pop %v7911
        %v7950 = vmul.f32 %v7949, 0.6931472
        %v7951 = vlog2.pop %v7912
        %v7952 = vmul.f32 %v7951, 0.6931472
        %v7953 = vlog2.pop %v7913
        %v7954 = vmul.f32 %v7953, 0.6931472
        %v7955 = vlog2.pop %v7914
        %v7956 = vmul.f32 %v7955, 0.6931472
        %v7957 = vlog2.pop %v7915
        %v7958 = vmul.f32 %v7957, 0.6931472
        %v7959 = vlog2.pop %v7916
        %v7960 = vmul.f32 %v7959, 0.6931472
        %v7961 = vlog2.pop %v7917
        %v7962 = vmul.f32 %v7961, 0.6931472
        %v7963 = vlog2.pop %v7918
        %v7964 = vmul.f32 %v7963, 0.6931472
        %v7965 = vlog2.pop %v7919
        %v7966 = vmul.f32 %v7965, 0.6931472
        %v7967 = vlog2.pop %v7920
        %v7968 = vmul.f32 %v7967, 0.6931472
        %v7969 = vlog2.pop %v7921
        %v7970 = vmul.f32 %v7969, 0.6931472
        %v7971 = vlog2.pop %v7922
        %v7972 = vmul.f32 %v7971, 0.6931472
        %v7973 = vlog2.pop %v7923
        %v7974 = vmul.f32 %v7973, 0.6931472
        %v7975 = vlog2.pop %v7924
        %v7976 = vmul.f32 %v7975, 0.6931472
        %v7977 = vlog2.pop %v7925
        %v7978 = vmul.f32 %v7977, 0.6931472
        %v7979 = vlog2.pop %v7926
        %v7980 = vmul.f32 %v7979, 0.6931472
        %v7981 = vlog2.pop %v7927
        %v7982 = vmul.f32 %v7981, 0.6931472
        %v7983 = vlog2.pop %v7928
        %v7984 = vmul.f32 %v7983, 0.6931472
        %v7985 = vlog2.pop %v7929
        %v7986 = vmul.f32 %v7985, 0.6931472
        %v7987 = vlog2.pop %v7930
        %v7988 = vmul.f32 %v7987, 0.6931472
        %v7989 = vlog2.pop %v7931
        %v7990 = vmul.f32 %v7989, 0.6931472
        %v7991 = vlog2.pop %v7932
        %v7992 = vmul.f32 %v7991, 0.6931472
        %v7993 = vlog2.pop %v7933
        %v7994 = vmul.f32 %v7993, 0.6931472
        %v7995 = vlog2.pop %v7934
        %v7996 = vmul.f32 %v7995, 0.6931472
        %v7997 = vlog2.pop %v7935
        %v7998 = vmul.f32 %v7997, 0.6931472
        %v7999 = vlog2.pop %v7936
        %v8000 = vmul.f32 %v7999, 0.6931472
        %v8001 = vmul.f32 %v7938, 2.4
        %v8002 = vmul.f32 %v7940, 2.4
        %v8003 = vmul.f32 %v7942, 2.4
        %v8004 = vmul.f32 %v7944, 2.4
        %v8005 = vmul.f32 %v7946, 2.4
        %v8006 = vmul.f32 %v7948, 2.4
        %v8007 = vmul.f32 %v7950, 2.4
        %v8008 = vmul.f32 %v7952, 2.4
        %v8009 = vmul.f32 %v7954, 2.4
        %v8010 = vmul.f32 %v7956, 2.4
        %v8011 = vmul.f32 %v7958, 2.4
        %v8012 = vmul.f32 %v7960, 2.4
        %v8013 = vmul.f32 %v7962, 2.4
        %v8014 = vmul.f32 %v7964, 2.4
        %v8015 = vmul.f32 %v7966, 2.4
        %v8016 = vmul.f32 %v7968, 2.4
        %v8017 = vmul.f32 %v7970, 2.4
        %v8018 = vmul.f32 %v7972, 2.4
        %v8019 = vmul.f32 %v7974, 2.4
        %v8020 = vmul.f32 %v7976, 2.4
        %v8021 = vmul.f32 %v7978, 2.4
        %v8022 = vmul.f32 %v7980, 2.4
        %v8023 = vmul.f32 %v7982, 2.4
        %v8024 = vmul.f32 %v7984, 2.4
        %v8025 = vmul.f32 %v7986, 2.4
        %v8026 = vmul.f32 %v7988, 2.4
        %v8027 = vmul.f32 %v7990, 2.4
        %v8028 = vmul.f32 %v7992, 2.4
        %v8029 = vmul.f32 %v7994, 2.4
        %v8030 = vmul.f32 %v7996, 2.4
        %v8031 = vmul.f32 %v7998, 2.4
        %v8032 = vmul.f32 %v8000, 2.4
        %v8033 = vmul.f32 %v8001, 1.442695
        %v8034 = vpow.pop %v8033
        %v8035 = vmul.f32 %v8002, 1.442695
        %v8036 = vpow.pop %v8035
        %v8037 = vmul.f32 %v8003, 1.442695
        %v8038 = vpow.pop %v8037
        %v8039 = vmul.f32 %v8004, 1.442695
        %v8040 = vpow.pop %v8039
        %v8041 = vmul.f32 %v8005, 1.442695
        %v8042 = vpow.pop %v8041
        %v8043 = vmul.f32 %v8006, 1.442695
        %v8044 = vpow.pop %v8043
        %v8045 = vmul.f32 %v8007, 1.442695
        %v8046 = vpow.pop %v8045
        %v8047 = vmul.f32 %v8008, 1.442695
        %v8048 = vpow.pop %v8047
        %v8049 = vmul.f32 %v8009, 1.442695
        %v8050 = vpow.pop %v8049
        %v8051 = vmul.f32 %v8010, 1.442695
        %v8052 = vpow.pop %v8051
        %v8053 = vmul.f32 %v8011, 1.442695
        %v8054 = vpow.pop %v8053
        %v8055 = vmul.f32 %v8012, 1.442695
        %v8056 = vpow.pop %v8055
        %v8057 = vmul.f32 %v8013, 1.442695
        %v8058 = vpow.pop %v8057
        %v8059 = vmul.f32 %v8014, 1.442695
        %v8060 = vpow.pop %v8059
        %v8061 = vmul.f32 %v8015, 1.442695
        %v8062 = vpow.pop %v8061
        %v8063 = vmul.f32 %v8016, 1.442695
        %v8064 = vpow.pop %v8063
        %v8065 = vmul.f32 %v8017, 1.442695
        %v8066 = vpow.pop %v8065
        %v8067 = vmul.f32 %v8018, 1.442695
        %v8068 = vpow.pop %v8067
        %v8069 = vmul.f32 %v8019, 1.442695
        %v8070 = vpow.pop %v8069
        %v8071 = vmul.f32 %v8020, 1.442695
        %v8072 = vpow.pop %v8071
        %v8073 = vmul.f32 %v8021, 1.442695
        %v8074 = vpow.pop %v8073
        %v8075 = vmul.f32 %v8022, 1.442695
        %v8076 = vpow.pop %v8075
        %v8077 = vmul.f32 %v8023, 1.442695
        %v8078 = vpow.pop %v8077
        %v8079 = vmul.f32 %v8024, 1.442695
        %v8080 = vpow.pop %v8079
        %v8081 = vmul.f32 %v8025, 1.442695
        %v8082 = vpow.pop %v8081
        %v8083 = vmul.f32 %v8026, 1.442695
        %v8084 = vpow.pop %v8083
        %v8085 = vmul.f32 %v8027, 1.442695
        %v8086 = vpow.pop %v8085
        %v8087 = vmul.f32 %v8028, 1.442695
        %v8088 = vpow.pop %v8087
        %v8089 = vmul.f32 %v8029, 1.442695
        %v8090 = vpow.pop %v8089
        %v8091 = vmul.f32 %v8030, 1.442695
        %v8092 = vpow.pop %v8091
        %v8093 = vmul.f32 %v8031, 1.442695
        %v8094 = vpow.pop %v8093
        %v8095 = vmul.f32 %v8032, 1.442695
        %v8096 = vpow.pop %v8095
        %vm8097 = vcmp.le.f32.partialorder %v4343, 0.04045
        %vm8098 = vcmp.le.f32.partialorder %v4344, 0.04045
        %vm8099 = vcmp.le.f32.partialorder %v4345, 0.04045
        %vm8100 = vcmp.le.f32.partialorder %v4346, 0.04045
        %vm8101 = vcmp.le.f32.partialorder %v4347, 0.04045
        %vm8102 = vcmp.le.f32.partialorder %v4348, 0.04045
        %vm8103 = vcmp.le.f32.partialorder %v4349, 0.04045
        %vm8104 = vcmp.le.f32.partialorder %v4350, 0.04045
        %vm8105 = vcmp.le.f32.partialorder %v4351, 0.04045
        %vm8106 = vcmp.le.f32.partialorder %v4352, 0.04045
        %vm8107 = vcmp.le.f32.partialorder %v4353, 0.04045
        %vm8108 = vcmp.le.f32.partialorder %v4354, 0.04045
        %vm8109 = vcmp.le.f32.partialorder %v4355, 0.04045
        %vm8110 = vcmp.le.f32.partialorder %v4356, 0.04045
        %vm8111 = vcmp.le.f32.partialorder %v4357, 0.04045
        %vm8112 = vcmp.le.f32.partialorder %v4358, 0.04045
        %vm8113 = vcmp.le.f32.partialorder %v4359, 0.04045
        %vm8114 = vcmp.le.f32.partialorder %v4360, 0.04045
        %vm8115 = vcmp.le.f32.partialorder %v4361, 0.04045
        %vm8116 = vcmp.le.f32.partialorder %v4362, 0.04045
        %vm8117 = vcmp.le.f32.partialorder %v4363, 0.04045
        %vm8118 = vcmp.le.f32.partialorder %v4364, 0.04045
        %vm8119 = vcmp.le.f32.partialorder %v4365, 0.04045
        %vm8120 = vcmp.le.f32.partialorder %v4366, 0.04045
        %vm8121 = vcmp.le.f32.partialorder %v4367, 0.04045
        %vm8122 = vcmp.le.f32.partialorder %v4368, 0.04045
        %vm8123 = vcmp.le.f32.partialorder %v4369, 0.04045
        %vm8124 = vcmp.le.f32.partialorder %v4370, 0.04045
        %vm8125 = vcmp.le.f32.partialorder %v4371, 0.04045
        %vm8126 = vcmp.le.f32.partialorder %v4372, 0.04045
        %vm8127 = vcmp.le.f32.partialorder %v4373, 0.04045
        %vm8128 = vcmp.le.f32.partialorder %v4374, 0.04045
        %v8129 = vmul.f32 %v4343, %v6570
        %v8130 = vmul.f32 %v4344, %v6570
        %v8131 = vmul.f32 %v4345, %v6570
        %v8132 = vmul.f32 %v4346, %v6570
        %v8133 = vmul.f32 %v4347, %v6570
        %v8134 = vmul.f32 %v4348, %v6570
        %v8135 = vmul.f32 %v4349, %v6570
        %v8136 = vmul.f32 %v4350, %v6570
        %v8137 = vmul.f32 %v4351, %v6570
        %v8138 = vmul.f32 %v4352, %v6570
        %v8139 = vmul.f32 %v4353, %v6570
        %v8140 = vmul.f32 %v4354, %v6570
        %v8141 = vmul.f32 %v4355, %v6570
        %v8142 = vmul.f32 %v4356, %v6570
        %v8143 = vmul.f32 %v4357, %v6570
        %v8144 = vmul.f32 %v4358, %v6570
        %v8145 = vmul.f32 %v4359, %v6570
        %v8146 = vmul.f32 %v4360, %v6570
        %v8147 = vmul.f32 %v4361, %v6570
        %v8148 = vmul.f32 %v4362, %v6570
        %v8149 = vmul.f32 %v4363, %v6570
        %v8150 = vmul.f32 %v4364, %v6570
        %v8151 = vmul.f32 %v4365, %v6570
        %v8152 = vmul.f32 %v4366, %v6570
        %v8153 = vmul.f32 %v4367, %v6570
        %v8154 = vmul.f32 %v4368, %v6570
        %v8155 = vmul.f32 %v4369, %v6570
        %v8156 = vmul.f32 %v4370, %v6570
        %v8157 = vmul.f32 %v4371, %v6570
        %v8158 = vmul.f32 %v4372, %v6570
        %v8159 = vmul.f32 %v4373, %v6570
        %v8160 = vmul.f32 %v4374, %v6570
        %v8161 = vsel %vm8097, %v8129, %v8034
        %v8162 = vsel %vm8098, %v8130, %v8036
        %v8163 = vsel %vm8099, %v8131, %v8038
        %v8164 = vsel %vm8100, %v8132, %v8040
        %v8165 = vsel %vm8101, %v8133, %v8042
        %v8166 = vsel %vm8102, %v8134, %v8044
        %v8167 = vsel %vm8103, %v8135, %v8046
        %v8168 = vsel %vm8104, %v8136, %v8048
        %v8169 = vsel %vm8105, %v8137, %v8050
        %v8170 = vsel %vm8106, %v8138, %v8052
        %v8171 = vsel %vm8107, %v8139, %v8054
        %v8172 = vsel %vm8108, %v8140, %v8056
        %v8173 = vsel %vm8109, %v8141, %v8058
        %v8174 = vsel %vm8110, %v8142, %v8060
        %v8175 = vsel %vm8111, %v8143, %v8062
        %v8176 = vsel %vm8112, %v8144, %v8064
        %v8177 = vsel %vm8113, %v8145, %v8066
        %v8178 = vsel %vm8114, %v8146, %v8068
        %v8179 = vsel %vm8115, %v8147, %v8070
        %v8180 = vsel %vm8116, %v8148, %v8072
        %v8181 = vsel %vm8117, %v8149, %v8074
        %v8182 = vsel %vm8118, %v8150, %v8076
        %v8183 = vsel %vm8119, %v8151, %v8078
        %v8184 = vsel %vm8120, %v8152, %v8080
        %v8185 = vsel %vm8121, %v8153, %v8082
        %v8186 = vsel %vm8122, %v8154, %v8084
        %v8187 = vsel %vm8123, %v8155, %v8086
        %v8188 = vsel %vm8124, %v8156, %v8088
        %v8189 = vsel %vm8125, %v8157, %v8090
        %v8190 = vsel %vm8126, %v8158, %v8092
        %v8191 = vsel %vm8127, %v8159, %v8094
        %v8192 = vsel %vm8128, %v8160, %v8096
        %v8193 = vmul.f32 %v8161, %v7708
        %v8194 = vmul.f32 %v8162, %v7709
        %v8195 = vmul.f32 %v8163, %v7710
        %v8196 = vmul.f32 %v8164, %v7711
        %v8197 = vmul.f32 %v8165, %v7712
        %v8198 = vmul.f32 %v8166, %v7713
        %v8199 = vmul.f32 %v8167, %v7714
        %v8200 = vmul.f32 %v8168, %v7715
        %v8201 = vmul.f32 %v8169, %v7716
        %v8202 = vmul.f32 %v8170, %v7717
        %v8203 = vmul.f32 %v8171, %v7718
        %v8204 = vmul.f32 %v8172, %v7719
        %v8205 = vmul.f32 %v8173, %v7720
        %v8206 = vmul.f32 %v8174, %v7721
        %v8207 = vmul.f32 %v8175, %v7722
        %v8208 = vmul.f32 %v8176, %v7723
        %v8209 = vmul.f32 %v8177, %v7724
        %v8210 = vmul.f32 %v8178, %v7725
        %v8211 = vmul.f32 %v8179, %v7726
        %v8212 = vmul.f32 %v8180, %v7727
        %v8213 = vmul.f32 %v8181, %v7728
        %v8214 = vmul.f32 %v8182, %v7729
        %v8215 = vmul.f32 %v8183, %v7730
        %v8216 = vmul.f32 %v8184, %v7731
        %v8217 = vmul.f32 %v8185, %v7732
        %v8218 = vmul.f32 %v8186, %v7733
        %v8219 = vmul.f32 %v8187, %v7734
        %v8220 = vmul.f32 %v8188, %v7735
        %v8221 = vmul.f32 %v8189, %v7736
        %v8222 = vmul.f32 %v8190, %v7737
        %v8223 = vmul.f32 %v8191, %v7738
        %v8224 = vmul.f32 %v8192, %v7739
        %v8225 = vadd.f32 %v8193, %v8194
        %v8226 = vadd.f32 %v8225, %v8195
        %v8227 = vadd.f32 %v8226, %v8196
        %v8228 = vadd.f32 %v8227, %v8197
        %v8229 = vadd.f32 %v8228, %v8198
        %v8230 = vadd.f32 %v8229, %v8199
        %v8231 = vadd.f32 %v8230, %v8200
        %v8232 = vadd.f32 %v8231, %v8201
        %v8233 = vadd.f32 %v8232, %v8202
        %v8234 = vadd.f32 %v8233, %v8203
        %v8235 = vadd.f32 %v8234, %v8204
        %v8236 = vadd.f32 %v8235, %v8205
        %v8237 = vadd.f32 %v8236, %v8206
        %v8238 = vadd.f32 %v8237, %v8207
        %v8239 = vadd.f32 %v8238, %v8208
        %v8240 = vadd.f32 %v8239, %v8209
        %v8241 = vadd.f32 %v8240, %v8210
        %v8242 = vadd.f32 %v8241, %v8211
        %v8243 = vadd.f32 %v8242, %v8212
        %v8244 = vadd.f32 %v8243, %v8213
        %v8245 = vadd.f32 %v8244, %v8214
        %v8246 = vadd.f32 %v8245, %v8215
        %v8247 = vadd.f32 %v8246, %v8216
        %v8248 = vadd.f32 %v8247, %v8217
        %v8249 = vadd.f32 %v8248, %v8218
        %v8250 = vadd.f32 %v8249, %v8219
        %v8251 = vadd.f32 %v8250, %v8220
        %v8252 = vadd.f32 %v8251, %v8221
        %v8253 = vadd.f32 %v8252, %v8222
        %v8254 = vadd.f32 %v8253, %v8223
        %v8255 = vadd.f32 %v8254, %v8224
        %8256 = vadd.xlane.f32.xlu0 %v8255
        %v8257 = vpop.xlane.xlu0 %8256
        %v8258 = vmul.f32 %v8257, %v7774
        %v8259 = vadd.f32 %v8258, 1e-06
        %v8260 = vrcp.pop %v8259
        %v8261 = vmul.f32 %v7840, %v8260
        %v8262 = vmul.f32 %v8261, %v2142
        %v8263 = vsub.f32 1.0, %v7708
        %v8264 = vsub.f32 1.0, %v7709
        %v8265 = vsub.f32 1.0, %v7710
        %v8266 = vsub.f32 1.0, %v7711
        %v8267 = vsub.f32 1.0, %v7712
        %v8268 = vsub.f32 1.0, %v7713
        %v8269 = vsub.f32 1.0, %v7714
        %v8270 = vsub.f32 1.0, %v7715
        %v8271 = vsub.f32 1.0, %v7716
        %v8272 = vsub.f32 1.0, %v7717
        %v8273 = vsub.f32 1.0, %v7718
        %v8274 = vsub.f32 1.0, %v7719
        %v8275 = vsub.f32 1.0, %v7720
        %v8276 = vsub.f32 1.0, %v7721
        %v8277 = vsub.f32 1.0, %v7722
        %v8278 = vsub.f32 1.0, %v7723
        %v8279 = vsub.f32 1.0, %v7724
        %v8280 = vsub.f32 1.0, %v7725
        %v8281 = vsub.f32 1.0, %v7726
        %v8282 = vsub.f32 1.0, %v7727
        %v8283 = vsub.f32 1.0, %v7728
        %v8284 = vsub.f32 1.0, %v7729
        %v8285 = vsub.f32 1.0, %v7730
        %v8286 = vsub.f32 1.0, %v7731
        %v8287 = vsub.f32 1.0, %v7732
        %v8288 = vsub.f32 1.0, %v7733
        %v8289 = vsub.f32 1.0, %v7734
        %v8290 = vsub.f32 1.0, %v7735
        %v8291 = vsub.f32 1.0, %v7736
        %v8292 = vsub.f32 1.0, %v7737
        %v8293 = vsub.f32 1.0, %v7738
        %v8294 = vsub.f32 1.0, %v7739
        %v8295 = vmul.f32 %v8263, %v2009
        %v8296 = vmul.f32 %v8264, %v2010
        %v8297 = vmul.f32 %v8265, %v2011
        %v8298 = vmul.f32 %v8266, %v2012
        %v8299 = vmul.f32 %v8267, %v2013
        %v8300 = vmul.f32 %v8268, %v2014
        %v8301 = vmul.f32 %v8269, %v2015
        %v8302 = vmul.f32 %v8270, %v2016
        %v8303 = vmul.f32 %v8271, %v2017
        %v8304 = vmul.f32 %v8272, %v2018
        %v8305 = vmul.f32 %v8273, %v2019
        %v8306 = vmul.f32 %v8274, %v2020
        %v8307 = vmul.f32 %v8275, %v2021
        %v8308 = vmul.f32 %v8276, %v2022
        %v8309 = vmul.f32 %v8277, %v2023
        %v8310 = vmul.f32 %v8278, %v2024
        %v8311 = vmul.f32 %v8279, %v2025
        %v8312 = vmul.f32 %v8280, %v2026
        %v8313 = vmul.f32 %v8281, %v2027
        %v8314 = vmul.f32 %v8282, %v2028
        %v8315 = vmul.f32 %v8283, %v2029
        %v8316 = vmul.f32 %v8284, %v2030
        %v8317 = vmul.f32 %v8285, %v2031
        %v8318 = vmul.f32 %v8286, %v2032
        %v8319 = vmul.f32 %v8287, %v2033
        %v8320 = vmul.f32 %v8288, %v2034
        %v8321 = vmul.f32 %v8289, %v2035
        %v8322 = vmul.f32 %v8290, %v2036
        %v8323 = vmul.f32 %v8291, %v2037
        %v8324 = vmul.f32 %v8292, %v2038
        %v8325 = vmul.f32 %v8293, %v2039
        %v8326 = vmul.f32 %v8294, %v2040
        %v8327 = vmul.f32 %v8193, %v8262
        %v8328 = vmul.f32 %v8194, %v8262
        %v8329 = vmul.f32 %v8195, %v8262
        %v8330 = vmul.f32 %v8196, %v8262
        %v8331 = vmul.f32 %v8197, %v8262
        %v8332 = vmul.f32 %v8198, %v8262
        %v8333 = vmul.f32 %v8199, %v8262
        %v8334 = vmul.f32 %v8200, %v8262
        %v8335 = vmul.f32 %v8201, %v8262
        %v8336 = vmul.f32 %v8202, %v8262
        %v8337 = vmul.f32 %v8203, %v8262
        %v8338 = vmul.f32 %v8204, %v8262
        %v8339 = vmul.f32 %v8205, %v8262
        %v8340 = vmul.f32 %v8206, %v8262
        %v8341 = vmul.f32 %v8207, %v8262
        %v8342 = vmul.f32 %v8208, %v8262
        %v8343 = vmul.f32 %v8209, %v8262
        %v8344 = vmul.f32 %v8210, %v8262
        %v8345 = vmul.f32 %v8211, %v8262
        %v8346 = vmul.f32 %v8212, %v8262
        %v8347 = vmul.f32 %v8213, %v8262
        %v8348 = vmul.f32 %v8214, %v8262
        %v8349 = vmul.f32 %v8215, %v8262
        %v8350 = vmul.f32 %v8216, %v8262
        %v8351 = vmul.f32 %v8217, %v8262
        %v8352 = vmul.f32 %v8218, %v8262
        %v8353 = vmul.f32 %v8219, %v8262
        %v8354 = vmul.f32 %v8220, %v8262
        %v8355 = vmul.f32 %v8221, %v8262
        %v8356 = vmul.f32 %v8222, %v8262
        %v8357 = vmul.f32 %v8223, %v8262
        %v8358 = vmul.f32 %v8224, %v8262
        %v8359 = vadd.f32 %v8295, %v8327
        %v8360 = vadd.f32 %v8296, %v8328
        %v8361 = vadd.f32 %v8297, %v8329
        %v8362 = vadd.f32 %v8298, %v8330
        %v8363 = vadd.f32 %v8299, %v8331
        %v8364 = vadd.f32 %v8300, %v8332
        %v8365 = vadd.f32 %v8301, %v8333
        %v8366 = vadd.f32 %v8302, %v8334
        %v8367 = vadd.f32 %v8303, %v8335
        %v8368 = vadd.f32 %v8304, %v8336
        %v8369 = vadd.f32 %v8305, %v8337
        %v8370 = vadd.f32 %v8306, %v8338
        %v8371 = vadd.f32 %v8307, %v8339
        %v8372 = vadd.f32 %v8308, %v8340
        %v8373 = vadd.f32 %v8309, %v8341
        %v8374 = vadd.f32 %v8310, %v8342
        %v8375 = vadd.f32 %v8311, %v8343
        %v8376 = vadd.f32 %v8312, %v8344
        %v8377 = vadd.f32 %v8313, %v8345
        %v8378 = vadd.f32 %v8314, %v8346
        %v8379 = vadd.f32 %v8315, %v8347
        %v8380 = vadd.f32 %v8316, %v8348
        %v8381 = vadd.f32 %v8317, %v8349
        %v8382 = vadd.f32 %v8318, %v8350
        %v8383 = vadd.f32 %v8319, %v8351
        %v8384 = vadd.f32 %v8320, %v8352
        %v8385 = vadd.f32 %v8321, %v8353
        %v8386 = vadd.f32 %v8322, %v8354
        %v8387 = vadd.f32 %v8323, %v8355
        %v8388 = vadd.f32 %v8324, %v8356
        %v8389 = vadd.f32 %v8325, %v8357
        %v8390 = vadd.f32 %v8326, %v8358
        %8391 = vst [vmem:[%s427 + $0x200] sm:$0xff] %v2009
        %8392 = vst [vmem:[%s427 + $0x208] sm:$0xff] %v2010
        %8393 = vst [vmem:[%s427 + $0x210] sm:$0xff] %v2011
        %8394 = vst [vmem:[%s427 + $0x218] sm:$0xff] %v2012
        %8395 = vst [vmem:[%s427 + $0x220] sm:$0xff] %v2013
        %8396 = vst [vmem:[%s427 + $0x228] sm:$0xff] %v2014
        %8397 = vst [vmem:[%s427 + $0x230] sm:$0xff] %v2015
        %8398 = vst [vmem:[%s427 + $0x238] sm:$0xff] %v2016
        %8399 = vst [vmem:[%s427 + $0x240] sm:$0xff] %v2017
        %8400 = vst [vmem:[%s427 + $0x248] sm:$0xff] %v2018
        %8401 = vst [vmem:[%s427 + $0x250] sm:$0xff] %v2019
        %8402 = vst [vmem:[%s427 + $0x258] sm:$0xff] %v2020
        %8403 = vst [vmem:[%s427 + $0x260] sm:$0xff] %v2021
        %8404 = vst [vmem:[%s427 + $0x268] sm:$0xff] %v2022
        %8405 = vst [vmem:[%s427 + $0x270] sm:$0xff] %v2023
        %8406 = vst [vmem:[%s427 + $0x278] sm:$0xff] %v2024
        %8407 = vst [vmem:[%s427 + $0x280] sm:$0xff] %v2025
        %8408 = vst [vmem:[%s427 + $0x288] sm:$0xff] %v2026
        %8409 = vst [vmem:[%s427 + $0x290] sm:$0xff] %v2027
        %8410 = vst [vmem:[%s427 + $0x298] sm:$0xff] %v2028
        %8411 = vst [vmem:[%s427 + $0x2a0] sm:$0xff] %v2029
        %8412 = vst [vmem:[%s427 + $0x2a8] sm:$0xff] %v2030
        %8413 = vst [vmem:[%s427 + $0x2b0] sm:$0xff] %v2031
        %8414 = vst [vmem:[%s427 + $0x2b8] sm:$0xff] %v2032
        %8415 = vst [vmem:[%s427 + $0x2c0] sm:$0xff] %v2033
        %8416 = vst [vmem:[%s427 + $0x2c8] sm:$0xff] %v2034
        %8417 = vst [vmem:[%s427 + $0x2d0] sm:$0xff] %v2035
        %8418 = vst [vmem:[%s427 + $0x2d8] sm:$0xff] %v2036
        %8419 = vst [vmem:[%s427 + $0x2e0] sm:$0xff] %v2037
        %8420 = vst [vmem:[%s427 + $0x2e8] sm:$0xff] %v2038
        %8421 = vst [vmem:[%s427 + $0x2f0] sm:$0xff] %v2039
        %8422 = vst [vmem:[%s427 + $0x2f8] sm:$0xff] %v2040
        %8423 = vst [vmem:[%s434 + $0x200] sm:$0xff] %v4343
        %8424 = vst [vmem:[%s434 + $0x208] sm:$0xff] %v4344
        %8425 = vst [vmem:[%s434 + $0x210] sm:$0xff] %v4345
        %8426 = vst [vmem:[%s434 + $0x218] sm:$0xff] %v4346
        %8427 = vst [vmem:[%s434 + $0x220] sm:$0xff] %v4347
        %8428 = vst [vmem:[%s434 + $0x228] sm:$0xff] %v4348
        %8429 = vst [vmem:[%s434 + $0x230] sm:$0xff] %v4349
        %8430 = vst [vmem:[%s434 + $0x238] sm:$0xff] %v4350
        %8431 = vst [vmem:[%s434 + $0x240] sm:$0xff] %v4351
        %8432 = vst [vmem:[%s434 + $0x248] sm:$0xff] %v4352
        %8433 = vst [vmem:[%s434 + $0x250] sm:$0xff] %v4353
        %8434 = vst [vmem:[%s434 + $0x258] sm:$0xff] %v4354
        %8435 = vst [vmem:[%s434 + $0x260] sm:$0xff] %v4355
        %8436 = vst [vmem:[%s434 + $0x268] sm:$0xff] %v4356
        %8437 = vst [vmem:[%s434 + $0x270] sm:$0xff] %v4357
        %8438 = vst [vmem:[%s434 + $0x278] sm:$0xff] %v4358
        %8439 = vst [vmem:[%s434 + $0x280] sm:$0xff] %v4359
        %8440 = vst [vmem:[%s434 + $0x288] sm:$0xff] %v4360
        %8441 = vst [vmem:[%s434 + $0x290] sm:$0xff] %v4361
        %8442 = vst [vmem:[%s434 + $0x298] sm:$0xff] %v4362
        %8443 = vst [vmem:[%s434 + $0x2a0] sm:$0xff] %v4363
        %8444 = vst [vmem:[%s434 + $0x2a8] sm:$0xff] %v4364
        %8445 = vst [vmem:[%s434 + $0x2b0] sm:$0xff] %v4365
        %8446 = vst [vmem:[%s434 + $0x2b8] sm:$0xff] %v4366
        %8447 = vst [vmem:[%s434 + $0x2c0] sm:$0xff] %v4367
        %8448 = vst [vmem:[%s434 + $0x2c8] sm:$0xff] %v4368
        %8449 = vst [vmem:[%s434 + $0x2d0] sm:$0xff] %v4369
        %8450 = vst [vmem:[%s434 + $0x2d8] sm:$0xff] %v4370
        %8451 = vst [vmem:[%s434 + $0x2e0] sm:$0xff] %v4371
        %8452 = vst [vmem:[%s434 + $0x2e8] sm:$0xff] %v4372
        %8453 = vst [vmem:[%s434 + $0x2f0] sm:$0xff] %v4373
        %8454 = vst [vmem:[%s434 + $0x2f8] sm:$0xff] %v4374
        %8455 = vst [vmem:[%s441 + $0x200] sm:$0xff] %v8359
        %8456 = vst [vmem:[%s441 + $0x208] sm:$0xff] %v8360
        %8457 = vst [vmem:[%s441 + $0x210] sm:$0xff] %v8361
        %8458 = vst [vmem:[%s441 + $0x218] sm:$0xff] %v8362
        %8459 = vst [vmem:[%s441 + $0x220] sm:$0xff] %v8363
        %8460 = vst [vmem:[%s441 + $0x228] sm:$0xff] %v8364
        %8461 = vst [vmem:[%s441 + $0x230] sm:$0xff] %v8365
        %8462 = vst [vmem:[%s441 + $0x238] sm:$0xff] %v8366
        %8463 = vst [vmem:[%s441 + $0x240] sm:$0xff] %v8367
        %8464 = vst [vmem:[%s441 + $0x248] sm:$0xff] %v8368
        %8465 = vst [vmem:[%s441 + $0x250] sm:$0xff] %v8369
        %8466 = vst [vmem:[%s441 + $0x258] sm:$0xff] %v8370
        %8467 = vst [vmem:[%s441 + $0x260] sm:$0xff] %v8371
        %8468 = vst [vmem:[%s441 + $0x268] sm:$0xff] %v8372
        %8469 = vst [vmem:[%s441 + $0x270] sm:$0xff] %v8373
        %8470 = vst [vmem:[%s441 + $0x278] sm:$0xff] %v8374
        %8471 = vst [vmem:[%s441 + $0x280] sm:$0xff] %v8375
        %8472 = vst [vmem:[%s441 + $0x288] sm:$0xff] %v8376
        %8473 = vst [vmem:[%s441 + $0x290] sm:$0xff] %v8377
        %8474 = vst [vmem:[%s441 + $0x298] sm:$0xff] %v8378
        %8475 = vst [vmem:[%s441 + $0x2a0] sm:$0xff] %v8379
        %8476 = vst [vmem:[%s441 + $0x2a8] sm:$0xff] %v8380
        %8477 = vst [vmem:[%s441 + $0x2b0] sm:$0xff] %v8381
        %8478 = vst [vmem:[%s441 + $0x2b8] sm:$0xff] %v8382
        %8479 = vst [vmem:[%s441 + $0x2c0] sm:$0xff] %v8383
        %8480 = vst [vmem:[%s441 + $0x2c8] sm:$0xff] %v8384
        %8481 = vst [vmem:[%s441 + $0x2d0] sm:$0xff] %v8385
        %8482 = vst [vmem:[%s441 + $0x2d8] sm:$0xff] %v8386
        %8483 = vst [vmem:[%s441 + $0x2e0] sm:$0xff] %v8387
        %8484 = vst [vmem:[%s441 + $0x2e8] sm:$0xff] %v8388
        %8485 = vst [vmem:[%s441 + $0x2f0] sm:$0xff] %v8389
        %8486 = vst [vmem:[%s441 + $0x2f8] sm:$0xff] %v8390
        %s8487 = sand.u32 %s194, 1
        %s8488 = scalar_lea.sflag [#allocation4], %s8487
        %s8489 = sand.u32 %s194, 1
        %s8490 = smul.addr %s8489, 768
        %s8491 = scalar_lea.vmem [#allocation15], %s8490
        %s8492 = sand.u32 %s34, 1
        %s8493 = scalar_lea.sflag [#allocation17], %s8492
        %s8494 = sand.u32 %s220, 1
        %s8495 = smul.addr %s8494, 768
        %s8496 = scalar_lea.vmem [#allocation16], %s8495
        %s8497 = sand.u32 %s34, 1
        %s8498 = scalar_lea.sflag [#allocation17], %s8497
        %s8499 = sand.u32 %s246, 1
        %s8500 = smul.addr %s8499, 768
        %s8501 = scalar_lea.vmem [#allocation18], %s8500
        // Predicated region
        $region77: #{tpu_custom_call.1} parent=47 // pred_check
          %p8502 = pneg %p204
        $region78: #{tpu_custom_call.1} parent=47 // pred_check_branch
          %8504 = sbr.rel (%p8502) target = $region80
        $region79: #{tpu_custom_call.1} parent=47 // pred_region
          %s8506 = ssub.s32 12288, 12288
          %8507 = vsyncadd %s8488, %s8506
          %s8508 = smul.addr %s34, 96
          %s8509 = smul.addr %s8508, 128
          %s8510 = scalar_lea.hbm %s7, %s8509
          %s8512 = sshll.u32 %s8491, 4
          %s8513 = int_to_ptr.vmem [resolvable:$true] %s8512
          %8515 = dma.vmem_to_hbm [thread:$0]  %s8513, 12288, %s8510, %s8488
        $region80: #{tpu_custom_call.1} parent=47 // pred_fallthru
          _
        // Predicated region
        $region81: #{tpu_custom_call.1} parent=47 // pred_check
          %p8516 = pneg %p230
        $region82: #{tpu_custom_call.1} parent=47 // pred_check_branch
          %8518 = sbr.rel (%p8516) target = $region84
        $region83: #{tpu_custom_call.1} parent=47 // pred_region
          %s8520 = ssub.s32 12288, 12288
          %8521 = vsyncadd %s8493, %s8520
          %s8522 = smul.addr %s34, 96
          %s8523 = smul.addr %s8522, 128
          %s8524 = scalar_lea.hbm %s8, %s8523
          %s8526 = sshll.u32 %s8496, 4
          %s8527 = int_to_ptr.vmem [resolvable:$true] %s8526
          %8529 = dma.vmem_to_hbm [thread:$0]  %s8527, 12288, %s8524, %s8493
        $region84: #{tpu_custom_call.1} parent=47 // pred_fallthru
          _
        // Predicated region
        $region85: #{tpu_custom_call.1} parent=47 // pred_check
          %p8530 = pneg %p256
        $region86: #{tpu_custom_call.1} parent=47 // pred_check_branch
          %8532 = sbr.rel (%p8530) target = $region88
        $region87: #{tpu_custom_call.1} parent=47 // pred_region
          %s8534 = ssub.s32 12288, 12288
          %8535 = vsyncadd %s8498, %s8534
          %s8536 = smul.addr %s34, 96
          %s8537 = smul.addr %s8536, 128
          %s8538 = scalar_lea.hbm %s9, %s8537
          %s8540 = sshll.u32 %s8501, 4
          %s8541 = int_to_ptr.vmem [resolvable:$true] %s8540
          %8543 = dma.vmem_to_hbm [thread:$0]  %s8541, 12288, %s8538, %s8498
        $region88: #{tpu_custom_call.1} parent=47 // pred_fallthru
          _
      $region48: #{tpu_custom_call.1} parent=5 // pred_fallthru
        _
      %p8544 = scmp.le.s32.totalorder 2, %s29
      // Predicated region
      $region89: #{tpu_custom_call.1} parent=5 // pred_check
        %p8545 = pneg %p8544
      $region90: #{tpu_custom_call.1} parent=5 // pred_check_branch
        %8547 = sbr.rel (%p8545) target = $region92
      $region91: #{tpu_custom_call.1} parent=5 // pred_region
        %s8548 = ssub.s32 %s29, 2
        // Predicated region
        $region93: #{tpu_custom_call.1} parent=91 // pred_check
          %p8549 = pneg %p210
        $region94: #{tpu_custom_call.1} parent=91 // pred_check_branch
          %8551 = sbr.rel (%p8549) target = $region96
        $region95: #{tpu_custom_call.1} parent=91 // pred_region
          %s8552 = sand.u32 %s195, 1
          %s8553 = scalar_lea.sflag [#allocation4], %s8552
          %s8554 = sand.u32 %s195, 1
          %s8555 = smul.addr %s8554, 768
          %s8556 = scalar_lea.vmem [#allocation15], %s8555
          %8557 = dma.done %s8553, 12288
        $region96: #{tpu_custom_call.1} parent=91 // pred_fallthru
          _
        // Predicated region
        $region97: #{tpu_custom_call.1} parent=91 // pred_check
          %p8558 = pneg %p236
        $region98: #{tpu_custom_call.1} parent=91 // pred_check_branch
          %8560 = sbr.rel (%p8558) target = $region100
        $region99: #{tpu_custom_call.1} parent=91 // pred_region
          %s8561 = sand.u32 %s35, 1
          %s8562 = scalar_lea.sflag [#allocation17], %s8561
          %s8563 = sand.u32 %s221, 1
          %s8564 = smul.addr %s8563, 768
          %s8565 = scalar_lea.vmem [#allocation16], %s8564
          %8566 = dma.done %s8562, 12288
        $region100: #{tpu_custom_call.1} parent=91 // pred_fallthru
          _
        // Predicated region
        $region101: #{tpu_custom_call.1} parent=91 // pred_check
          %p8567 = pneg %p262
        $region102: #{tpu_custom_call.1} parent=91 // pred_check_branch
          %8569 = sbr.rel (%p8567) target = $region104
        $region103: #{tpu_custom_call.1} parent=91 // pred_region
          %s8570 = sand.u32 %s35, 1
          %s8571 = scalar_lea.sflag [#allocation17], %s8570
          %s8572 = sand.u32 %s247, 1
          %s8573 = smul.addr %s8572, 768
          %s8574 = scalar_lea.vmem [#allocation18], %s8573
          %8575 = dma.done %s8571, 12288
        $region104: #{tpu_custom_call.1} parent=91 // pred_fallthru
          _
      $region92: #{tpu_custom_call.1} parent=5 // pred_fallthru
        _
    $region6: #{tpu_custom_call.1} parent=1 // loop_footer
      %s33 = sadd.s32 1, %s29
    $region7: #{tpu_custom_call.1} parent=1 // loop_footer_branch
      %28 = sbr.rel target = $region3
    $region8: #{tpu_custom_call.1} parent=1 // loop_exit
      _
    %8576 = vsyncpa [#allocation3], 1
    %s8577 = scalar_lea.sflag [#allocation3], 1
    %8578 = vsyncpa %s8577, 1
    %8579 = vsyncpa [#allocation13], 1
    %8580 = vsyncpa [#allocation4], 1
    %s8581 = scalar_lea.sflag [#allocation4], 1
    %8582 = vsyncpa %s8581, 1
    %8583 = vsyncpa [#allocation17], 1
    %s8584 = scalar_lea.sflag [#allocation17], 1
    %8585 = vsyncpa %s8584, 1
    %8586 = vsyncpa [#allocation5], 1
    %s8587 = scalar_lea.sflag [#allocation5], 1
    %8588 = vsyncpa %s8587, 1
    %8589 = vsyncpa [#allocation6], 1
    %s8590 = scalar_lea.sflag [#allocation6], 1
    %8591 = vsyncpa %s8590, 1
    %8592 = vsyncpa [#allocation10], 1

</llo_original>
